<compile_context>
chip_gen: v6e
topology: v6e:2x2x1
jax: 0.10.0
libtpu: 0.0.40
codegen_flags: <defaults>
</compile_context>

<pallas_src>
import functools

import jax
import jax.numpy as jnp
from jax.experimental import pallas as pl
from jax.experimental.pallas import tpu as pltpu

BN_EPS = 1e-5
LRELU_SLOPE = 0.01
_PRECISION = jax.lax.Precision.HIGHEST

_VMEM_SPEC = pl.BlockSpec(memory_space=pltpu.MemorySpace.VMEM)


# --------------------------- fused forward kernel ---------------------------

def _bn_lrelu(pre, gamma, beta):
    """Train-mode BatchNorm1d (batch stats, biased var) + leaky_relu."""
    mean = jnp.mean(pre, axis=0, keepdims=True)
    var = jnp.mean(pre * pre, axis=0, keepdims=True) - mean * mean  # one pass
    hn = (pre - mean) * jax.lax.rsqrt(var + BN_EPS) * gamma + beta
    return jnp.where(hn > 0, hn, LRELU_SLOPE * hn)


def _make_fused_kernel(enc_has_down, dec_has_down):
    """Build the whole-network kernel for a static block structure.

    Input refs (in order): x, eps,
      per ResBlock with downsample : Wcat^T (in, 2*out), db, gamma, beta
      per ResBlock identity        : W^T   (in, out),        gamma, beta
      fused fc21|fc22              : W^T (hidden, 2*z), b (1, 2*z)
      fc4                          : W^T, b
    Output refs: recon (B, input_dim), mu_logvar (B, 2*z_dim).
    """

    def kernel(*refs):
        *in_refs, recon_ref, muvar_ref = refs
        it = iter(in_refs)
        x = next(it)[...]
        eps = next(it)[...]

        def run_block(h, has_down):
            if has_down:
                wcat_t = next(it)[...]
                db = next(it)[...]
                gamma = next(it)[...]
                beta = next(it)[...]
                out_dim = gamma.shape[1]
                # One fused dot: [BN path | downsample residual path].
                hh = jnp.dot(h, wcat_t, preferred_element_type=jnp.float32,
                             precision=_PRECISION)
                pre = hh[:, :out_dim]
                res = hh[:, out_dim:] + db
            else:
                w_t = next(it)[...]
                gamma = next(it)[...]
                beta = next(it)[...]
                pre = jnp.dot(h, w_t, preferred_element_type=jnp.float32,
                              precision=_PRECISION)
                res = h
            # fc bias dropped: BN's mean subtraction cancels it exactly.
            return _bn_lrelu(pre, gamma, beta) + res

        # ------------------------------ encode ------------------------------
        h = x
        for has_down in enc_has_down:
            h = run_block(h, has_down)
        w2x_t = next(it)[...]          # (hidden, 2*z_dim): fc21 | fc22 fused
        b2x = next(it)[...]
        mu_logvar = jnp.dot(h, w2x_t, preferred_element_type=jnp.float32,
                            precision=_PRECISION) + b2x
        z_dim = eps.shape[1]
        mu = mu_logvar[:, :z_dim]
        logvar = mu_logvar[:, z_dim:]

        # -------------------------- reparameterize ---------------------------
        z = mu + eps * jnp.exp(0.5 * logvar)

        # ------------------------------ decode ------------------------------
        h = z
        for has_down in dec_has_down:
            h = run_block(h, has_down)
        w4_t = next(it)[...]
        b4 = next(it)[...]
        recon = jnp.dot(h, w4_t, preferred_element_type=jnp.float32,
                        precision=_PRECISION) + b4

        recon_ref[...] = recon
        muvar_ref[...] = mu_logvar

    return kernel


@functools.partial(jax.jit, static_argnames=("enc_has_down", "dec_has_down"))
def _fused_forward(flat_params, x, eps, *, enc_has_down, dec_has_down):
    B, input_dim = x.shape
    z_dim = eps.shape[1]
    kernel = _make_fused_kernel(enc_has_down, dec_has_down)
    n_in = 2 + len(flat_params)
    recon, mu_logvar = pl.pallas_call(
        kernel,
        out_shape=(
            jax.ShapeDtypeStruct((B, input_dim), jnp.float32),
            jax.ShapeDtypeStruct((B, 2 * z_dim), jnp.float32),
        ),
        in_specs=[_VMEM_SPEC] * n_in,
        out_specs=(_VMEM_SPEC, _VMEM_SPEC),
        # 48 MiB: ample headroom for large single-shot batches on v5e/v6e while
        # staying well inside v7x's 64 MiB physical VMEM.
        compiler_params=pltpu.CompilerParams(vmem_limit_bytes=48 * 1024 * 1024),
    )(x, eps, *flat_params)
    mu = mu_logvar[:, :z_dim]
    logvar = mu_logvar[:, z_dim:]
    return recon, mu, logvar


def vae_forward(prepared, x, eps):
    """Mirrors ContinuousResidualVAE.forward: returns (recon_x, mu, logvar)."""
    flat, enc_has_down, dec_has_down = prepared
    return _fused_forward(flat, x, eps,
                          enc_has_down=enc_has_down, dec_has_down=dec_has_down)


# --------------------------- parameter preparation ---------------------------

def _prep_block(blk, flat, has_down_list):
    has = blk["dw"] is not None
    has_down_list.append(has)
    w_t = jnp.asarray(blk["w"], jnp.float32).T               # (in, out)
    gamma = jnp.asarray(blk["gamma"], jnp.float32).reshape(1, -1)
    beta = jnp.asarray(blk["beta"], jnp.float32).reshape(1, -1)
    if has:
        dw_t = jnp.asarray(blk["dw"], jnp.float32).T          # (in, out)
        wcat_t = jnp.concatenate([w_t, dw_t], axis=1)          # (in, 2*out)
        db = jnp.asarray(blk["db"], jnp.float32).reshape(1, -1)
        flat += [wcat_t, db, gamma, beta]
    else:
        flat += [w_t, gamma, beta]
    # NOTE: fc bias blk["b"] intentionally omitted — cancelled by BN mean sub.


def prepare_params(params):
    """One-time hoist of transposes, reshapes and matmul fusions."""
    flat = []
    enc_has_down, dec_has_down = [], []
    for blk in params["enc"]:
        _prep_block(blk, flat, enc_has_down)

    # Fuse fc21 | fc22 into one weight / one bias.
    (w21, b21), (w22, b22) = params["fc21"], params["fc22"]
    w2x_t = jnp.concatenate([jnp.asarray(w21, jnp.float32).T,
                             jnp.asarray(w22, jnp.float32).T], axis=1)
    b2x = jnp.concatenate([jnp.asarray(b21, jnp.float32),
                           jnp.asarray(b22, jnp.float32)]).reshape(1, -1)
    flat += [w2x_t, b2x]

    for blk in params["dec"]:
        _prep_block(blk, flat, dec_has_down)

    w4, b4 = params["fc4"]
    flat += [jnp.asarray(w4, jnp.float32).T,
             jnp.asarray(b4, jnp.float32).reshape(1, -1)]
    return flat, tuple(enc_has_down), tuple(dec_has_down)


# ------------------------------ parameter init -------------------------------

def _kaiming_normal(key, out_dim, in_dim):
    # kaiming_normal_(nonlinearity='leaky_relu', a=0) -> gain=sqrt(2), fan_in
    std = (2.0 / in_dim) ** 0.5
    return std * jax.random.normal(key, (out_dim, in_dim), jnp.float32)


def _xavier_normal(key, out_dim, in_dim):
    std = (2.0 / (in_dim + out_dim)) ** 0.5
    return std * jax.random.normal(key, (out_dim, in_dim), jnp.float32)


def _linear_bias(key, out_dim, in_dim):
    # PyTorch Linear default bias init: U(-1/sqrt(fan_in), 1/sqrt(fan_in))
    bound = 1.0 / (in_dim ** 0.5)
    return jax.random.uniform(key, (out_dim,), jnp.float32, -bound, bound)


def init_resblock_params(key, in_dim, out_dim):
    k1, k2, k3, k4 = jax.random.split(key, 4)
    p = {
        "w": _kaiming_normal(k1, out_dim, in_dim),
        "b": _linear_bias(k2, out_dim, in_dim),
        "gamma": jnp.ones((out_dim,), jnp.float32),
        "beta": jnp.zeros((out_dim,), jnp.float32),
        "dw": None,
        "db": None,
    }
    if in_dim != out_dim:
        p["dw"] = _kaiming_normal(k3, out_dim, in_dim)
        p["db"] = _linear_bias(k4, out_dim, in_dim)
    return p


def init_vae_params(key, input_dim, hidden_dim_layer0, encoder_layer_dims,
                    decoder_layer_dims, hidden_dim_layer_out_Z, z_dim):
    keys = jax.random.split(key, 16)
    ki = iter(keys)
    enc = [
        init_resblock_params(next(ki), encoder_layer_dims[i],
                             encoder_layer_dims[i + 1])
        for i in range(len(encoder_layer_dims) - 1)
    ]
    dec = [
        init_resblock_params(next(ki), decoder_layer_dims[i],
                             decoder_layer_dims[i + 1])
        for i in range(len(decoder_layer_dims) - 1)
    ]
    fc21 = (_xavier_normal(next(ki), z_dim, hidden_dim_layer_out_Z),
            _linear_bias(next(ki), z_dim, hidden_dim_layer_out_Z))
    fc22 = (_xavier_normal(next(ki), z_dim, hidden_dim_layer_out_Z),
            _linear_bias(next(ki), z_dim, hidden_dim_layer_out_Z))
    fc4 = (_xavier_normal(next(ki), input_dim, hidden_dim_layer0),
           _linear_bias(next(ki), input_dim, hidden_dim_layer0))
    return {"enc": enc, "dec": dec, "fc21": fc21, "fc22": fc22, "fc4": fc4}


# ------------------------- pure-JAX reference (check) ------------------------
# Kept in the ORIGINAL (unfused, fc-bias-included, two-pass-variance) form so
# the algebraic kernel optimizations are validated against module semantics.

def _ref_resblock(x, blk):
    h = x @ blk["w"].T + blk["b"]
    mean = h.mean(0, keepdims=True)
    var = ((h - mean) ** 2).mean(0, keepdims=True)
    h = (h - mean) * jax.lax.rsqrt(var + BN_EPS) * blk["gamma"] + blk["beta"]
    out = jnp.where(h > 0, h, LRELU_SLOPE * h)
    res = x @ blk["dw"].T + blk["db"] if blk["dw"] is not None else x
    return out + res


def reference_forward(params, x, eps):
    h = x
    for blk in params["enc"]:
        h = _ref_resblock(h, blk)
    mu = h @ params["fc21"][0].T + params["fc21"][1]
    logvar = h @ params["fc22"][0].T + params["fc22"][1]
    z = mu + eps * jnp.exp(0.5 * logvar)
    h = z
    for blk in params["dec"]:
        h = _ref_resblock(h, blk)
    recon = h @ params["fc4"][0].T + params["fc4"][1]
    return recon, mu, logvar


# ------------------------------------ main ------------------------------------

if __name__ == "__main__":
    # Small, self-consistent hyperparameters (dims from the module's intent);
    # batch is the MXU M / sublane axis, so it is the only dim worth growing.
    input_dim = 16
    hidden_dim_layer0 = 32          # Decoder's last ResBlock output dim
    hidden_dim_layer_out_Z = 24     # Encoder's last ResBlock output dim
    z_dim = 8
    encoder_layer_dims = [input_dim, 32, hidden_dim_layer_out_Z]
    decoder_layer_dims = [z_dim, 16, hidden_dim_layer0]
    batch = 128                     # multiple of 8 (f32 sublanes); scale freely

    root = jax.random.PRNGKey(0)
    k_param, k_x, k_eps = jax.random.split(root, 3)

    params = init_vae_params(k_param, input_dim, hidden_dim_layer0,
                             encoder_layer_dims, decoder_layer_dims,
                             hidden_dim_layer_out_Z, z_dim)
    prepared = prepare_params(params)   # transposes / fusions hoisted, done once

    x = jax.random.normal(k_x, (batch, input_dim), jnp.float32)
    # TODO(synk): torch.randn_like noise for the reparameterization trick is
    # generated deterministically here with jax.random and passed into the
    # fused kernel (no in-kernel RNG needed for forward parity).
    eps = jax.random.normal(k_eps, (batch, z_dim), jnp.float32)

    recon, mu, logvar = vae_forward(prepared, x, eps)
    jax.block_until_ready((recon, mu, logvar))

    assert recon.shape == (batch, input_dim)
    assert mu.shape == (batch, z_dim)
    assert logvar.shape == (batch, z_dim)
    assert recon.dtype == jnp.float32

    # Numerical check against the plain-XLA reference of the ORIGINAL math
    # (unfused matmuls, fc biases present, two-pass variance).
    r_recon, r_mu, r_logvar = reference_forward(params, x, eps)
    for got, want, name in ((recon, r_recon, "recon"),
                            (mu, r_mu, "mu"),
                            (logvar, r_logvar, "logvar")):
        scale = 1.0 + float(jnp.max(jnp.abs(want)))
        err = float(jnp.max(jnp.abs(got - want)))
        assert err < 1e-2 * scale, f"{name} mismatch: max abs err {err} (scale {scale})"

    print("KERNEL_OK")
</pallas_src>

<mosaic_0001>
module attributes {stable_mosaic.version = 11 : i64} {
  func.func @kernel(%arg0: memref<128x16xf32, #tpu.memory_space<vmem>>, %arg1: memref<128x8xf32, #tpu.memory_space<vmem>>, %arg2: memref<16x64xf32, #tpu.memory_space<vmem>>, %arg3: memref<1x32xf32, #tpu.memory_space<vmem>>, %arg4: memref<1x32xf32, #tpu.memory_space<vmem>>, %arg5: memref<1x32xf32, #tpu.memory_space<vmem>>, %arg6: memref<32x48xf32, #tpu.memory_space<vmem>>, %arg7: memref<1x24xf32, #tpu.memory_space<vmem>>, %arg8: memref<1x24xf32, #tpu.memory_space<vmem>>, %arg9: memref<1x24xf32, #tpu.memory_space<vmem>>, %arg10: memref<24x16xf32, #tpu.memory_space<vmem>>, %arg11: memref<1x16xf32, #tpu.memory_space<vmem>>, %arg12: memref<8x32xf32, #tpu.memory_space<vmem>>, %arg13: memref<1x16xf32, #tpu.memory_space<vmem>>, %arg14: memref<1x16xf32, #tpu.memory_space<vmem>>, %arg15: memref<1x16xf32, #tpu.memory_space<vmem>>, %arg16: memref<16x64xf32, #tpu.memory_space<vmem>>, %arg17: memref<1x32xf32, #tpu.memory_space<vmem>>, %arg18: memref<1x32xf32, #tpu.memory_space<vmem>>, %arg19: memref<1x32xf32, #tpu.memory_space<vmem>>, %arg20: memref<32x16xf32, #tpu.memory_space<vmem>>, %arg21: memref<1x16xf32, #tpu.memory_space<vmem>>, %arg22: memref<128x16xf32, #tpu.memory_space<vmem>>, %arg23: memref<128x16xf32, #tpu.memory_space<vmem>>) attributes {dimension_semantics = [], scalar_prefetch = 0 : i64, scratch_operands = 0 : i64, tpu.core_type = #tpu.core_type<tc>} {
    %c0 = arith.constant 0 : index
    %c0_0 = arith.constant 0 : index
    %0 = vector.load %arg0[%c0, %c0_0] : memref<128x16xf32, #tpu.memory_space<vmem>>, vector<128x16xf32>
    %c0_1 = arith.constant 0 : index
    %c0_2 = arith.constant 0 : index
    %1 = vector.load %arg1[%c0_1, %c0_2] : memref<128x8xf32, #tpu.memory_space<vmem>>, vector<128x8xf32>
    %c0_3 = arith.constant 0 : index
    %c0_4 = arith.constant 0 : index
    %2 = vector.load %arg2[%c0_3, %c0_4] : memref<16x64xf32, #tpu.memory_space<vmem>>, vector<16x64xf32>
    %c0_5 = arith.constant 0 : index
    %c0_6 = arith.constant 0 : index
    %3 = vector.load %arg3[%c0_5, %c0_6] : memref<1x32xf32, #tpu.memory_space<vmem>>, vector<1x32xf32>
    %c0_7 = arith.constant 0 : index
    %c0_8 = arith.constant 0 : index
    %4 = vector.load %arg4[%c0_7, %c0_8] : memref<1x32xf32, #tpu.memory_space<vmem>>, vector<1x32xf32>
    %c0_9 = arith.constant 0 : index
    %c0_10 = arith.constant 0 : index
    %5 = vector.load %arg5[%c0_9, %c0_10] : memref<1x32xf32, #tpu.memory_space<vmem>>, vector<1x32xf32>
    %cst = arith.constant dense<0.000000e+00> : vector<128x64xf32>
    %6 = tpu.matmul %0, %2, %cst {dimension_numbers = #tpu.dot_dimension_numbers<[1], [0], [0], [1], [0, 0, 1, 1], [], []>, precision = #tpu.contract_precision<fp32>} : vector<128x16xf32>, vector<16x64xf32>, vector<128x64xf32> -> vector<128x64xf32>
    %7 = vector.extract_strided_slice %6 {offsets = [0, 0], sizes = [128, 32], strides = [1, 1]} : vector<128x64xf32> to vector<128x32xf32>
    %8 = vector.extract_strided_slice %6 {offsets = [0, 32], sizes = [128, 32], strides = [1, 1]} : vector<128x64xf32> to vector<128x32xf32>
    %9 = vector.broadcast %3 : vector<1x32xf32> to vector<128x32xf32>
    %10 = arith.addf %8, %9 : vector<128x32xf32>
    %cst_11 = arith.constant dense<0.000000e+00> : vector<32xf32>
    %11 = vector.multi_reduction <add>, %7, %cst_11 [0] : vector<128x32xf32> to vector<32xf32>
    %12 = vector.shape_cast %11 : vector<32xf32> to vector<1x32xf32>
    %cst_12 = arith.constant 1.280000e+02 : f32
    %13 = vector.broadcast %cst_12 : f32 to vector<1x32xf32>
    %14 = arith.divf %12, %13 : vector<1x32xf32>
    %15 = arith.mulf %7, %7 : vector<128x32xf32>
    %cst_13 = arith.constant dense<0.000000e+00> : vector<32xf32>
    %16 = vector.multi_reduction <add>, %15, %cst_13 [0] : vector<128x32xf32> to vector<32xf32>
    %17 = vector.shape_cast %16 : vector<32xf32> to vector<1x32xf32>
    %cst_14 = arith.constant 1.280000e+02 : f32
    %18 = vector.broadcast %cst_14 : f32 to vector<1x32xf32>
    %19 = arith.divf %17, %18 : vector<1x32xf32>
    %20 = arith.mulf %14, %14 : vector<1x32xf32>
    %21 = arith.subf %19, %20 : vector<1x32xf32>
    %22 = vector.broadcast %14 : vector<1x32xf32> to vector<128x32xf32>
    %23 = arith.subf %7, %22 : vector<128x32xf32>
    %cst_15 = arith.constant 9.99999974E-6 : f32
    %24 = vector.broadcast %cst_15 : f32 to vector<1x32xf32>
    %25 = arith.addf %21, %24 : vector<1x32xf32>
    %26 = math.rsqrt %25 : vector<1x32xf32>
    %27 = vector.broadcast %26 : vector<1x32xf32> to vector<128x32xf32>
    %28 = arith.mulf %23, %27 : vector<128x32xf32>
    %29 = vector.broadcast %4 : vector<1x32xf32> to vector<128x32xf32>
    %30 = arith.mulf %28, %29 : vector<128x32xf32>
    %31 = vector.broadcast %5 : vector<1x32xf32> to vector<128x32xf32>
    %32 = arith.addf %30, %31 : vector<128x32xf32>
    %cst_16 = arith.constant 0.000000e+00 : f32
    %33 = vector.broadcast %cst_16 : f32 to vector<128x32xf32>
    %34 = arith.cmpf ogt, %32, %33 : vector<128x32xf32>
    %cst_17 = arith.constant 0.00999999977 : f32
    %35 = vector.broadcast %cst_17 : f32 to vector<128x32xf32>
    %36 = arith.mulf %35, %32 : vector<128x32xf32>
    %37 = arith.select %34, %32, %36 : vector<128x32xi1>, vector<128x32xf32>
    %38 = arith.addf %37, %10 : vector<128x32xf32>
    %c0_18 = arith.constant 0 : index
    %c0_19 = arith.constant 0 : index
    %39 = vector.load %arg6[%c0_18, %c0_19] : memref<32x48xf32, #tpu.memory_space<vmem>>, vector<32x48xf32>
    %c0_20 = arith.constant 0 : index
    %c0_21 = arith.constant 0 : index
    %40 = vector.load %arg7[%c0_20, %c0_21] : memref<1x24xf32, #tpu.memory_space<vmem>>, vector<1x24xf32>
    %c0_22 = arith.constant 0 : index
    %c0_23 = arith.constant 0 : index
    %41 = vector.load %arg8[%c0_22, %c0_23] : memref<1x24xf32, #tpu.memory_space<vmem>>, vector<1x24xf32>
    %c0_24 = arith.constant 0 : index
    %c0_25 = arith.constant 0 : index
    %42 = vector.load %arg9[%c0_24, %c0_25] : memref<1x24xf32, #tpu.memory_space<vmem>>, vector<1x24xf32>
    %cst_26 = arith.constant dense<0.000000e+00> : vector<128x48xf32>
    %43 = tpu.matmul %38, %39, %cst_26 {dimension_numbers = #tpu.dot_dimension_numbers<[1], [0], [0], [1], [0, 0, 1, 1], [], []>, precision = #tpu.contract_precision<fp32>} : vector<128x32xf32>, vector<32x48xf32>, vector<128x48xf32> -> vector<128x48xf32>
    %44 = vector.extract_strided_slice %43 {offsets = [0, 0], sizes = [128, 24], strides = [1, 1]} : vector<128x48xf32> to vector<128x24xf32>
    %45 = vector.extract_strided_slice %43 {offsets = [0, 24], sizes = [128, 24], strides = [1, 1]} : vector<128x48xf32> to vector<128x24xf32>
    %46 = vector.broadcast %40 : vector<1x24xf32> to vector<128x24xf32>
    %47 = arith.addf %45, %46 : vector<128x24xf32>
    %cst_27 = arith.constant dense<0.000000e+00> : vector<24xf32>
    %48 = vector.multi_reduction <add>, %44, %cst_27 [0] : vector<128x24xf32> to vector<24xf32>
    %49 = vector.shape_cast %48 : vector<24xf32> to vector<1x24xf32>
    %cst_28 = arith.constant 1.280000e+02 : f32
    %50 = vector.broadcast %cst_28 : f32 to vector<1x24xf32>
    %51 = arith.divf %49, %50 : vector<1x24xf32>
    %52 = arith.mulf %44, %44 : vector<128x24xf32>
    %cst_29 = arith.constant dense<0.000000e+00> : vector<24xf32>
    %53 = vector.multi_reduction <add>, %52, %cst_29 [0] : vector<128x24xf32> to vector<24xf32>
    %54 = vector.shape_cast %53 : vector<24xf32> to vector<1x24xf32>
    %cst_30 = arith.constant 1.280000e+02 : f32
    %55 = vector.broadcast %cst_30 : f32 to vector<1x24xf32>
    %56 = arith.divf %54, %55 : vector<1x24xf32>
    %57 = arith.mulf %51, %51 : vector<1x24xf32>
    %58 = arith.subf %56, %57 : vector<1x24xf32>
    %59 = vector.broadcast %51 : vector<1x24xf32> to vector<128x24xf32>
    %60 = arith.subf %44, %59 : vector<128x24xf32>
    %cst_31 = arith.constant 9.99999974E-6 : f32
    %61 = vector.broadcast %cst_31 : f32 to vector<1x24xf32>
    %62 = arith.addf %58, %61 : vector<1x24xf32>
    %63 = math.rsqrt %62 : vector<1x24xf32>
    %64 = vector.broadcast %63 : vector<1x24xf32> to vector<128x24xf32>
    %65 = arith.mulf %60, %64 : vector<128x24xf32>
    %66 = vector.broadcast %41 : vector<1x24xf32> to vector<128x24xf32>
    %67 = arith.mulf %65, %66 : vector<128x24xf32>
    %68 = vector.broadcast %42 : vector<1x24xf32> to vector<128x24xf32>
    %69 = arith.addf %67, %68 : vector<128x24xf32>
    %cst_32 = arith.constant 0.000000e+00 : f32
    %70 = vector.broadcast %cst_32 : f32 to vector<128x24xf32>
    %71 = arith.cmpf ogt, %69, %70 : vector<128x24xf32>
    %cst_33 = arith.constant 0.00999999977 : f32
    %72 = vector.broadcast %cst_33 : f32 to vector<128x24xf32>
    %73 = arith.mulf %72, %69 : vector<128x24xf32>
    %74 = arith.select %71, %69, %73 : vector<128x24xi1>, vector<128x24xf32>
    %75 = arith.addf %74, %47 : vector<128x24xf32>
    %c0_34 = arith.constant 0 : index
    %c0_35 = arith.constant 0 : index
    %76 = vector.load %arg10[%c0_34, %c0_35] : memref<24x16xf32, #tpu.memory_space<vmem>>, vector<24x16xf32>
    %c0_36 = arith.constant 0 : index
    %c0_37 = arith.constant 0 : index
    %77 = vector.load %arg11[%c0_36, %c0_37] : memref<1x16xf32, #tpu.memory_space<vmem>>, vector<1x16xf32>
    %cst_38 = arith.constant dense<0.000000e+00> : vector<128x16xf32>
    %78 = tpu.matmul %75, %76, %cst_38 {dimension_numbers = #tpu.dot_dimension_numbers<[1], [0], [0], [1], [0, 0, 1, 1], [], []>, precision = #tpu.contract_precision<fp32>} : vector<128x24xf32>, vector<24x16xf32>, vector<128x16xf32> -> vector<128x16xf32>
    %79 = vector.broadcast %77 : vector<1x16xf32> to vector<128x16xf32>
    %80 = arith.addf %78, %79 : vector<128x16xf32>
    %81 = vector.extract_strided_slice %80 {offsets = [0, 0], sizes = [128, 8], strides = [1, 1]} : vector<128x16xf32> to vector<128x8xf32>
    %82 = vector.extract_strided_slice %80 {offsets = [0, 8], sizes = [128, 8], strides = [1, 1]} : vector<128x16xf32> to vector<128x8xf32>
    %cst_39 = arith.constant 5.000000e-01 : f32
    %83 = vector.broadcast %cst_39 : f32 to vector<128x8xf32>
    %84 = arith.mulf %83, %82 : vector<128x8xf32>
    %85 = math.exp %84 : vector<128x8xf32>
    %86 = arith.mulf %1, %85 : vector<128x8xf32>
    %87 = arith.addf %81, %86 : vector<128x8xf32>
    %c0_40 = arith.constant 0 : index
    %c0_41 = arith.constant 0 : index
    %88 = vector.load %arg12[%c0_40, %c0_41] : memref<8x32xf32, #tpu.memory_space<vmem>>, vector<8x32xf32>
    %c0_42 = arith.constant 0 : index
    %c0_43 = arith.constant 0 : index
    %89 = vector.load %arg13[%c0_42, %c0_43] : memref<1x16xf32, #tpu.memory_space<vmem>>, vector<1x16xf32>
    %c0_44 = arith.constant 0 : index
    %c0_45 = arith.constant 0 : index
    %90 = vector.load %arg14[%c0_44, %c0_45] : memref<1x16xf32, #tpu.memory_space<vmem>>, vector<1x16xf32>
    %c0_46 = arith.constant 0 : index
    %c0_47 = arith.constant 0 : index
    %91 = vector.load %arg15[%c0_46, %c0_47] : memref<1x16xf32, #tpu.memory_space<vmem>>, vector<1x16xf32>
    %cst_48 = arith.constant dense<0.000000e+00> : vector<128x32xf32>
    %92 = tpu.matmul %87, %88, %cst_48 {dimension_numbers = #tpu.dot_dimension_numbers<[1], [0], [0], [1], [0, 0, 1, 1], [], []>, precision = #tpu.contract_precision<fp32>} : vector<128x8xf32>, vector<8x32xf32>, vector<128x32xf32> -> vector<128x32xf32>
    %93 = vector.extract_strided_slice %92 {offsets = [0, 0], sizes = [128, 16], strides = [1, 1]} : vector<128x32xf32> to vector<128x16xf32>
    %94 = vector.extract_strided_slice %92 {offsets = [0, 16], sizes = [128, 16], strides = [1, 1]} : vector<128x32xf32> to vector<128x16xf32>
    %95 = vector.broadcast %89 : vector<1x16xf32> to vector<128x16xf32>
    %96 = arith.addf %94, %95 : vector<128x16xf32>
    %cst_49 = arith.constant dense<0.000000e+00> : vector<16xf32>
    %97 = vector.multi_reduction <add>, %93, %cst_49 [0] : vector<128x16xf32> to vector<16xf32>
    %98 = vector.shape_cast %97 : vector<16xf32> to vector<1x16xf32>
    %cst_50 = arith.constant 1.280000e+02 : f32
    %99 = vector.broadcast %cst_50 : f32 to vector<1x16xf32>
    %100 = arith.divf %98, %99 : vector<1x16xf32>
    %101 = arith.mulf %93, %93 : vector<128x16xf32>
    %cst_51 = arith.constant dense<0.000000e+00> : vector<16xf32>
    %102 = vector.multi_reduction <add>, %101, %cst_51 [0] : vector<128x16xf32> to vector<16xf32>
    %103 = vector.shape_cast %102 : vector<16xf32> to vector<1x16xf32>
    %cst_52 = arith.constant 1.280000e+02 : f32
    %104 = vector.broadcast %cst_52 : f32 to vector<1x16xf32>
    %105 = arith.divf %103, %104 : vector<1x16xf32>
    %106 = arith.mulf %100, %100 : vector<1x16xf32>
    %107 = arith.subf %105, %106 : vector<1x16xf32>
    %108 = vector.broadcast %100 : vector<1x16xf32> to vector<128x16xf32>
    %109 = arith.subf %93, %108 : vector<128x16xf32>
    %cst_53 = arith.constant 9.99999974E-6 : f32
    %110 = vector.broadcast %cst_53 : f32 to vector<1x16xf32>
    %111 = arith.addf %107, %110 : vector<1x16xf32>
    %112 = math.rsqrt %111 : vector<1x16xf32>
    %113 = vector.broadcast %112 : vector<1x16xf32> to vector<128x16xf32>
    %114 = arith.mulf %109, %113 : vector<128x16xf32>
    %115 = vector.broadcast %90 : vector<1x16xf32> to vector<128x16xf32>
    %116 = arith.mulf %114, %115 : vector<128x16xf32>
    %117 = vector.broadcast %91 : vector<1x16xf32> to vector<128x16xf32>
    %118 = arith.addf %116, %117 : vector<128x16xf32>
    %cst_54 = arith.constant 0.000000e+00 : f32
    %119 = vector.broadcast %cst_54 : f32 to vector<128x16xf32>
    %120 = arith.cmpf ogt, %118, %119 : vector<128x16xf32>
    %cst_55 = arith.constant 0.00999999977 : f32
    %121 = vector.broadcast %cst_55 : f32 to vector<128x16xf32>
    %122 = arith.mulf %121, %118 : vector<128x16xf32>
    %123 = arith.select %120, %118, %122 : vector<128x16xi1>, vector<128x16xf32>
    %124 = arith.addf %123, %96 : vector<128x16xf32>
    %c0_56 = arith.constant 0 : index
    %c0_57 = arith.constant 0 : index
    %125 = vector.load %arg16[%c0_56, %c0_57] : memref<16x64xf32, #tpu.memory_space<vmem>>, vector<16x64xf32>
    %c0_58 = arith.constant 0 : index
    %c0_59 = arith.constant 0 : index
    %126 = vector.load %arg17[%c0_58, %c0_59] : memref<1x32xf32, #tpu.memory_space<vmem>>, vector<1x32xf32>
    %c0_60 = arith.constant 0 : index
    %c0_61 = arith.constant 0 : index
    %127 = vector.load %arg18[%c0_60, %c0_61] : memref<1x32xf32, #tpu.memory_space<vmem>>, vector<1x32xf32>
    %c0_62 = arith.constant 0 : index
    %c0_63 = arith.constant 0 : index
    %128 = vector.load %arg19[%c0_62, %c0_63] : memref<1x32xf32, #tpu.memory_space<vmem>>, vector<1x32xf32>
    %cst_64 = arith.constant dense<0.000000e+00> : vector<128x64xf32>
    %129 = tpu.matmul %124, %125, %cst_64 {dimension_numbers = #tpu.dot_dimension_numbers<[1], [0], [0], [1], [0, 0, 1, 1], [], []>, precision = #tpu.contract_precision<fp32>} : vector<128x16xf32>, vector<16x64xf32>, vector<128x64xf32> -> vector<128x64xf32>
    %130 = vector.extract_strided_slice %129 {offsets = [0, 0], sizes = [128, 32], strides = [1, 1]} : vector<128x64xf32> to vector<128x32xf32>
    %131 = vector.extract_strided_slice %129 {offsets = [0, 32], sizes = [128, 32], strides = [1, 1]} : vector<128x64xf32> to vector<128x32xf32>
    %132 = vector.broadcast %126 : vector<1x32xf32> to vector<128x32xf32>
    %133 = arith.addf %131, %132 : vector<128x32xf32>
    %cst_65 = arith.constant dense<0.000000e+00> : vector<32xf32>
    %134 = vector.multi_reduction <add>, %130, %cst_65 [0] : vector<128x32xf32> to vector<32xf32>
    %135 = vector.shape_cast %134 : vector<32xf32> to vector<1x32xf32>
    %cst_66 = arith.constant 1.280000e+02 : f32
    %136 = vector.broadcast %cst_66 : f32 to vector<1x32xf32>
    %137 = arith.divf %135, %136 : vector<1x32xf32>
    %138 = arith.mulf %130, %130 : vector<128x32xf32>
    %cst_67 = arith.constant dense<0.000000e+00> : vector<32xf32>
    %139 = vector.multi_reduction <add>, %138, %cst_67 [0] : vector<128x32xf32> to vector<32xf32>
    %140 = vector.shape_cast %139 : vector<32xf32> to vector<1x32xf32>
    %cst_68 = arith.constant 1.280000e+02 : f32
    %141 = vector.broadcast %cst_68 : f32 to vector<1x32xf32>
    %142 = arith.divf %140, %141 : vector<1x32xf32>
    %143 = arith.mulf %137, %137 : vector<1x32xf32>
    %144 = arith.subf %142, %143 : vector<1x32xf32>
    %145 = vector.broadcast %137 : vector<1x32xf32> to vector<128x32xf32>
    %146 = arith.subf %130, %145 : vector<128x32xf32>
    %cst_69 = arith.constant 9.99999974E-6 : f32
    %147 = vector.broadcast %cst_69 : f32 to vector<1x32xf32>
    %148 = arith.addf %144, %147 : vector<1x32xf32>
    %149 = math.rsqrt %148 : vector<1x32xf32>
    %150 = vector.broadcast %149 : vector<1x32xf32> to vector<128x32xf32>
    %151 = arith.mulf %146, %150 : vector<128x32xf32>
    %152 = vector.broadcast %127 : vector<1x32xf32> to vector<128x32xf32>
    %153 = arith.mulf %151, %152 : vector<128x32xf32>
    %154 = vector.broadcast %128 : vector<1x32xf32> to vector<128x32xf32>
    %155 = arith.addf %153, %154 : vector<128x32xf32>
    %cst_70 = arith.constant 0.000000e+00 : f32
    %156 = vector.broadcast %cst_70 : f32 to vector<128x32xf32>
    %157 = arith.cmpf ogt, %155, %156 : vector<128x32xf32>
    %cst_71 = arith.constant 0.00999999977 : f32
    %158 = vector.broadcast %cst_71 : f32 to vector<128x32xf32>
    %159 = arith.mulf %158, %155 : vector<128x32xf32>
    %160 = arith.select %157, %155, %159 : vector<128x32xi1>, vector<128x32xf32>
    %161 = arith.addf %160, %133 : vector<128x32xf32>
    %c0_72 = arith.constant 0 : index
    %c0_73 = arith.constant 0 : index
    %162 = vector.load %arg20[%c0_72, %c0_73] : memref<32x16xf32, #tpu.memory_space<vmem>>, vector<32x16xf32>
    %c0_74 = arith.constant 0 : index
    %c0_75 = arith.constant 0 : index
    %163 = vector.load %arg21[%c0_74, %c0_75] : memref<1x16xf32, #tpu.memory_space<vmem>>, vector<1x16xf32>
    %cst_76 = arith.constant dense<0.000000e+00> : vector<128x16xf32>
    %164 = tpu.matmul %161, %162, %cst_76 {dimension_numbers = #tpu.dot_dimension_numbers<[1], [0], [0], [1], [0, 0, 1, 1], [], []>, precision = #tpu.contract_precision<fp32>} : vector<128x32xf32>, vector<32x16xf32>, vector<128x16xf32> -> vector<128x16xf32>
    %165 = vector.broadcast %163 : vector<1x16xf32> to vector<128x16xf32>
    %166 = arith.addf %164, %165 : vector<128x16xf32>
    %c0_77 = arith.constant 0 : index
    %c0_78 = arith.constant 0 : index
    %167 = vector.load %arg22[%c0_77, %c0_78] : memref<128x16xf32, #tpu.memory_space<vmem>>, vector<128x16xf32>
    tpu.vector_store %arg22[%c0_77, %c0_78], %166 {strides = array<i32>} : memref<128x16xf32, #tpu.memory_space<vmem>>, vector<128x16xf32>,
    %c0_79 = arith.constant 0 : index
    %c0_80 = arith.constant 0 : index
    %168 = vector.load %arg23[%c0_79, %c0_80] : memref<128x16xf32, #tpu.memory_space<vmem>>, vector<128x16xf32>
    tpu.vector_store %arg23[%c0_79, %c0_80], %80 {strides = array<i32>} : memref<128x16xf32, #tpu.memory_space<vmem>>, vector<128x16xf32>,
    return
  }
}

</mosaic_0001>

<llo_original>
// kernel: _fused_forward.1
$region0: #{_fused_forward.1}
  #allocation0 [shape = 'u32[]', space=smem, size = 0x4, offset = 0x4, fixed_abs, tag = 'smem constant byte address 0x4 - core index']
  #allocation1 [shape = 'u32[144,128]{1,0:T(1,128)}', space=vmem, size = 0x12000, scoped, tag = 'internal scratch']
  %s0 = inlined_call_operand.vmem [shape: f32[128,16], index: 0, kind: input, shape index: {}]
  %s1 = inlined_call_operand.vmem [shape: f32[128,8], index: 1, kind: input, shape index: {}]
  %s2 = inlined_call_operand.vmem [shape: f32[16,64], index: 2, kind: input, shape index: {}]
  %s3 = inlined_call_operand.vmem [shape: f32[1,32], index: 3, kind: input, shape index: {}]
  %s4 = inlined_call_operand.vmem [shape: f32[1,32], index: 4, kind: input, shape index: {}]
  %s5 = inlined_call_operand.vmem [shape: f32[1,32], index: 5, kind: input, shape index: {}]
  %s6 = inlined_call_operand.vmem [shape: f32[32,48], index: 6, kind: input, shape index: {}]
  %s7 = inlined_call_operand.vmem [shape: f32[1,24], index: 7, kind: input, shape index: {}]
  %s8 = inlined_call_operand.vmem [shape: f32[1,24], index: 8, kind: input, shape index: {}]
  %s9 = inlined_call_operand.vmem [shape: f32[1,24], index: 9, kind: input, shape index: {}]
  %s10 = inlined_call_operand.vmem [shape: f32[24,16], index: 10, kind: input, shape index: {}]
  %s11 = inlined_call_operand.vmem [shape: f32[1,16], index: 11, kind: input, shape index: {}]
  %s12 = inlined_call_operand.vmem [shape: f32[8,32], index: 12, kind: input, shape index: {}]
  %s13 = inlined_call_operand.vmem [shape: f32[1,16], index: 13, kind: input, shape index: {}]
  %s14 = inlined_call_operand.vmem [shape: f32[1,16], index: 14, kind: input, shape index: {}]
  %s15 = inlined_call_operand.vmem [shape: f32[1,16], index: 15, kind: input, shape index: {}]
  %s16 = inlined_call_operand.vmem [shape: f32[16,64], index: 16, kind: input, shape index: {}]
  %s17 = inlined_call_operand.vmem [shape: f32[1,32], index: 17, kind: input, shape index: {}]
  %s18 = inlined_call_operand.vmem [shape: f32[1,32], index: 18, kind: input, shape index: {}]
  %s19 = inlined_call_operand.vmem [shape: f32[1,32], index: 19, kind: input, shape index: {}]
  %s20 = inlined_call_operand.vmem [shape: f32[32,16], index: 20, kind: input, shape index: {}]
  %s21 = inlined_call_operand.vmem [shape: f32[1,16], index: 21, kind: input, shape index: {}]
  %s22 = inlined_call_operand.vmem [shape: f32[128,16], index: 22, kind: output, shape index: {0}]
  %s23 = inlined_call_operand.vmem [shape: f32[128,16], index: 23, kind: output, shape index: {1}]
  %24 = xla_tuple %s22, %s23
  %s25 = sld [smem:[#allocation0]]
  $region106: #{_fused_forward.1} parent=0
    _
  %s27 = ssub.s32 1, %s25
  %s28 = scalar_select 0, %s27, %s25
  // Predicated region
  $region2: #{_fused_forward.1} parent=0 // pred_check
    _
  $region3: #{_fused_forward.1} parent=0 // pred_check_branch
    %30 = sbr.rel (0) target = $region5
  $region4: #{_fused_forward.1} parent=0 // pred_region
    _
  $region5: #{_fused_forward.1} parent=0 // pred_fallthru
    _
  // Predicated region
  $region6: #{_fused_forward.1} parent=0 // pred_check
    _
  $region7: #{_fused_forward.1} parent=0 // pred_check_branch
    %32 = sbr.rel (0) target = $region9
  $region8: #{_fused_forward.1} parent=0 // pred_region
    _
  $region9: #{_fused_forward.1} parent=0 // pred_fallthru
    _
  // Predicated region
  $region10: #{_fused_forward.1} parent=0 // pred_check
    _
  $region11: #{_fused_forward.1} parent=0 // pred_check_branch
    %34 = sbr.rel (0) target = $region13
  $region12: #{_fused_forward.1} parent=0 // pred_region
    _
  $region13: #{_fused_forward.1} parent=0 // pred_fallthru
    _
  // Predicated region
  $region14: #{_fused_forward.1} parent=0 // pred_check
    _
  $region15: #{_fused_forward.1} parent=0 // pred_check_branch
    %36 = sbr.rel (0) target = $region17
  $region16: #{_fused_forward.1} parent=0 // pred_region
    _
  $region17: #{_fused_forward.1} parent=0 // pred_fallthru
    _
  // Predicated region
  $region18: #{_fused_forward.1} parent=0 // pred_check
    _
  $region19: #{_fused_forward.1} parent=0 // pred_check_branch
    %38 = sbr.rel (0) target = $region21
  $region20: #{_fused_forward.1} parent=0 // pred_region
    _
  $region21: #{_fused_forward.1} parent=0 // pred_fallthru
    _
  // Predicated region
  $region22: #{_fused_forward.1} parent=0 // pred_check
    _
  $region23: #{_fused_forward.1} parent=0 // pred_check_branch
    %40 = sbr.rel (0) target = $region25
  $region24: #{_fused_forward.1} parent=0 // pred_region
    _
  $region25: #{_fused_forward.1} parent=0 // pred_fallthru
    _
  // Predicated region
  $region26: #{_fused_forward.1} parent=0 // pred_check
    _
  $region27: #{_fused_forward.1} parent=0 // pred_check_branch
    %42 = sbr.rel (0) target = $region29
  $region28: #{_fused_forward.1} parent=0 // pred_region
    _
  $region29: #{_fused_forward.1} parent=0 // pred_fallthru
    _
  // Predicated region
  $region30: #{_fused_forward.1} parent=0 // pred_check
    _
  $region31: #{_fused_forward.1} parent=0 // pred_check_branch
    %44 = sbr.rel (0) target = $region33
  $region32: #{_fused_forward.1} parent=0 // pred_region
    _
  $region33: #{_fused_forward.1} parent=0 // pred_fallthru
    _
  // Predicated region
  $region34: #{_fused_forward.1} parent=0 // pred_check
    _
  $region35: #{_fused_forward.1} parent=0 // pred_check_branch
    %46 = sbr.rel (0) target = $region37
  $region36: #{_fused_forward.1} parent=0 // pred_region
    _
  $region37: #{_fused_forward.1} parent=0 // pred_fallthru
    _
  // Predicated region
  $region38: #{_fused_forward.1} parent=0 // pred_check
    _
  $region39: #{_fused_forward.1} parent=0 // pred_check_branch
    %48 = sbr.rel (0) target = $region41
  $region40: #{_fused_forward.1} parent=0 // pred_region
    _
  $region41: #{_fused_forward.1} parent=0 // pred_fallthru
    _
  // Predicated region
  $region42: #{_fused_forward.1} parent=0 // pred_check
    _
  $region43: #{_fused_forward.1} parent=0 // pred_check_branch
    %50 = sbr.rel (0) target = $region45
  $region44: #{_fused_forward.1} parent=0 // pred_region
    _
  $region45: #{_fused_forward.1} parent=0 // pred_fallthru
    _
  // Predicated region
  $region46: #{_fused_forward.1} parent=0 // pred_check
    _
  $region47: #{_fused_forward.1} parent=0 // pred_check_branch
    %52 = sbr.rel (0) target = $region49
  $region48: #{_fused_forward.1} parent=0 // pred_region
    _
  $region49: #{_fused_forward.1} parent=0 // pred_fallthru
    _
  // Predicated region
  $region50: #{_fused_forward.1} parent=0 // pred_check
    _
  $region51: #{_fused_forward.1} parent=0 // pred_check_branch
    %54 = sbr.rel (0) target = $region53
  $region52: #{_fused_forward.1} parent=0 // pred_region
    _
  $region53: #{_fused_forward.1} parent=0 // pred_fallthru
    _
  // Predicated region
  $region54: #{_fused_forward.1} parent=0 // pred_check
    _
  $region55: #{_fused_forward.1} parent=0 // pred_check_branch
    %56 = sbr.rel (0) target = $region57
  $region56: #{_fused_forward.1} parent=0 // pred_region
    _
  $region57: #{_fused_forward.1} parent=0 // pred_fallthru
    _
  // Predicated region
  $region58: #{_fused_forward.1} parent=0 // pred_check
    _
  $region59: #{_fused_forward.1} parent=0 // pred_check_branch
    %58 = sbr.rel (0) target = $region61
  $region60: #{_fused_forward.1} parent=0 // pred_region
    _
  $region61: #{_fused_forward.1} parent=0 // pred_fallthru
    _
  // Predicated region
  $region62: #{_fused_forward.1} parent=0 // pred_check
    _
  $region63: #{_fused_forward.1} parent=0 // pred_check_branch
    %60 = sbr.rel (0) target = $region65
  $region64: #{_fused_forward.1} parent=0 // pred_region
    _
  $region65: #{_fused_forward.1} parent=0 // pred_fallthru
    _
  // Predicated region
  $region66: #{_fused_forward.1} parent=0 // pred_check
    _
  $region67: #{_fused_forward.1} parent=0 // pred_check_branch
    %62 = sbr.rel (0) target = $region69
  $region68: #{_fused_forward.1} parent=0 // pred_region
    _
  $region69: #{_fused_forward.1} parent=0 // pred_fallthru
    _
  // Predicated region
  $region70: #{_fused_forward.1} parent=0 // pred_check
    _
  $region71: #{_fused_forward.1} parent=0 // pred_check_branch
    %64 = sbr.rel (0) target = $region73
  $region72: #{_fused_forward.1} parent=0 // pred_region
    _
  $region73: #{_fused_forward.1} parent=0 // pred_fallthru
    _
  // Predicated region
  $region74: #{_fused_forward.1} parent=0 // pred_check
    _
  $region75: #{_fused_forward.1} parent=0 // pred_check_branch
    %66 = sbr.rel (0) target = $region77
  $region76: #{_fused_forward.1} parent=0 // pred_region
    _
  $region77: #{_fused_forward.1} parent=0 // pred_fallthru
    _
  // Predicated region
  $region78: #{_fused_forward.1} parent=0 // pred_check
    _
  $region79: #{_fused_forward.1} parent=0 // pred_check_branch
    %68 = sbr.rel (0) target = $region81
  $region80: #{_fused_forward.1} parent=0 // pred_region
    _
  $region81: #{_fused_forward.1} parent=0 // pred_fallthru
    _
  // Predicated region
  $region82: #{_fused_forward.1} parent=0 // pred_check
    _
  $region83: #{_fused_forward.1} parent=0 // pred_check_branch
    %70 = sbr.rel (0) target = $region85
  $region84: #{_fused_forward.1} parent=0 // pred_region
    _
  $region85: #{_fused_forward.1} parent=0 // pred_fallthru
    _
  // Predicated region
  $region86: #{_fused_forward.1} parent=0 // pred_check
    _
  $region87: #{_fused_forward.1} parent=0 // pred_check_branch
    %72 = sbr.rel (0) target = $region89
  $region88: #{_fused_forward.1} parent=0 // pred_region
    _
  $region89: #{_fused_forward.1} parent=0 // pred_fallthru
    _
  %v73 = vld [vmem:[%s0] sm:$0xff]
  %v74 = vld [vmem:[%s0 + $0x8] sm:$0xff]
  %v75 = vld [vmem:[%s0 + $0x10] sm:$0xff]
  %v76 = vld [vmem:[%s0 + $0x18] sm:$0xff]
  %v77 = vld [vmem:[%s0 + $0x20] sm:$0xff]
  %v78 = vld [vmem:[%s0 + $0x28] sm:$0xff]
  %v79 = vld [vmem:[%s0 + $0x30] sm:$0xff]
  %v80 = vld [vmem:[%s0 + $0x38] sm:$0xff]
  %v81 = vld [vmem:[%s0 + $0x40] sm:$0xff]
  %v82 = vld [vmem:[%s0 + $0x48] sm:$0xff]
  %v83 = vld [vmem:[%s0 + $0x50] sm:$0xff]
  %v84 = vld [vmem:[%s0 + $0x58] sm:$0xff]
  %v85 = vld [vmem:[%s0 + $0x60] sm:$0xff]
  %v86 = vld [vmem:[%s0 + $0x68] sm:$0xff]
  %v87 = vld [vmem:[%s0 + $0x70] sm:$0xff]
  %v88 = vld [vmem:[%s0 + $0x78] sm:$0xff]
  %v89 = vld [vmem:[%s1] sm:$0xff]
  %v90 = vld [vmem:[%s1 + $0x8] sm:$0xff]
  %v91 = vld [vmem:[%s1 + $0x10] sm:$0xff]
  %v92 = vld [vmem:[%s1 + $0x18] sm:$0xff]
  %v93 = vld [vmem:[%s1 + $0x20] sm:$0xff]
  %v94 = vld [vmem:[%s1 + $0x28] sm:$0xff]
  %v95 = vld [vmem:[%s1 + $0x30] sm:$0xff]
  %v96 = vld [vmem:[%s1 + $0x38] sm:$0xff]
  %v97 = vld [vmem:[%s1 + $0x40] sm:$0xff]
  %v98 = vld [vmem:[%s1 + $0x48] sm:$0xff]
  %v99 = vld [vmem:[%s1 + $0x50] sm:$0xff]
  %v100 = vld [vmem:[%s1 + $0x58] sm:$0xff]
  %v101 = vld [vmem:[%s1 + $0x60] sm:$0xff]
  %v102 = vld [vmem:[%s1 + $0x68] sm:$0xff]
  %v103 = vld [vmem:[%s1 + $0x70] sm:$0xff]
  %v104 = vld [vmem:[%s1 + $0x78] sm:$0xff]
  %v105 = vld [vmem:[%s2] sm:$0xff]
  %v106 = vld [vmem:[%s2 + $0x8] sm:$0xff]
  %v107 = vld [vmem:[%s3] sm:$0x1]
  %v108 = vld [vmem:[%s4] sm:$0x1]
  %v109 = vld [vmem:[%s5] sm:$0x1]
  %vm110 = vcmask 130048
  %v112 = vsel %vm110, %v73, 0
  %v115 = vsel %vm110, %v74, 0
  %v118 = vsel %vm110, %v75, 0
  %v121 = vsel %vm110, %v76, 0
  %v124 = vsel %vm110, %v77, 0
  %v127 = vsel %vm110, %v78, 0
  %v130 = vsel %vm110, %v79, 0
  %v133 = vsel %vm110, %v80, 0
  %v136 = vsel %vm110, %v81, 0
  %v139 = vsel %vm110, %v82, 0
  %v142 = vsel %vm110, %v83, 0
  %v145 = vsel %vm110, %v84, 0
  %v148 = vsel %vm110, %v85, 0
  %v151 = vsel %vm110, %v86, 0
  %v154 = vsel %vm110, %v87, 0
  %v157 = vsel %vm110, %v88, 0
  %159 = vmatprep.subr.mxu0 0.0
  %160 = vmatpush1.msra.mxu0 0.0
  %161 = vmatprep.subr.mxu0 0.0
  %162 = vmatpush1.msra.mxu0 0.0
  %163 = vmatprep.subr.mxu0 0.0
  %164 = vmatpush1.msra.mxu0 0.0
  %165 = vmatprep.subr.mxu0 0.0
  %166 = vmatpush1.msra.mxu0 0.0
  %167 = vmatprep.subr.mxu0 0.0
  %168 = vmatpush1.msra.mxu0 0.0
  %169 = vmatprep.subr.mxu0 0.0
  %170 = vmatpush1.msra.mxu0 0.0
  %171 = vmatprep.subr.mxu0 0.0
  %172 = vmatpush1.msra.mxu0 0.0
  %173 = vmatprep.subr.mxu0 0.0
  %174 = vmatpush1.msra.mxu0 0.0
  %175 = vmatprep.subr.mxu0 0.0
  %176 = vmatpush1.msra.mxu0 0.0
  %177 = vmatprep.subr.mxu0 0.0
  %178 = vmatpush1.msra.mxu0 0.0
  %179 = vmatprep.subr.mxu0 0.0
  %180 = vmatpush1.msra.mxu0 0.0
  %181 = vmatprep.subr.mxu0 0.0
  %182 = vmatpush1.msra.mxu0 0.0
  %183 = vmatprep.subr.mxu0 0.0
  %184 = vmatpush1.msra.mxu0 0.0
  %185 = vmatprep.subr.mxu0 0.0
  %186 = vmatpush1.msra.mxu0 0.0
  %187 = vmatprep.subr.mxu0 0.0
  %v188 = vand.u32 %v106, 4294901760
  %189 = vmatpush1.msra.mxu0 %v188
  %190 = vmatprep.subr.mxu0 0.0
  %v191 = vand.u32 %v105, 4294901760
  %192 = vmatpush1.msra.mxu0 %v191
  %193 = vmatprep.subr.mxu0 0.0
  %194 = vmatpush2.msra.mxu0 0.0
  %195 = vmatprep.subr.mxu0 0.0
  %196 = vmatpush2.msra.mxu0 0.0
  %197 = vmatprep.subr.mxu0 0.0
  %198 = vmatpush2.msra.mxu0 0.0
  %199 = vmatprep.subr.mxu0 0.0
  %200 = vmatpush2.msra.mxu0 0.0
  %201 = vmatprep.subr.mxu0 0.0
  %202 = vmatpush2.msra.mxu0 0.0
  %203 = vmatprep.subr.mxu0 0.0
  %204 = vmatpush2.msra.mxu0 0.0
  %205 = vmatprep.subr.mxu0 0.0
  %206 = vmatpush2.msra.mxu0 0.0
  %207 = vmatprep.subr.mxu0 0.0
  %208 = vmatpush2.msra.mxu0 0.0
  %209 = vmatprep.subr.mxu0 0.0
  %210 = vmatpush2.msra.mxu0 0.0
  %211 = vmatprep.subr.mxu0 0.0
  %212 = vmatpush2.msra.mxu0 0.0
  %213 = vmatprep.subr.mxu0 0.0
  %214 = vmatpush2.msra.mxu0 0.0
  %215 = vmatprep.subr.mxu0 0.0
  %216 = vmatpush2.msra.mxu0 0.0
  %217 = vmatprep.subr.mxu0 0.0
  %218 = vmatpush2.msra.mxu0 0.0
  %219 = vmatprep.subr.mxu0 0.0
  %220 = vmatpush2.msra.mxu0 0.0
  %221 = vmatprep.subr.mxu0 0.0
  %222 = vmatpush2.msra.mxu0 0.0
  %223 = vmatprep.subr.mxu0 0.0
  %224 = vmatpush2.msra.mxu0 0.0
  %225 = vmatprep.mubr.f32.mxu0 0.0
  %v226 = vand.u32 %v112, 4294901760
  %v227 = vsub.f32 %v112, %v226
  %v228 = vand.u32 %v227, 4294901760
  %v229 = vsub.f32 %v227, %v228
  %v230 = vand.u32 %v229, 4294901760
  %231 = vmatmul.mubr.f32.gmra.mxu0 %v230
  %v232 = vpop.f32.mrf.mxu0
  %v233 = vadd.f32 0.0, %v232
  %v234 = vpop.f32.mrf.mxu0
  %235 = vmatprep.mubr.f32.mxu0 0.0
  %v236 = vand.u32 %v115, 4294901760
  %v237 = vsub.f32 %v115, %v236
  %v238 = vand.u32 %v237, 4294901760
  %v239 = vsub.f32 %v237, %v238
  %v240 = vand.u32 %v239, 4294901760
  %241 = vmatmul.mubr.f32.gmra.mxu0 %v240
  %v242 = vpop.f32.mrf.mxu0
  %v243 = vadd.f32 0.0, %v242
  %v244 = vpop.f32.mrf.mxu0
  %245 = vmatprep.mubr.f32.mxu0 0.0
  %v246 = vand.u32 %v118, 4294901760
  %v247 = vsub.f32 %v118, %v246
  %v248 = vand.u32 %v247, 4294901760
  %v249 = vsub.f32 %v247, %v248
  %v250 = vand.u32 %v249, 4294901760
  %251 = vmatmul.mubr.f32.gmra.mxu0 %v250
  %v252 = vpop.f32.mrf.mxu0
  %v253 = vadd.f32 0.0, %v252
  %v254 = vpop.f32.mrf.mxu0
  %255 = vmatprep.mubr.f32.mxu0 0.0
  %v256 = vand.u32 %v121, 4294901760
  %v257 = vsub.f32 %v121, %v256
  %v258 = vand.u32 %v257, 4294901760
  %v259 = vsub.f32 %v257, %v258
  %v260 = vand.u32 %v259, 4294901760
  %261 = vmatmul.mubr.f32.gmra.mxu0 %v260
  %v262 = vpop.f32.mrf.mxu0
  %v263 = vadd.f32 0.0, %v262
  %v264 = vpop.f32.mrf.mxu0
  %265 = vmatprep.mubr.f32.mxu0 0.0
  %v266 = vand.u32 %v124, 4294901760
  %v267 = vsub.f32 %v124, %v266
  %v268 = vand.u32 %v267, 4294901760
  %v269 = vsub.f32 %v267, %v268
  %v270 = vand.u32 %v269, 4294901760
  %271 = vmatmul.mubr.f32.gmra.mxu0 %v270
  %v272 = vpop.f32.mrf.mxu0
  %v273 = vadd.f32 0.0, %v272
  %v274 = vpop.f32.mrf.mxu0
  %275 = vmatprep.mubr.f32.mxu0 0.0
  %v276 = vand.u32 %v127, 4294901760
  %v277 = vsub.f32 %v127, %v276
  %v278 = vand.u32 %v277, 4294901760
  %v279 = vsub.f32 %v277, %v278
  %v280 = vand.u32 %v279, 4294901760
  %281 = vmatmul.mubr.f32.gmra.mxu0 %v280
  %v282 = vpop.f32.mrf.mxu0
  %v283 = vadd.f32 0.0, %v282
  %v284 = vpop.f32.mrf.mxu0
  %285 = vmatprep.mubr.f32.mxu0 0.0
  %v286 = vand.u32 %v130, 4294901760
  %v287 = vsub.f32 %v130, %v286
  %v288 = vand.u32 %v287, 4294901760
  %v289 = vsub.f32 %v287, %v288
  %v290 = vand.u32 %v289, 4294901760
  %291 = vmatmul.mubr.f32.gmra.mxu0 %v290
  %v292 = vpop.f32.mrf.mxu0
  %v293 = vadd.f32 0.0, %v292
  %v294 = vpop.f32.mrf.mxu0
  %295 = vmatprep.mubr.f32.mxu0 0.0
  %v296 = vand.u32 %v133, 4294901760
  %v297 = vsub.f32 %v133, %v296
  %v298 = vand.u32 %v297, 4294901760
  %v299 = vsub.f32 %v297, %v298
  %v300 = vand.u32 %v299, 4294901760
  %301 = vmatmul.mubr.f32.gmra.mxu0 %v300
  %v302 = vpop.f32.mrf.mxu0
  %v303 = vadd.f32 0.0, %v302
  %v304 = vpop.f32.mrf.mxu0
  %305 = vmatprep.mubr.f32.mxu0 0.0
  %v306 = vand.u32 %v136, 4294901760
  %v307 = vsub.f32 %v136, %v306
  %v308 = vand.u32 %v307, 4294901760
  %v309 = vsub.f32 %v307, %v308
  %v310 = vand.u32 %v309, 4294901760
  %311 = vmatmul.mubr.f32.gmra.mxu0 %v310
  %v312 = vpop.f32.mrf.mxu0
  %v313 = vadd.f32 0.0, %v312
  %v314 = vpop.f32.mrf.mxu0
  %315 = vmatprep.mubr.f32.mxu0 0.0
  %v316 = vand.u32 %v139, 4294901760
  %v317 = vsub.f32 %v139, %v316
  %v318 = vand.u32 %v317, 4294901760
  %v319 = vsub.f32 %v317, %v318
  %v320 = vand.u32 %v319, 4294901760
  %321 = vmatmul.mubr.f32.gmra.mxu0 %v320
  %v322 = vpop.f32.mrf.mxu0
  %v323 = vadd.f32 0.0, %v322
  %v324 = vpop.f32.mrf.mxu0
  %325 = vmatprep.mubr.f32.mxu0 0.0
  %v326 = vand.u32 %v142, 4294901760
  %v327 = vsub.f32 %v142, %v326
  %v328 = vand.u32 %v327, 4294901760
  %v329 = vsub.f32 %v327, %v328
  %v330 = vand.u32 %v329, 4294901760
  %331 = vmatmul.mubr.f32.gmra.mxu0 %v330
  %v332 = vpop.f32.mrf.mxu0
  %v333 = vadd.f32 0.0, %v332
  %v334 = vpop.f32.mrf.mxu0
  %335 = vmatprep.mubr.f32.mxu0 0.0
  %v336 = vand.u32 %v145, 4294901760
  %v337 = vsub.f32 %v145, %v336
  %v338 = vand.u32 %v337, 4294901760
  %v339 = vsub.f32 %v337, %v338
  %v340 = vand.u32 %v339, 4294901760
  %341 = vmatmul.mubr.f32.gmra.mxu0 %v340
  %v342 = vpop.f32.mrf.mxu0
  %v343 = vadd.f32 0.0, %v342
  %v344 = vpop.f32.mrf.mxu0
  %345 = vmatprep.mubr.f32.mxu0 0.0
  %v346 = vand.u32 %v148, 4294901760
  %v347 = vsub.f32 %v148, %v346
  %v348 = vand.u32 %v347, 4294901760
  %v349 = vsub.f32 %v347, %v348
  %v350 = vand.u32 %v349, 4294901760
  %351 = vmatmul.mubr.f32.gmra.mxu0 %v350
  %v352 = vpop.f32.mrf.mxu0
  %v353 = vadd.f32 0.0, %v352
  %v354 = vpop.f32.mrf.mxu0
  %355 = vmatprep.mubr.f32.mxu0 0.0
  %v356 = vand.u32 %v151, 4294901760
  %v357 = vsub.f32 %v151, %v356
  %v358 = vand.u32 %v357, 4294901760
  %v359 = vsub.f32 %v357, %v358
  %v360 = vand.u32 %v359, 4294901760
  %361 = vmatmul.mubr.f32.gmra.mxu0 %v360
  %v362 = vpop.f32.mrf.mxu0
  %v363 = vadd.f32 0.0, %v362
  %v364 = vpop.f32.mrf.mxu0
  %365 = vmatprep.mubr.f32.mxu0 0.0
  %v366 = vand.u32 %v154, 4294901760
  %v367 = vsub.f32 %v154, %v366
  %v368 = vand.u32 %v367, 4294901760
  %v369 = vsub.f32 %v367, %v368
  %v370 = vand.u32 %v369, 4294901760
  %371 = vmatmul.mubr.f32.gmra.mxu0 %v370
  %v372 = vpop.f32.mrf.mxu0
  %v373 = vadd.f32 0.0, %v372
  %v374 = vpop.f32.mrf.mxu0
  %375 = vmatprep.mubr.f32.mxu0 0.0
  %v376 = vand.u32 %v157, 4294901760
  %v377 = vsub.f32 %v157, %v376
  %v378 = vand.u32 %v377, 4294901760
  %v379 = vsub.f32 %v377, %v378
  %v380 = vand.u32 %v379, 4294901760
  %381 = vmatmul.mubr.f32.gmra.mxu0 %v380
  %v382 = vpop.f32.mrf.mxu0
  %v383 = vadd.f32 0.0, %v382
  %v384 = vpop.f32.mrf.mxu0
  %385 = vdwg.mxu0
  %386 = vmatprep.subr.mxu0 0.0
  %387 = vmatpush1.msra.mxu0 0.0
  %388 = vmatprep.subr.mxu0 0.0
  %389 = vmatpush1.msra.mxu0 0.0
  %390 = vmatprep.subr.mxu0 0.0
  %391 = vmatpush1.msra.mxu0 0.0
  %392 = vmatprep.subr.mxu0 0.0
  %393 = vmatpush1.msra.mxu0 0.0
  %394 = vmatprep.subr.mxu0 0.0
  %395 = vmatpush1.msra.mxu0 0.0
  %396 = vmatprep.subr.mxu0 0.0
  %397 = vmatpush1.msra.mxu0 0.0
  %398 = vmatprep.subr.mxu0 0.0
  %399 = vmatpush1.msra.mxu0 0.0
  %400 = vmatprep.subr.mxu0 0.0
  %401 = vmatpush1.msra.mxu0 0.0
  %402 = vmatprep.subr.mxu0 0.0
  %403 = vmatpush1.msra.mxu0 0.0
  %404 = vmatprep.subr.mxu0 0.0
  %405 = vmatpush1.msra.mxu0 0.0
  %406 = vmatprep.subr.mxu0 0.0
  %407 = vmatpush1.msra.mxu0 0.0
  %408 = vmatprep.subr.mxu0 0.0
  %409 = vmatpush1.msra.mxu0 0.0
  %410 = vmatprep.subr.mxu0 0.0
  %411 = vmatpush1.msra.mxu0 0.0
  %412 = vmatprep.subr.mxu0 0.0
  %413 = vmatpush1.msra.mxu0 0.0
  %414 = vmatprep.subr.mxu0 0.0
  %v415 = vand.u32 %v106, 4294901760
  %v416 = vsub.f32 %v106, %v415
  %v417 = vand.u32 %v416, 4294901760
  %v418 = vsub.f32 %v416, %v417
  %v419 = vand.u32 %v418, 4294901760
  %420 = vmatpush1.msra.mxu0 %v419
  %421 = vmatprep.subr.mxu0 0.0
  %v422 = vand.u32 %v105, 4294901760
  %v423 = vsub.f32 %v105, %v422
  %v424 = vand.u32 %v423, 4294901760
  %v425 = vsub.f32 %v423, %v424
  %v426 = vand.u32 %v425, 4294901760
  %427 = vmatpush1.msra.mxu0 %v426
  %428 = vmatprep.subr.mxu0 0.0
  %429 = vmatpush2.msra.mxu0 0.0
  %430 = vmatprep.subr.mxu0 0.0
  %431 = vmatpush2.msra.mxu0 0.0
  %432 = vmatprep.subr.mxu0 0.0
  %433 = vmatpush2.msra.mxu0 0.0
  %434 = vmatprep.subr.mxu0 0.0
  %435 = vmatpush2.msra.mxu0 0.0
  %436 = vmatprep.subr.mxu0 0.0
  %437 = vmatpush2.msra.mxu0 0.0
  %438 = vmatprep.subr.mxu0 0.0
  %439 = vmatpush2.msra.mxu0 0.0
  %440 = vmatprep.subr.mxu0 0.0
  %441 = vmatpush2.msra.mxu0 0.0
  %442 = vmatprep.subr.mxu0 0.0
  %443 = vmatpush2.msra.mxu0 0.0
  %444 = vmatprep.subr.mxu0 0.0
  %445 = vmatpush2.msra.mxu0 0.0
  %446 = vmatprep.subr.mxu0 0.0
  %447 = vmatpush2.msra.mxu0 0.0
  %448 = vmatprep.subr.mxu0 0.0
  %449 = vmatpush2.msra.mxu0 0.0
  %450 = vmatprep.subr.mxu0 0.0
  %451 = vmatpush2.msra.mxu0 0.0
  %452 = vmatprep.subr.mxu0 0.0
  %453 = vmatpush2.msra.mxu0 0.0
  %454 = vmatprep.subr.mxu0 0.0
  %455 = vmatpush2.msra.mxu0 0.0
  %456 = vmatprep.subr.mxu0 0.0
  %457 = vmatpush2.msra.mxu0 0.0
  %458 = vmatprep.subr.mxu0 0.0
  %459 = vmatpush2.msra.mxu0 0.0
  %460 = vmatprep.mubr.f32.mxu0 0.0
  %v461 = vand.u32 %v112, 4294901760
  %462 = vmatmul.mubr.f32.gmra.mxu0 %v461
  %v463 = vpop.f32.mrf.mxu0
  %v464 = vadd.f32 %v233, %v463
  %v465 = vpop.f32.mrf.mxu0
  %466 = vmatprep.mubr.f32.mxu0 0.0
  %v467 = vand.u32 %v115, 4294901760
  %468 = vmatmul.mubr.f32.gmra.mxu0 %v467
  %v469 = vpop.f32.mrf.mxu0
  %v470 = vadd.f32 %v243, %v469
  %v471 = vpop.f32.mrf.mxu0
  %472 = vmatprep.mubr.f32.mxu0 0.0
  %v473 = vand.u32 %v118, 4294901760
  %474 = vmatmul.mubr.f32.gmra.mxu0 %v473
  %v475 = vpop.f32.mrf.mxu0
  %v476 = vadd.f32 %v253, %v475
  %v477 = vpop.f32.mrf.mxu0
  %478 = vmatprep.mubr.f32.mxu0 0.0
  %v479 = vand.u32 %v121, 4294901760
  %480 = vmatmul.mubr.f32.gmra.mxu0 %v479
  %v481 = vpop.f32.mrf.mxu0
  %v482 = vadd.f32 %v263, %v481
  %v483 = vpop.f32.mrf.mxu0
  %484 = vmatprep.mubr.f32.mxu0 0.0
  %v485 = vand.u32 %v124, 4294901760
  %486 = vmatmul.mubr.f32.gmra.mxu0 %v485
  %v487 = vpop.f32.mrf.mxu0
  %v488 = vadd.f32 %v273, %v487
  %v489 = vpop.f32.mrf.mxu0
  %490 = vmatprep.mubr.f32.mxu0 0.0
  %v491 = vand.u32 %v127, 4294901760
  %492 = vmatmul.mubr.f32.gmra.mxu0 %v491
  %v493 = vpop.f32.mrf.mxu0
  %v494 = vadd.f32 %v283, %v493
  %v495 = vpop.f32.mrf.mxu0
  %496 = vmatprep.mubr.f32.mxu0 0.0
  %v497 = vand.u32 %v130, 4294901760
  %498 = vmatmul.mubr.f32.gmra.mxu0 %v497
  %v499 = vpop.f32.mrf.mxu0
  %v500 = vadd.f32 %v293, %v499
  %v501 = vpop.f32.mrf.mxu0
  %502 = vmatprep.mubr.f32.mxu0 0.0
  %v503 = vand.u32 %v133, 4294901760
  %504 = vmatmul.mubr.f32.gmra.mxu0 %v503
  %v505 = vpop.f32.mrf.mxu0
  %v506 = vadd.f32 %v303, %v505
  %v507 = vpop.f32.mrf.mxu0
  %508 = vmatprep.mubr.f32.mxu0 0.0
  %v509 = vand.u32 %v136, 4294901760
  %510 = vmatmul.mubr.f32.gmra.mxu0 %v509
  %v511 = vpop.f32.mrf.mxu0
  %v512 = vadd.f32 %v313, %v511
  %v513 = vpop.f32.mrf.mxu0
  %514 = vmatprep.mubr.f32.mxu0 0.0
  %v515 = vand.u32 %v139, 4294901760
  %516 = vmatmul.mubr.f32.gmra.mxu0 %v515
  %v517 = vpop.f32.mrf.mxu0
  %v518 = vadd.f32 %v323, %v517
  %v519 = vpop.f32.mrf.mxu0
  %520 = vmatprep.mubr.f32.mxu0 0.0
  %v521 = vand.u32 %v142, 4294901760
  %522 = vmatmul.mubr.f32.gmra.mxu0 %v521
  %v523 = vpop.f32.mrf.mxu0
  %v524 = vadd.f32 %v333, %v523
  %v525 = vpop.f32.mrf.mxu0
  %526 = vmatprep.mubr.f32.mxu0 0.0
  %v527 = vand.u32 %v145, 4294901760
  %528 = vmatmul.mubr.f32.gmra.mxu0 %v527
  %v529 = vpop.f32.mrf.mxu0
  %v530 = vadd.f32 %v343, %v529
  %v531 = vpop.f32.mrf.mxu0
  %532 = vmatprep.mubr.f32.mxu0 0.0
  %v533 = vand.u32 %v148, 4294901760
  %534 = vmatmul.mubr.f32.gmra.mxu0 %v533
  %v535 = vpop.f32.mrf.mxu0
  %v536 = vadd.f32 %v353, %v535
  %v537 = vpop.f32.mrf.mxu0
  %538 = vmatprep.mubr.f32.mxu0 0.0
  %v539 = vand.u32 %v151, 4294901760
  %540 = vmatmul.mubr.f32.gmra.mxu0 %v539
  %v541 = vpop.f32.mrf.mxu0
  %v542 = vadd.f32 %v363, %v541
  %v543 = vpop.f32.mrf.mxu0
  %544 = vmatprep.mubr.f32.mxu0 0.0
  %v545 = vand.u32 %v154, 4294901760
  %546 = vmatmul.mubr.f32.gmra.mxu0 %v545
  %v547 = vpop.f32.mrf.mxu0
  %v548 = vadd.f32 %v373, %v547
  %v549 = vpop.f32.mrf.mxu0
  %550 = vmatprep.mubr.f32.mxu0 0.0
  %v551 = vand.u32 %v157, 4294901760
  %552 = vmatmul.mubr.f32.gmra.mxu0 %v551
  %v553 = vpop.f32.mrf.mxu0
  %v554 = vadd.f32 %v383, %v553
  %v555 = vpop.f32.mrf.mxu0
  %556 = vdwg.mxu0
  %557 = vmatprep.subr.mxu0 0.0
  %558 = vmatpush1.msra.mxu0 0.0
  %559 = vmatprep.subr.mxu0 0.0
  %560 = vmatpush1.msra.mxu0 0.0
  %561 = vmatprep.subr.mxu0 0.0
  %562 = vmatpush1.msra.mxu0 0.0
  %563 = vmatprep.subr.mxu0 0.0
  %564 = vmatpush1.msra.mxu0 0.0
  %565 = vmatprep.subr.mxu0 0.0
  %566 = vmatpush1.msra.mxu0 0.0
  %567 = vmatprep.subr.mxu0 0.0
  %568 = vmatpush1.msra.mxu0 0.0
  %569 = vmatprep.subr.mxu0 0.0
  %570 = vmatpush1.msra.mxu0 0.0
  %571 = vmatprep.subr.mxu0 0.0
  %572 = vmatpush1.msra.mxu0 0.0
  %573 = vmatprep.subr.mxu0 0.0
  %574 = vmatpush1.msra.mxu0 0.0
  %575 = vmatprep.subr.mxu0 0.0
  %576 = vmatpush1.msra.mxu0 0.0
  %577 = vmatprep.subr.mxu0 0.0
  %578 = vmatpush1.msra.mxu0 0.0
  %579 = vmatprep.subr.mxu0 0.0
  %580 = vmatpush1.msra.mxu0 0.0
  %581 = vmatprep.subr.mxu0 0.0
  %582 = vmatpush1.msra.mxu0 0.0
  %583 = vmatprep.subr.mxu0 0.0
  %584 = vmatpush1.msra.mxu0 0.0
  %585 = vmatprep.subr.mxu0 0.0
  %v586 = vand.u32 %v106, 4294901760
  %v587 = vsub.f32 %v106, %v586
  %588 = vmatpush1.msra.mxu0 %v587
  %589 = vmatprep.subr.mxu0 0.0
  %v590 = vand.u32 %v105, 4294901760
  %v591 = vsub.f32 %v105, %v590
  %592 = vmatpush1.msra.mxu0 %v591
  %593 = vmatprep.subr.mxu0 0.0
  %594 = vmatpush2.msra.mxu0 0.0
  %595 = vmatprep.subr.mxu0 0.0
  %596 = vmatpush2.msra.mxu0 0.0
  %597 = vmatprep.subr.mxu0 0.0
  %598 = vmatpush2.msra.mxu0 0.0
  %599 = vmatprep.subr.mxu0 0.0
  %600 = vmatpush2.msra.mxu0 0.0
  %601 = vmatprep.subr.mxu0 0.0
  %602 = vmatpush2.msra.mxu0 0.0
  %603 = vmatprep.subr.mxu0 0.0
  %604 = vmatpush2.msra.mxu0 0.0
  %605 = vmatprep.subr.mxu0 0.0
  %606 = vmatpush2.msra.mxu0 0.0
  %607 = vmatprep.subr.mxu0 0.0
  %608 = vmatpush2.msra.mxu0 0.0
  %609 = vmatprep.subr.mxu0 0.0
  %610 = vmatpush2.msra.mxu0 0.0
  %611 = vmatprep.subr.mxu0 0.0
  %612 = vmatpush2.msra.mxu0 0.0
  %613 = vmatprep.subr.mxu0 0.0
  %614 = vmatpush2.msra.mxu0 0.0
  %615 = vmatprep.subr.mxu0 0.0
  %616 = vmatpush2.msra.mxu0 0.0
  %617 = vmatprep.subr.mxu0 0.0
  %618 = vmatpush2.msra.mxu0 0.0
  %619 = vmatprep.subr.mxu0 0.0
  %620 = vmatpush2.msra.mxu0 0.0
  %621 = vmatprep.subr.mxu0 0.0
  %622 = vmatpush2.msra.mxu0 0.0
  %623 = vmatprep.subr.mxu0 0.0
  %624 = vmatpush2.msra.mxu0 0.0
  %625 = vmatprep.mubr.f32.mxu0 0.0
  %v626 = vand.u32 %v112, 4294901760
  %v627 = vsub.f32 %v112, %v626
  %628 = vmatmul.mubr.f32.gmra.mxu0 %v627
  %v629 = vpop.f32.mrf.mxu0
  %v630 = vadd.f32 %v464, %v629
  %v631 = vpop.f32.mrf.mxu0
  %632 = vmatprep.mubr.f32.mxu0 0.0
  %v633 = vand.u32 %v115, 4294901760
  %v634 = vsub.f32 %v115, %v633
  %635 = vmatmul.mubr.f32.gmra.mxu0 %v634
  %v636 = vpop.f32.mrf.mxu0
  %v637 = vadd.f32 %v470, %v636
  %v638 = vpop.f32.mrf.mxu0
  %639 = vmatprep.mubr.f32.mxu0 0.0
  %v640 = vand.u32 %v118, 4294901760
  %v641 = vsub.f32 %v118, %v640
  %642 = vmatmul.mubr.f32.gmra.mxu0 %v641
  %v643 = vpop.f32.mrf.mxu0
  %v644 = vadd.f32 %v476, %v643
  %v645 = vpop.f32.mrf.mxu0
  %646 = vmatprep.mubr.f32.mxu0 0.0
  %v647 = vand.u32 %v121, 4294901760
  %v648 = vsub.f32 %v121, %v647
  %649 = vmatmul.mubr.f32.gmra.mxu0 %v648
  %v650 = vpop.f32.mrf.mxu0
  %v651 = vadd.f32 %v482, %v650
  %v652 = vpop.f32.mrf.mxu0
  %653 = vmatprep.mubr.f32.mxu0 0.0
  %v654 = vand.u32 %v124, 4294901760
  %v655 = vsub.f32 %v124, %v654
  %656 = vmatmul.mubr.f32.gmra.mxu0 %v655
  %v657 = vpop.f32.mrf.mxu0
  %v658 = vadd.f32 %v488, %v657
  %v659 = vpop.f32.mrf.mxu0
  %660 = vmatprep.mubr.f32.mxu0 0.0
  %v661 = vand.u32 %v127, 4294901760
  %v662 = vsub.f32 %v127, %v661
  %663 = vmatmul.mubr.f32.gmra.mxu0 %v662
  %v664 = vpop.f32.mrf.mxu0
  %v665 = vadd.f32 %v494, %v664
  %v666 = vpop.f32.mrf.mxu0
  %667 = vmatprep.mubr.f32.mxu0 0.0
  %v668 = vand.u32 %v130, 4294901760
  %v669 = vsub.f32 %v130, %v668
  %670 = vmatmul.mubr.f32.gmra.mxu0 %v669
  %v671 = vpop.f32.mrf.mxu0
  %v672 = vadd.f32 %v500, %v671
  %v673 = vpop.f32.mrf.mxu0
  %674 = vmatprep.mubr.f32.mxu0 0.0
  %v675 = vand.u32 %v133, 4294901760
  %v676 = vsub.f32 %v133, %v675
  %677 = vmatmul.mubr.f32.gmra.mxu0 %v676
  %v678 = vpop.f32.mrf.mxu0
  %v679 = vadd.f32 %v506, %v678
  %v680 = vpop.f32.mrf.mxu0
  %681 = vmatprep.mubr.f32.mxu0 0.0
  %v682 = vand.u32 %v136, 4294901760
  %v683 = vsub.f32 %v136, %v682
  %684 = vmatmul.mubr.f32.gmra.mxu0 %v683
  %v685 = vpop.f32.mrf.mxu0
  %v686 = vadd.f32 %v512, %v685
  %v687 = vpop.f32.mrf.mxu0
  %688 = vmatprep.mubr.f32.mxu0 0.0
  %v689 = vand.u32 %v139, 4294901760
  %v690 = vsub.f32 %v139, %v689
  %691 = vmatmul.mubr.f32.gmra.mxu0 %v690
  %v692 = vpop.f32.mrf.mxu0
  %v693 = vadd.f32 %v518, %v692
  %v694 = vpop.f32.mrf.mxu0
  %695 = vmatprep.mubr.f32.mxu0 0.0
  %v696 = vand.u32 %v142, 4294901760
  %v697 = vsub.f32 %v142, %v696
  %698 = vmatmul.mubr.f32.gmra.mxu0 %v697
  %v699 = vpop.f32.mrf.mxu0
  %v700 = vadd.f32 %v524, %v699
  %v701 = vpop.f32.mrf.mxu0
  %702 = vmatprep.mubr.f32.mxu0 0.0
  %v703 = vand.u32 %v145, 4294901760
  %v704 = vsub.f32 %v145, %v703
  %705 = vmatmul.mubr.f32.gmra.mxu0 %v704
  %v706 = vpop.f32.mrf.mxu0
  %v707 = vadd.f32 %v530, %v706
  %v708 = vpop.f32.mrf.mxu0
  %709 = vmatprep.mubr.f32.mxu0 0.0
  %v710 = vand.u32 %v148, 4294901760
  %v711 = vsub.f32 %v148, %v710
  %712 = vmatmul.mubr.f32.gmra.mxu0 %v711
  %v713 = vpop.f32.mrf.mxu0
  %v714 = vadd.f32 %v536, %v713
  %v715 = vpop.f32.mrf.mxu0
  %716 = vmatprep.mubr.f32.mxu0 0.0
  %v717 = vand.u32 %v151, 4294901760
  %v718 = vsub.f32 %v151, %v717
  %719 = vmatmul.mubr.f32.gmra.mxu0 %v718
  %v720 = vpop.f32.mrf.mxu0
  %v721 = vadd.f32 %v542, %v720
  %v722 = vpop.f32.mrf.mxu0
  %723 = vmatprep.mubr.f32.mxu0 0.0
  %v724 = vand.u32 %v154, 4294901760
  %v725 = vsub.f32 %v154, %v724
  %726 = vmatmul.mubr.f32.gmra.mxu0 %v725
  %v727 = vpop.f32.mrf.mxu0
  %v728 = vadd.f32 %v548, %v727
  %v729 = vpop.f32.mrf.mxu0
  %730 = vmatprep.mubr.f32.mxu0 0.0
  %v731 = vand.u32 %v157, 4294901760
  %v732 = vsub.f32 %v157, %v731
  %733 = vmatmul.mubr.f32.gmra.mxu0 %v732
  %v734 = vpop.f32.mrf.mxu0
  %v735 = vadd.f32 %v554, %v734
  %v736 = vpop.f32.mrf.mxu0
  %737 = vdwg.mxu0
  %738 = vmatprep.subr.mxu0 0.0
  %739 = vmatpush1.msra.mxu0 0.0
  %740 = vmatprep.subr.mxu0 0.0
  %741 = vmatpush1.msra.mxu0 0.0
  %742 = vmatprep.subr.mxu0 0.0
  %743 = vmatpush1.msra.mxu0 0.0
  %744 = vmatprep.subr.mxu0 0.0
  %745 = vmatpush1.msra.mxu0 0.0
  %746 = vmatprep.subr.mxu0 0.0
  %747 = vmatpush1.msra.mxu0 0.0
  %748 = vmatprep.subr.mxu0 0.0
  %749 = vmatpush1.msra.mxu0 0.0
  %750 = vmatprep.subr.mxu0 0.0
  %751 = vmatpush1.msra.mxu0 0.0
  %752 = vmatprep.subr.mxu0 0.0
  %753 = vmatpush1.msra.mxu0 0.0
  %754 = vmatprep.subr.mxu0 0.0
  %755 = vmatpush1.msra.mxu0 0.0
  %756 = vmatprep.subr.mxu0 0.0
  %757 = vmatpush1.msra.mxu0 0.0
  %758 = vmatprep.subr.mxu0 0.0
  %759 = vmatpush1.msra.mxu0 0.0
  %760 = vmatprep.subr.mxu0 0.0
  %761 = vmatpush1.msra.mxu0 0.0
  %762 = vmatprep.subr.mxu0 0.0
  %763 = vmatpush1.msra.mxu0 0.0
  %764 = vmatprep.subr.mxu0 0.0
  %765 = vmatpush1.msra.mxu0 0.0
  %766 = vmatprep.subr.mxu0 0.0
  %v767 = vand.u32 %v106, 4294901760
  %768 = vmatpush1.msra.mxu0 %v767
  %769 = vmatprep.subr.mxu0 0.0
  %v770 = vand.u32 %v105, 4294901760
  %771 = vmatpush1.msra.mxu0 %v770
  %772 = vmatprep.subr.mxu0 0.0
  %773 = vmatpush2.msra.mxu0 0.0
  %774 = vmatprep.subr.mxu0 0.0
  %775 = vmatpush2.msra.mxu0 0.0
  %776 = vmatprep.subr.mxu0 0.0
  %777 = vmatpush2.msra.mxu0 0.0
  %778 = vmatprep.subr.mxu0 0.0
  %779 = vmatpush2.msra.mxu0 0.0
  %780 = vmatprep.subr.mxu0 0.0
  %781 = vmatpush2.msra.mxu0 0.0
  %782 = vmatprep.subr.mxu0 0.0
  %783 = vmatpush2.msra.mxu0 0.0
  %784 = vmatprep.subr.mxu0 0.0
  %785 = vmatpush2.msra.mxu0 0.0
  %786 = vmatprep.subr.mxu0 0.0
  %787 = vmatpush2.msra.mxu0 0.0
  %788 = vmatprep.subr.mxu0 0.0
  %789 = vmatpush2.msra.mxu0 0.0
  %790 = vmatprep.subr.mxu0 0.0
  %791 = vmatpush2.msra.mxu0 0.0
  %792 = vmatprep.subr.mxu0 0.0
  %793 = vmatpush2.msra.mxu0 0.0
  %794 = vmatprep.subr.mxu0 0.0
  %795 = vmatpush2.msra.mxu0 0.0
  %796 = vmatprep.subr.mxu0 0.0
  %797 = vmatpush2.msra.mxu0 0.0
  %798 = vmatprep.subr.mxu0 0.0
  %799 = vmatpush2.msra.mxu0 0.0
  %800 = vmatprep.subr.mxu0 0.0
  %801 = vmatpush2.msra.mxu0 0.0
  %802 = vmatprep.subr.mxu0 0.0
  %803 = vmatpush2.msra.mxu0 0.0
  %804 = vmatprep.mubr.f32.mxu0 0.0
  %v805 = vand.u32 %v112, 4294901760
  %v806 = vsub.f32 %v112, %v805
  %v807 = vand.u32 %v806, 4294901760
  %808 = vmatmul.mubr.f32.gmra.mxu0 %v807
  %v809 = vpop.f32.mrf.mxu0
  %v810 = vadd.f32 %v630, %v809
  %v811 = vpop.f32.mrf.mxu0
  %812 = vmatprep.mubr.f32.mxu0 0.0
  %v813 = vand.u32 %v115, 4294901760
  %v814 = vsub.f32 %v115, %v813
  %v815 = vand.u32 %v814, 4294901760
  %816 = vmatmul.mubr.f32.gmra.mxu0 %v815
  %v817 = vpop.f32.mrf.mxu0
  %v818 = vadd.f32 %v637, %v817
  %v819 = vpop.f32.mrf.mxu0
  %820 = vmatprep.mubr.f32.mxu0 0.0
  %v821 = vand.u32 %v118, 4294901760
  %v822 = vsub.f32 %v118, %v821
  %v823 = vand.u32 %v822, 4294901760
  %824 = vmatmul.mubr.f32.gmra.mxu0 %v823
  %v825 = vpop.f32.mrf.mxu0
  %v826 = vadd.f32 %v644, %v825
  %v827 = vpop.f32.mrf.mxu0
  %828 = vmatprep.mubr.f32.mxu0 0.0
  %v829 = vand.u32 %v121, 4294901760
  %v830 = vsub.f32 %v121, %v829
  %v831 = vand.u32 %v830, 4294901760
  %832 = vmatmul.mubr.f32.gmra.mxu0 %v831
  %v833 = vpop.f32.mrf.mxu0
  %v834 = vadd.f32 %v651, %v833
  %v835 = vpop.f32.mrf.mxu0
  %836 = vmatprep.mubr.f32.mxu0 0.0
  %v837 = vand.u32 %v124, 4294901760
  %v838 = vsub.f32 %v124, %v837
  %v839 = vand.u32 %v838, 4294901760
  %840 = vmatmul.mubr.f32.gmra.mxu0 %v839
  %v841 = vpop.f32.mrf.mxu0
  %v842 = vadd.f32 %v658, %v841
  %v843 = vpop.f32.mrf.mxu0
  %844 = vmatprep.mubr.f32.mxu0 0.0
  %v845 = vand.u32 %v127, 4294901760
  %v846 = vsub.f32 %v127, %v845
  %v847 = vand.u32 %v846, 4294901760
  %848 = vmatmul.mubr.f32.gmra.mxu0 %v847
  %v849 = vpop.f32.mrf.mxu0
  %v850 = vadd.f32 %v665, %v849
  %v851 = vpop.f32.mrf.mxu0
  %852 = vmatprep.mubr.f32.mxu0 0.0
  %v853 = vand.u32 %v130, 4294901760
  %v854 = vsub.f32 %v130, %v853
  %v855 = vand.u32 %v854, 4294901760
  %856 = vmatmul.mubr.f32.gmra.mxu0 %v855
  %v857 = vpop.f32.mrf.mxu0
  %v858 = vadd.f32 %v672, %v857
  %v859 = vpop.f32.mrf.mxu0
  %860 = vmatprep.mubr.f32.mxu0 0.0
  %v861 = vand.u32 %v133, 4294901760
  %v862 = vsub.f32 %v133, %v861
  %v863 = vand.u32 %v862, 4294901760
  %864 = vmatmul.mubr.f32.gmra.mxu0 %v863
  %v865 = vpop.f32.mrf.mxu0
  %v866 = vadd.f32 %v679, %v865
  %v867 = vpop.f32.mrf.mxu0
  %868 = vmatprep.mubr.f32.mxu0 0.0
  %v869 = vand.u32 %v136, 4294901760
  %v870 = vsub.f32 %v136, %v869
  %v871 = vand.u32 %v870, 4294901760
  %872 = vmatmul.mubr.f32.gmra.mxu0 %v871
  %v873 = vpop.f32.mrf.mxu0
  %v874 = vadd.f32 %v686, %v873
  %v875 = vpop.f32.mrf.mxu0
  %876 = vmatprep.mubr.f32.mxu0 0.0
  %v877 = vand.u32 %v139, 4294901760
  %v878 = vsub.f32 %v139, %v877
  %v879 = vand.u32 %v878, 4294901760
  %880 = vmatmul.mubr.f32.gmra.mxu0 %v879
  %v881 = vpop.f32.mrf.mxu0
  %v882 = vadd.f32 %v693, %v881
  %v883 = vpop.f32.mrf.mxu0
  %884 = vmatprep.mubr.f32.mxu0 0.0
  %v885 = vand.u32 %v142, 4294901760
  %v886 = vsub.f32 %v142, %v885
  %v887 = vand.u32 %v886, 4294901760
  %888 = vmatmul.mubr.f32.gmra.mxu0 %v887
  %v889 = vpop.f32.mrf.mxu0
  %v890 = vadd.f32 %v700, %v889
  %v891 = vpop.f32.mrf.mxu0
  %892 = vmatprep.mubr.f32.mxu0 0.0
  %v893 = vand.u32 %v145, 4294901760
  %v894 = vsub.f32 %v145, %v893
  %v895 = vand.u32 %v894, 4294901760
  %896 = vmatmul.mubr.f32.gmra.mxu0 %v895
  %v897 = vpop.f32.mrf.mxu0
  %v898 = vadd.f32 %v707, %v897
  %v899 = vpop.f32.mrf.mxu0
  %900 = vmatprep.mubr.f32.mxu0 0.0
  %v901 = vand.u32 %v148, 4294901760
  %v902 = vsub.f32 %v148, %v901
  %v903 = vand.u32 %v902, 4294901760
  %904 = vmatmul.mubr.f32.gmra.mxu0 %v903
  %v905 = vpop.f32.mrf.mxu0
  %v906 = vadd.f32 %v714, %v905
  %v907 = vpop.f32.mrf.mxu0
  %908 = vmatprep.mubr.f32.mxu0 0.0
  %v909 = vand.u32 %v151, 4294901760
  %v910 = vsub.f32 %v151, %v909
  %v911 = vand.u32 %v910, 4294901760
  %912 = vmatmul.mubr.f32.gmra.mxu0 %v911
  %v913 = vpop.f32.mrf.mxu0
  %v914 = vadd.f32 %v721, %v913
  %v915 = vpop.f32.mrf.mxu0
  %916 = vmatprep.mubr.f32.mxu0 0.0
  %v917 = vand.u32 %v154, 4294901760
  %v918 = vsub.f32 %v154, %v917
  %v919 = vand.u32 %v918, 4294901760
  %920 = vmatmul.mubr.f32.gmra.mxu0 %v919
  %v921 = vpop.f32.mrf.mxu0
  %v922 = vadd.f32 %v728, %v921
  %v923 = vpop.f32.mrf.mxu0
  %924 = vmatprep.mubr.f32.mxu0 0.0
  %v925 = vand.u32 %v157, 4294901760
  %v926 = vsub.f32 %v157, %v925
  %v927 = vand.u32 %v926, 4294901760
  %928 = vmatmul.mubr.f32.gmra.mxu0 %v927
  %v929 = vpop.f32.mrf.mxu0
  %v930 = vadd.f32 %v735, %v929
  %v931 = vpop.f32.mrf.mxu0
  %932 = vdwg.mxu0
  %933 = vmatprep.subr.mxu0 0.0
  %934 = vmatpush1.msra.mxu0 0.0
  %935 = vmatprep.subr.mxu0 0.0
  %936 = vmatpush1.msra.mxu0 0.0
  %937 = vmatprep.subr.mxu0 0.0
  %938 = vmatpush1.msra.mxu0 0.0
  %939 = vmatprep.subr.mxu0 0.0
  %940 = vmatpush1.msra.mxu0 0.0
  %941 = vmatprep.subr.mxu0 0.0
  %942 = vmatpush1.msra.mxu0 0.0
  %943 = vmatprep.subr.mxu0 0.0
  %944 = vmatpush1.msra.mxu0 0.0
  %945 = vmatprep.subr.mxu0 0.0
  %946 = vmatpush1.msra.mxu0 0.0
  %947 = vmatprep.subr.mxu0 0.0
  %948 = vmatpush1.msra.mxu0 0.0
  %949 = vmatprep.subr.mxu0 0.0
  %950 = vmatpush1.msra.mxu0 0.0
  %951 = vmatprep.subr.mxu0 0.0
  %952 = vmatpush1.msra.mxu0 0.0
  %953 = vmatprep.subr.mxu0 0.0
  %954 = vmatpush1.msra.mxu0 0.0
  %955 = vmatprep.subr.mxu0 0.0
  %956 = vmatpush1.msra.mxu0 0.0
  %957 = vmatprep.subr.mxu0 0.0
  %958 = vmatpush1.msra.mxu0 0.0
  %959 = vmatprep.subr.mxu0 0.0
  %960 = vmatpush1.msra.mxu0 0.0
  %961 = vmatprep.subr.mxu0 0.0
  %v962 = vand.u32 %v106, 4294901760
  %v963 = vsub.f32 %v106, %v962
  %v964 = vand.u32 %v963, 4294901760
  %965 = vmatpush1.msra.mxu0 %v964
  %966 = vmatprep.subr.mxu0 0.0
  %v967 = vand.u32 %v105, 4294901760
  %v968 = vsub.f32 %v105, %v967
  %v969 = vand.u32 %v968, 4294901760
  %970 = vmatpush1.msra.mxu0 %v969
  %971 = vmatprep.subr.mxu0 0.0
  %972 = vmatpush2.msra.mxu0 0.0
  %973 = vmatprep.subr.mxu0 0.0
  %974 = vmatpush2.msra.mxu0 0.0
  %975 = vmatprep.subr.mxu0 0.0
  %976 = vmatpush2.msra.mxu0 0.0
  %977 = vmatprep.subr.mxu0 0.0
  %978 = vmatpush2.msra.mxu0 0.0
  %979 = vmatprep.subr.mxu0 0.0
  %980 = vmatpush2.msra.mxu0 0.0
  %981 = vmatprep.subr.mxu0 0.0
  %982 = vmatpush2.msra.mxu0 0.0
  %983 = vmatprep.subr.mxu0 0.0
  %984 = vmatpush2.msra.mxu0 0.0
  %985 = vmatprep.subr.mxu0 0.0
  %986 = vmatpush2.msra.mxu0 0.0
  %987 = vmatprep.subr.mxu0 0.0
  %988 = vmatpush2.msra.mxu0 0.0
  %989 = vmatprep.subr.mxu0 0.0
  %990 = vmatpush2.msra.mxu0 0.0
  %991 = vmatprep.subr.mxu0 0.0
  %992 = vmatpush2.msra.mxu0 0.0
  %993 = vmatprep.subr.mxu0 0.0
  %994 = vmatpush2.msra.mxu0 0.0
  %995 = vmatprep.subr.mxu0 0.0
  %996 = vmatpush2.msra.mxu0 0.0
  %997 = vmatprep.subr.mxu0 0.0
  %998 = vmatpush2.msra.mxu0 0.0
  %999 = vmatprep.subr.mxu0 0.0
  %1000 = vmatpush2.msra.mxu0 0.0
  %1001 = vmatprep.subr.mxu0 0.0
  %1002 = vmatpush2.msra.mxu0 0.0
  %1003 = vmatprep.mubr.f32.mxu0 0.0
  %v1004 = vand.u32 %v112, 4294901760
  %1005 = vmatmul.mubr.f32.gmra.mxu0 %v1004
  %v1006 = vpop.f32.mrf.mxu0
  %v1007 = vadd.f32 %v810, %v1006
  %v1008 = vpop.f32.mrf.mxu0
  %1009 = vmatprep.mubr.f32.mxu0 0.0
  %v1010 = vand.u32 %v115, 4294901760
  %1011 = vmatmul.mubr.f32.gmra.mxu0 %v1010
  %v1012 = vpop.f32.mrf.mxu0
  %v1013 = vadd.f32 %v818, %v1012
  %v1014 = vpop.f32.mrf.mxu0
  %1015 = vmatprep.mubr.f32.mxu0 0.0
  %v1016 = vand.u32 %v118, 4294901760
  %1017 = vmatmul.mubr.f32.gmra.mxu0 %v1016
  %v1018 = vpop.f32.mrf.mxu0
  %v1019 = vadd.f32 %v826, %v1018
  %v1020 = vpop.f32.mrf.mxu0
  %1021 = vmatprep.mubr.f32.mxu0 0.0
  %v1022 = vand.u32 %v121, 4294901760
  %1023 = vmatmul.mubr.f32.gmra.mxu0 %v1022
  %v1024 = vpop.f32.mrf.mxu0
  %v1025 = vadd.f32 %v834, %v1024
  %v1026 = vpop.f32.mrf.mxu0
  %1027 = vmatprep.mubr.f32.mxu0 0.0
  %v1028 = vand.u32 %v124, 4294901760
  %1029 = vmatmul.mubr.f32.gmra.mxu0 %v1028
  %v1030 = vpop.f32.mrf.mxu0
  %v1031 = vadd.f32 %v842, %v1030
  %v1032 = vpop.f32.mrf.mxu0
  %1033 = vmatprep.mubr.f32.mxu0 0.0
  %v1034 = vand.u32 %v127, 4294901760
  %1035 = vmatmul.mubr.f32.gmra.mxu0 %v1034
  %v1036 = vpop.f32.mrf.mxu0
  %v1037 = vadd.f32 %v850, %v1036
  %v1038 = vpop.f32.mrf.mxu0
  %1039 = vmatprep.mubr.f32.mxu0 0.0
  %v1040 = vand.u32 %v130, 4294901760
  %1041 = vmatmul.mubr.f32.gmra.mxu0 %v1040
  %v1042 = vpop.f32.mrf.mxu0
  %v1043 = vadd.f32 %v858, %v1042
  %v1044 = vpop.f32.mrf.mxu0
  %1045 = vmatprep.mubr.f32.mxu0 0.0
  %v1046 = vand.u32 %v133, 4294901760
  %1047 = vmatmul.mubr.f32.gmra.mxu0 %v1046
  %v1048 = vpop.f32.mrf.mxu0
  %v1049 = vadd.f32 %v866, %v1048
  %v1050 = vpop.f32.mrf.mxu0
  %1051 = vmatprep.mubr.f32.mxu0 0.0
  %v1052 = vand.u32 %v136, 4294901760
  %1053 = vmatmul.mubr.f32.gmra.mxu0 %v1052
  %v1054 = vpop.f32.mrf.mxu0
  %v1055 = vadd.f32 %v874, %v1054
  %v1056 = vpop.f32.mrf.mxu0
  %1057 = vmatprep.mubr.f32.mxu0 0.0
  %v1058 = vand.u32 %v139, 4294901760
  %1059 = vmatmul.mubr.f32.gmra.mxu0 %v1058
  %v1060 = vpop.f32.mrf.mxu0
  %v1061 = vadd.f32 %v882, %v1060
  %v1062 = vpop.f32.mrf.mxu0
  %1063 = vmatprep.mubr.f32.mxu0 0.0
  %v1064 = vand.u32 %v142, 4294901760
  %1065 = vmatmul.mubr.f32.gmra.mxu0 %v1064
  %v1066 = vpop.f32.mrf.mxu0
  %v1067 = vadd.f32 %v890, %v1066
  %v1068 = vpop.f32.mrf.mxu0
  %1069 = vmatprep.mubr.f32.mxu0 0.0
  %v1070 = vand.u32 %v145, 4294901760
  %1071 = vmatmul.mubr.f32.gmra.mxu0 %v1070
  %v1072 = vpop.f32.mrf.mxu0
  %v1073 = vadd.f32 %v898, %v1072
  %v1074 = vpop.f32.mrf.mxu0
  %1075 = vmatprep.mubr.f32.mxu0 0.0
  %v1076 = vand.u32 %v148, 4294901760
  %1077 = vmatmul.mubr.f32.gmra.mxu0 %v1076
  %v1078 = vpop.f32.mrf.mxu0
  %v1079 = vadd.f32 %v906, %v1078
  %v1080 = vpop.f32.mrf.mxu0
  %1081 = vmatprep.mubr.f32.mxu0 0.0
  %v1082 = vand.u32 %v151, 4294901760
  %1083 = vmatmul.mubr.f32.gmra.mxu0 %v1082
  %v1084 = vpop.f32.mrf.mxu0
  %v1085 = vadd.f32 %v914, %v1084
  %v1086 = vpop.f32.mrf.mxu0
  %1087 = vmatprep.mubr.f32.mxu0 0.0
  %v1088 = vand.u32 %v154, 4294901760
  %1089 = vmatmul.mubr.f32.gmra.mxu0 %v1088
  %v1090 = vpop.f32.mrf.mxu0
  %v1091 = vadd.f32 %v922, %v1090
  %v1092 = vpop.f32.mrf.mxu0
  %1093 = vmatprep.mubr.f32.mxu0 0.0
  %v1094 = vand.u32 %v157, 4294901760
  %1095 = vmatmul.mubr.f32.gmra.mxu0 %v1094
  %v1096 = vpop.f32.mrf.mxu0
  %v1097 = vadd.f32 %v930, %v1096
  %v1098 = vpop.f32.mrf.mxu0
  %1099 = vdwg.mxu0
  %1100 = vmatprep.subr.mxu0 0.0
  %1101 = vmatpush1.msra.mxu0 0.0
  %1102 = vmatprep.subr.mxu0 0.0
  %1103 = vmatpush1.msra.mxu0 0.0
  %1104 = vmatprep.subr.mxu0 0.0
  %1105 = vmatpush1.msra.mxu0 0.0
  %1106 = vmatprep.subr.mxu0 0.0
  %1107 = vmatpush1.msra.mxu0 0.0
  %1108 = vmatprep.subr.mxu0 0.0
  %1109 = vmatpush1.msra.mxu0 0.0
  %1110 = vmatprep.subr.mxu0 0.0
  %1111 = vmatpush1.msra.mxu0 0.0
  %1112 = vmatprep.subr.mxu0 0.0
  %1113 = vmatpush1.msra.mxu0 0.0
  %1114 = vmatprep.subr.mxu0 0.0
  %1115 = vmatpush1.msra.mxu0 0.0
  %1116 = vmatprep.subr.mxu0 0.0
  %1117 = vmatpush1.msra.mxu0 0.0
  %1118 = vmatprep.subr.mxu0 0.0
  %1119 = vmatpush1.msra.mxu0 0.0
  %1120 = vmatprep.subr.mxu0 0.0
  %1121 = vmatpush1.msra.mxu0 0.0
  %1122 = vmatprep.subr.mxu0 0.0
  %1123 = vmatpush1.msra.mxu0 0.0
  %1124 = vmatprep.subr.mxu0 0.0
  %1125 = vmatpush1.msra.mxu0 0.0
  %1126 = vmatprep.subr.mxu0 0.0
  %1127 = vmatpush1.msra.mxu0 0.0
  %1128 = vmatprep.subr.mxu0 0.0
  %v1129 = vand.u32 %v106, 4294901760
  %1130 = vmatpush1.msra.mxu0 %v1129
  %1131 = vmatprep.subr.mxu0 0.0
  %v1132 = vand.u32 %v105, 4294901760
  %1133 = vmatpush1.msra.mxu0 %v1132
  %1134 = vmatprep.subr.mxu0 0.0
  %1135 = vmatpush2.msra.mxu0 0.0
  %1136 = vmatprep.subr.mxu0 0.0
  %1137 = vmatpush2.msra.mxu0 0.0
  %1138 = vmatprep.subr.mxu0 0.0
  %1139 = vmatpush2.msra.mxu0 0.0
  %1140 = vmatprep.subr.mxu0 0.0
  %1141 = vmatpush2.msra.mxu0 0.0
  %1142 = vmatprep.subr.mxu0 0.0
  %1143 = vmatpush2.msra.mxu0 0.0
  %1144 = vmatprep.subr.mxu0 0.0
  %1145 = vmatpush2.msra.mxu0 0.0
  %1146 = vmatprep.subr.mxu0 0.0
  %1147 = vmatpush2.msra.mxu0 0.0
  %1148 = vmatprep.subr.mxu0 0.0
  %1149 = vmatpush2.msra.mxu0 0.0
  %1150 = vmatprep.subr.mxu0 0.0
  %1151 = vmatpush2.msra.mxu0 0.0
  %1152 = vmatprep.subr.mxu0 0.0
  %1153 = vmatpush2.msra.mxu0 0.0
  %1154 = vmatprep.subr.mxu0 0.0
  %1155 = vmatpush2.msra.mxu0 0.0
  %1156 = vmatprep.subr.mxu0 0.0
  %1157 = vmatpush2.msra.mxu0 0.0
  %1158 = vmatprep.subr.mxu0 0.0
  %1159 = vmatpush2.msra.mxu0 0.0
  %1160 = vmatprep.subr.mxu0 0.0
  %1161 = vmatpush2.msra.mxu0 0.0
  %1162 = vmatprep.subr.mxu0 0.0
  %1163 = vmatpush2.msra.mxu0 0.0
  %1164 = vmatprep.subr.mxu0 0.0
  %1165 = vmatpush2.msra.mxu0 0.0
  %1166 = vmatprep.mubr.f32.mxu0 0.0
  %v1167 = vand.u32 %v112, 4294901760
  %1168 = vmatmul.mubr.f32.gmra.mxu0 %v1167
  %v1169 = vpop.f32.mrf.mxu0
  %v1170 = vadd.f32 %v1007, %v1169
  %v1171 = vpop.f32.mrf.mxu0
  %1172 = vmatprep.mubr.f32.mxu0 0.0
  %v1173 = vand.u32 %v115, 4294901760
  %1174 = vmatmul.mubr.f32.gmra.mxu0 %v1173
  %v1175 = vpop.f32.mrf.mxu0
  %v1176 = vadd.f32 %v1013, %v1175
  %v1177 = vpop.f32.mrf.mxu0
  %1178 = vmatprep.mubr.f32.mxu0 0.0
  %v1179 = vand.u32 %v118, 4294901760
  %1180 = vmatmul.mubr.f32.gmra.mxu0 %v1179
  %v1181 = vpop.f32.mrf.mxu0
  %v1182 = vadd.f32 %v1019, %v1181
  %v1183 = vpop.f32.mrf.mxu0
  %1184 = vmatprep.mubr.f32.mxu0 0.0
  %v1185 = vand.u32 %v121, 4294901760
  %1186 = vmatmul.mubr.f32.gmra.mxu0 %v1185
  %v1187 = vpop.f32.mrf.mxu0
  %v1188 = vadd.f32 %v1025, %v1187
  %v1189 = vpop.f32.mrf.mxu0
  %1190 = vmatprep.mubr.f32.mxu0 0.0
  %v1191 = vand.u32 %v124, 4294901760
  %1192 = vmatmul.mubr.f32.gmra.mxu0 %v1191
  %v1193 = vpop.f32.mrf.mxu0
  %v1194 = vadd.f32 %v1031, %v1193
  %v1195 = vpop.f32.mrf.mxu0
  %1196 = vmatprep.mubr.f32.mxu0 0.0
  %v1197 = vand.u32 %v127, 4294901760
  %1198 = vmatmul.mubr.f32.gmra.mxu0 %v1197
  %v1199 = vpop.f32.mrf.mxu0
  %v1200 = vadd.f32 %v1037, %v1199
  %v1201 = vpop.f32.mrf.mxu0
  %1202 = vmatprep.mubr.f32.mxu0 0.0
  %v1203 = vand.u32 %v130, 4294901760
  %1204 = vmatmul.mubr.f32.gmra.mxu0 %v1203
  %v1205 = vpop.f32.mrf.mxu0
  %v1206 = vadd.f32 %v1043, %v1205
  %v1207 = vpop.f32.mrf.mxu0
  %1208 = vmatprep.mubr.f32.mxu0 0.0
  %v1209 = vand.u32 %v133, 4294901760
  %1210 = vmatmul.mubr.f32.gmra.mxu0 %v1209
  %v1211 = vpop.f32.mrf.mxu0
  %v1212 = vadd.f32 %v1049, %v1211
  %v1213 = vpop.f32.mrf.mxu0
  %1214 = vmatprep.mubr.f32.mxu0 0.0
  %v1215 = vand.u32 %v136, 4294901760
  %1216 = vmatmul.mubr.f32.gmra.mxu0 %v1215
  %v1217 = vpop.f32.mrf.mxu0
  %v1218 = vadd.f32 %v1055, %v1217
  %v1219 = vpop.f32.mrf.mxu0
  %1220 = vmatprep.mubr.f32.mxu0 0.0
  %v1221 = vand.u32 %v139, 4294901760
  %1222 = vmatmul.mubr.f32.gmra.mxu0 %v1221
  %v1223 = vpop.f32.mrf.mxu0
  %v1224 = vadd.f32 %v1061, %v1223
  %v1225 = vpop.f32.mrf.mxu0
  %1226 = vmatprep.mubr.f32.mxu0 0.0
  %v1227 = vand.u32 %v142, 4294901760
  %1228 = vmatmul.mubr.f32.gmra.mxu0 %v1227
  %v1229 = vpop.f32.mrf.mxu0
  %v1230 = vadd.f32 %v1067, %v1229
  %v1231 = vpop.f32.mrf.mxu0
  %1232 = vmatprep.mubr.f32.mxu0 0.0
  %v1233 = vand.u32 %v145, 4294901760
  %1234 = vmatmul.mubr.f32.gmra.mxu0 %v1233
  %v1235 = vpop.f32.mrf.mxu0
  %v1236 = vadd.f32 %v1073, %v1235
  %v1237 = vpop.f32.mrf.mxu0
  %1238 = vmatprep.mubr.f32.mxu0 0.0
  %v1239 = vand.u32 %v148, 4294901760
  %1240 = vmatmul.mubr.f32.gmra.mxu0 %v1239
  %v1241 = vpop.f32.mrf.mxu0
  %v1242 = vadd.f32 %v1079, %v1241
  %v1243 = vpop.f32.mrf.mxu0
  %1244 = vmatprep.mubr.f32.mxu0 0.0
  %v1245 = vand.u32 %v151, 4294901760
  %1246 = vmatmul.mubr.f32.gmra.mxu0 %v1245
  %v1247 = vpop.f32.mrf.mxu0
  %v1248 = vadd.f32 %v1085, %v1247
  %v1249 = vpop.f32.mrf.mxu0
  %1250 = vmatprep.mubr.f32.mxu0 0.0
  %v1251 = vand.u32 %v154, 4294901760
  %1252 = vmatmul.mubr.f32.gmra.mxu0 %v1251
  %v1253 = vpop.f32.mrf.mxu0
  %v1254 = vadd.f32 %v1091, %v1253
  %v1255 = vpop.f32.mrf.mxu0
  %1256 = vmatprep.mubr.f32.mxu0 0.0
  %v1257 = vand.u32 %v157, 4294901760
  %1258 = vmatmul.mubr.f32.gmra.mxu0 %v1257
  %v1259 = vpop.f32.mrf.mxu0
  %v1260 = vadd.f32 %v1097, %v1259
  %v1261 = vpop.f32.mrf.mxu0
  %1262 = vdwg.mxu0
  %v1264 = vlaneseq
  %v1265 = vshrl.u32 %v1264, 7
  %v1266 = vsub.s32 0, %v1265
  %v1267 = vrot.slane %v107, %v1266
  %1268 = vrot.lane.b32.xlu0 %v1267, 32
  %v1269 = vpop.permute.xlu0 %1268
  %v1271 = vadd.f32 %v1170, %v1269
  %v1272 = vadd.f32 %v1176, %v1269
  %v1273 = vadd.f32 %v1182, %v1269
  %v1274 = vadd.f32 %v1188, %v1269
  %v1275 = vadd.f32 %v1194, %v1269
  %v1276 = vadd.f32 %v1200, %v1269
  %v1277 = vadd.f32 %v1206, %v1269
  %v1278 = vadd.f32 %v1212, %v1269
  %v1279 = vadd.f32 %v1218, %v1269
  %v1280 = vadd.f32 %v1224, %v1269
  %v1281 = vadd.f32 %v1230, %v1269
  %v1282 = vadd.f32 %v1236, %v1269
  %v1283 = vadd.f32 %v1242, %v1269
  %v1284 = vadd.f32 %v1248, %v1269
  %v1285 = vadd.f32 %v1254, %v1269
  %v1286 = vadd.f32 %v1260, %v1269
  %vm1287 = vcmask 261120
  %v1288 = vsel %vm1287, %v1170, 0.0
  %v1289 = vsel %vm1287, %v1176, 0.0
  %v1290 = vadd.f32 %v1288, %v1289
  %v1291 = vsel %vm1287, %v1182, 0.0
  %v1292 = vadd.f32 %v1290, %v1291
  %v1293 = vsel %vm1287, %v1188, 0.0
  %v1294 = vadd.f32 %v1292, %v1293
  %v1295 = vsel %vm1287, %v1194, 0.0
  %v1296 = vadd.f32 %v1294, %v1295
  %v1297 = vsel %vm1287, %v1200, 0.0
  %v1298 = vadd.f32 %v1296, %v1297
  %v1299 = vsel %vm1287, %v1206, 0.0
  %v1300 = vadd.f32 %v1298, %v1299
  %v1301 = vsel %vm1287, %v1212, 0.0
  %v1302 = vadd.f32 %v1300, %v1301
  %v1303 = vsel %vm1287, %v1218, 0.0
  %v1304 = vadd.f32 %v1302, %v1303
  %v1305 = vsel %vm1287, %v1224, 0.0
  %v1306 = vadd.f32 %v1304, %v1305
  %v1307 = vsel %vm1287, %v1230, 0.0
  %v1308 = vadd.f32 %v1306, %v1307
  %v1309 = vsel %vm1287, %v1236, 0.0
  %v1310 = vadd.f32 %v1308, %v1309
  %v1311 = vsel %vm1287, %v1242, 0.0
  %v1312 = vadd.f32 %v1310, %v1311
  %v1313 = vsel %vm1287, %v1248, 0.0
  %v1314 = vadd.f32 %v1312, %v1313
  %v1315 = vsel %vm1287, %v1254, 0.0
  %v1316 = vadd.f32 %v1314, %v1315
  %v1317 = vsel %vm1287, %v1260, 0.0
  %v1318 = vadd.f32 %v1316, %v1317
  %v1319 = vrot.slane %v1318, 4
  %v1320 = vadd.f32 %v1318, %v1319
  %v1321 = vrot.slane %v1320, 2
  %v1322 = vadd.f32 %v1320, %v1321
  %v1323 = vrot.slane %v1322, 1
  %v1324 = vadd.f32 %v1322, %v1323
  %v1325 = vrcp.pop 128.0
  %v1326 = vmul.f32 %v1324, %v1325
  %v1327 = vmul.f32 %v1170, %v1170
  %v1328 = vmul.f32 %v1176, %v1176
  %v1329 = vmul.f32 %v1182, %v1182
  %v1330 = vmul.f32 %v1188, %v1188
  %v1331 = vmul.f32 %v1194, %v1194
  %v1332 = vmul.f32 %v1200, %v1200
  %v1333 = vmul.f32 %v1206, %v1206
  %v1334 = vmul.f32 %v1212, %v1212
  %v1335 = vmul.f32 %v1218, %v1218
  %v1336 = vmul.f32 %v1224, %v1224
  %v1337 = vmul.f32 %v1230, %v1230
  %v1338 = vmul.f32 %v1236, %v1236
  %v1339 = vmul.f32 %v1242, %v1242
  %v1340 = vmul.f32 %v1248, %v1248
  %v1341 = vmul.f32 %v1254, %v1254
  %v1342 = vmul.f32 %v1260, %v1260
  %v1343 = vsel %vm1287, %v1327, 0.0
  %v1344 = vsel %vm1287, %v1328, 0.0
  %v1345 = vadd.f32 %v1343, %v1344
  %v1346 = vsel %vm1287, %v1329, 0.0
  %v1347 = vadd.f32 %v1345, %v1346
  %v1348 = vsel %vm1287, %v1330, 0.0
  %v1349 = vadd.f32 %v1347, %v1348
  %v1350 = vsel %vm1287, %v1331, 0.0
  %v1351 = vadd.f32 %v1349, %v1350
  %v1352 = vsel %vm1287, %v1332, 0.0
  %v1353 = vadd.f32 %v1351, %v1352
  %v1354 = vsel %vm1287, %v1333, 0.0
  %v1355 = vadd.f32 %v1353, %v1354
  %v1356 = vsel %vm1287, %v1334, 0.0
  %v1357 = vadd.f32 %v1355, %v1356
  %v1358 = vsel %vm1287, %v1335, 0.0
  %v1359 = vadd.f32 %v1357, %v1358
  %v1360 = vsel %vm1287, %v1336, 0.0
  %v1361 = vadd.f32 %v1359, %v1360
  %v1362 = vsel %vm1287, %v1337, 0.0
  %v1363 = vadd.f32 %v1361, %v1362
  %v1364 = vsel %vm1287, %v1338, 0.0
  %v1365 = vadd.f32 %v1363, %v1364
  %v1366 = vsel %vm1287, %v1339, 0.0
  %v1367 = vadd.f32 %v1365, %v1366
  %v1368 = vsel %vm1287, %v1340, 0.0
  %v1369 = vadd.f32 %v1367, %v1368
  %v1370 = vsel %vm1287, %v1341, 0.0
  %v1371 = vadd.f32 %v1369, %v1370
  %v1372 = vsel %vm1287, %v1342, 0.0
  %v1373 = vadd.f32 %v1371, %v1372
  %v1374 = vrot.slane %v1373, 4
  %v1375 = vadd.f32 %v1373, %v1374
  %v1376 = vrot.slane %v1375, 2
  %v1377 = vadd.f32 %v1375, %v1376
  %v1378 = vrot.slane %v1377, 1
  %v1379 = vadd.f32 %v1377, %v1378
  %v1380 = vmul.f32 %v1379, %v1325
  %v1381 = vmul.f32 %v1326, %v1326
  %v1382 = vsub.f32 %v1380, %v1381
  %v1383 = vsub.f32 %v1170, %v1326
  %v1384 = vsub.f32 %v1176, %v1326
  %v1385 = vsub.f32 %v1182, %v1326
  %v1386 = vsub.f32 %v1188, %v1326
  %v1387 = vsub.f32 %v1194, %v1326
  %v1388 = vsub.f32 %v1200, %v1326
  %v1389 = vsub.f32 %v1206, %v1326
  %v1390 = vsub.f32 %v1212, %v1326
  %v1391 = vsub.f32 %v1218, %v1326
  %v1392 = vsub.f32 %v1224, %v1326
  %v1393 = vsub.f32 %v1230, %v1326
  %v1394 = vsub.f32 %v1236, %v1326
  %v1395 = vsub.f32 %v1242, %v1326
  %v1396 = vsub.f32 %v1248, %v1326
  %v1397 = vsub.f32 %v1254, %v1326
  %v1398 = vsub.f32 %v1260, %v1326
  %v1399 = vadd.f32 %v1382, 1e-05
  %v1400 = vrsqrt.pop %v1399
  %v1401 = vmul.f32 %v1383, %v1400
  %v1402 = vmul.f32 %v1384, %v1400
  %v1403 = vmul.f32 %v1385, %v1400
  %v1404 = vmul.f32 %v1386, %v1400
  %v1405 = vmul.f32 %v1387, %v1400
  %v1406 = vmul.f32 %v1388, %v1400
  %v1407 = vmul.f32 %v1389, %v1400
  %v1408 = vmul.f32 %v1390, %v1400
  %v1409 = vmul.f32 %v1391, %v1400
  %v1410 = vmul.f32 %v1392, %v1400
  %v1411 = vmul.f32 %v1393, %v1400
  %v1412 = vmul.f32 %v1394, %v1400
  %v1413 = vmul.f32 %v1395, %v1400
  %v1414 = vmul.f32 %v1396, %v1400
  %v1415 = vmul.f32 %v1397, %v1400
  %v1416 = vmul.f32 %v1398, %v1400
  %v1418 = vlaneseq
  %v1419 = vshrl.u32 %v1418, 7
  %v1420 = vsub.s32 0, %v1419
  %v1421 = vrot.slane %v108, %v1420
  %v1423 = vmul.f32 %v1401, %v1421
  %v1424 = vmul.f32 %v1402, %v1421
  %v1425 = vmul.f32 %v1403, %v1421
  %v1426 = vmul.f32 %v1404, %v1421
  %v1427 = vmul.f32 %v1405, %v1421
  %v1428 = vmul.f32 %v1406, %v1421
  %v1429 = vmul.f32 %v1407, %v1421
  %v1430 = vmul.f32 %v1408, %v1421
  %v1431 = vmul.f32 %v1409, %v1421
  %v1432 = vmul.f32 %v1410, %v1421
  %v1433 = vmul.f32 %v1411, %v1421
  %v1434 = vmul.f32 %v1412, %v1421
  %v1435 = vmul.f32 %v1413, %v1421
  %v1436 = vmul.f32 %v1414, %v1421
  %v1437 = vmul.f32 %v1415, %v1421
  %v1438 = vmul.f32 %v1416, %v1421
  %v1440 = vlaneseq
  %v1441 = vshrl.u32 %v1440, 7
  %v1442 = vsub.s32 0, %v1441
  %v1443 = vrot.slane %v109, %v1442
  %v1445 = vadd.f32 %v1423, %v1443
  %v1446 = vadd.f32 %v1424, %v1443
  %v1447 = vadd.f32 %v1425, %v1443
  %v1448 = vadd.f32 %v1426, %v1443
  %v1449 = vadd.f32 %v1427, %v1443
  %v1450 = vadd.f32 %v1428, %v1443
  %v1451 = vadd.f32 %v1429, %v1443
  %v1452 = vadd.f32 %v1430, %v1443
  %v1453 = vadd.f32 %v1431, %v1443
  %v1454 = vadd.f32 %v1432, %v1443
  %v1455 = vadd.f32 %v1433, %v1443
  %v1456 = vadd.f32 %v1434, %v1443
  %v1457 = vadd.f32 %v1435, %v1443
  %v1458 = vadd.f32 %v1436, %v1443
  %v1459 = vadd.f32 %v1437, %v1443
  %v1460 = vadd.f32 %v1438, %v1443
  %vm1461 = vcmp.gt.f32.partialorder %v1445, 0.0
  %vm1462 = vcmp.gt.f32.partialorder %v1446, 0.0
  %vm1463 = vcmp.gt.f32.partialorder %v1447, 0.0
  %vm1464 = vcmp.gt.f32.partialorder %v1448, 0.0
  %vm1465 = vcmp.gt.f32.partialorder %v1449, 0.0
  %vm1466 = vcmp.gt.f32.partialorder %v1450, 0.0
  %vm1467 = vcmp.gt.f32.partialorder %v1451, 0.0
  %vm1468 = vcmp.gt.f32.partialorder %v1452, 0.0
  %vm1469 = vcmp.gt.f32.partialorder %v1453, 0.0
  %vm1470 = vcmp.gt.f32.partialorder %v1454, 0.0
  %vm1471 = vcmp.gt.f32.partialorder %v1455, 0.0
  %vm1472 = vcmp.gt.f32.partialorder %v1456, 0.0
  %vm1473 = vcmp.gt.f32.partialorder %v1457, 0.0
  %vm1474 = vcmp.gt.f32.partialorder %v1458, 0.0
  %vm1475 = vcmp.gt.f32.partialorder %v1459, 0.0
  %vm1476 = vcmp.gt.f32.partialorder %v1460, 0.0
  %v1477 = vmul.f32 %v1445, 0.01
  %v1478 = vmul.f32 %v1446, 0.01
  %v1479 = vmul.f32 %v1447, 0.01
  %v1480 = vmul.f32 %v1448, 0.01
  %v1481 = vmul.f32 %v1449, 0.01
  %v1482 = vmul.f32 %v1450, 0.01
  %v1483 = vmul.f32 %v1451, 0.01
  %v1484 = vmul.f32 %v1452, 0.01
  %v1485 = vmul.f32 %v1453, 0.01
  %v1486 = vmul.f32 %v1454, 0.01
  %v1487 = vmul.f32 %v1455, 0.01
  %v1488 = vmul.f32 %v1456, 0.01
  %v1489 = vmul.f32 %v1457, 0.01
  %v1490 = vmul.f32 %v1458, 0.01
  %v1491 = vmul.f32 %v1459, 0.01
  %v1492 = vmul.f32 %v1460, 0.01
  %v1493 = vsel %vm1461, %v1445, %v1477
  %v1494 = vsel %vm1462, %v1446, %v1478
  %v1495 = vsel %vm1463, %v1447, %v1479
  %v1496 = vsel %vm1464, %v1448, %v1480
  %v1497 = vsel %vm1465, %v1449, %v1481
  %v1498 = vsel %vm1466, %v1450, %v1482
  %v1499 = vsel %vm1467, %v1451, %v1483
  %v1500 = vsel %vm1468, %v1452, %v1484
  %v1501 = vsel %vm1469, %v1453, %v1485
  %v1502 = vsel %vm1470, %v1454, %v1486
  %v1503 = vsel %vm1471, %v1455, %v1487
  %v1504 = vsel %vm1472, %v1456, %v1488
  %v1505 = vsel %vm1473, %v1457, %v1489
  %v1506 = vsel %vm1474, %v1458, %v1490
  %v1507 = vsel %vm1475, %v1459, %v1491
  %v1508 = vsel %vm1476, %v1460, %v1492
  %1525 = vrot.lane.b32.xlu0 %v1271, 96
  %v1526 = vpop.permute.xlu0 %1525
  %1527 = vrot.lane.b32.xlu0 %v1272, 96
  %v1528 = vpop.permute.xlu0 %1527
  %1529 = vrot.lane.b32.xlu0 %v1273, 96
  %v1530 = vpop.permute.xlu0 %1529
  %1531 = vrot.lane.b32.xlu0 %v1274, 96
  %v1532 = vpop.permute.xlu0 %1531
  %1533 = vrot.lane.b32.xlu0 %v1275, 96
  %v1534 = vpop.permute.xlu0 %1533
  %1535 = vrot.lane.b32.xlu0 %v1276, 96
  %v1536 = vpop.permute.xlu0 %1535
  %1537 = vrot.lane.b32.xlu0 %v1277, 96
  %v1538 = vpop.permute.xlu0 %1537
  %1539 = vrot.lane.b32.xlu0 %v1278, 96
  %v1540 = vpop.permute.xlu0 %1539
  %1541 = vrot.lane.b32.xlu0 %v1279, 96
  %v1542 = vpop.permute.xlu0 %1541
  %1543 = vrot.lane.b32.xlu0 %v1280, 96
  %v1544 = vpop.permute.xlu0 %1543
  %1545 = vrot.lane.b32.xlu0 %v1281, 96
  %v1546 = vpop.permute.xlu0 %1545
  %1547 = vrot.lane.b32.xlu0 %v1282, 96
  %v1548 = vpop.permute.xlu0 %1547
  %1549 = vrot.lane.b32.xlu0 %v1283, 96
  %v1550 = vpop.permute.xlu0 %1549
  %1551 = vrot.lane.b32.xlu0 %v1284, 96
  %v1552 = vpop.permute.xlu0 %1551
  %1553 = vrot.lane.b32.xlu0 %v1285, 96
  %v1554 = vpop.permute.xlu0 %1553
  %1555 = vrot.lane.b32.xlu0 %v1286, 96
  %v1556 = vpop.permute.xlu0 %1555
  %v1573 = vadd.f32 %v1493, %v1526
  %v1574 = vadd.f32 %v1494, %v1528
  %v1575 = vadd.f32 %v1495, %v1530
  %v1576 = vadd.f32 %v1496, %v1532
  %v1577 = vadd.f32 %v1497, %v1534
  %v1578 = vadd.f32 %v1498, %v1536
  %v1579 = vadd.f32 %v1499, %v1538
  %v1580 = vadd.f32 %v1500, %v1540
  %v1581 = vadd.f32 %v1501, %v1542
  %v1582 = vadd.f32 %v1502, %v1544
  %v1583 = vadd.f32 %v1503, %v1546
  %v1584 = vadd.f32 %v1504, %v1548
  %v1585 = vadd.f32 %v1505, %v1550
  %v1586 = vadd.f32 %v1506, %v1552
  %v1587 = vadd.f32 %v1507, %v1554
  %v1588 = vadd.f32 %v1508, %v1556
  %v1589 = vld [vmem:[%s6] sm:$0xff]
  %v1590 = vld [vmem:[%s6 + $0x8] sm:$0xff]
  %v1591 = vld [vmem:[%s6 + $0x10] sm:$0xff]
  %v1592 = vld [vmem:[%s6 + $0x18] sm:$0xff]
  %v1593 = vld [vmem:[%s7] sm:$0x1]
  %v1594 = vld [vmem:[%s8] sm:$0x1]
  %v1595 = vld [vmem:[%s9] sm:$0x1]
  %v1597 = vsel %vm1287, %v1573, 0
  %v1600 = vsel %vm1287, %v1574, 0
  %v1603 = vsel %vm1287, %v1575, 0
  %v1606 = vsel %vm1287, %v1576, 0
  %v1609 = vsel %vm1287, %v1577, 0
  %v1612 = vsel %vm1287, %v1578, 0
  %v1615 = vsel %vm1287, %v1579, 0
  %v1618 = vsel %vm1287, %v1580, 0
  %v1621 = vsel %vm1287, %v1581, 0
  %v1624 = vsel %vm1287, %v1582, 0
  %v1627 = vsel %vm1287, %v1583, 0
  %v1630 = vsel %vm1287, %v1584, 0
  %v1633 = vsel %vm1287, %v1585, 0
  %v1636 = vsel %vm1287, %v1586, 0
  %v1639 = vsel %vm1287, %v1587, 0
  %v1642 = vsel %vm1287, %v1588, 0
  %1644 = vmatprep.subr.mxu0 0.0
  %1645 = vmatpush1.msra.mxu0 0.0
  %1646 = vmatprep.subr.mxu0 0.0
  %1647 = vmatpush1.msra.mxu0 0.0
  %1648 = vmatprep.subr.mxu0 0.0
  %1649 = vmatpush1.msra.mxu0 0.0
  %1650 = vmatprep.subr.mxu0 0.0
  %1651 = vmatpush1.msra.mxu0 0.0
  %1652 = vmatprep.subr.mxu0 0.0
  %1653 = vmatpush1.msra.mxu0 0.0
  %1654 = vmatprep.subr.mxu0 0.0
  %1655 = vmatpush1.msra.mxu0 0.0
  %1656 = vmatprep.subr.mxu0 0.0
  %1657 = vmatpush1.msra.mxu0 0.0
  %1658 = vmatprep.subr.mxu0 0.0
  %1659 = vmatpush1.msra.mxu0 0.0
  %1660 = vmatprep.subr.mxu0 0.0
  %1661 = vmatpush1.msra.mxu0 0.0
  %1662 = vmatprep.subr.mxu0 0.0
  %1663 = vmatpush1.msra.mxu0 0.0
  %1664 = vmatprep.subr.mxu0 0.0
  %1665 = vmatpush1.msra.mxu0 0.0
  %1666 = vmatprep.subr.mxu0 0.0
  %1667 = vmatpush1.msra.mxu0 0.0
  %1668 = vmatprep.subr.mxu0 0.0
  %v1669 = vand.u32 %v1592, 4294901760
  %1670 = vmatpush1.msra.mxu0 %v1669
  %1671 = vmatprep.subr.mxu0 0.0
  %v1672 = vand.u32 %v1591, 4294901760
  %1673 = vmatpush1.msra.mxu0 %v1672
  %1674 = vmatprep.subr.mxu0 0.0
  %v1675 = vand.u32 %v1590, 4294901760
  %1676 = vmatpush1.msra.mxu0 %v1675
  %1677 = vmatprep.subr.mxu0 0.0
  %v1678 = vand.u32 %v1589, 4294901760
  %1679 = vmatpush1.msra.mxu0 %v1678
  %1680 = vmatprep.subr.mxu0 0.0
  %1681 = vmatpush2.msra.mxu0 0.0
  %1682 = vmatprep.subr.mxu0 0.0
  %1683 = vmatpush2.msra.mxu0 0.0
  %1684 = vmatprep.subr.mxu0 0.0
  %1685 = vmatpush2.msra.mxu0 0.0
  %1686 = vmatprep.subr.mxu0 0.0
  %1687 = vmatpush2.msra.mxu0 0.0
  %1688 = vmatprep.subr.mxu0 0.0
  %1689 = vmatpush2.msra.mxu0 0.0
  %1690 = vmatprep.subr.mxu0 0.0
  %1691 = vmatpush2.msra.mxu0 0.0
  %1692 = vmatprep.subr.mxu0 0.0
  %1693 = vmatpush2.msra.mxu0 0.0
  %1694 = vmatprep.subr.mxu0 0.0
  %1695 = vmatpush2.msra.mxu0 0.0
  %1696 = vmatprep.subr.mxu0 0.0
  %1697 = vmatpush2.msra.mxu0 0.0
  %1698 = vmatprep.subr.mxu0 0.0
  %1699 = vmatpush2.msra.mxu0 0.0
  %1700 = vmatprep.subr.mxu0 0.0
  %1701 = vmatpush2.msra.mxu0 0.0
  %1702 = vmatprep.subr.mxu0 0.0
  %1703 = vmatpush2.msra.mxu0 0.0
  %1704 = vmatprep.subr.mxu0 0.0
  %1705 = vmatpush2.msra.mxu0 0.0
  %1706 = vmatprep.subr.mxu0 0.0
  %1707 = vmatpush2.msra.mxu0 0.0
  %1708 = vmatprep.subr.mxu0 0.0
  %1709 = vmatpush2.msra.mxu0 0.0
  %1710 = vmatprep.subr.mxu0 0.0
  %1711 = vmatpush2.msra.mxu0 0.0
  %1712 = vmatprep.mubr.f32.mxu0 0.0
  %v1713 = vand.u32 %v1597, 4294901760
  %v1714 = vsub.f32 %v1597, %v1713
  %v1715 = vand.u32 %v1714, 4294901760
  %v1716 = vsub.f32 %v1714, %v1715
  %v1717 = vand.u32 %v1716, 4294901760
  %1718 = vmatmul.mubr.f32.gmra.mxu0 %v1717
  %v1719 = vpop.f32.mrf.mxu0
  %v1720 = vadd.f32 0.0, %v1719
  %v1721 = vpop.f32.mrf.mxu0
  %1722 = vmatprep.mubr.f32.mxu0 0.0
  %v1723 = vand.u32 %v1600, 4294901760
  %v1724 = vsub.f32 %v1600, %v1723
  %v1725 = vand.u32 %v1724, 4294901760
  %v1726 = vsub.f32 %v1724, %v1725
  %v1727 = vand.u32 %v1726, 4294901760
  %1728 = vmatmul.mubr.f32.gmra.mxu0 %v1727
  %v1729 = vpop.f32.mrf.mxu0
  %v1730 = vadd.f32 0.0, %v1729
  %v1731 = vpop.f32.mrf.mxu0
  %1732 = vmatprep.mubr.f32.mxu0 0.0
  %v1733 = vand.u32 %v1603, 4294901760
  %v1734 = vsub.f32 %v1603, %v1733
  %v1735 = vand.u32 %v1734, 4294901760
  %v1736 = vsub.f32 %v1734, %v1735
  %v1737 = vand.u32 %v1736, 4294901760
  %1738 = vmatmul.mubr.f32.gmra.mxu0 %v1737
  %v1739 = vpop.f32.mrf.mxu0
  %v1740 = vadd.f32 0.0, %v1739
  %v1741 = vpop.f32.mrf.mxu0
  %1742 = vmatprep.mubr.f32.mxu0 0.0
  %v1743 = vand.u32 %v1606, 4294901760
  %v1744 = vsub.f32 %v1606, %v1743
  %v1745 = vand.u32 %v1744, 4294901760
  %v1746 = vsub.f32 %v1744, %v1745
  %v1747 = vand.u32 %v1746, 4294901760
  %1748 = vmatmul.mubr.f32.gmra.mxu0 %v1747
  %v1749 = vpop.f32.mrf.mxu0
  %v1750 = vadd.f32 0.0, %v1749
  %v1751 = vpop.f32.mrf.mxu0
  %1752 = vmatprep.mubr.f32.mxu0 0.0
  %v1753 = vand.u32 %v1609, 4294901760
  %v1754 = vsub.f32 %v1609, %v1753
  %v1755 = vand.u32 %v1754, 4294901760
  %v1756 = vsub.f32 %v1754, %v1755
  %v1757 = vand.u32 %v1756, 4294901760
  %1758 = vmatmul.mubr.f32.gmra.mxu0 %v1757
  %v1759 = vpop.f32.mrf.mxu0
  %v1760 = vadd.f32 0.0, %v1759
  %v1761 = vpop.f32.mrf.mxu0
  %1762 = vmatprep.mubr.f32.mxu0 0.0
  %v1763 = vand.u32 %v1612, 4294901760
  %v1764 = vsub.f32 %v1612, %v1763
  %v1765 = vand.u32 %v1764, 4294901760
  %v1766 = vsub.f32 %v1764, %v1765
  %v1767 = vand.u32 %v1766, 4294901760
  %1768 = vmatmul.mubr.f32.gmra.mxu0 %v1767
  %v1769 = vpop.f32.mrf.mxu0
  %v1770 = vadd.f32 0.0, %v1769
  %v1771 = vpop.f32.mrf.mxu0
  %1772 = vmatprep.mubr.f32.mxu0 0.0
  %v1773 = vand.u32 %v1615, 4294901760
  %v1774 = vsub.f32 %v1615, %v1773
  %v1775 = vand.u32 %v1774, 4294901760
  %v1776 = vsub.f32 %v1774, %v1775
  %v1777 = vand.u32 %v1776, 4294901760
  %1778 = vmatmul.mubr.f32.gmra.mxu0 %v1777
  %v1779 = vpop.f32.mrf.mxu0
  %v1780 = vadd.f32 0.0, %v1779
  %v1781 = vpop.f32.mrf.mxu0
  %1782 = vmatprep.mubr.f32.mxu0 0.0
  %v1783 = vand.u32 %v1618, 4294901760
  %v1784 = vsub.f32 %v1618, %v1783
  %v1785 = vand.u32 %v1784, 4294901760
  %v1786 = vsub.f32 %v1784, %v1785
  %v1787 = vand.u32 %v1786, 4294901760
  %1788 = vmatmul.mubr.f32.gmra.mxu0 %v1787
  %v1789 = vpop.f32.mrf.mxu0
  %v1790 = vadd.f32 0.0, %v1789
  %v1791 = vpop.f32.mrf.mxu0
  %1792 = vmatprep.mubr.f32.mxu0 0.0
  %v1793 = vand.u32 %v1621, 4294901760
  %v1794 = vsub.f32 %v1621, %v1793
  %v1795 = vand.u32 %v1794, 4294901760
  %v1796 = vsub.f32 %v1794, %v1795
  %v1797 = vand.u32 %v1796, 4294901760
  %1798 = vmatmul.mubr.f32.gmra.mxu0 %v1797
  %v1799 = vpop.f32.mrf.mxu0
  %v1800 = vadd.f32 0.0, %v1799
  %v1801 = vpop.f32.mrf.mxu0
  %1802 = vmatprep.mubr.f32.mxu0 0.0
  %v1803 = vand.u32 %v1624, 4294901760
  %v1804 = vsub.f32 %v1624, %v1803
  %v1805 = vand.u32 %v1804, 4294901760
  %v1806 = vsub.f32 %v1804, %v1805
  %v1807 = vand.u32 %v1806, 4294901760
  %1808 = vmatmul.mubr.f32.gmra.mxu0 %v1807
  %v1809 = vpop.f32.mrf.mxu0
  %v1810 = vadd.f32 0.0, %v1809
  %v1811 = vpop.f32.mrf.mxu0
  %1812 = vmatprep.mubr.f32.mxu0 0.0
  %v1813 = vand.u32 %v1627, 4294901760
  %v1814 = vsub.f32 %v1627, %v1813
  %v1815 = vand.u32 %v1814, 4294901760
  %v1816 = vsub.f32 %v1814, %v1815
  %v1817 = vand.u32 %v1816, 4294901760
  %1818 = vmatmul.mubr.f32.gmra.mxu0 %v1817
  %v1819 = vpop.f32.mrf.mxu0
  %v1820 = vadd.f32 0.0, %v1819
  %v1821 = vpop.f32.mrf.mxu0
  %1822 = vmatprep.mubr.f32.mxu0 0.0
  %v1823 = vand.u32 %v1630, 4294901760
  %v1824 = vsub.f32 %v1630, %v1823
  %v1825 = vand.u32 %v1824, 4294901760
  %v1826 = vsub.f32 %v1824, %v1825
  %v1827 = vand.u32 %v1826, 4294901760
  %1828 = vmatmul.mubr.f32.gmra.mxu0 %v1827
  %v1829 = vpop.f32.mrf.mxu0
  %v1830 = vadd.f32 0.0, %v1829
  %v1831 = vpop.f32.mrf.mxu0
  %1832 = vmatprep.mubr.f32.mxu0 0.0
  %v1833 = vand.u32 %v1633, 4294901760
  %v1834 = vsub.f32 %v1633, %v1833
  %v1835 = vand.u32 %v1834, 4294901760
  %v1836 = vsub.f32 %v1834, %v1835
  %v1837 = vand.u32 %v1836, 4294901760
  %1838 = vmatmul.mubr.f32.gmra.mxu0 %v1837
  %v1839 = vpop.f32.mrf.mxu0
  %v1840 = vadd.f32 0.0, %v1839
  %v1841 = vpop.f32.mrf.mxu0
  %1842 = vmatprep.mubr.f32.mxu0 0.0
  %v1843 = vand.u32 %v1636, 4294901760
  %v1844 = vsub.f32 %v1636, %v1843
  %v1845 = vand.u32 %v1844, 4294901760
  %v1846 = vsub.f32 %v1844, %v1845
  %v1847 = vand.u32 %v1846, 4294901760
  %1848 = vmatmul.mubr.f32.gmra.mxu0 %v1847
  %v1849 = vpop.f32.mrf.mxu0
  %v1850 = vadd.f32 0.0, %v1849
  %v1851 = vpop.f32.mrf.mxu0
  %1852 = vmatprep.mubr.f32.mxu0 0.0
  %v1853 = vand.u32 %v1639, 4294901760
  %v1854 = vsub.f32 %v1639, %v1853
  %v1855 = vand.u32 %v1854, 4294901760
  %v1856 = vsub.f32 %v1854, %v1855
  %v1857 = vand.u32 %v1856, 4294901760
  %1858 = vmatmul.mubr.f32.gmra.mxu0 %v1857
  %v1859 = vpop.f32.mrf.mxu0
  %v1860 = vadd.f32 0.0, %v1859
  %v1861 = vpop.f32.mrf.mxu0
  %1862 = vmatprep.mubr.f32.mxu0 0.0
  %v1863 = vand.u32 %v1642, 4294901760
  %v1864 = vsub.f32 %v1642, %v1863
  %v1865 = vand.u32 %v1864, 4294901760
  %v1866 = vsub.f32 %v1864, %v1865
  %v1867 = vand.u32 %v1866, 4294901760
  %1868 = vmatmul.mubr.f32.gmra.mxu0 %v1867
  %v1869 = vpop.f32.mrf.mxu0
  %v1870 = vadd.f32 0.0, %v1869
  %v1871 = vpop.f32.mrf.mxu0
  %1872 = vdwg.mxu0
  %1873 = vmatprep.subr.mxu0 0.0
  %1874 = vmatpush1.msra.mxu0 0.0
  %1875 = vmatprep.subr.mxu0 0.0
  %1876 = vmatpush1.msra.mxu0 0.0
  %1877 = vmatprep.subr.mxu0 0.0
  %1878 = vmatpush1.msra.mxu0 0.0
  %1879 = vmatprep.subr.mxu0 0.0
  %1880 = vmatpush1.msra.mxu0 0.0
  %1881 = vmatprep.subr.mxu0 0.0
  %1882 = vmatpush1.msra.mxu0 0.0
  %1883 = vmatprep.subr.mxu0 0.0
  %1884 = vmatpush1.msra.mxu0 0.0
  %1885 = vmatprep.subr.mxu0 0.0
  %1886 = vmatpush1.msra.mxu0 0.0
  %1887 = vmatprep.subr.mxu0 0.0
  %1888 = vmatpush1.msra.mxu0 0.0
  %1889 = vmatprep.subr.mxu0 0.0
  %1890 = vmatpush1.msra.mxu0 0.0
  %1891 = vmatprep.subr.mxu0 0.0
  %1892 = vmatpush1.msra.mxu0 0.0
  %1893 = vmatprep.subr.mxu0 0.0
  %1894 = vmatpush1.msra.mxu0 0.0
  %1895 = vmatprep.subr.mxu0 0.0
  %1896 = vmatpush1.msra.mxu0 0.0
  %1897 = vmatprep.subr.mxu0 0.0
  %v1898 = vand.u32 %v1592, 4294901760
  %v1899 = vsub.f32 %v1592, %v1898
  %v1900 = vand.u32 %v1899, 4294901760
  %v1901 = vsub.f32 %v1899, %v1900
  %v1902 = vand.u32 %v1901, 4294901760
  %1903 = vmatpush1.msra.mxu0 %v1902
  %1904 = vmatprep.subr.mxu0 0.0
  %v1905 = vand.u32 %v1591, 4294901760
  %v1906 = vsub.f32 %v1591, %v1905
  %v1907 = vand.u32 %v1906, 4294901760
  %v1908 = vsub.f32 %v1906, %v1907
  %v1909 = vand.u32 %v1908, 4294901760
  %1910 = vmatpush1.msra.mxu0 %v1909
  %1911 = vmatprep.subr.mxu0 0.0
  %v1912 = vand.u32 %v1590, 4294901760
  %v1913 = vsub.f32 %v1590, %v1912
  %v1914 = vand.u32 %v1913, 4294901760
  %v1915 = vsub.f32 %v1913, %v1914
  %v1916 = vand.u32 %v1915, 4294901760
  %1917 = vmatpush1.msra.mxu0 %v1916
  %1918 = vmatprep.subr.mxu0 0.0
  %v1919 = vand.u32 %v1589, 4294901760
  %v1920 = vsub.f32 %v1589, %v1919
  %v1921 = vand.u32 %v1920, 4294901760
  %v1922 = vsub.f32 %v1920, %v1921
  %v1923 = vand.u32 %v1922, 4294901760
  %1924 = vmatpush1.msra.mxu0 %v1923
  %1925 = vmatprep.subr.mxu0 0.0
  %1926 = vmatpush2.msra.mxu0 0.0
  %1927 = vmatprep.subr.mxu0 0.0
  %1928 = vmatpush2.msra.mxu0 0.0
  %1929 = vmatprep.subr.mxu0 0.0
  %1930 = vmatpush2.msra.mxu0 0.0
  %1931 = vmatprep.subr.mxu0 0.0
  %1932 = vmatpush2.msra.mxu0 0.0
  %1933 = vmatprep.subr.mxu0 0.0
  %1934 = vmatpush2.msra.mxu0 0.0
  %1935 = vmatprep.subr.mxu0 0.0
  %1936 = vmatpush2.msra.mxu0 0.0
  %1937 = vmatprep.subr.mxu0 0.0
  %1938 = vmatpush2.msra.mxu0 0.0
  %1939 = vmatprep.subr.mxu0 0.0
  %1940 = vmatpush2.msra.mxu0 0.0
  %1941 = vmatprep.subr.mxu0 0.0
  %1942 = vmatpush2.msra.mxu0 0.0
  %1943 = vmatprep.subr.mxu0 0.0
  %1944 = vmatpush2.msra.mxu0 0.0
  %1945 = vmatprep.subr.mxu0 0.0
  %1946 = vmatpush2.msra.mxu0 0.0
  %1947 = vmatprep.subr.mxu0 0.0
  %1948 = vmatpush2.msra.mxu0 0.0
  %1949 = vmatprep.subr.mxu0 0.0
  %1950 = vmatpush2.msra.mxu0 0.0
  %1951 = vmatprep.subr.mxu0 0.0
  %1952 = vmatpush2.msra.mxu0 0.0
  %1953 = vmatprep.subr.mxu0 0.0
  %1954 = vmatpush2.msra.mxu0 0.0
  %1955 = vmatprep.subr.mxu0 0.0
  %1956 = vmatpush2.msra.mxu0 0.0
  %1957 = vmatprep.mubr.f32.mxu0 0.0
  %v1958 = vand.u32 %v1597, 4294901760
  %1959 = vmatmul.mubr.f32.gmra.mxu0 %v1958
  %v1960 = vpop.f32.mrf.mxu0
  %v1961 = vadd.f32 %v1720, %v1960
  %v1962 = vpop.f32.mrf.mxu0
  %1963 = vmatprep.mubr.f32.mxu0 0.0
  %v1964 = vand.u32 %v1600, 4294901760
  %1965 = vmatmul.mubr.f32.gmra.mxu0 %v1964
  %v1966 = vpop.f32.mrf.mxu0
  %v1967 = vadd.f32 %v1730, %v1966
  %v1968 = vpop.f32.mrf.mxu0
  %1969 = vmatprep.mubr.f32.mxu0 0.0
  %v1970 = vand.u32 %v1603, 4294901760
  %1971 = vmatmul.mubr.f32.gmra.mxu0 %v1970
  %v1972 = vpop.f32.mrf.mxu0
  %v1973 = vadd.f32 %v1740, %v1972
  %v1974 = vpop.f32.mrf.mxu0
  %1975 = vmatprep.mubr.f32.mxu0 0.0
  %v1976 = vand.u32 %v1606, 4294901760
  %1977 = vmatmul.mubr.f32.gmra.mxu0 %v1976
  %v1978 = vpop.f32.mrf.mxu0
  %v1979 = vadd.f32 %v1750, %v1978
  %v1980 = vpop.f32.mrf.mxu0
  %1981 = vmatprep.mubr.f32.mxu0 0.0
  %v1982 = vand.u32 %v1609, 4294901760
  %1983 = vmatmul.mubr.f32.gmra.mxu0 %v1982
  %v1984 = vpop.f32.mrf.mxu0
  %v1985 = vadd.f32 %v1760, %v1984
  %v1986 = vpop.f32.mrf.mxu0
  %1987 = vmatprep.mubr.f32.mxu0 0.0
  %v1988 = vand.u32 %v1612, 4294901760
  %1989 = vmatmul.mubr.f32.gmra.mxu0 %v1988
  %v1990 = vpop.f32.mrf.mxu0
  %v1991 = vadd.f32 %v1770, %v1990
  %v1992 = vpop.f32.mrf.mxu0
  %1993 = vmatprep.mubr.f32.mxu0 0.0
  %v1994 = vand.u32 %v1615, 4294901760
  %1995 = vmatmul.mubr.f32.gmra.mxu0 %v1994
  %v1996 = vpop.f32.mrf.mxu0
  %v1997 = vadd.f32 %v1780, %v1996
  %v1998 = vpop.f32.mrf.mxu0
  %1999 = vmatprep.mubr.f32.mxu0 0.0
  %v2000 = vand.u32 %v1618, 4294901760
  %2001 = vmatmul.mubr.f32.gmra.mxu0 %v2000
  %v2002 = vpop.f32.mrf.mxu0
  %v2003 = vadd.f32 %v1790, %v2002
  %v2004 = vpop.f32.mrf.mxu0
  %2005 = vmatprep.mubr.f32.mxu0 0.0
  %v2006 = vand.u32 %v1621, 4294901760
  %2007 = vmatmul.mubr.f32.gmra.mxu0 %v2006
  %v2008 = vpop.f32.mrf.mxu0
  %v2009 = vadd.f32 %v1800, %v2008
  %v2010 = vpop.f32.mrf.mxu0
  %2011 = vmatprep.mubr.f32.mxu0 0.0
  %v2012 = vand.u32 %v1624, 4294901760
  %2013 = vmatmul.mubr.f32.gmra.mxu0 %v2012
  %v2014 = vpop.f32.mrf.mxu0
  %v2015 = vadd.f32 %v1810, %v2014
  %v2016 = vpop.f32.mrf.mxu0
  %2017 = vmatprep.mubr.f32.mxu0 0.0
  %v2018 = vand.u32 %v1627, 4294901760
  %2019 = vmatmul.mubr.f32.gmra.mxu0 %v2018
  %v2020 = vpop.f32.mrf.mxu0
  %v2021 = vadd.f32 %v1820, %v2020
  %v2022 = vpop.f32.mrf.mxu0
  %2023 = vmatprep.mubr.f32.mxu0 0.0
  %v2024 = vand.u32 %v1630, 4294901760
  %2025 = vmatmul.mubr.f32.gmra.mxu0 %v2024
  %v2026 = vpop.f32.mrf.mxu0
  %v2027 = vadd.f32 %v1830, %v2026
  %v2028 = vpop.f32.mrf.mxu0
  %2029 = vmatprep.mubr.f32.mxu0 0.0
  %v2030 = vand.u32 %v1633, 4294901760
  %2031 = vmatmul.mubr.f32.gmra.mxu0 %v2030
  %v2032 = vpop.f32.mrf.mxu0
  %v2033 = vadd.f32 %v1840, %v2032
  %v2034 = vpop.f32.mrf.mxu0
  %2035 = vmatprep.mubr.f32.mxu0 0.0
  %v2036 = vand.u32 %v1636, 4294901760
  %2037 = vmatmul.mubr.f32.gmra.mxu0 %v2036
  %v2038 = vpop.f32.mrf.mxu0
  %v2039 = vadd.f32 %v1850, %v2038
  %v2040 = vpop.f32.mrf.mxu0
  %2041 = vmatprep.mubr.f32.mxu0 0.0
  %v2042 = vand.u32 %v1639, 4294901760
  %2043 = vmatmul.mubr.f32.gmra.mxu0 %v2042
  %v2044 = vpop.f32.mrf.mxu0
  %v2045 = vadd.f32 %v1860, %v2044
  %v2046 = vpop.f32.mrf.mxu0
  %2047 = vmatprep.mubr.f32.mxu0 0.0
  %v2048 = vand.u32 %v1642, 4294901760
  %2049 = vmatmul.mubr.f32.gmra.mxu0 %v2048
  %v2050 = vpop.f32.mrf.mxu0
  %v2051 = vadd.f32 %v1870, %v2050
  %v2052 = vpop.f32.mrf.mxu0
  %2053 = vdwg.mxu0
  %2054 = vmatprep.subr.mxu0 0.0
  %2055 = vmatpush1.msra.mxu0 0.0
  %2056 = vmatprep.subr.mxu0 0.0
  %2057 = vmatpush1.msra.mxu0 0.0
  %2058 = vmatprep.subr.mxu0 0.0
  %2059 = vmatpush1.msra.mxu0 0.0
  %2060 = vmatprep.subr.mxu0 0.0
  %2061 = vmatpush1.msra.mxu0 0.0
  %2062 = vmatprep.subr.mxu0 0.0
  %2063 = vmatpush1.msra.mxu0 0.0
  %2064 = vmatprep.subr.mxu0 0.0
  %2065 = vmatpush1.msra.mxu0 0.0
  %2066 = vmatprep.subr.mxu0 0.0
  %2067 = vmatpush1.msra.mxu0 0.0
  %2068 = vmatprep.subr.mxu0 0.0
  %2069 = vmatpush1.msra.mxu0 0.0
  %2070 = vmatprep.subr.mxu0 0.0
  %2071 = vmatpush1.msra.mxu0 0.0
  %2072 = vmatprep.subr.mxu0 0.0
  %2073 = vmatpush1.msra.mxu0 0.0
  %2074 = vmatprep.subr.mxu0 0.0
  %2075 = vmatpush1.msra.mxu0 0.0
  %2076 = vmatprep.subr.mxu0 0.0
  %2077 = vmatpush1.msra.mxu0 0.0
  %2078 = vmatprep.subr.mxu0 0.0
  %v2079 = vand.u32 %v1592, 4294901760
  %v2080 = vsub.f32 %v1592, %v2079
  %2081 = vmatpush1.msra.mxu0 %v2080
  %2082 = vmatprep.subr.mxu0 0.0
  %v2083 = vand.u32 %v1591, 4294901760
  %v2084 = vsub.f32 %v1591, %v2083
  %2085 = vmatpush1.msra.mxu0 %v2084
  %2086 = vmatprep.subr.mxu0 0.0
  %v2087 = vand.u32 %v1590, 4294901760
  %v2088 = vsub.f32 %v1590, %v2087
  %2089 = vmatpush1.msra.mxu0 %v2088
  %2090 = vmatprep.subr.mxu0 0.0
  %v2091 = vand.u32 %v1589, 4294901760
  %v2092 = vsub.f32 %v1589, %v2091
  %2093 = vmatpush1.msra.mxu0 %v2092
  %2094 = vmatprep.subr.mxu0 0.0
  %2095 = vmatpush2.msra.mxu0 0.0
  %2096 = vmatprep.subr.mxu0 0.0
  %2097 = vmatpush2.msra.mxu0 0.0
  %2098 = vmatprep.subr.mxu0 0.0
  %2099 = vmatpush2.msra.mxu0 0.0
  %2100 = vmatprep.subr.mxu0 0.0
  %2101 = vmatpush2.msra.mxu0 0.0
  %2102 = vmatprep.subr.mxu0 0.0
  %2103 = vmatpush2.msra.mxu0 0.0
  %2104 = vmatprep.subr.mxu0 0.0
  %2105 = vmatpush2.msra.mxu0 0.0
  %2106 = vmatprep.subr.mxu0 0.0
  %2107 = vmatpush2.msra.mxu0 0.0
  %2108 = vmatprep.subr.mxu0 0.0
  %2109 = vmatpush2.msra.mxu0 0.0
  %2110 = vmatprep.subr.mxu0 0.0
  %2111 = vmatpush2.msra.mxu0 0.0
  %2112 = vmatprep.subr.mxu0 0.0
  %2113 = vmatpush2.msra.mxu0 0.0
  %2114 = vmatprep.subr.mxu0 0.0
  %2115 = vmatpush2.msra.mxu0 0.0
  %2116 = vmatprep.subr.mxu0 0.0
  %2117 = vmatpush2.msra.mxu0 0.0
  %2118 = vmatprep.subr.mxu0 0.0
  %2119 = vmatpush2.msra.mxu0 0.0
  %2120 = vmatprep.subr.mxu0 0.0
  %2121 = vmatpush2.msra.mxu0 0.0
  %2122 = vmatprep.subr.mxu0 0.0
  %2123 = vmatpush2.msra.mxu0 0.0
  %2124 = vmatprep.subr.mxu0 0.0
  %2125 = vmatpush2.msra.mxu0 0.0
  %2126 = vmatprep.mubr.f32.mxu0 0.0
  %v2127 = vand.u32 %v1597, 4294901760
  %v2128 = vsub.f32 %v1597, %v2127
  %2129 = vmatmul.mubr.f32.gmra.mxu0 %v2128
  %v2130 = vpop.f32.mrf.mxu0
  %v2131 = vadd.f32 %v1961, %v2130
  %v2132 = vpop.f32.mrf.mxu0
  %2133 = vmatprep.mubr.f32.mxu0 0.0
  %v2134 = vand.u32 %v1600, 4294901760
  %v2135 = vsub.f32 %v1600, %v2134
  %2136 = vmatmul.mubr.f32.gmra.mxu0 %v2135
  %v2137 = vpop.f32.mrf.mxu0
  %v2138 = vadd.f32 %v1967, %v2137
  %v2139 = vpop.f32.mrf.mxu0
  %2140 = vmatprep.mubr.f32.mxu0 0.0
  %v2141 = vand.u32 %v1603, 4294901760
  %v2142 = vsub.f32 %v1603, %v2141
  %2143 = vmatmul.mubr.f32.gmra.mxu0 %v2142
  %v2144 = vpop.f32.mrf.mxu0
  %v2145 = vadd.f32 %v1973, %v2144
  %v2146 = vpop.f32.mrf.mxu0
  %2147 = vmatprep.mubr.f32.mxu0 0.0
  %v2148 = vand.u32 %v1606, 4294901760
  %v2149 = vsub.f32 %v1606, %v2148
  %2150 = vmatmul.mubr.f32.gmra.mxu0 %v2149
  %v2151 = vpop.f32.mrf.mxu0
  %v2152 = vadd.f32 %v1979, %v2151
  %v2153 = vpop.f32.mrf.mxu0
  %2154 = vmatprep.mubr.f32.mxu0 0.0
  %v2155 = vand.u32 %v1609, 4294901760
  %v2156 = vsub.f32 %v1609, %v2155
  %2157 = vmatmul.mubr.f32.gmra.mxu0 %v2156
  %v2158 = vpop.f32.mrf.mxu0
  %v2159 = vadd.f32 %v1985, %v2158
  %v2160 = vpop.f32.mrf.mxu0
  %2161 = vmatprep.mubr.f32.mxu0 0.0
  %v2162 = vand.u32 %v1612, 4294901760
  %v2163 = vsub.f32 %v1612, %v2162
  %2164 = vmatmul.mubr.f32.gmra.mxu0 %v2163
  %v2165 = vpop.f32.mrf.mxu0
  %v2166 = vadd.f32 %v1991, %v2165
  %v2167 = vpop.f32.mrf.mxu0
  %2168 = vmatprep.mubr.f32.mxu0 0.0
  %v2169 = vand.u32 %v1615, 4294901760
  %v2170 = vsub.f32 %v1615, %v2169
  %2171 = vmatmul.mubr.f32.gmra.mxu0 %v2170
  %v2172 = vpop.f32.mrf.mxu0
  %v2173 = vadd.f32 %v1997, %v2172
  %v2174 = vpop.f32.mrf.mxu0
  %2175 = vmatprep.mubr.f32.mxu0 0.0
  %v2176 = vand.u32 %v1618, 4294901760
  %v2177 = vsub.f32 %v1618, %v2176
  %2178 = vmatmul.mubr.f32.gmra.mxu0 %v2177
  %v2179 = vpop.f32.mrf.mxu0
  %v2180 = vadd.f32 %v2003, %v2179
  %v2181 = vpop.f32.mrf.mxu0
  %2182 = vmatprep.mubr.f32.mxu0 0.0
  %v2183 = vand.u32 %v1621, 4294901760
  %v2184 = vsub.f32 %v1621, %v2183
  %2185 = vmatmul.mubr.f32.gmra.mxu0 %v2184
  %v2186 = vpop.f32.mrf.mxu0
  %v2187 = vadd.f32 %v2009, %v2186
  %v2188 = vpop.f32.mrf.mxu0
  %2189 = vmatprep.mubr.f32.mxu0 0.0
  %v2190 = vand.u32 %v1624, 4294901760
  %v2191 = vsub.f32 %v1624, %v2190
  %2192 = vmatmul.mubr.f32.gmra.mxu0 %v2191
  %v2193 = vpop.f32.mrf.mxu0
  %v2194 = vadd.f32 %v2015, %v2193
  %v2195 = vpop.f32.mrf.mxu0
  %2196 = vmatprep.mubr.f32.mxu0 0.0
  %v2197 = vand.u32 %v1627, 4294901760
  %v2198 = vsub.f32 %v1627, %v2197
  %2199 = vmatmul.mubr.f32.gmra.mxu0 %v2198
  %v2200 = vpop.f32.mrf.mxu0
  %v2201 = vadd.f32 %v2021, %v2200
  %v2202 = vpop.f32.mrf.mxu0
  %2203 = vmatprep.mubr.f32.mxu0 0.0
  %v2204 = vand.u32 %v1630, 4294901760
  %v2205 = vsub.f32 %v1630, %v2204
  %2206 = vmatmul.mubr.f32.gmra.mxu0 %v2205
  %v2207 = vpop.f32.mrf.mxu0
  %v2208 = vadd.f32 %v2027, %v2207
  %v2209 = vpop.f32.mrf.mxu0
  %2210 = vmatprep.mubr.f32.mxu0 0.0
  %v2211 = vand.u32 %v1633, 4294901760
  %v2212 = vsub.f32 %v1633, %v2211
  %2213 = vmatmul.mubr.f32.gmra.mxu0 %v2212
  %v2214 = vpop.f32.mrf.mxu0
  %v2215 = vadd.f32 %v2033, %v2214
  %v2216 = vpop.f32.mrf.mxu0
  %2217 = vmatprep.mubr.f32.mxu0 0.0
  %v2218 = vand.u32 %v1636, 4294901760
  %v2219 = vsub.f32 %v1636, %v2218
  %2220 = vmatmul.mubr.f32.gmra.mxu0 %v2219
  %v2221 = vpop.f32.mrf.mxu0
  %v2222 = vadd.f32 %v2039, %v2221
  %v2223 = vpop.f32.mrf.mxu0
  %2224 = vmatprep.mubr.f32.mxu0 0.0
  %v2225 = vand.u32 %v1639, 4294901760
  %v2226 = vsub.f32 %v1639, %v2225
  %2227 = vmatmul.mubr.f32.gmra.mxu0 %v2226
  %v2228 = vpop.f32.mrf.mxu0
  %v2229 = vadd.f32 %v2045, %v2228
  %v2230 = vpop.f32.mrf.mxu0
  %2231 = vmatprep.mubr.f32.mxu0 0.0
  %v2232 = vand.u32 %v1642, 4294901760
  %v2233 = vsub.f32 %v1642, %v2232
  %2234 = vmatmul.mubr.f32.gmra.mxu0 %v2233
  %v2235 = vpop.f32.mrf.mxu0
  %v2236 = vadd.f32 %v2051, %v2235
  %v2237 = vpop.f32.mrf.mxu0
  %2238 = vdwg.mxu0
  %2239 = vmatprep.subr.mxu0 0.0
  %2240 = vmatpush1.msra.mxu0 0.0
  %2241 = vmatprep.subr.mxu0 0.0
  %2242 = vmatpush1.msra.mxu0 0.0
  %2243 = vmatprep.subr.mxu0 0.0
  %2244 = vmatpush1.msra.mxu0 0.0
  %2245 = vmatprep.subr.mxu0 0.0
  %2246 = vmatpush1.msra.mxu0 0.0
  %2247 = vmatprep.subr.mxu0 0.0
  %2248 = vmatpush1.msra.mxu0 0.0
  %2249 = vmatprep.subr.mxu0 0.0
  %2250 = vmatpush1.msra.mxu0 0.0
  %2251 = vmatprep.subr.mxu0 0.0
  %2252 = vmatpush1.msra.mxu0 0.0
  %2253 = vmatprep.subr.mxu0 0.0
  %2254 = vmatpush1.msra.mxu0 0.0
  %2255 = vmatprep.subr.mxu0 0.0
  %2256 = vmatpush1.msra.mxu0 0.0
  %2257 = vmatprep.subr.mxu0 0.0
  %2258 = vmatpush1.msra.mxu0 0.0
  %2259 = vmatprep.subr.mxu0 0.0
  %2260 = vmatpush1.msra.mxu0 0.0
  %2261 = vmatprep.subr.mxu0 0.0
  %2262 = vmatpush1.msra.mxu0 0.0
  %2263 = vmatprep.subr.mxu0 0.0
  %v2264 = vand.u32 %v1592, 4294901760
  %2265 = vmatpush1.msra.mxu0 %v2264
  %2266 = vmatprep.subr.mxu0 0.0
  %v2267 = vand.u32 %v1591, 4294901760
  %2268 = vmatpush1.msra.mxu0 %v2267
  %2269 = vmatprep.subr.mxu0 0.0
  %v2270 = vand.u32 %v1590, 4294901760
  %2271 = vmatpush1.msra.mxu0 %v2270
  %2272 = vmatprep.subr.mxu0 0.0
  %v2273 = vand.u32 %v1589, 4294901760
  %2274 = vmatpush1.msra.mxu0 %v2273
  %2275 = vmatprep.subr.mxu0 0.0
  %2276 = vmatpush2.msra.mxu0 0.0
  %2277 = vmatprep.subr.mxu0 0.0
  %2278 = vmatpush2.msra.mxu0 0.0
  %2279 = vmatprep.subr.mxu0 0.0
  %2280 = vmatpush2.msra.mxu0 0.0
  %2281 = vmatprep.subr.mxu0 0.0
  %2282 = vmatpush2.msra.mxu0 0.0
  %2283 = vmatprep.subr.mxu0 0.0
  %2284 = vmatpush2.msra.mxu0 0.0
  %2285 = vmatprep.subr.mxu0 0.0
  %2286 = vmatpush2.msra.mxu0 0.0
  %2287 = vmatprep.subr.mxu0 0.0
  %2288 = vmatpush2.msra.mxu0 0.0
  %2289 = vmatprep.subr.mxu0 0.0
  %2290 = vmatpush2.msra.mxu0 0.0
  %2291 = vmatprep.subr.mxu0 0.0
  %2292 = vmatpush2.msra.mxu0 0.0
  %2293 = vmatprep.subr.mxu0 0.0
  %2294 = vmatpush2.msra.mxu0 0.0
  %2295 = vmatprep.subr.mxu0 0.0
  %2296 = vmatpush2.msra.mxu0 0.0
  %2297 = vmatprep.subr.mxu0 0.0
  %2298 = vmatpush2.msra.mxu0 0.0
  %2299 = vmatprep.subr.mxu0 0.0
  %2300 = vmatpush2.msra.mxu0 0.0
  %2301 = vmatprep.subr.mxu0 0.0
  %2302 = vmatpush2.msra.mxu0 0.0
  %2303 = vmatprep.subr.mxu0 0.0
  %2304 = vmatpush2.msra.mxu0 0.0
  %2305 = vmatprep.subr.mxu0 0.0
  %2306 = vmatpush2.msra.mxu0 0.0
  %2307 = vmatprep.mubr.f32.mxu0 0.0
  %v2308 = vand.u32 %v1597, 4294901760
  %v2309 = vsub.f32 %v1597, %v2308
  %v2310 = vand.u32 %v2309, 4294901760
  %2311 = vmatmul.mubr.f32.gmra.mxu0 %v2310
  %v2312 = vpop.f32.mrf.mxu0
  %v2313 = vadd.f32 %v2131, %v2312
  %v2314 = vpop.f32.mrf.mxu0
  %2315 = vmatprep.mubr.f32.mxu0 0.0
  %v2316 = vand.u32 %v1600, 4294901760
  %v2317 = vsub.f32 %v1600, %v2316
  %v2318 = vand.u32 %v2317, 4294901760
  %2319 = vmatmul.mubr.f32.gmra.mxu0 %v2318
  %v2320 = vpop.f32.mrf.mxu0
  %v2321 = vadd.f32 %v2138, %v2320
  %v2322 = vpop.f32.mrf.mxu0
  %2323 = vmatprep.mubr.f32.mxu0 0.0
  %v2324 = vand.u32 %v1603, 4294901760
  %v2325 = vsub.f32 %v1603, %v2324
  %v2326 = vand.u32 %v2325, 4294901760
  %2327 = vmatmul.mubr.f32.gmra.mxu0 %v2326
  %v2328 = vpop.f32.mrf.mxu0
  %v2329 = vadd.f32 %v2145, %v2328
  %v2330 = vpop.f32.mrf.mxu0
  %2331 = vmatprep.mubr.f32.mxu0 0.0
  %v2332 = vand.u32 %v1606, 4294901760
  %v2333 = vsub.f32 %v1606, %v2332
  %v2334 = vand.u32 %v2333, 4294901760
  %2335 = vmatmul.mubr.f32.gmra.mxu0 %v2334
  %v2336 = vpop.f32.mrf.mxu0
  %v2337 = vadd.f32 %v2152, %v2336
  %v2338 = vpop.f32.mrf.mxu0
  %2339 = vmatprep.mubr.f32.mxu0 0.0
  %v2340 = vand.u32 %v1609, 4294901760
  %v2341 = vsub.f32 %v1609, %v2340
  %v2342 = vand.u32 %v2341, 4294901760
  %2343 = vmatmul.mubr.f32.gmra.mxu0 %v2342
  %v2344 = vpop.f32.mrf.mxu0
  %v2345 = vadd.f32 %v2159, %v2344
  %v2346 = vpop.f32.mrf.mxu0
  %2347 = vmatprep.mubr.f32.mxu0 0.0
  %v2348 = vand.u32 %v1612, 4294901760
  %v2349 = vsub.f32 %v1612, %v2348
  %v2350 = vand.u32 %v2349, 4294901760
  %2351 = vmatmul.mubr.f32.gmra.mxu0 %v2350
  %v2352 = vpop.f32.mrf.mxu0
  %v2353 = vadd.f32 %v2166, %v2352
  %v2354 = vpop.f32.mrf.mxu0
  %2355 = vmatprep.mubr.f32.mxu0 0.0
  %v2356 = vand.u32 %v1615, 4294901760
  %v2357 = vsub.f32 %v1615, %v2356
  %v2358 = vand.u32 %v2357, 4294901760
  %2359 = vmatmul.mubr.f32.gmra.mxu0 %v2358
  %v2360 = vpop.f32.mrf.mxu0
  %v2361 = vadd.f32 %v2173, %v2360
  %v2362 = vpop.f32.mrf.mxu0
  %2363 = vmatprep.mubr.f32.mxu0 0.0
  %v2364 = vand.u32 %v1618, 4294901760
  %v2365 = vsub.f32 %v1618, %v2364
  %v2366 = vand.u32 %v2365, 4294901760
  %2367 = vmatmul.mubr.f32.gmra.mxu0 %v2366
  %v2368 = vpop.f32.mrf.mxu0
  %v2369 = vadd.f32 %v2180, %v2368
  %v2370 = vpop.f32.mrf.mxu0
  %2371 = vmatprep.mubr.f32.mxu0 0.0
  %v2372 = vand.u32 %v1621, 4294901760
  %v2373 = vsub.f32 %v1621, %v2372
  %v2374 = vand.u32 %v2373, 4294901760
  %2375 = vmatmul.mubr.f32.gmra.mxu0 %v2374
  %v2376 = vpop.f32.mrf.mxu0
  %v2377 = vadd.f32 %v2187, %v2376
  %v2378 = vpop.f32.mrf.mxu0
  %2379 = vmatprep.mubr.f32.mxu0 0.0
  %v2380 = vand.u32 %v1624, 4294901760
  %v2381 = vsub.f32 %v1624, %v2380
  %v2382 = vand.u32 %v2381, 4294901760
  %2383 = vmatmul.mubr.f32.gmra.mxu0 %v2382
  %v2384 = vpop.f32.mrf.mxu0
  %v2385 = vadd.f32 %v2194, %v2384
  %v2386 = vpop.f32.mrf.mxu0
  %2387 = vmatprep.mubr.f32.mxu0 0.0
  %v2388 = vand.u32 %v1627, 4294901760
  %v2389 = vsub.f32 %v1627, %v2388
  %v2390 = vand.u32 %v2389, 4294901760
  %2391 = vmatmul.mubr.f32.gmra.mxu0 %v2390
  %v2392 = vpop.f32.mrf.mxu0
  %v2393 = vadd.f32 %v2201, %v2392
  %v2394 = vpop.f32.mrf.mxu0
  %2395 = vmatprep.mubr.f32.mxu0 0.0
  %v2396 = vand.u32 %v1630, 4294901760
  %v2397 = vsub.f32 %v1630, %v2396
  %v2398 = vand.u32 %v2397, 4294901760
  %2399 = vmatmul.mubr.f32.gmra.mxu0 %v2398
  %v2400 = vpop.f32.mrf.mxu0
  %v2401 = vadd.f32 %v2208, %v2400
  %v2402 = vpop.f32.mrf.mxu0
  %2403 = vmatprep.mubr.f32.mxu0 0.0
  %v2404 = vand.u32 %v1633, 4294901760
  %v2405 = vsub.f32 %v1633, %v2404
  %v2406 = vand.u32 %v2405, 4294901760
  %2407 = vmatmul.mubr.f32.gmra.mxu0 %v2406
  %v2408 = vpop.f32.mrf.mxu0
  %v2409 = vadd.f32 %v2215, %v2408
  %v2410 = vpop.f32.mrf.mxu0
  %2411 = vmatprep.mubr.f32.mxu0 0.0
  %v2412 = vand.u32 %v1636, 4294901760
  %v2413 = vsub.f32 %v1636, %v2412
  %v2414 = vand.u32 %v2413, 4294901760
  %2415 = vmatmul.mubr.f32.gmra.mxu0 %v2414
  %v2416 = vpop.f32.mrf.mxu0
  %v2417 = vadd.f32 %v2222, %v2416
  %v2418 = vpop.f32.mrf.mxu0
  %2419 = vmatprep.mubr.f32.mxu0 0.0
  %v2420 = vand.u32 %v1639, 4294901760
  %v2421 = vsub.f32 %v1639, %v2420
  %v2422 = vand.u32 %v2421, 4294901760
  %2423 = vmatmul.mubr.f32.gmra.mxu0 %v2422
  %v2424 = vpop.f32.mrf.mxu0
  %v2425 = vadd.f32 %v2229, %v2424
  %v2426 = vpop.f32.mrf.mxu0
  %2427 = vmatprep.mubr.f32.mxu0 0.0
  %v2428 = vand.u32 %v1642, 4294901760
  %v2429 = vsub.f32 %v1642, %v2428
  %v2430 = vand.u32 %v2429, 4294901760
  %2431 = vmatmul.mubr.f32.gmra.mxu0 %v2430
  %v2432 = vpop.f32.mrf.mxu0
  %v2433 = vadd.f32 %v2236, %v2432
  %v2434 = vpop.f32.mrf.mxu0
  %2435 = vdwg.mxu0
  %2436 = vmatprep.subr.mxu0 0.0
  %2437 = vmatpush1.msra.mxu0 0.0
  %2438 = vmatprep.subr.mxu0 0.0
  %2439 = vmatpush1.msra.mxu0 0.0
  %2440 = vmatprep.subr.mxu0 0.0
  %2441 = vmatpush1.msra.mxu0 0.0
  %2442 = vmatprep.subr.mxu0 0.0
  %2443 = vmatpush1.msra.mxu0 0.0
  %2444 = vmatprep.subr.mxu0 0.0
  %2445 = vmatpush1.msra.mxu0 0.0
  %2446 = vmatprep.subr.mxu0 0.0
  %2447 = vmatpush1.msra.mxu0 0.0
  %2448 = vmatprep.subr.mxu0 0.0
  %2449 = vmatpush1.msra.mxu0 0.0
  %2450 = vmatprep.subr.mxu0 0.0
  %2451 = vmatpush1.msra.mxu0 0.0
  %2452 = vmatprep.subr.mxu0 0.0
  %2453 = vmatpush1.msra.mxu0 0.0
  %2454 = vmatprep.subr.mxu0 0.0
  %2455 = vmatpush1.msra.mxu0 0.0
  %2456 = vmatprep.subr.mxu0 0.0
  %2457 = vmatpush1.msra.mxu0 0.0
  %2458 = vmatprep.subr.mxu0 0.0
  %2459 = vmatpush1.msra.mxu0 0.0
  %2460 = vmatprep.subr.mxu0 0.0
  %v2461 = vand.u32 %v1592, 4294901760
  %v2462 = vsub.f32 %v1592, %v2461
  %v2463 = vand.u32 %v2462, 4294901760
  %2464 = vmatpush1.msra.mxu0 %v2463
  %2465 = vmatprep.subr.mxu0 0.0
  %v2466 = vand.u32 %v1591, 4294901760
  %v2467 = vsub.f32 %v1591, %v2466
  %v2468 = vand.u32 %v2467, 4294901760
  %2469 = vmatpush1.msra.mxu0 %v2468
  %2470 = vmatprep.subr.mxu0 0.0
  %v2471 = vand.u32 %v1590, 4294901760
  %v2472 = vsub.f32 %v1590, %v2471
  %v2473 = vand.u32 %v2472, 4294901760
  %2474 = vmatpush1.msra.mxu0 %v2473
  %2475 = vmatprep.subr.mxu0 0.0
  %v2476 = vand.u32 %v1589, 4294901760
  %v2477 = vsub.f32 %v1589, %v2476
  %v2478 = vand.u32 %v2477, 4294901760
  %2479 = vmatpush1.msra.mxu0 %v2478
  %2480 = vmatprep.subr.mxu0 0.0
  %2481 = vmatpush2.msra.mxu0 0.0
  %2482 = vmatprep.subr.mxu0 0.0
  %2483 = vmatpush2.msra.mxu0 0.0
  %2484 = vmatprep.subr.mxu0 0.0
  %2485 = vmatpush2.msra.mxu0 0.0
  %2486 = vmatprep.subr.mxu0 0.0
  %2487 = vmatpush2.msra.mxu0 0.0
  %2488 = vmatprep.subr.mxu0 0.0
  %2489 = vmatpush2.msra.mxu0 0.0
  %2490 = vmatprep.subr.mxu0 0.0
  %2491 = vmatpush2.msra.mxu0 0.0
  %2492 = vmatprep.subr.mxu0 0.0
  %2493 = vmatpush2.msra.mxu0 0.0
  %2494 = vmatprep.subr.mxu0 0.0
  %2495 = vmatpush2.msra.mxu0 0.0
  %2496 = vmatprep.subr.mxu0 0.0
  %2497 = vmatpush2.msra.mxu0 0.0
  %2498 = vmatprep.subr.mxu0 0.0
  %2499 = vmatpush2.msra.mxu0 0.0
  %2500 = vmatprep.subr.mxu0 0.0
  %2501 = vmatpush2.msra.mxu0 0.0
  %2502 = vmatprep.subr.mxu0 0.0
  %2503 = vmatpush2.msra.mxu0 0.0
  %2504 = vmatprep.subr.mxu0 0.0
  %2505 = vmatpush2.msra.mxu0 0.0
  %2506 = vmatprep.subr.mxu0 0.0
  %2507 = vmatpush2.msra.mxu0 0.0
  %2508 = vmatprep.subr.mxu0 0.0
  %2509 = vmatpush2.msra.mxu0 0.0
  %2510 = vmatprep.subr.mxu0 0.0
  %2511 = vmatpush2.msra.mxu0 0.0
  %2512 = vmatprep.mubr.f32.mxu0 0.0
  %v2513 = vand.u32 %v1597, 4294901760
  %2514 = vmatmul.mubr.f32.gmra.mxu0 %v2513
  %v2515 = vpop.f32.mrf.mxu0
  %v2516 = vadd.f32 %v2313, %v2515
  %v2517 = vpop.f32.mrf.mxu0
  %2518 = vmatprep.mubr.f32.mxu0 0.0
  %v2519 = vand.u32 %v1600, 4294901760
  %2520 = vmatmul.mubr.f32.gmra.mxu0 %v2519
  %v2521 = vpop.f32.mrf.mxu0
  %v2522 = vadd.f32 %v2321, %v2521
  %v2523 = vpop.f32.mrf.mxu0
  %2524 = vmatprep.mubr.f32.mxu0 0.0
  %v2525 = vand.u32 %v1603, 4294901760
  %2526 = vmatmul.mubr.f32.gmra.mxu0 %v2525
  %v2527 = vpop.f32.mrf.mxu0
  %v2528 = vadd.f32 %v2329, %v2527
  %v2529 = vpop.f32.mrf.mxu0
  %2530 = vmatprep.mubr.f32.mxu0 0.0
  %v2531 = vand.u32 %v1606, 4294901760
  %2532 = vmatmul.mubr.f32.gmra.mxu0 %v2531
  %v2533 = vpop.f32.mrf.mxu0
  %v2534 = vadd.f32 %v2337, %v2533
  %v2535 = vpop.f32.mrf.mxu0
  %2536 = vmatprep.mubr.f32.mxu0 0.0
  %v2537 = vand.u32 %v1609, 4294901760
  %2538 = vmatmul.mubr.f32.gmra.mxu0 %v2537
  %v2539 = vpop.f32.mrf.mxu0
  %v2540 = vadd.f32 %v2345, %v2539
  %v2541 = vpop.f32.mrf.mxu0
  %2542 = vmatprep.mubr.f32.mxu0 0.0
  %v2543 = vand.u32 %v1612, 4294901760
  %2544 = vmatmul.mubr.f32.gmra.mxu0 %v2543
  %v2545 = vpop.f32.mrf.mxu0
  %v2546 = vadd.f32 %v2353, %v2545
  %v2547 = vpop.f32.mrf.mxu0
  %2548 = vmatprep.mubr.f32.mxu0 0.0
  %v2549 = vand.u32 %v1615, 4294901760
  %2550 = vmatmul.mubr.f32.gmra.mxu0 %v2549
  %v2551 = vpop.f32.mrf.mxu0
  %v2552 = vadd.f32 %v2361, %v2551
  %v2553 = vpop.f32.mrf.mxu0
  %2554 = vmatprep.mubr.f32.mxu0 0.0
  %v2555 = vand.u32 %v1618, 4294901760
  %2556 = vmatmul.mubr.f32.gmra.mxu0 %v2555
  %v2557 = vpop.f32.mrf.mxu0
  %v2558 = vadd.f32 %v2369, %v2557
  %v2559 = vpop.f32.mrf.mxu0
  %2560 = vmatprep.mubr.f32.mxu0 0.0
  %v2561 = vand.u32 %v1621, 4294901760
  %2562 = vmatmul.mubr.f32.gmra.mxu0 %v2561
  %v2563 = vpop.f32.mrf.mxu0
  %v2564 = vadd.f32 %v2377, %v2563
  %v2565 = vpop.f32.mrf.mxu0
  %2566 = vmatprep.mubr.f32.mxu0 0.0
  %v2567 = vand.u32 %v1624, 4294901760
  %2568 = vmatmul.mubr.f32.gmra.mxu0 %v2567
  %v2569 = vpop.f32.mrf.mxu0
  %v2570 = vadd.f32 %v2385, %v2569
  %v2571 = vpop.f32.mrf.mxu0
  %2572 = vmatprep.mubr.f32.mxu0 0.0
  %v2573 = vand.u32 %v1627, 4294901760
  %2574 = vmatmul.mubr.f32.gmra.mxu0 %v2573
  %v2575 = vpop.f32.mrf.mxu0
  %v2576 = vadd.f32 %v2393, %v2575
  %v2577 = vpop.f32.mrf.mxu0
  %2578 = vmatprep.mubr.f32.mxu0 0.0
  %v2579 = vand.u32 %v1630, 4294901760
  %2580 = vmatmul.mubr.f32.gmra.mxu0 %v2579
  %v2581 = vpop.f32.mrf.mxu0
  %v2582 = vadd.f32 %v2401, %v2581
  %v2583 = vpop.f32.mrf.mxu0
  %2584 = vmatprep.mubr.f32.mxu0 0.0
  %v2585 = vand.u32 %v1633, 4294901760
  %2586 = vmatmul.mubr.f32.gmra.mxu0 %v2585
  %v2587 = vpop.f32.mrf.mxu0
  %v2588 = vadd.f32 %v2409, %v2587
  %v2589 = vpop.f32.mrf.mxu0
  %2590 = vmatprep.mubr.f32.mxu0 0.0
  %v2591 = vand.u32 %v1636, 4294901760
  %2592 = vmatmul.mubr.f32.gmra.mxu0 %v2591
  %v2593 = vpop.f32.mrf.mxu0
  %v2594 = vadd.f32 %v2417, %v2593
  %v2595 = vpop.f32.mrf.mxu0
  %2596 = vmatprep.mubr.f32.mxu0 0.0
  %v2597 = vand.u32 %v1639, 4294901760
  %2598 = vmatmul.mubr.f32.gmra.mxu0 %v2597
  %v2599 = vpop.f32.mrf.mxu0
  %v2600 = vadd.f32 %v2425, %v2599
  %v2601 = vpop.f32.mrf.mxu0
  %2602 = vmatprep.mubr.f32.mxu0 0.0
  %v2603 = vand.u32 %v1642, 4294901760
  %2604 = vmatmul.mubr.f32.gmra.mxu0 %v2603
  %v2605 = vpop.f32.mrf.mxu0
  %v2606 = vadd.f32 %v2433, %v2605
  %v2607 = vpop.f32.mrf.mxu0
  %2608 = vdwg.mxu0
  %2609 = vmatprep.subr.mxu0 0.0
  %2610 = vmatpush1.msra.mxu0 0.0
  %2611 = vmatprep.subr.mxu0 0.0
  %2612 = vmatpush1.msra.mxu0 0.0
  %2613 = vmatprep.subr.mxu0 0.0
  %2614 = vmatpush1.msra.mxu0 0.0
  %2615 = vmatprep.subr.mxu0 0.0
  %2616 = vmatpush1.msra.mxu0 0.0
  %2617 = vmatprep.subr.mxu0 0.0
  %2618 = vmatpush1.msra.mxu0 0.0
  %2619 = vmatprep.subr.mxu0 0.0
  %2620 = vmatpush1.msra.mxu0 0.0
  %2621 = vmatprep.subr.mxu0 0.0
  %2622 = vmatpush1.msra.mxu0 0.0
  %2623 = vmatprep.subr.mxu0 0.0
  %2624 = vmatpush1.msra.mxu0 0.0
  %2625 = vmatprep.subr.mxu0 0.0
  %2626 = vmatpush1.msra.mxu0 0.0
  %2627 = vmatprep.subr.mxu0 0.0
  %2628 = vmatpush1.msra.mxu0 0.0
  %2629 = vmatprep.subr.mxu0 0.0
  %2630 = vmatpush1.msra.mxu0 0.0
  %2631 = vmatprep.subr.mxu0 0.0
  %2632 = vmatpush1.msra.mxu0 0.0
  %2633 = vmatprep.subr.mxu0 0.0
  %v2634 = vand.u32 %v1592, 4294901760
  %2635 = vmatpush1.msra.mxu0 %v2634
  %2636 = vmatprep.subr.mxu0 0.0
  %v2637 = vand.u32 %v1591, 4294901760
  %2638 = vmatpush1.msra.mxu0 %v2637
  %2639 = vmatprep.subr.mxu0 0.0
  %v2640 = vand.u32 %v1590, 4294901760
  %2641 = vmatpush1.msra.mxu0 %v2640
  %2642 = vmatprep.subr.mxu0 0.0
  %v2643 = vand.u32 %v1589, 4294901760
  %2644 = vmatpush1.msra.mxu0 %v2643
  %2645 = vmatprep.subr.mxu0 0.0
  %2646 = vmatpush2.msra.mxu0 0.0
  %2647 = vmatprep.subr.mxu0 0.0
  %2648 = vmatpush2.msra.mxu0 0.0
  %2649 = vmatprep.subr.mxu0 0.0
  %2650 = vmatpush2.msra.mxu0 0.0
  %2651 = vmatprep.subr.mxu0 0.0
  %2652 = vmatpush2.msra.mxu0 0.0
  %2653 = vmatprep.subr.mxu0 0.0
  %2654 = vmatpush2.msra.mxu0 0.0
  %2655 = vmatprep.subr.mxu0 0.0
  %2656 = vmatpush2.msra.mxu0 0.0
  %2657 = vmatprep.subr.mxu0 0.0
  %2658 = vmatpush2.msra.mxu0 0.0
  %2659 = vmatprep.subr.mxu0 0.0
  %2660 = vmatpush2.msra.mxu0 0.0
  %2661 = vmatprep.subr.mxu0 0.0
  %2662 = vmatpush2.msra.mxu0 0.0
  %2663 = vmatprep.subr.mxu0 0.0
  %2664 = vmatpush2.msra.mxu0 0.0
  %2665 = vmatprep.subr.mxu0 0.0
  %2666 = vmatpush2.msra.mxu0 0.0
  %2667 = vmatprep.subr.mxu0 0.0
  %2668 = vmatpush2.msra.mxu0 0.0
  %2669 = vmatprep.subr.mxu0 0.0
  %2670 = vmatpush2.msra.mxu0 0.0
  %2671 = vmatprep.subr.mxu0 0.0
  %2672 = vmatpush2.msra.mxu0 0.0
  %2673 = vmatprep.subr.mxu0 0.0
  %2674 = vmatpush2.msra.mxu0 0.0
  %2675 = vmatprep.subr.mxu0 0.0
  %2676 = vmatpush2.msra.mxu0 0.0
  %2677 = vmatprep.mubr.f32.mxu0 0.0
  %v2678 = vand.u32 %v1597, 4294901760
  %2679 = vmatmul.mubr.f32.gmra.mxu0 %v2678
  %v2680 = vpop.f32.mrf.mxu0
  %v2681 = vadd.f32 %v2516, %v2680
  %v2682 = vpop.f32.mrf.mxu0
  %2683 = vmatprep.mubr.f32.mxu0 0.0
  %v2684 = vand.u32 %v1600, 4294901760
  %2685 = vmatmul.mubr.f32.gmra.mxu0 %v2684
  %v2686 = vpop.f32.mrf.mxu0
  %v2687 = vadd.f32 %v2522, %v2686
  %v2688 = vpop.f32.mrf.mxu0
  %2689 = vmatprep.mubr.f32.mxu0 0.0
  %v2690 = vand.u32 %v1603, 4294901760
  %2691 = vmatmul.mubr.f32.gmra.mxu0 %v2690
  %v2692 = vpop.f32.mrf.mxu0
  %v2693 = vadd.f32 %v2528, %v2692
  %v2694 = vpop.f32.mrf.mxu0
  %2695 = vmatprep.mubr.f32.mxu0 0.0
  %v2696 = vand.u32 %v1606, 4294901760
  %2697 = vmatmul.mubr.f32.gmra.mxu0 %v2696
  %v2698 = vpop.f32.mrf.mxu0
  %v2699 = vadd.f32 %v2534, %v2698
  %v2700 = vpop.f32.mrf.mxu0
  %2701 = vmatprep.mubr.f32.mxu0 0.0
  %v2702 = vand.u32 %v1609, 4294901760
  %2703 = vmatmul.mubr.f32.gmra.mxu0 %v2702
  %v2704 = vpop.f32.mrf.mxu0
  %v2705 = vadd.f32 %v2540, %v2704
  %v2706 = vpop.f32.mrf.mxu0
  %2707 = vmatprep.mubr.f32.mxu0 0.0
  %v2708 = vand.u32 %v1612, 4294901760
  %2709 = vmatmul.mubr.f32.gmra.mxu0 %v2708
  %v2710 = vpop.f32.mrf.mxu0
  %v2711 = vadd.f32 %v2546, %v2710
  %v2712 = vpop.f32.mrf.mxu0
  %2713 = vmatprep.mubr.f32.mxu0 0.0
  %v2714 = vand.u32 %v1615, 4294901760
  %2715 = vmatmul.mubr.f32.gmra.mxu0 %v2714
  %v2716 = vpop.f32.mrf.mxu0
  %v2717 = vadd.f32 %v2552, %v2716
  %v2718 = vpop.f32.mrf.mxu0
  %2719 = vmatprep.mubr.f32.mxu0 0.0
  %v2720 = vand.u32 %v1618, 4294901760
  %2721 = vmatmul.mubr.f32.gmra.mxu0 %v2720
  %v2722 = vpop.f32.mrf.mxu0
  %v2723 = vadd.f32 %v2558, %v2722
  %v2724 = vpop.f32.mrf.mxu0
  %2725 = vmatprep.mubr.f32.mxu0 0.0
  %v2726 = vand.u32 %v1621, 4294901760
  %2727 = vmatmul.mubr.f32.gmra.mxu0 %v2726
  %v2728 = vpop.f32.mrf.mxu0
  %v2729 = vadd.f32 %v2564, %v2728
  %v2730 = vpop.f32.mrf.mxu0
  %2731 = vmatprep.mubr.f32.mxu0 0.0
  %v2732 = vand.u32 %v1624, 4294901760
  %2733 = vmatmul.mubr.f32.gmra.mxu0 %v2732
  %v2734 = vpop.f32.mrf.mxu0
  %v2735 = vadd.f32 %v2570, %v2734
  %v2736 = vpop.f32.mrf.mxu0
  %2737 = vmatprep.mubr.f32.mxu0 0.0
  %v2738 = vand.u32 %v1627, 4294901760
  %2739 = vmatmul.mubr.f32.gmra.mxu0 %v2738
  %v2740 = vpop.f32.mrf.mxu0
  %v2741 = vadd.f32 %v2576, %v2740
  %v2742 = vpop.f32.mrf.mxu0
  %2743 = vmatprep.mubr.f32.mxu0 0.0
  %v2744 = vand.u32 %v1630, 4294901760
  %2745 = vmatmul.mubr.f32.gmra.mxu0 %v2744
  %v2746 = vpop.f32.mrf.mxu0
  %v2747 = vadd.f32 %v2582, %v2746
  %v2748 = vpop.f32.mrf.mxu0
  %2749 = vmatprep.mubr.f32.mxu0 0.0
  %v2750 = vand.u32 %v1633, 4294901760
  %2751 = vmatmul.mubr.f32.gmra.mxu0 %v2750
  %v2752 = vpop.f32.mrf.mxu0
  %v2753 = vadd.f32 %v2588, %v2752
  %v2754 = vpop.f32.mrf.mxu0
  %2755 = vmatprep.mubr.f32.mxu0 0.0
  %v2756 = vand.u32 %v1636, 4294901760
  %2757 = vmatmul.mubr.f32.gmra.mxu0 %v2756
  %v2758 = vpop.f32.mrf.mxu0
  %v2759 = vadd.f32 %v2594, %v2758
  %v2760 = vpop.f32.mrf.mxu0
  %2761 = vmatprep.mubr.f32.mxu0 0.0
  %v2762 = vand.u32 %v1639, 4294901760
  %2763 = vmatmul.mubr.f32.gmra.mxu0 %v2762
  %v2764 = vpop.f32.mrf.mxu0
  %v2765 = vadd.f32 %v2600, %v2764
  %v2766 = vpop.f32.mrf.mxu0
  %2767 = vmatprep.mubr.f32.mxu0 0.0
  %v2768 = vand.u32 %v1642, 4294901760
  %2769 = vmatmul.mubr.f32.gmra.mxu0 %v2768
  %v2770 = vpop.f32.mrf.mxu0
  %v2771 = vadd.f32 %v2606, %v2770
  %v2772 = vpop.f32.mrf.mxu0
  %2773 = vdwg.mxu0
  %v2775 = vlaneseq
  %v2776 = vshrl.u32 %v2775, 7
  %v2777 = vsub.s32 0, %v2776
  %v2778 = vrot.slane %v1593, %v2777
  %2779 = vrot.lane.b32.xlu0 %v2778, 24
  %v2780 = vpop.permute.xlu0 %2779
  %v2782 = vadd.f32 %v2681, %v2780
  %v2783 = vadd.f32 %v2687, %v2780
  %v2784 = vadd.f32 %v2693, %v2780
  %v2785 = vadd.f32 %v2699, %v2780
  %v2786 = vadd.f32 %v2705, %v2780
  %v2787 = vadd.f32 %v2711, %v2780
  %v2788 = vadd.f32 %v2717, %v2780
  %v2789 = vadd.f32 %v2723, %v2780
  %v2790 = vadd.f32 %v2729, %v2780
  %v2791 = vadd.f32 %v2735, %v2780
  %v2792 = vadd.f32 %v2741, %v2780
  %v2793 = vadd.f32 %v2747, %v2780
  %v2794 = vadd.f32 %v2753, %v2780
  %v2795 = vadd.f32 %v2759, %v2780
  %v2796 = vadd.f32 %v2765, %v2780
  %v2797 = vadd.f32 %v2771, %v2780
  %vm2798 = vcmask 195584
  %v2799 = vsel %vm2798, %v2681, 0.0
  %v2800 = vsel %vm2798, %v2687, 0.0
  %v2801 = vadd.f32 %v2799, %v2800
  %v2802 = vsel %vm2798, %v2693, 0.0
  %v2803 = vadd.f32 %v2801, %v2802
  %v2804 = vsel %vm2798, %v2699, 0.0
  %v2805 = vadd.f32 %v2803, %v2804
  %v2806 = vsel %vm2798, %v2705, 0.0
  %v2807 = vadd.f32 %v2805, %v2806
  %v2808 = vsel %vm2798, %v2711, 0.0
  %v2809 = vadd.f32 %v2807, %v2808
  %v2810 = vsel %vm2798, %v2717, 0.0
  %v2811 = vadd.f32 %v2809, %v2810
  %v2812 = vsel %vm2798, %v2723, 0.0
  %v2813 = vadd.f32 %v2811, %v2812
  %v2814 = vsel %vm2798, %v2729, 0.0
  %v2815 = vadd.f32 %v2813, %v2814
  %v2816 = vsel %vm2798, %v2735, 0.0
  %v2817 = vadd.f32 %v2815, %v2816
  %v2818 = vsel %vm2798, %v2741, 0.0
  %v2819 = vadd.f32 %v2817, %v2818
  %v2820 = vsel %vm2798, %v2747, 0.0
  %v2821 = vadd.f32 %v2819, %v2820
  %v2822 = vsel %vm2798, %v2753, 0.0
  %v2823 = vadd.f32 %v2821, %v2822
  %v2824 = vsel %vm2798, %v2759, 0.0
  %v2825 = vadd.f32 %v2823, %v2824
  %v2826 = vsel %vm2798, %v2765, 0.0
  %v2827 = vadd.f32 %v2825, %v2826
  %v2828 = vsel %vm2798, %v2771, 0.0
  %v2829 = vadd.f32 %v2827, %v2828
  %v2830 = vrot.slane %v2829, 4
  %v2831 = vadd.f32 %v2829, %v2830
  %v2832 = vrot.slane %v2831, 2
  %v2833 = vadd.f32 %v2831, %v2832
  %v2834 = vrot.slane %v2833, 1
  %v2835 = vadd.f32 %v2833, %v2834
  %v2836 = vmul.f32 %v2835, %v1325
  %v2837 = vmul.f32 %v2681, %v2681
  %v2838 = vmul.f32 %v2687, %v2687
  %v2839 = vmul.f32 %v2693, %v2693
  %v2840 = vmul.f32 %v2699, %v2699
  %v2841 = vmul.f32 %v2705, %v2705
  %v2842 = vmul.f32 %v2711, %v2711
  %v2843 = vmul.f32 %v2717, %v2717
  %v2844 = vmul.f32 %v2723, %v2723
  %v2845 = vmul.f32 %v2729, %v2729
  %v2846 = vmul.f32 %v2735, %v2735
  %v2847 = vmul.f32 %v2741, %v2741
  %v2848 = vmul.f32 %v2747, %v2747
  %v2849 = vmul.f32 %v2753, %v2753
  %v2850 = vmul.f32 %v2759, %v2759
  %v2851 = vmul.f32 %v2765, %v2765
  %v2852 = vmul.f32 %v2771, %v2771
  %v2853 = vsel %vm2798, %v2837, 0.0
  %v2854 = vsel %vm2798, %v2838, 0.0
  %v2855 = vadd.f32 %v2853, %v2854
  %v2856 = vsel %vm2798, %v2839, 0.0
  %v2857 = vadd.f32 %v2855, %v2856
  %v2858 = vsel %vm2798, %v2840, 0.0
  %v2859 = vadd.f32 %v2857, %v2858
  %v2860 = vsel %vm2798, %v2841, 0.0
  %v2861 = vadd.f32 %v2859, %v2860
  %v2862 = vsel %vm2798, %v2842, 0.0
  %v2863 = vadd.f32 %v2861, %v2862
  %v2864 = vsel %vm2798, %v2843, 0.0
  %v2865 = vadd.f32 %v2863, %v2864
  %v2866 = vsel %vm2798, %v2844, 0.0
  %v2867 = vadd.f32 %v2865, %v2866
  %v2868 = vsel %vm2798, %v2845, 0.0
  %v2869 = vadd.f32 %v2867, %v2868
  %v2870 = vsel %vm2798, %v2846, 0.0
  %v2871 = vadd.f32 %v2869, %v2870
  %v2872 = vsel %vm2798, %v2847, 0.0
  %v2873 = vadd.f32 %v2871, %v2872
  %v2874 = vsel %vm2798, %v2848, 0.0
  %v2875 = vadd.f32 %v2873, %v2874
  %v2876 = vsel %vm2798, %v2849, 0.0
  %v2877 = vadd.f32 %v2875, %v2876
  %v2878 = vsel %vm2798, %v2850, 0.0
  %v2879 = vadd.f32 %v2877, %v2878
  %v2880 = vsel %vm2798, %v2851, 0.0
  %v2881 = vadd.f32 %v2879, %v2880
  %v2882 = vsel %vm2798, %v2852, 0.0
  %v2883 = vadd.f32 %v2881, %v2882
  %v2884 = vrot.slane %v2883, 4
  %v2885 = vadd.f32 %v2883, %v2884
  %v2886 = vrot.slane %v2885, 2
  %v2887 = vadd.f32 %v2885, %v2886
  %v2888 = vrot.slane %v2887, 1
  %v2889 = vadd.f32 %v2887, %v2888
  %v2890 = vmul.f32 %v2889, %v1325
  %v2891 = vmul.f32 %v2836, %v2836
  %v2892 = vsub.f32 %v2890, %v2891
  %v2893 = vsub.f32 %v2681, %v2836
  %v2894 = vsub.f32 %v2687, %v2836
  %v2895 = vsub.f32 %v2693, %v2836
  %v2896 = vsub.f32 %v2699, %v2836
  %v2897 = vsub.f32 %v2705, %v2836
  %v2898 = vsub.f32 %v2711, %v2836
  %v2899 = vsub.f32 %v2717, %v2836
  %v2900 = vsub.f32 %v2723, %v2836
  %v2901 = vsub.f32 %v2729, %v2836
  %v2902 = vsub.f32 %v2735, %v2836
  %v2903 = vsub.f32 %v2741, %v2836
  %v2904 = vsub.f32 %v2747, %v2836
  %v2905 = vsub.f32 %v2753, %v2836
  %v2906 = vsub.f32 %v2759, %v2836
  %v2907 = vsub.f32 %v2765, %v2836
  %v2908 = vsub.f32 %v2771, %v2836
  %v2909 = vadd.f32 %v2892, 1e-05
  %v2910 = vrsqrt.pop %v2909
  %v2911 = vmul.f32 %v2893, %v2910
  %v2912 = vmul.f32 %v2894, %v2910
  %v2913 = vmul.f32 %v2895, %v2910
  %v2914 = vmul.f32 %v2896, %v2910
  %v2915 = vmul.f32 %v2897, %v2910
  %v2916 = vmul.f32 %v2898, %v2910
  %v2917 = vmul.f32 %v2899, %v2910
  %v2918 = vmul.f32 %v2900, %v2910
  %v2919 = vmul.f32 %v2901, %v2910
  %v2920 = vmul.f32 %v2902, %v2910
  %v2921 = vmul.f32 %v2903, %v2910
  %v2922 = vmul.f32 %v2904, %v2910
  %v2923 = vmul.f32 %v2905, %v2910
  %v2924 = vmul.f32 %v2906, %v2910
  %v2925 = vmul.f32 %v2907, %v2910
  %v2926 = vmul.f32 %v2908, %v2910
  %v2928 = vlaneseq
  %v2929 = vshrl.u32 %v2928, 7
  %v2930 = vsub.s32 0, %v2929
  %v2931 = vrot.slane %v1594, %v2930
  %v2933 = vmul.f32 %v2911, %v2931
  %v2934 = vmul.f32 %v2912, %v2931
  %v2935 = vmul.f32 %v2913, %v2931
  %v2936 = vmul.f32 %v2914, %v2931
  %v2937 = vmul.f32 %v2915, %v2931
  %v2938 = vmul.f32 %v2916, %v2931
  %v2939 = vmul.f32 %v2917, %v2931
  %v2940 = vmul.f32 %v2918, %v2931
  %v2941 = vmul.f32 %v2919, %v2931
  %v2942 = vmul.f32 %v2920, %v2931
  %v2943 = vmul.f32 %v2921, %v2931
  %v2944 = vmul.f32 %v2922, %v2931
  %v2945 = vmul.f32 %v2923, %v2931
  %v2946 = vmul.f32 %v2924, %v2931
  %v2947 = vmul.f32 %v2925, %v2931
  %v2948 = vmul.f32 %v2926, %v2931
  %v2950 = vlaneseq
  %v2951 = vshrl.u32 %v2950, 7
  %v2952 = vsub.s32 0, %v2951
  %v2953 = vrot.slane %v1595, %v2952
  %v2955 = vadd.f32 %v2933, %v2953
  %v2956 = vadd.f32 %v2934, %v2953
  %v2957 = vadd.f32 %v2935, %v2953
  %v2958 = vadd.f32 %v2936, %v2953
  %v2959 = vadd.f32 %v2937, %v2953
  %v2960 = vadd.f32 %v2938, %v2953
  %v2961 = vadd.f32 %v2939, %v2953
  %v2962 = vadd.f32 %v2940, %v2953
  %v2963 = vadd.f32 %v2941, %v2953
  %v2964 = vadd.f32 %v2942, %v2953
  %v2965 = vadd.f32 %v2943, %v2953
  %v2966 = vadd.f32 %v2944, %v2953
  %v2967 = vadd.f32 %v2945, %v2953
  %v2968 = vadd.f32 %v2946, %v2953
  %v2969 = vadd.f32 %v2947, %v2953
  %v2970 = vadd.f32 %v2948, %v2953
  %vm2971 = vcmp.gt.f32.partialorder %v2955, 0.0
  %vm2972 = vcmp.gt.f32.partialorder %v2956, 0.0
  %vm2973 = vcmp.gt.f32.partialorder %v2957, 0.0
  %vm2974 = vcmp.gt.f32.partialorder %v2958, 0.0
  %vm2975 = vcmp.gt.f32.partialorder %v2959, 0.0
  %vm2976 = vcmp.gt.f32.partialorder %v2960, 0.0
  %vm2977 = vcmp.gt.f32.partialorder %v2961, 0.0
  %vm2978 = vcmp.gt.f32.partialorder %v2962, 0.0
  %vm2979 = vcmp.gt.f32.partialorder %v2963, 0.0
  %vm2980 = vcmp.gt.f32.partialorder %v2964, 0.0
  %vm2981 = vcmp.gt.f32.partialorder %v2965, 0.0
  %vm2982 = vcmp.gt.f32.partialorder %v2966, 0.0
  %vm2983 = vcmp.gt.f32.partialorder %v2967, 0.0
  %vm2984 = vcmp.gt.f32.partialorder %v2968, 0.0
  %vm2985 = vcmp.gt.f32.partialorder %v2969, 0.0
  %vm2986 = vcmp.gt.f32.partialorder %v2970, 0.0
  %v2987 = vmul.f32 %v2955, 0.01
  %v2988 = vmul.f32 %v2956, 0.01
  %v2989 = vmul.f32 %v2957, 0.01
  %v2990 = vmul.f32 %v2958, 0.01
  %v2991 = vmul.f32 %v2959, 0.01
  %v2992 = vmul.f32 %v2960, 0.01
  %v2993 = vmul.f32 %v2961, 0.01
  %v2994 = vmul.f32 %v2962, 0.01
  %v2995 = vmul.f32 %v2963, 0.01
  %v2996 = vmul.f32 %v2964, 0.01
  %v2997 = vmul.f32 %v2965, 0.01
  %v2998 = vmul.f32 %v2966, 0.01
  %v2999 = vmul.f32 %v2967, 0.01
  %v3000 = vmul.f32 %v2968, 0.01
  %v3001 = vmul.f32 %v2969, 0.01
  %v3002 = vmul.f32 %v2970, 0.01
  %v3003 = vsel %vm2971, %v2955, %v2987
  %v3004 = vsel %vm2972, %v2956, %v2988
  %v3005 = vsel %vm2973, %v2957, %v2989
  %v3006 = vsel %vm2974, %v2958, %v2990
  %v3007 = vsel %vm2975, %v2959, %v2991
  %v3008 = vsel %vm2976, %v2960, %v2992
  %v3009 = vsel %vm2977, %v2961, %v2993
  %v3010 = vsel %vm2978, %v2962, %v2994
  %v3011 = vsel %vm2979, %v2963, %v2995
  %v3012 = vsel %vm2980, %v2964, %v2996
  %v3013 = vsel %vm2981, %v2965, %v2997
  %v3014 = vsel %vm2982, %v2966, %v2998
  %v3015 = vsel %vm2983, %v2967, %v2999
  %v3016 = vsel %vm2984, %v2968, %v3000
  %v3017 = vsel %vm2985, %v2969, %v3001
  %v3018 = vsel %vm2986, %v2970, %v3002
  %3035 = vrot.lane.b32.xlu0 %v2782, 104
  %v3036 = vpop.permute.xlu0 %3035
  %3037 = vrot.lane.b32.xlu0 %v2783, 104
  %v3038 = vpop.permute.xlu0 %3037
  %3039 = vrot.lane.b32.xlu0 %v2784, 104
  %v3040 = vpop.permute.xlu0 %3039
  %3041 = vrot.lane.b32.xlu0 %v2785, 104
  %v3042 = vpop.permute.xlu0 %3041
  %3043 = vrot.lane.b32.xlu0 %v2786, 104
  %v3044 = vpop.permute.xlu0 %3043
  %3045 = vrot.lane.b32.xlu0 %v2787, 104
  %v3046 = vpop.permute.xlu0 %3045
  %3047 = vrot.lane.b32.xlu0 %v2788, 104
  %v3048 = vpop.permute.xlu0 %3047
  %3049 = vrot.lane.b32.xlu0 %v2789, 104
  %v3050 = vpop.permute.xlu0 %3049
  %3051 = vrot.lane.b32.xlu0 %v2790, 104
  %v3052 = vpop.permute.xlu0 %3051
  %3053 = vrot.lane.b32.xlu0 %v2791, 104
  %v3054 = vpop.permute.xlu0 %3053
  %3055 = vrot.lane.b32.xlu0 %v2792, 104
  %v3056 = vpop.permute.xlu0 %3055
  %3057 = vrot.lane.b32.xlu0 %v2793, 104
  %v3058 = vpop.permute.xlu0 %3057
  %3059 = vrot.lane.b32.xlu0 %v2794, 104
  %v3060 = vpop.permute.xlu0 %3059
  %3061 = vrot.lane.b32.xlu0 %v2795, 104
  %v3062 = vpop.permute.xlu0 %3061
  %3063 = vrot.lane.b32.xlu0 %v2796, 104
  %v3064 = vpop.permute.xlu0 %3063
  %3065 = vrot.lane.b32.xlu0 %v2797, 104
  %v3066 = vpop.permute.xlu0 %3065
  %v3083 = vadd.f32 %v3003, %v3036
  %v3084 = vadd.f32 %v3004, %v3038
  %v3085 = vadd.f32 %v3005, %v3040
  %v3086 = vadd.f32 %v3006, %v3042
  %v3087 = vadd.f32 %v3007, %v3044
  %v3088 = vadd.f32 %v3008, %v3046
  %v3089 = vadd.f32 %v3009, %v3048
  %v3090 = vadd.f32 %v3010, %v3050
  %v3091 = vadd.f32 %v3011, %v3052
  %v3092 = vadd.f32 %v3012, %v3054
  %v3093 = vadd.f32 %v3013, %v3056
  %v3094 = vadd.f32 %v3014, %v3058
  %v3095 = vadd.f32 %v3015, %v3060
  %v3096 = vadd.f32 %v3016, %v3062
  %v3097 = vadd.f32 %v3017, %v3064
  %v3098 = vadd.f32 %v3018, %v3066
  %v3099 = vld [vmem:[%s10] sm:$0xff]
  %v3100 = vld [vmem:[%s10 + $0x8] sm:$0xff]
  %v3101 = vld [vmem:[%s10 + $0x10] sm:$0xff]
  %v3102 = vld [vmem:[%s11] sm:$0x1]
  %v3104 = vlaneseq
  %v3105 = vshrl.u32 %v3104, 7
  %v3106 = vsub.s32 0, %v3105
  %v3107 = vrot.slane %v3102, %v3106
  %v3110 = vsel %vm2798, %v3083, 0
  %v3113 = vsel %vm2798, %v3084, 0
  %v3116 = vsel %vm2798, %v3085, 0
  %v3119 = vsel %vm2798, %v3086, 0
  %v3122 = vsel %vm2798, %v3087, 0
  %v3125 = vsel %vm2798, %v3088, 0
  %v3128 = vsel %vm2798, %v3089, 0
  %v3131 = vsel %vm2798, %v3090, 0
  %v3134 = vsel %vm2798, %v3091, 0
  %v3137 = vsel %vm2798, %v3092, 0
  %v3140 = vsel %vm2798, %v3093, 0
  %v3143 = vsel %vm2798, %v3094, 0
  %v3146 = vsel %vm2798, %v3095, 0
  %v3149 = vsel %vm2798, %v3096, 0
  %v3152 = vsel %vm2798, %v3097, 0
  %v3155 = vsel %vm2798, %v3098, 0
  %3157 = vmatprep.subr.mxu0 0.0
  %3158 = vmatpush1.msra.mxu0 0.0
  %3159 = vmatprep.subr.mxu0 0.0
  %3160 = vmatpush1.msra.mxu0 0.0
  %3161 = vmatprep.subr.mxu0 0.0
  %3162 = vmatpush1.msra.mxu0 0.0
  %3163 = vmatprep.subr.mxu0 0.0
  %3164 = vmatpush1.msra.mxu0 0.0
  %3165 = vmatprep.subr.mxu0 0.0
  %3166 = vmatpush1.msra.mxu0 0.0
  %3167 = vmatprep.subr.mxu0 0.0
  %3168 = vmatpush1.msra.mxu0 0.0
  %3169 = vmatprep.subr.mxu0 0.0
  %3170 = vmatpush1.msra.mxu0 0.0
  %3171 = vmatprep.subr.mxu0 0.0
  %3172 = vmatpush1.msra.mxu0 0.0
  %3173 = vmatprep.subr.mxu0 0.0
  %3174 = vmatpush1.msra.mxu0 0.0
  %3175 = vmatprep.subr.mxu0 0.0
  %3176 = vmatpush1.msra.mxu0 0.0
  %3177 = vmatprep.subr.mxu0 0.0
  %3178 = vmatpush1.msra.mxu0 0.0
  %3179 = vmatprep.subr.mxu0 0.0
  %3180 = vmatpush1.msra.mxu0 0.0
  %3181 = vmatprep.subr.mxu0 0.0
  %3182 = vmatpush1.msra.mxu0 0.0
  %3183 = vmatprep.subr.mxu0 0.0
  %v3184 = vand.u32 %v3101, 4294901760
  %3185 = vmatpush1.msra.mxu0 %v3184
  %3186 = vmatprep.subr.mxu0 0.0
  %v3187 = vand.u32 %v3100, 4294901760
  %3188 = vmatpush1.msra.mxu0 %v3187
  %3189 = vmatprep.subr.mxu0 0.0
  %v3190 = vand.u32 %v3099, 4294901760
  %3191 = vmatpush1.msra.mxu0 %v3190
  %3192 = vmatprep.subr.mxu0 0.0
  %3193 = vmatpush2.msra.mxu0 0.0
  %3194 = vmatprep.subr.mxu0 0.0
  %3195 = vmatpush2.msra.mxu0 0.0
  %3196 = vmatprep.subr.mxu0 0.0
  %3197 = vmatpush2.msra.mxu0 0.0
  %3198 = vmatprep.subr.mxu0 0.0
  %3199 = vmatpush2.msra.mxu0 0.0
  %3200 = vmatprep.subr.mxu0 0.0
  %3201 = vmatpush2.msra.mxu0 0.0
  %3202 = vmatprep.subr.mxu0 0.0
  %3203 = vmatpush2.msra.mxu0 0.0
  %3204 = vmatprep.subr.mxu0 0.0
  %3205 = vmatpush2.msra.mxu0 0.0
  %3206 = vmatprep.subr.mxu0 0.0
  %3207 = vmatpush2.msra.mxu0 0.0
  %3208 = vmatprep.subr.mxu0 0.0
  %3209 = vmatpush2.msra.mxu0 0.0
  %3210 = vmatprep.subr.mxu0 0.0
  %3211 = vmatpush2.msra.mxu0 0.0
  %3212 = vmatprep.subr.mxu0 0.0
  %3213 = vmatpush2.msra.mxu0 0.0
  %3214 = vmatprep.subr.mxu0 0.0
  %3215 = vmatpush2.msra.mxu0 0.0
  %3216 = vmatprep.subr.mxu0 0.0
  %3217 = vmatpush2.msra.mxu0 0.0
  %3218 = vmatprep.subr.mxu0 0.0
  %3219 = vmatpush2.msra.mxu0 0.0
  %3220 = vmatprep.subr.mxu0 0.0
  %3221 = vmatpush2.msra.mxu0 0.0
  %3222 = vmatprep.subr.mxu0 0.0
  %3223 = vmatpush2.msra.mxu0 0.0
  %3224 = vmatprep.mubr.f32.mxu0 0.0
  %v3225 = vand.u32 %v3110, 4294901760
  %v3226 = vsub.f32 %v3110, %v3225
  %v3227 = vand.u32 %v3226, 4294901760
  %v3228 = vsub.f32 %v3226, %v3227
  %v3229 = vand.u32 %v3228, 4294901760
  %3230 = vmatmul.mubr.f32.gmra.mxu0 %v3229
  %v3231 = vpop.f32.mrf.mxu0
  %v3232 = vadd.f32 %v3107, %v3231
  %v3233 = vpop.f32.mrf.mxu0
  %3234 = vmatprep.mubr.f32.mxu0 0.0
  %v3235 = vand.u32 %v3113, 4294901760
  %v3236 = vsub.f32 %v3113, %v3235
  %v3237 = vand.u32 %v3236, 4294901760
  %v3238 = vsub.f32 %v3236, %v3237
  %v3239 = vand.u32 %v3238, 4294901760
  %3240 = vmatmul.mubr.f32.gmra.mxu0 %v3239
  %v3241 = vpop.f32.mrf.mxu0
  %v3242 = vadd.f32 %v3107, %v3241
  %v3243 = vpop.f32.mrf.mxu0
  %3244 = vmatprep.mubr.f32.mxu0 0.0
  %v3245 = vand.u32 %v3116, 4294901760
  %v3246 = vsub.f32 %v3116, %v3245
  %v3247 = vand.u32 %v3246, 4294901760
  %v3248 = vsub.f32 %v3246, %v3247
  %v3249 = vand.u32 %v3248, 4294901760
  %3250 = vmatmul.mubr.f32.gmra.mxu0 %v3249
  %v3251 = vpop.f32.mrf.mxu0
  %v3252 = vadd.f32 %v3107, %v3251
  %v3253 = vpop.f32.mrf.mxu0
  %3254 = vmatprep.mubr.f32.mxu0 0.0
  %v3255 = vand.u32 %v3119, 4294901760
  %v3256 = vsub.f32 %v3119, %v3255
  %v3257 = vand.u32 %v3256, 4294901760
  %v3258 = vsub.f32 %v3256, %v3257
  %v3259 = vand.u32 %v3258, 4294901760
  %3260 = vmatmul.mubr.f32.gmra.mxu0 %v3259
  %v3261 = vpop.f32.mrf.mxu0
  %v3262 = vadd.f32 %v3107, %v3261
  %v3263 = vpop.f32.mrf.mxu0
  %3264 = vmatprep.mubr.f32.mxu0 0.0
  %v3265 = vand.u32 %v3122, 4294901760
  %v3266 = vsub.f32 %v3122, %v3265
  %v3267 = vand.u32 %v3266, 4294901760
  %v3268 = vsub.f32 %v3266, %v3267
  %v3269 = vand.u32 %v3268, 4294901760
  %3270 = vmatmul.mubr.f32.gmra.mxu0 %v3269
  %v3271 = vpop.f32.mrf.mxu0
  %v3272 = vadd.f32 %v3107, %v3271
  %v3273 = vpop.f32.mrf.mxu0
  %3274 = vmatprep.mubr.f32.mxu0 0.0
  %v3275 = vand.u32 %v3125, 4294901760
  %v3276 = vsub.f32 %v3125, %v3275
  %v3277 = vand.u32 %v3276, 4294901760
  %v3278 = vsub.f32 %v3276, %v3277
  %v3279 = vand.u32 %v3278, 4294901760
  %3280 = vmatmul.mubr.f32.gmra.mxu0 %v3279
  %v3281 = vpop.f32.mrf.mxu0
  %v3282 = vadd.f32 %v3107, %v3281
  %v3283 = vpop.f32.mrf.mxu0
  %3284 = vmatprep.mubr.f32.mxu0 0.0
  %v3285 = vand.u32 %v3128, 4294901760
  %v3286 = vsub.f32 %v3128, %v3285
  %v3287 = vand.u32 %v3286, 4294901760
  %v3288 = vsub.f32 %v3286, %v3287
  %v3289 = vand.u32 %v3288, 4294901760
  %3290 = vmatmul.mubr.f32.gmra.mxu0 %v3289
  %v3291 = vpop.f32.mrf.mxu0
  %v3292 = vadd.f32 %v3107, %v3291
  %v3293 = vpop.f32.mrf.mxu0
  %3294 = vmatprep.mubr.f32.mxu0 0.0
  %v3295 = vand.u32 %v3131, 4294901760
  %v3296 = vsub.f32 %v3131, %v3295
  %v3297 = vand.u32 %v3296, 4294901760
  %v3298 = vsub.f32 %v3296, %v3297
  %v3299 = vand.u32 %v3298, 4294901760
  %3300 = vmatmul.mubr.f32.gmra.mxu0 %v3299
  %v3301 = vpop.f32.mrf.mxu0
  %v3302 = vadd.f32 %v3107, %v3301
  %v3303 = vpop.f32.mrf.mxu0
  %3304 = vmatprep.mubr.f32.mxu0 0.0
  %v3305 = vand.u32 %v3134, 4294901760
  %v3306 = vsub.f32 %v3134, %v3305
  %v3307 = vand.u32 %v3306, 4294901760
  %v3308 = vsub.f32 %v3306, %v3307
  %v3309 = vand.u32 %v3308, 4294901760
  %3310 = vmatmul.mubr.f32.gmra.mxu0 %v3309
  %v3311 = vpop.f32.mrf.mxu0
  %v3312 = vadd.f32 %v3107, %v3311
  %v3313 = vpop.f32.mrf.mxu0
  %3314 = vmatprep.mubr.f32.mxu0 0.0
  %v3315 = vand.u32 %v3137, 4294901760
  %v3316 = vsub.f32 %v3137, %v3315
  %v3317 = vand.u32 %v3316, 4294901760
  %v3318 = vsub.f32 %v3316, %v3317
  %v3319 = vand.u32 %v3318, 4294901760
  %3320 = vmatmul.mubr.f32.gmra.mxu0 %v3319
  %v3321 = vpop.f32.mrf.mxu0
  %v3322 = vadd.f32 %v3107, %v3321
  %v3323 = vpop.f32.mrf.mxu0
  %3324 = vmatprep.mubr.f32.mxu0 0.0
  %v3325 = vand.u32 %v3140, 4294901760
  %v3326 = vsub.f32 %v3140, %v3325
  %v3327 = vand.u32 %v3326, 4294901760
  %v3328 = vsub.f32 %v3326, %v3327
  %v3329 = vand.u32 %v3328, 4294901760
  %3330 = vmatmul.mubr.f32.gmra.mxu0 %v3329
  %v3331 = vpop.f32.mrf.mxu0
  %v3332 = vadd.f32 %v3107, %v3331
  %v3333 = vpop.f32.mrf.mxu0
  %3334 = vmatprep.mubr.f32.mxu0 0.0
  %v3335 = vand.u32 %v3143, 4294901760
  %v3336 = vsub.f32 %v3143, %v3335
  %v3337 = vand.u32 %v3336, 4294901760
  %v3338 = vsub.f32 %v3336, %v3337
  %v3339 = vand.u32 %v3338, 4294901760
  %3340 = vmatmul.mubr.f32.gmra.mxu0 %v3339
  %v3341 = vpop.f32.mrf.mxu0
  %v3342 = vadd.f32 %v3107, %v3341
  %v3343 = vpop.f32.mrf.mxu0
  %3344 = vmatprep.mubr.f32.mxu0 0.0
  %v3345 = vand.u32 %v3146, 4294901760
  %v3346 = vsub.f32 %v3146, %v3345
  %v3347 = vand.u32 %v3346, 4294901760
  %v3348 = vsub.f32 %v3346, %v3347
  %v3349 = vand.u32 %v3348, 4294901760
  %3350 = vmatmul.mubr.f32.gmra.mxu0 %v3349
  %v3351 = vpop.f32.mrf.mxu0
  %v3352 = vadd.f32 %v3107, %v3351
  %v3353 = vpop.f32.mrf.mxu0
  %3354 = vmatprep.mubr.f32.mxu0 0.0
  %v3355 = vand.u32 %v3149, 4294901760
  %v3356 = vsub.f32 %v3149, %v3355
  %v3357 = vand.u32 %v3356, 4294901760
  %v3358 = vsub.f32 %v3356, %v3357
  %v3359 = vand.u32 %v3358, 4294901760
  %3360 = vmatmul.mubr.f32.gmra.mxu0 %v3359
  %v3361 = vpop.f32.mrf.mxu0
  %v3362 = vadd.f32 %v3107, %v3361
  %v3363 = vpop.f32.mrf.mxu0
  %3364 = vmatprep.mubr.f32.mxu0 0.0
  %v3365 = vand.u32 %v3152, 4294901760
  %v3366 = vsub.f32 %v3152, %v3365
  %v3367 = vand.u32 %v3366, 4294901760
  %v3368 = vsub.f32 %v3366, %v3367
  %v3369 = vand.u32 %v3368, 4294901760
  %3370 = vmatmul.mubr.f32.gmra.mxu0 %v3369
  %v3371 = vpop.f32.mrf.mxu0
  %v3372 = vadd.f32 %v3107, %v3371
  %v3373 = vpop.f32.mrf.mxu0
  %3374 = vmatprep.mubr.f32.mxu0 0.0
  %v3375 = vand.u32 %v3155, 4294901760
  %v3376 = vsub.f32 %v3155, %v3375
  %v3377 = vand.u32 %v3376, 4294901760
  %v3378 = vsub.f32 %v3376, %v3377
  %v3379 = vand.u32 %v3378, 4294901760
  %3380 = vmatmul.mubr.f32.gmra.mxu0 %v3379
  %v3381 = vpop.f32.mrf.mxu0
  %v3382 = vadd.f32 %v3107, %v3381
  %v3383 = vpop.f32.mrf.mxu0
  %3384 = vdwg.mxu0
  %3385 = vmatprep.subr.mxu0 0.0
  %3386 = vmatpush1.msra.mxu0 0.0
  %3387 = vmatprep.subr.mxu0 0.0
  %3388 = vmatpush1.msra.mxu0 0.0
  %3389 = vmatprep.subr.mxu0 0.0
  %3390 = vmatpush1.msra.mxu0 0.0
  %3391 = vmatprep.subr.mxu0 0.0
  %3392 = vmatpush1.msra.mxu0 0.0
  %3393 = vmatprep.subr.mxu0 0.0
  %3394 = vmatpush1.msra.mxu0 0.0
  %3395 = vmatprep.subr.mxu0 0.0
  %3396 = vmatpush1.msra.mxu0 0.0
  %3397 = vmatprep.subr.mxu0 0.0
  %3398 = vmatpush1.msra.mxu0 0.0
  %3399 = vmatprep.subr.mxu0 0.0
  %3400 = vmatpush1.msra.mxu0 0.0
  %3401 = vmatprep.subr.mxu0 0.0
  %3402 = vmatpush1.msra.mxu0 0.0
  %3403 = vmatprep.subr.mxu0 0.0
  %3404 = vmatpush1.msra.mxu0 0.0
  %3405 = vmatprep.subr.mxu0 0.0
  %3406 = vmatpush1.msra.mxu0 0.0
  %3407 = vmatprep.subr.mxu0 0.0
  %3408 = vmatpush1.msra.mxu0 0.0
  %3409 = vmatprep.subr.mxu0 0.0
  %3410 = vmatpush1.msra.mxu0 0.0
  %3411 = vmatprep.subr.mxu0 0.0
  %v3412 = vand.u32 %v3101, 4294901760
  %v3413 = vsub.f32 %v3101, %v3412
  %v3414 = vand.u32 %v3413, 4294901760
  %v3415 = vsub.f32 %v3413, %v3414
  %v3416 = vand.u32 %v3415, 4294901760
  %3417 = vmatpush1.msra.mxu0 %v3416
  %3418 = vmatprep.subr.mxu0 0.0
  %v3419 = vand.u32 %v3100, 4294901760
  %v3420 = vsub.f32 %v3100, %v3419
  %v3421 = vand.u32 %v3420, 4294901760
  %v3422 = vsub.f32 %v3420, %v3421
  %v3423 = vand.u32 %v3422, 4294901760
  %3424 = vmatpush1.msra.mxu0 %v3423
  %3425 = vmatprep.subr.mxu0 0.0
  %v3426 = vand.u32 %v3099, 4294901760
  %v3427 = vsub.f32 %v3099, %v3426
  %v3428 = vand.u32 %v3427, 4294901760
  %v3429 = vsub.f32 %v3427, %v3428
  %v3430 = vand.u32 %v3429, 4294901760
  %3431 = vmatpush1.msra.mxu0 %v3430
  %3432 = vmatprep.subr.mxu0 0.0
  %3433 = vmatpush2.msra.mxu0 0.0
  %3434 = vmatprep.subr.mxu0 0.0
  %3435 = vmatpush2.msra.mxu0 0.0
  %3436 = vmatprep.subr.mxu0 0.0
  %3437 = vmatpush2.msra.mxu0 0.0
  %3438 = vmatprep.subr.mxu0 0.0
  %3439 = vmatpush2.msra.mxu0 0.0
  %3440 = vmatprep.subr.mxu0 0.0
  %3441 = vmatpush2.msra.mxu0 0.0
  %3442 = vmatprep.subr.mxu0 0.0
  %3443 = vmatpush2.msra.mxu0 0.0
  %3444 = vmatprep.subr.mxu0 0.0
  %3445 = vmatpush2.msra.mxu0 0.0
  %3446 = vmatprep.subr.mxu0 0.0
  %3447 = vmatpush2.msra.mxu0 0.0
  %3448 = vmatprep.subr.mxu0 0.0
  %3449 = vmatpush2.msra.mxu0 0.0
  %3450 = vmatprep.subr.mxu0 0.0
  %3451 = vmatpush2.msra.mxu0 0.0
  %3452 = vmatprep.subr.mxu0 0.0
  %3453 = vmatpush2.msra.mxu0 0.0
  %3454 = vmatprep.subr.mxu0 0.0
  %3455 = vmatpush2.msra.mxu0 0.0
  %3456 = vmatprep.subr.mxu0 0.0
  %3457 = vmatpush2.msra.mxu0 0.0
  %3458 = vmatprep.subr.mxu0 0.0
  %3459 = vmatpush2.msra.mxu0 0.0
  %3460 = vmatprep.subr.mxu0 0.0
  %3461 = vmatpush2.msra.mxu0 0.0
  %3462 = vmatprep.subr.mxu0 0.0
  %3463 = vmatpush2.msra.mxu0 0.0
  %3464 = vmatprep.mubr.f32.mxu0 0.0
  %v3465 = vand.u32 %v3110, 4294901760
  %3466 = vmatmul.mubr.f32.gmra.mxu0 %v3465
  %v3467 = vpop.f32.mrf.mxu0
  %v3468 = vadd.f32 %v3232, %v3467
  %v3469 = vpop.f32.mrf.mxu0
  %3470 = vmatprep.mubr.f32.mxu0 0.0
  %v3471 = vand.u32 %v3113, 4294901760
  %3472 = vmatmul.mubr.f32.gmra.mxu0 %v3471
  %v3473 = vpop.f32.mrf.mxu0
  %v3474 = vadd.f32 %v3242, %v3473
  %v3475 = vpop.f32.mrf.mxu0
  %3476 = vmatprep.mubr.f32.mxu0 0.0
  %v3477 = vand.u32 %v3116, 4294901760
  %3478 = vmatmul.mubr.f32.gmra.mxu0 %v3477
  %v3479 = vpop.f32.mrf.mxu0
  %v3480 = vadd.f32 %v3252, %v3479
  %v3481 = vpop.f32.mrf.mxu0
  %3482 = vmatprep.mubr.f32.mxu0 0.0
  %v3483 = vand.u32 %v3119, 4294901760
  %3484 = vmatmul.mubr.f32.gmra.mxu0 %v3483
  %v3485 = vpop.f32.mrf.mxu0
  %v3486 = vadd.f32 %v3262, %v3485
  %v3487 = vpop.f32.mrf.mxu0
  %3488 = vmatprep.mubr.f32.mxu0 0.0
  %v3489 = vand.u32 %v3122, 4294901760
  %3490 = vmatmul.mubr.f32.gmra.mxu0 %v3489
  %v3491 = vpop.f32.mrf.mxu0
  %v3492 = vadd.f32 %v3272, %v3491
  %v3493 = vpop.f32.mrf.mxu0
  %3494 = vmatprep.mubr.f32.mxu0 0.0
  %v3495 = vand.u32 %v3125, 4294901760
  %3496 = vmatmul.mubr.f32.gmra.mxu0 %v3495
  %v3497 = vpop.f32.mrf.mxu0
  %v3498 = vadd.f32 %v3282, %v3497
  %v3499 = vpop.f32.mrf.mxu0
  %3500 = vmatprep.mubr.f32.mxu0 0.0
  %v3501 = vand.u32 %v3128, 4294901760
  %3502 = vmatmul.mubr.f32.gmra.mxu0 %v3501
  %v3503 = vpop.f32.mrf.mxu0
  %v3504 = vadd.f32 %v3292, %v3503
  %v3505 = vpop.f32.mrf.mxu0
  %3506 = vmatprep.mubr.f32.mxu0 0.0
  %v3507 = vand.u32 %v3131, 4294901760
  %3508 = vmatmul.mubr.f32.gmra.mxu0 %v3507
  %v3509 = vpop.f32.mrf.mxu0
  %v3510 = vadd.f32 %v3302, %v3509
  %v3511 = vpop.f32.mrf.mxu0
  %3512 = vmatprep.mubr.f32.mxu0 0.0
  %v3513 = vand.u32 %v3134, 4294901760
  %3514 = vmatmul.mubr.f32.gmra.mxu0 %v3513
  %v3515 = vpop.f32.mrf.mxu0
  %v3516 = vadd.f32 %v3312, %v3515
  %v3517 = vpop.f32.mrf.mxu0
  %3518 = vmatprep.mubr.f32.mxu0 0.0
  %v3519 = vand.u32 %v3137, 4294901760
  %3520 = vmatmul.mubr.f32.gmra.mxu0 %v3519
  %v3521 = vpop.f32.mrf.mxu0
  %v3522 = vadd.f32 %v3322, %v3521
  %v3523 = vpop.f32.mrf.mxu0
  %3524 = vmatprep.mubr.f32.mxu0 0.0
  %v3525 = vand.u32 %v3140, 4294901760
  %3526 = vmatmul.mubr.f32.gmra.mxu0 %v3525
  %v3527 = vpop.f32.mrf.mxu0
  %v3528 = vadd.f32 %v3332, %v3527
  %v3529 = vpop.f32.mrf.mxu0
  %3530 = vmatprep.mubr.f32.mxu0 0.0
  %v3531 = vand.u32 %v3143, 4294901760
  %3532 = vmatmul.mubr.f32.gmra.mxu0 %v3531
  %v3533 = vpop.f32.mrf.mxu0
  %v3534 = vadd.f32 %v3342, %v3533
  %v3535 = vpop.f32.mrf.mxu0
  %3536 = vmatprep.mubr.f32.mxu0 0.0
  %v3537 = vand.u32 %v3146, 4294901760
  %3538 = vmatmul.mubr.f32.gmra.mxu0 %v3537
  %v3539 = vpop.f32.mrf.mxu0
  %v3540 = vadd.f32 %v3352, %v3539
  %v3541 = vpop.f32.mrf.mxu0
  %3542 = vmatprep.mubr.f32.mxu0 0.0
  %v3543 = vand.u32 %v3149, 4294901760
  %3544 = vmatmul.mubr.f32.gmra.mxu0 %v3543
  %v3545 = vpop.f32.mrf.mxu0
  %v3546 = vadd.f32 %v3362, %v3545
  %v3547 = vpop.f32.mrf.mxu0
  %3548 = vmatprep.mubr.f32.mxu0 0.0
  %v3549 = vand.u32 %v3152, 4294901760
  %3550 = vmatmul.mubr.f32.gmra.mxu0 %v3549
  %v3551 = vpop.f32.mrf.mxu0
  %v3552 = vadd.f32 %v3372, %v3551
  %v3553 = vpop.f32.mrf.mxu0
  %3554 = vmatprep.mubr.f32.mxu0 0.0
  %v3555 = vand.u32 %v3155, 4294901760
  %3556 = vmatmul.mubr.f32.gmra.mxu0 %v3555
  %v3557 = vpop.f32.mrf.mxu0
  %v3558 = vadd.f32 %v3382, %v3557
  %v3559 = vpop.f32.mrf.mxu0
  %3560 = vdwg.mxu0
  %3561 = vmatprep.subr.mxu0 0.0
  %3562 = vmatpush1.msra.mxu0 0.0
  %3563 = vmatprep.subr.mxu0 0.0
  %3564 = vmatpush1.msra.mxu0 0.0
  %3565 = vmatprep.subr.mxu0 0.0
  %3566 = vmatpush1.msra.mxu0 0.0
  %3567 = vmatprep.subr.mxu0 0.0
  %3568 = vmatpush1.msra.mxu0 0.0
  %3569 = vmatprep.subr.mxu0 0.0
  %3570 = vmatpush1.msra.mxu0 0.0
  %3571 = vmatprep.subr.mxu0 0.0
  %3572 = vmatpush1.msra.mxu0 0.0
  %3573 = vmatprep.subr.mxu0 0.0
  %3574 = vmatpush1.msra.mxu0 0.0
  %3575 = vmatprep.subr.mxu0 0.0
  %3576 = vmatpush1.msra.mxu0 0.0
  %3577 = vmatprep.subr.mxu0 0.0
  %3578 = vmatpush1.msra.mxu0 0.0
  %3579 = vmatprep.subr.mxu0 0.0
  %3580 = vmatpush1.msra.mxu0 0.0
  %3581 = vmatprep.subr.mxu0 0.0
  %3582 = vmatpush1.msra.mxu0 0.0
  %3583 = vmatprep.subr.mxu0 0.0
  %3584 = vmatpush1.msra.mxu0 0.0
  %3585 = vmatprep.subr.mxu0 0.0
  %3586 = vmatpush1.msra.mxu0 0.0
  %3587 = vmatprep.subr.mxu0 0.0
  %v3588 = vand.u32 %v3101, 4294901760
  %v3589 = vsub.f32 %v3101, %v3588
  %3590 = vmatpush1.msra.mxu0 %v3589
  %3591 = vmatprep.subr.mxu0 0.0
  %v3592 = vand.u32 %v3100, 4294901760
  %v3593 = vsub.f32 %v3100, %v3592
  %3594 = vmatpush1.msra.mxu0 %v3593
  %3595 = vmatprep.subr.mxu0 0.0
  %v3596 = vand.u32 %v3099, 4294901760
  %v3597 = vsub.f32 %v3099, %v3596
  %3598 = vmatpush1.msra.mxu0 %v3597
  %3599 = vmatprep.subr.mxu0 0.0
  %3600 = vmatpush2.msra.mxu0 0.0
  %3601 = vmatprep.subr.mxu0 0.0
  %3602 = vmatpush2.msra.mxu0 0.0
  %3603 = vmatprep.subr.mxu0 0.0
  %3604 = vmatpush2.msra.mxu0 0.0
  %3605 = vmatprep.subr.mxu0 0.0
  %3606 = vmatpush2.msra.mxu0 0.0
  %3607 = vmatprep.subr.mxu0 0.0
  %3608 = vmatpush2.msra.mxu0 0.0
  %3609 = vmatprep.subr.mxu0 0.0
  %3610 = vmatpush2.msra.mxu0 0.0
  %3611 = vmatprep.subr.mxu0 0.0
  %3612 = vmatpush2.msra.mxu0 0.0
  %3613 = vmatprep.subr.mxu0 0.0
  %3614 = vmatpush2.msra.mxu0 0.0
  %3615 = vmatprep.subr.mxu0 0.0
  %3616 = vmatpush2.msra.mxu0 0.0
  %3617 = vmatprep.subr.mxu0 0.0
  %3618 = vmatpush2.msra.mxu0 0.0
  %3619 = vmatprep.subr.mxu0 0.0
  %3620 = vmatpush2.msra.mxu0 0.0
  %3621 = vmatprep.subr.mxu0 0.0
  %3622 = vmatpush2.msra.mxu0 0.0
  %3623 = vmatprep.subr.mxu0 0.0
  %3624 = vmatpush2.msra.mxu0 0.0
  %3625 = vmatprep.subr.mxu0 0.0
  %3626 = vmatpush2.msra.mxu0 0.0
  %3627 = vmatprep.subr.mxu0 0.0
  %3628 = vmatpush2.msra.mxu0 0.0
  %3629 = vmatprep.subr.mxu0 0.0
  %3630 = vmatpush2.msra.mxu0 0.0
  %3631 = vmatprep.mubr.f32.mxu0 0.0
  %v3632 = vand.u32 %v3110, 4294901760
  %v3633 = vsub.f32 %v3110, %v3632
  %3634 = vmatmul.mubr.f32.gmra.mxu0 %v3633
  %v3635 = vpop.f32.mrf.mxu0
  %v3636 = vadd.f32 %v3468, %v3635
  %v3637 = vpop.f32.mrf.mxu0
  %3638 = vmatprep.mubr.f32.mxu0 0.0
  %v3639 = vand.u32 %v3113, 4294901760
  %v3640 = vsub.f32 %v3113, %v3639
  %3641 = vmatmul.mubr.f32.gmra.mxu0 %v3640
  %v3642 = vpop.f32.mrf.mxu0
  %v3643 = vadd.f32 %v3474, %v3642
  %v3644 = vpop.f32.mrf.mxu0
  %3645 = vmatprep.mubr.f32.mxu0 0.0
  %v3646 = vand.u32 %v3116, 4294901760
  %v3647 = vsub.f32 %v3116, %v3646
  %3648 = vmatmul.mubr.f32.gmra.mxu0 %v3647
  %v3649 = vpop.f32.mrf.mxu0
  %v3650 = vadd.f32 %v3480, %v3649
  %v3651 = vpop.f32.mrf.mxu0
  %3652 = vmatprep.mubr.f32.mxu0 0.0
  %v3653 = vand.u32 %v3119, 4294901760
  %v3654 = vsub.f32 %v3119, %v3653
  %3655 = vmatmul.mubr.f32.gmra.mxu0 %v3654
  %v3656 = vpop.f32.mrf.mxu0
  %v3657 = vadd.f32 %v3486, %v3656
  %v3658 = vpop.f32.mrf.mxu0
  %3659 = vmatprep.mubr.f32.mxu0 0.0
  %v3660 = vand.u32 %v3122, 4294901760
  %v3661 = vsub.f32 %v3122, %v3660
  %3662 = vmatmul.mubr.f32.gmra.mxu0 %v3661
  %v3663 = vpop.f32.mrf.mxu0
  %v3664 = vadd.f32 %v3492, %v3663
  %v3665 = vpop.f32.mrf.mxu0
  %3666 = vmatprep.mubr.f32.mxu0 0.0
  %v3667 = vand.u32 %v3125, 4294901760
  %v3668 = vsub.f32 %v3125, %v3667
  %3669 = vmatmul.mubr.f32.gmra.mxu0 %v3668
  %v3670 = vpop.f32.mrf.mxu0
  %v3671 = vadd.f32 %v3498, %v3670
  %v3672 = vpop.f32.mrf.mxu0
  %3673 = vmatprep.mubr.f32.mxu0 0.0
  %v3674 = vand.u32 %v3128, 4294901760
  %v3675 = vsub.f32 %v3128, %v3674
  %3676 = vmatmul.mubr.f32.gmra.mxu0 %v3675
  %v3677 = vpop.f32.mrf.mxu0
  %v3678 = vadd.f32 %v3504, %v3677
  %v3679 = vpop.f32.mrf.mxu0
  %3680 = vmatprep.mubr.f32.mxu0 0.0
  %v3681 = vand.u32 %v3131, 4294901760
  %v3682 = vsub.f32 %v3131, %v3681
  %3683 = vmatmul.mubr.f32.gmra.mxu0 %v3682
  %v3684 = vpop.f32.mrf.mxu0
  %v3685 = vadd.f32 %v3510, %v3684
  %v3686 = vpop.f32.mrf.mxu0
  %3687 = vmatprep.mubr.f32.mxu0 0.0
  %v3688 = vand.u32 %v3134, 4294901760
  %v3689 = vsub.f32 %v3134, %v3688
  %3690 = vmatmul.mubr.f32.gmra.mxu0 %v3689
  %v3691 = vpop.f32.mrf.mxu0
  %v3692 = vadd.f32 %v3516, %v3691
  %v3693 = vpop.f32.mrf.mxu0
  %3694 = vmatprep.mubr.f32.mxu0 0.0
  %v3695 = vand.u32 %v3137, 4294901760
  %v3696 = vsub.f32 %v3137, %v3695
  %3697 = vmatmul.mubr.f32.gmra.mxu0 %v3696
  %v3698 = vpop.f32.mrf.mxu0
  %v3699 = vadd.f32 %v3522, %v3698
  %v3700 = vpop.f32.mrf.mxu0
  %3701 = vmatprep.mubr.f32.mxu0 0.0
  %v3702 = vand.u32 %v3140, 4294901760
  %v3703 = vsub.f32 %v3140, %v3702
  %3704 = vmatmul.mubr.f32.gmra.mxu0 %v3703
  %v3705 = vpop.f32.mrf.mxu0
  %v3706 = vadd.f32 %v3528, %v3705
  %v3707 = vpop.f32.mrf.mxu0
  %3708 = vmatprep.mubr.f32.mxu0 0.0
  %v3709 = vand.u32 %v3143, 4294901760
  %v3710 = vsub.f32 %v3143, %v3709
  %3711 = vmatmul.mubr.f32.gmra.mxu0 %v3710
  %v3712 = vpop.f32.mrf.mxu0
  %v3713 = vadd.f32 %v3534, %v3712
  %v3714 = vpop.f32.mrf.mxu0
  %3715 = vmatprep.mubr.f32.mxu0 0.0
  %v3716 = vand.u32 %v3146, 4294901760
  %v3717 = vsub.f32 %v3146, %v3716
  %3718 = vmatmul.mubr.f32.gmra.mxu0 %v3717
  %v3719 = vpop.f32.mrf.mxu0
  %v3720 = vadd.f32 %v3540, %v3719
  %v3721 = vpop.f32.mrf.mxu0
  %3722 = vmatprep.mubr.f32.mxu0 0.0
  %v3723 = vand.u32 %v3149, 4294901760
  %v3724 = vsub.f32 %v3149, %v3723
  %3725 = vmatmul.mubr.f32.gmra.mxu0 %v3724
  %v3726 = vpop.f32.mrf.mxu0
  %v3727 = vadd.f32 %v3546, %v3726
  %v3728 = vpop.f32.mrf.mxu0
  %3729 = vmatprep.mubr.f32.mxu0 0.0
  %v3730 = vand.u32 %v3152, 4294901760
  %v3731 = vsub.f32 %v3152, %v3730
  %3732 = vmatmul.mubr.f32.gmra.mxu0 %v3731
  %v3733 = vpop.f32.mrf.mxu0
  %v3734 = vadd.f32 %v3552, %v3733
  %v3735 = vpop.f32.mrf.mxu0
  %3736 = vmatprep.mubr.f32.mxu0 0.0
  %v3737 = vand.u32 %v3155, 4294901760
  %v3738 = vsub.f32 %v3155, %v3737
  %3739 = vmatmul.mubr.f32.gmra.mxu0 %v3738
  %v3740 = vpop.f32.mrf.mxu0
  %v3741 = vadd.f32 %v3558, %v3740
  %v3742 = vpop.f32.mrf.mxu0
  %3743 = vdwg.mxu0
  %3744 = vmatprep.subr.mxu0 0.0
  %3745 = vmatpush1.msra.mxu0 0.0
  %3746 = vmatprep.subr.mxu0 0.0
  %3747 = vmatpush1.msra.mxu0 0.0
  %3748 = vmatprep.subr.mxu0 0.0
  %3749 = vmatpush1.msra.mxu0 0.0
  %3750 = vmatprep.subr.mxu0 0.0
  %3751 = vmatpush1.msra.mxu0 0.0
  %3752 = vmatprep.subr.mxu0 0.0
  %3753 = vmatpush1.msra.mxu0 0.0
  %3754 = vmatprep.subr.mxu0 0.0
  %3755 = vmatpush1.msra.mxu0 0.0
  %3756 = vmatprep.subr.mxu0 0.0
  %3757 = vmatpush1.msra.mxu0 0.0
  %3758 = vmatprep.subr.mxu0 0.0
  %3759 = vmatpush1.msra.mxu0 0.0
  %3760 = vmatprep.subr.mxu0 0.0
  %3761 = vmatpush1.msra.mxu0 0.0
  %3762 = vmatprep.subr.mxu0 0.0
  %3763 = vmatpush1.msra.mxu0 0.0
  %3764 = vmatprep.subr.mxu0 0.0
  %3765 = vmatpush1.msra.mxu0 0.0
  %3766 = vmatprep.subr.mxu0 0.0
  %3767 = vmatpush1.msra.mxu0 0.0
  %3768 = vmatprep.subr.mxu0 0.0
  %3769 = vmatpush1.msra.mxu0 0.0
  %3770 = vmatprep.subr.mxu0 0.0
  %v3771 = vand.u32 %v3101, 4294901760
  %3772 = vmatpush1.msra.mxu0 %v3771
  %3773 = vmatprep.subr.mxu0 0.0
  %v3774 = vand.u32 %v3100, 4294901760
  %3775 = vmatpush1.msra.mxu0 %v3774
  %3776 = vmatprep.subr.mxu0 0.0
  %v3777 = vand.u32 %v3099, 4294901760
  %3778 = vmatpush1.msra.mxu0 %v3777
  %3779 = vmatprep.subr.mxu0 0.0
  %3780 = vmatpush2.msra.mxu0 0.0
  %3781 = vmatprep.subr.mxu0 0.0
  %3782 = vmatpush2.msra.mxu0 0.0
  %3783 = vmatprep.subr.mxu0 0.0
  %3784 = vmatpush2.msra.mxu0 0.0
  %3785 = vmatprep.subr.mxu0 0.0
  %3786 = vmatpush2.msra.mxu0 0.0
  %3787 = vmatprep.subr.mxu0 0.0
  %3788 = vmatpush2.msra.mxu0 0.0
  %3789 = vmatprep.subr.mxu0 0.0
  %3790 = vmatpush2.msra.mxu0 0.0
  %3791 = vmatprep.subr.mxu0 0.0
  %3792 = vmatpush2.msra.mxu0 0.0
  %3793 = vmatprep.subr.mxu0 0.0
  %3794 = vmatpush2.msra.mxu0 0.0
  %3795 = vmatprep.subr.mxu0 0.0
  %3796 = vmatpush2.msra.mxu0 0.0
  %3797 = vmatprep.subr.mxu0 0.0
  %3798 = vmatpush2.msra.mxu0 0.0
  %3799 = vmatprep.subr.mxu0 0.0
  %3800 = vmatpush2.msra.mxu0 0.0
  %3801 = vmatprep.subr.mxu0 0.0
  %3802 = vmatpush2.msra.mxu0 0.0
  %3803 = vmatprep.subr.mxu0 0.0
  %3804 = vmatpush2.msra.mxu0 0.0
  %3805 = vmatprep.subr.mxu0 0.0
  %3806 = vmatpush2.msra.mxu0 0.0
  %3807 = vmatprep.subr.mxu0 0.0
  %3808 = vmatpush2.msra.mxu0 0.0
  %3809 = vmatprep.subr.mxu0 0.0
  %3810 = vmatpush2.msra.mxu0 0.0
  %3811 = vmatprep.mubr.f32.mxu0 0.0
  %v3812 = vand.u32 %v3110, 4294901760
  %v3813 = vsub.f32 %v3110, %v3812
  %v3814 = vand.u32 %v3813, 4294901760
  %3815 = vmatmul.mubr.f32.gmra.mxu0 %v3814
  %v3816 = vpop.f32.mrf.mxu0
  %v3817 = vadd.f32 %v3636, %v3816
  %v3818 = vpop.f32.mrf.mxu0
  %3819 = vmatprep.mubr.f32.mxu0 0.0
  %v3820 = vand.u32 %v3113, 4294901760
  %v3821 = vsub.f32 %v3113, %v3820
  %v3822 = vand.u32 %v3821, 4294901760
  %3823 = vmatmul.mubr.f32.gmra.mxu0 %v3822
  %v3824 = vpop.f32.mrf.mxu0
  %v3825 = vadd.f32 %v3643, %v3824
  %v3826 = vpop.f32.mrf.mxu0
  %3827 = vmatprep.mubr.f32.mxu0 0.0
  %v3828 = vand.u32 %v3116, 4294901760
  %v3829 = vsub.f32 %v3116, %v3828
  %v3830 = vand.u32 %v3829, 4294901760
  %3831 = vmatmul.mubr.f32.gmra.mxu0 %v3830
  %v3832 = vpop.f32.mrf.mxu0
  %v3833 = vadd.f32 %v3650, %v3832
  %v3834 = vpop.f32.mrf.mxu0
  %3835 = vmatprep.mubr.f32.mxu0 0.0
  %v3836 = vand.u32 %v3119, 4294901760
  %v3837 = vsub.f32 %v3119, %v3836
  %v3838 = vand.u32 %v3837, 4294901760
  %3839 = vmatmul.mubr.f32.gmra.mxu0 %v3838
  %v3840 = vpop.f32.mrf.mxu0
  %v3841 = vadd.f32 %v3657, %v3840
  %v3842 = vpop.f32.mrf.mxu0
  %3843 = vmatprep.mubr.f32.mxu0 0.0
  %v3844 = vand.u32 %v3122, 4294901760
  %v3845 = vsub.f32 %v3122, %v3844
  %v3846 = vand.u32 %v3845, 4294901760
  %3847 = vmatmul.mubr.f32.gmra.mxu0 %v3846
  %v3848 = vpop.f32.mrf.mxu0
  %v3849 = vadd.f32 %v3664, %v3848
  %v3850 = vpop.f32.mrf.mxu0
  %3851 = vmatprep.mubr.f32.mxu0 0.0
  %v3852 = vand.u32 %v3125, 4294901760
  %v3853 = vsub.f32 %v3125, %v3852
  %v3854 = vand.u32 %v3853, 4294901760
  %3855 = vmatmul.mubr.f32.gmra.mxu0 %v3854
  %v3856 = vpop.f32.mrf.mxu0
  %v3857 = vadd.f32 %v3671, %v3856
  %v3858 = vpop.f32.mrf.mxu0
  %3859 = vmatprep.mubr.f32.mxu0 0.0
  %v3860 = vand.u32 %v3128, 4294901760
  %v3861 = vsub.f32 %v3128, %v3860
  %v3862 = vand.u32 %v3861, 4294901760
  %3863 = vmatmul.mubr.f32.gmra.mxu0 %v3862
  %v3864 = vpop.f32.mrf.mxu0
  %v3865 = vadd.f32 %v3678, %v3864
  %v3866 = vpop.f32.mrf.mxu0
  %3867 = vmatprep.mubr.f32.mxu0 0.0
  %v3868 = vand.u32 %v3131, 4294901760
  %v3869 = vsub.f32 %v3131, %v3868
  %v3870 = vand.u32 %v3869, 4294901760
  %3871 = vmatmul.mubr.f32.gmra.mxu0 %v3870
  %v3872 = vpop.f32.mrf.mxu0
  %v3873 = vadd.f32 %v3685, %v3872
  %v3874 = vpop.f32.mrf.mxu0
  %3875 = vmatprep.mubr.f32.mxu0 0.0
  %v3876 = vand.u32 %v3134, 4294901760
  %v3877 = vsub.f32 %v3134, %v3876
  %v3878 = vand.u32 %v3877, 4294901760
  %3879 = vmatmul.mubr.f32.gmra.mxu0 %v3878
  %v3880 = vpop.f32.mrf.mxu0
  %v3881 = vadd.f32 %v3692, %v3880
  %v3882 = vpop.f32.mrf.mxu0
  %3883 = vmatprep.mubr.f32.mxu0 0.0
  %v3884 = vand.u32 %v3137, 4294901760
  %v3885 = vsub.f32 %v3137, %v3884
  %v3886 = vand.u32 %v3885, 4294901760
  %3887 = vmatmul.mubr.f32.gmra.mxu0 %v3886
  %v3888 = vpop.f32.mrf.mxu0
  %v3889 = vadd.f32 %v3699, %v3888
  %v3890 = vpop.f32.mrf.mxu0
  %3891 = vmatprep.mubr.f32.mxu0 0.0
  %v3892 = vand.u32 %v3140, 4294901760
  %v3893 = vsub.f32 %v3140, %v3892
  %v3894 = vand.u32 %v3893, 4294901760
  %3895 = vmatmul.mubr.f32.gmra.mxu0 %v3894
  %v3896 = vpop.f32.mrf.mxu0
  %v3897 = vadd.f32 %v3706, %v3896
  %v3898 = vpop.f32.mrf.mxu0
  %3899 = vmatprep.mubr.f32.mxu0 0.0
  %v3900 = vand.u32 %v3143, 4294901760
  %v3901 = vsub.f32 %v3143, %v3900
  %v3902 = vand.u32 %v3901, 4294901760
  %3903 = vmatmul.mubr.f32.gmra.mxu0 %v3902
  %v3904 = vpop.f32.mrf.mxu0
  %v3905 = vadd.f32 %v3713, %v3904
  %v3906 = vpop.f32.mrf.mxu0
  %3907 = vmatprep.mubr.f32.mxu0 0.0
  %v3908 = vand.u32 %v3146, 4294901760
  %v3909 = vsub.f32 %v3146, %v3908
  %v3910 = vand.u32 %v3909, 4294901760
  %3911 = vmatmul.mubr.f32.gmra.mxu0 %v3910
  %v3912 = vpop.f32.mrf.mxu0
  %v3913 = vadd.f32 %v3720, %v3912
  %v3914 = vpop.f32.mrf.mxu0
  %3915 = vmatprep.mubr.f32.mxu0 0.0
  %v3916 = vand.u32 %v3149, 4294901760
  %v3917 = vsub.f32 %v3149, %v3916
  %v3918 = vand.u32 %v3917, 4294901760
  %3919 = vmatmul.mubr.f32.gmra.mxu0 %v3918
  %v3920 = vpop.f32.mrf.mxu0
  %v3921 = vadd.f32 %v3727, %v3920
  %v3922 = vpop.f32.mrf.mxu0
  %3923 = vmatprep.mubr.f32.mxu0 0.0
  %v3924 = vand.u32 %v3152, 4294901760
  %v3925 = vsub.f32 %v3152, %v3924
  %v3926 = vand.u32 %v3925, 4294901760
  %3927 = vmatmul.mubr.f32.gmra.mxu0 %v3926
  %v3928 = vpop.f32.mrf.mxu0
  %v3929 = vadd.f32 %v3734, %v3928
  %v3930 = vpop.f32.mrf.mxu0
  %3931 = vmatprep.mubr.f32.mxu0 0.0
  %v3932 = vand.u32 %v3155, 4294901760
  %v3933 = vsub.f32 %v3155, %v3932
  %v3934 = vand.u32 %v3933, 4294901760
  %3935 = vmatmul.mubr.f32.gmra.mxu0 %v3934
  %v3936 = vpop.f32.mrf.mxu0
  %v3937 = vadd.f32 %v3741, %v3936
  %v3938 = vpop.f32.mrf.mxu0
  %3939 = vdwg.mxu0
  %3940 = vmatprep.subr.mxu0 0.0
  %3941 = vmatpush1.msra.mxu0 0.0
  %3942 = vmatprep.subr.mxu0 0.0
  %3943 = vmatpush1.msra.mxu0 0.0
  %3944 = vmatprep.subr.mxu0 0.0
  %3945 = vmatpush1.msra.mxu0 0.0
  %3946 = vmatprep.subr.mxu0 0.0
  %3947 = vmatpush1.msra.mxu0 0.0
  %3948 = vmatprep.subr.mxu0 0.0
  %3949 = vmatpush1.msra.mxu0 0.0
  %3950 = vmatprep.subr.mxu0 0.0
  %3951 = vmatpush1.msra.mxu0 0.0
  %3952 = vmatprep.subr.mxu0 0.0
  %3953 = vmatpush1.msra.mxu0 0.0
  %3954 = vmatprep.subr.mxu0 0.0
  %3955 = vmatpush1.msra.mxu0 0.0
  %3956 = vmatprep.subr.mxu0 0.0
  %3957 = vmatpush1.msra.mxu0 0.0
  %3958 = vmatprep.subr.mxu0 0.0
  %3959 = vmatpush1.msra.mxu0 0.0
  %3960 = vmatprep.subr.mxu0 0.0
  %3961 = vmatpush1.msra.mxu0 0.0
  %3962 = vmatprep.subr.mxu0 0.0
  %3963 = vmatpush1.msra.mxu0 0.0
  %3964 = vmatprep.subr.mxu0 0.0
  %3965 = vmatpush1.msra.mxu0 0.0
  %3966 = vmatprep.subr.mxu0 0.0
  %v3967 = vand.u32 %v3101, 4294901760
  %v3968 = vsub.f32 %v3101, %v3967
  %v3969 = vand.u32 %v3968, 4294901760
  %3970 = vmatpush1.msra.mxu0 %v3969
  %3971 = vmatprep.subr.mxu0 0.0
  %v3972 = vand.u32 %v3100, 4294901760
  %v3973 = vsub.f32 %v3100, %v3972
  %v3974 = vand.u32 %v3973, 4294901760
  %3975 = vmatpush1.msra.mxu0 %v3974
  %3976 = vmatprep.subr.mxu0 0.0
  %v3977 = vand.u32 %v3099, 4294901760
  %v3978 = vsub.f32 %v3099, %v3977
  %v3979 = vand.u32 %v3978, 4294901760
  %3980 = vmatpush1.msra.mxu0 %v3979
  %3981 = vmatprep.subr.mxu0 0.0
  %3982 = vmatpush2.msra.mxu0 0.0
  %3983 = vmatprep.subr.mxu0 0.0
  %3984 = vmatpush2.msra.mxu0 0.0
  %3985 = vmatprep.subr.mxu0 0.0
  %3986 = vmatpush2.msra.mxu0 0.0
  %3987 = vmatprep.subr.mxu0 0.0
  %3988 = vmatpush2.msra.mxu0 0.0
  %3989 = vmatprep.subr.mxu0 0.0
  %3990 = vmatpush2.msra.mxu0 0.0
  %3991 = vmatprep.subr.mxu0 0.0
  %3992 = vmatpush2.msra.mxu0 0.0
  %3993 = vmatprep.subr.mxu0 0.0
  %3994 = vmatpush2.msra.mxu0 0.0
  %3995 = vmatprep.subr.mxu0 0.0
  %3996 = vmatpush2.msra.mxu0 0.0
  %3997 = vmatprep.subr.mxu0 0.0
  %3998 = vmatpush2.msra.mxu0 0.0
  %3999 = vmatprep.subr.mxu0 0.0
  %4000 = vmatpush2.msra.mxu0 0.0
  %4001 = vmatprep.subr.mxu0 0.0
  %4002 = vmatpush2.msra.mxu0 0.0
  %4003 = vmatprep.subr.mxu0 0.0
  %4004 = vmatpush2.msra.mxu0 0.0
  %4005 = vmatprep.subr.mxu0 0.0
  %4006 = vmatpush2.msra.mxu0 0.0
  %4007 = vmatprep.subr.mxu0 0.0
  %4008 = vmatpush2.msra.mxu0 0.0
  %4009 = vmatprep.subr.mxu0 0.0
  %4010 = vmatpush2.msra.mxu0 0.0
  %4011 = vmatprep.subr.mxu0 0.0
  %4012 = vmatpush2.msra.mxu0 0.0
  %4013 = vmatprep.mubr.f32.mxu0 0.0
  %v4014 = vand.u32 %v3110, 4294901760
  %4015 = vmatmul.mubr.f32.gmra.mxu0 %v4014
  %v4016 = vpop.f32.mrf.mxu0
  %v4017 = vadd.f32 %v3817, %v4016
  %v4018 = vpop.f32.mrf.mxu0
  %4019 = vmatprep.mubr.f32.mxu0 0.0
  %v4020 = vand.u32 %v3113, 4294901760
  %4021 = vmatmul.mubr.f32.gmra.mxu0 %v4020
  %v4022 = vpop.f32.mrf.mxu0
  %v4023 = vadd.f32 %v3825, %v4022
  %v4024 = vpop.f32.mrf.mxu0
  %4025 = vmatprep.mubr.f32.mxu0 0.0
  %v4026 = vand.u32 %v3116, 4294901760
  %4027 = vmatmul.mubr.f32.gmra.mxu0 %v4026
  %v4028 = vpop.f32.mrf.mxu0
  %v4029 = vadd.f32 %v3833, %v4028
  %v4030 = vpop.f32.mrf.mxu0
  %4031 = vmatprep.mubr.f32.mxu0 0.0
  %v4032 = vand.u32 %v3119, 4294901760
  %4033 = vmatmul.mubr.f32.gmra.mxu0 %v4032
  %v4034 = vpop.f32.mrf.mxu0
  %v4035 = vadd.f32 %v3841, %v4034
  %v4036 = vpop.f32.mrf.mxu0
  %4037 = vmatprep.mubr.f32.mxu0 0.0
  %v4038 = vand.u32 %v3122, 4294901760
  %4039 = vmatmul.mubr.f32.gmra.mxu0 %v4038
  %v4040 = vpop.f32.mrf.mxu0
  %v4041 = vadd.f32 %v3849, %v4040
  %v4042 = vpop.f32.mrf.mxu0
  %4043 = vmatprep.mubr.f32.mxu0 0.0
  %v4044 = vand.u32 %v3125, 4294901760
  %4045 = vmatmul.mubr.f32.gmra.mxu0 %v4044
  %v4046 = vpop.f32.mrf.mxu0
  %v4047 = vadd.f32 %v3857, %v4046
  %v4048 = vpop.f32.mrf.mxu0
  %4049 = vmatprep.mubr.f32.mxu0 0.0
  %v4050 = vand.u32 %v3128, 4294901760
  %4051 = vmatmul.mubr.f32.gmra.mxu0 %v4050
  %v4052 = vpop.f32.mrf.mxu0
  %v4053 = vadd.f32 %v3865, %v4052
  %v4054 = vpop.f32.mrf.mxu0
  %4055 = vmatprep.mubr.f32.mxu0 0.0
  %v4056 = vand.u32 %v3131, 4294901760
  %4057 = vmatmul.mubr.f32.gmra.mxu0 %v4056
  %v4058 = vpop.f32.mrf.mxu0
  %v4059 = vadd.f32 %v3873, %v4058
  %v4060 = vpop.f32.mrf.mxu0
  %4061 = vmatprep.mubr.f32.mxu0 0.0
  %v4062 = vand.u32 %v3134, 4294901760
  %4063 = vmatmul.mubr.f32.gmra.mxu0 %v4062
  %v4064 = vpop.f32.mrf.mxu0
  %v4065 = vadd.f32 %v3881, %v4064
  %v4066 = vpop.f32.mrf.mxu0
  %4067 = vmatprep.mubr.f32.mxu0 0.0
  %v4068 = vand.u32 %v3137, 4294901760
  %4069 = vmatmul.mubr.f32.gmra.mxu0 %v4068
  %v4070 = vpop.f32.mrf.mxu0
  %v4071 = vadd.f32 %v3889, %v4070
  %v4072 = vpop.f32.mrf.mxu0
  %4073 = vmatprep.mubr.f32.mxu0 0.0
  %v4074 = vand.u32 %v3140, 4294901760
  %4075 = vmatmul.mubr.f32.gmra.mxu0 %v4074
  %v4076 = vpop.f32.mrf.mxu0
  %v4077 = vadd.f32 %v3897, %v4076
  %v4078 = vpop.f32.mrf.mxu0
  %4079 = vmatprep.mubr.f32.mxu0 0.0
  %v4080 = vand.u32 %v3143, 4294901760
  %4081 = vmatmul.mubr.f32.gmra.mxu0 %v4080
  %v4082 = vpop.f32.mrf.mxu0
  %v4083 = vadd.f32 %v3905, %v4082
  %v4084 = vpop.f32.mrf.mxu0
  %4085 = vmatprep.mubr.f32.mxu0 0.0
  %v4086 = vand.u32 %v3146, 4294901760
  %4087 = vmatmul.mubr.f32.gmra.mxu0 %v4086
  %v4088 = vpop.f32.mrf.mxu0
  %v4089 = vadd.f32 %v3913, %v4088
  %v4090 = vpop.f32.mrf.mxu0
  %4091 = vmatprep.mubr.f32.mxu0 0.0
  %v4092 = vand.u32 %v3149, 4294901760
  %4093 = vmatmul.mubr.f32.gmra.mxu0 %v4092
  %v4094 = vpop.f32.mrf.mxu0
  %v4095 = vadd.f32 %v3921, %v4094
  %v4096 = vpop.f32.mrf.mxu0
  %4097 = vmatprep.mubr.f32.mxu0 0.0
  %v4098 = vand.u32 %v3152, 4294901760
  %4099 = vmatmul.mubr.f32.gmra.mxu0 %v4098
  %v4100 = vpop.f32.mrf.mxu0
  %v4101 = vadd.f32 %v3929, %v4100
  %v4102 = vpop.f32.mrf.mxu0
  %4103 = vmatprep.mubr.f32.mxu0 0.0
  %v4104 = vand.u32 %v3155, 4294901760
  %4105 = vmatmul.mubr.f32.gmra.mxu0 %v4104
  %v4106 = vpop.f32.mrf.mxu0
  %v4107 = vadd.f32 %v3937, %v4106
  %v4108 = vpop.f32.mrf.mxu0
  %4109 = vdwg.mxu0
  %4110 = vmatprep.subr.mxu0 0.0
  %4111 = vmatpush1.msra.mxu0 0.0
  %4112 = vmatprep.subr.mxu0 0.0
  %4113 = vmatpush1.msra.mxu0 0.0
  %4114 = vmatprep.subr.mxu0 0.0
  %4115 = vmatpush1.msra.mxu0 0.0
  %4116 = vmatprep.subr.mxu0 0.0
  %4117 = vmatpush1.msra.mxu0 0.0
  %4118 = vmatprep.subr.mxu0 0.0
  %4119 = vmatpush1.msra.mxu0 0.0
  %4120 = vmatprep.subr.mxu0 0.0
  %4121 = vmatpush1.msra.mxu0 0.0
  %4122 = vmatprep.subr.mxu0 0.0
  %4123 = vmatpush1.msra.mxu0 0.0
  %4124 = vmatprep.subr.mxu0 0.0
  %4125 = vmatpush1.msra.mxu0 0.0
  %4126 = vmatprep.subr.mxu0 0.0
  %4127 = vmatpush1.msra.mxu0 0.0
  %4128 = vmatprep.subr.mxu0 0.0
  %4129 = vmatpush1.msra.mxu0 0.0
  %4130 = vmatprep.subr.mxu0 0.0
  %4131 = vmatpush1.msra.mxu0 0.0
  %4132 = vmatprep.subr.mxu0 0.0
  %4133 = vmatpush1.msra.mxu0 0.0
  %4134 = vmatprep.subr.mxu0 0.0
  %4135 = vmatpush1.msra.mxu0 0.0
  %4136 = vmatprep.subr.mxu0 0.0
  %v4137 = vand.u32 %v3101, 4294901760
  %4138 = vmatpush1.msra.mxu0 %v4137
  %4139 = vmatprep.subr.mxu0 0.0
  %v4140 = vand.u32 %v3100, 4294901760
  %4141 = vmatpush1.msra.mxu0 %v4140
  %4142 = vmatprep.subr.mxu0 0.0
  %v4143 = vand.u32 %v3099, 4294901760
  %4144 = vmatpush1.msra.mxu0 %v4143
  %4145 = vmatprep.subr.mxu0 0.0
  %4146 = vmatpush2.msra.mxu0 0.0
  %4147 = vmatprep.subr.mxu0 0.0
  %4148 = vmatpush2.msra.mxu0 0.0
  %4149 = vmatprep.subr.mxu0 0.0
  %4150 = vmatpush2.msra.mxu0 0.0
  %4151 = vmatprep.subr.mxu0 0.0
  %4152 = vmatpush2.msra.mxu0 0.0
  %4153 = vmatprep.subr.mxu0 0.0
  %4154 = vmatpush2.msra.mxu0 0.0
  %4155 = vmatprep.subr.mxu0 0.0
  %4156 = vmatpush2.msra.mxu0 0.0
  %4157 = vmatprep.subr.mxu0 0.0
  %4158 = vmatpush2.msra.mxu0 0.0
  %4159 = vmatprep.subr.mxu0 0.0
  %4160 = vmatpush2.msra.mxu0 0.0
  %4161 = vmatprep.subr.mxu0 0.0
  %4162 = vmatpush2.msra.mxu0 0.0
  %4163 = vmatprep.subr.mxu0 0.0
  %4164 = vmatpush2.msra.mxu0 0.0
  %4165 = vmatprep.subr.mxu0 0.0
  %4166 = vmatpush2.msra.mxu0 0.0
  %4167 = vmatprep.subr.mxu0 0.0
  %4168 = vmatpush2.msra.mxu0 0.0
  %4169 = vmatprep.subr.mxu0 0.0
  %4170 = vmatpush2.msra.mxu0 0.0
  %4171 = vmatprep.subr.mxu0 0.0
  %4172 = vmatpush2.msra.mxu0 0.0
  %4173 = vmatprep.subr.mxu0 0.0
  %4174 = vmatpush2.msra.mxu0 0.0
  %4175 = vmatprep.subr.mxu0 0.0
  %4176 = vmatpush2.msra.mxu0 0.0
  %4177 = vmatprep.mubr.f32.mxu0 0.0
  %v4178 = vand.u32 %v3110, 4294901760
  %4179 = vmatmul.mubr.f32.gmra.mxu0 %v4178
  %v4180 = vpop.f32.mrf.mxu0
  %v4181 = vadd.f32 %v4017, %v4180
  %v4182 = vpop.f32.mrf.mxu0
  %4183 = vmatprep.mubr.f32.mxu0 0.0
  %v4184 = vand.u32 %v3113, 4294901760
  %4185 = vmatmul.mubr.f32.gmra.mxu0 %v4184
  %v4186 = vpop.f32.mrf.mxu0
  %v4187 = vadd.f32 %v4023, %v4186
  %v4188 = vpop.f32.mrf.mxu0
  %4189 = vmatprep.mubr.f32.mxu0 0.0
  %v4190 = vand.u32 %v3116, 4294901760
  %4191 = vmatmul.mubr.f32.gmra.mxu0 %v4190
  %v4192 = vpop.f32.mrf.mxu0
  %v4193 = vadd.f32 %v4029, %v4192
  %v4194 = vpop.f32.mrf.mxu0
  %4195 = vmatprep.mubr.f32.mxu0 0.0
  %v4196 = vand.u32 %v3119, 4294901760
  %4197 = vmatmul.mubr.f32.gmra.mxu0 %v4196
  %v4198 = vpop.f32.mrf.mxu0
  %v4199 = vadd.f32 %v4035, %v4198
  %v4200 = vpop.f32.mrf.mxu0
  %4201 = vmatprep.mubr.f32.mxu0 0.0
  %v4202 = vand.u32 %v3122, 4294901760
  %4203 = vmatmul.mubr.f32.gmra.mxu0 %v4202
  %v4204 = vpop.f32.mrf.mxu0
  %v4205 = vadd.f32 %v4041, %v4204
  %v4206 = vpop.f32.mrf.mxu0
  %4207 = vmatprep.mubr.f32.mxu0 0.0
  %v4208 = vand.u32 %v3125, 4294901760
  %4209 = vmatmul.mubr.f32.gmra.mxu0 %v4208
  %v4210 = vpop.f32.mrf.mxu0
  %v4211 = vadd.f32 %v4047, %v4210
  %v4212 = vpop.f32.mrf.mxu0
  %4213 = vmatprep.mubr.f32.mxu0 0.0
  %v4214 = vand.u32 %v3128, 4294901760
  %4215 = vmatmul.mubr.f32.gmra.mxu0 %v4214
  %v4216 = vpop.f32.mrf.mxu0
  %v4217 = vadd.f32 %v4053, %v4216
  %v4218 = vpop.f32.mrf.mxu0
  %4219 = vmatprep.mubr.f32.mxu0 0.0
  %v4220 = vand.u32 %v3131, 4294901760
  %4221 = vmatmul.mubr.f32.gmra.mxu0 %v4220
  %v4222 = vpop.f32.mrf.mxu0
  %v4223 = vadd.f32 %v4059, %v4222
  %v4224 = vpop.f32.mrf.mxu0
  %4225 = vmatprep.mubr.f32.mxu0 0.0
  %v4226 = vand.u32 %v3134, 4294901760
  %4227 = vmatmul.mubr.f32.gmra.mxu0 %v4226
  %v4228 = vpop.f32.mrf.mxu0
  %v4229 = vadd.f32 %v4065, %v4228
  %v4230 = vpop.f32.mrf.mxu0
  %4231 = vmatprep.mubr.f32.mxu0 0.0
  %v4232 = vand.u32 %v3137, 4294901760
  %4233 = vmatmul.mubr.f32.gmra.mxu0 %v4232
  %v4234 = vpop.f32.mrf.mxu0
  %v4235 = vadd.f32 %v4071, %v4234
  %v4236 = vpop.f32.mrf.mxu0
  %4237 = vmatprep.mubr.f32.mxu0 0.0
  %v4238 = vand.u32 %v3140, 4294901760
  %4239 = vmatmul.mubr.f32.gmra.mxu0 %v4238
  %v4240 = vpop.f32.mrf.mxu0
  %v4241 = vadd.f32 %v4077, %v4240
  %v4242 = vpop.f32.mrf.mxu0
  %4243 = vmatprep.mubr.f32.mxu0 0.0
  %v4244 = vand.u32 %v3143, 4294901760
  %4245 = vmatmul.mubr.f32.gmra.mxu0 %v4244
  %v4246 = vpop.f32.mrf.mxu0
  %v4247 = vadd.f32 %v4083, %v4246
  %v4248 = vpop.f32.mrf.mxu0
  %4249 = vmatprep.mubr.f32.mxu0 0.0
  %v4250 = vand.u32 %v3146, 4294901760
  %4251 = vmatmul.mubr.f32.gmra.mxu0 %v4250
  %v4252 = vpop.f32.mrf.mxu0
  %v4253 = vadd.f32 %v4089, %v4252
  %v4254 = vpop.f32.mrf.mxu0
  %4255 = vmatprep.mubr.f32.mxu0 0.0
  %v4256 = vand.u32 %v3149, 4294901760
  %4257 = vmatmul.mubr.f32.gmra.mxu0 %v4256
  %v4258 = vpop.f32.mrf.mxu0
  %v4259 = vadd.f32 %v4095, %v4258
  %v4260 = vpop.f32.mrf.mxu0
  %4261 = vmatprep.mubr.f32.mxu0 0.0
  %v4262 = vand.u32 %v3152, 4294901760
  %4263 = vmatmul.mubr.f32.gmra.mxu0 %v4262
  %v4264 = vpop.f32.mrf.mxu0
  %v4265 = vadd.f32 %v4101, %v4264
  %v4266 = vpop.f32.mrf.mxu0
  %4267 = vmatprep.mubr.f32.mxu0 0.0
  %v4268 = vand.u32 %v3155, 4294901760
  %4269 = vmatmul.mubr.f32.gmra.mxu0 %v4268
  %v4270 = vpop.f32.mrf.mxu0
  %v4271 = vadd.f32 %v4107, %v4270
  %v4272 = vpop.f32.mrf.mxu0
  %4273 = vdwg.mxu0
  %v4274 = vmul.f32 %v4181, 0.5
  %v4275 = vmul.f32 %v4187, 0.5
  %v4276 = vmul.f32 %v4193, 0.5
  %v4277 = vmul.f32 %v4199, 0.5
  %v4278 = vmul.f32 %v4205, 0.5
  %v4279 = vmul.f32 %v4211, 0.5
  %v4280 = vmul.f32 %v4217, 0.5
  %v4281 = vmul.f32 %v4223, 0.5
  %v4282 = vmul.f32 %v4229, 0.5
  %v4283 = vmul.f32 %v4235, 0.5
  %v4284 = vmul.f32 %v4241, 0.5
  %v4285 = vmul.f32 %v4247, 0.5
  %v4286 = vmul.f32 %v4253, 0.5
  %v4287 = vmul.f32 %v4259, 0.5
  %v4288 = vmul.f32 %v4265, 0.5
  %v4289 = vmul.f32 %v4271, 0.5
  %v4290 = vmul.f32 %v4274, 1.442695
  %v4291 = vpow.pop %v4290
  %v4292 = vmul.f32 %v4275, 1.442695
  %v4293 = vpow.pop %v4292
  %v4294 = vmul.f32 %v4276, 1.442695
  %v4295 = vpow.pop %v4294
  %v4296 = vmul.f32 %v4277, 1.442695
  %v4297 = vpow.pop %v4296
  %v4298 = vmul.f32 %v4278, 1.442695
  %v4299 = vpow.pop %v4298
  %v4300 = vmul.f32 %v4279, 1.442695
  %v4301 = vpow.pop %v4300
  %v4302 = vmul.f32 %v4280, 1.442695
  %v4303 = vpow.pop %v4302
  %v4304 = vmul.f32 %v4281, 1.442695
  %v4305 = vpow.pop %v4304
  %v4306 = vmul.f32 %v4282, 1.442695
  %v4307 = vpow.pop %v4306
  %v4308 = vmul.f32 %v4283, 1.442695
  %v4309 = vpow.pop %v4308
  %v4310 = vmul.f32 %v4284, 1.442695
  %v4311 = vpow.pop %v4310
  %v4312 = vmul.f32 %v4285, 1.442695
  %v4313 = vpow.pop %v4312
  %v4314 = vmul.f32 %v4286, 1.442695
  %v4315 = vpow.pop %v4314
  %v4316 = vmul.f32 %v4287, 1.442695
  %v4317 = vpow.pop %v4316
  %v4318 = vmul.f32 %v4288, 1.442695
  %v4319 = vpow.pop %v4318
  %v4320 = vmul.f32 %v4289, 1.442695
  %v4321 = vpow.pop %v4320
  %4338 = vrot.lane.b32.xlu0 %v4291, 120
  %v4339 = vpop.permute.xlu0 %4338
  %4340 = vrot.lane.b32.xlu0 %v4293, 120
  %v4341 = vpop.permute.xlu0 %4340
  %4342 = vrot.lane.b32.xlu0 %v4295, 120
  %v4343 = vpop.permute.xlu0 %4342
  %4344 = vrot.lane.b32.xlu0 %v4297, 120
  %v4345 = vpop.permute.xlu0 %4344
  %4346 = vrot.lane.b32.xlu0 %v4299, 120
  %v4347 = vpop.permute.xlu0 %4346
  %4348 = vrot.lane.b32.xlu0 %v4301, 120
  %v4349 = vpop.permute.xlu0 %4348
  %4350 = vrot.lane.b32.xlu0 %v4303, 120
  %v4351 = vpop.permute.xlu0 %4350
  %4352 = vrot.lane.b32.xlu0 %v4305, 120
  %v4353 = vpop.permute.xlu0 %4352
  %4354 = vrot.lane.b32.xlu0 %v4307, 120
  %v4355 = vpop.permute.xlu0 %4354
  %4356 = vrot.lane.b32.xlu0 %v4309, 120
  %v4357 = vpop.permute.xlu0 %4356
  %4358 = vrot.lane.b32.xlu0 %v4311, 120
  %v4359 = vpop.permute.xlu0 %4358
  %4360 = vrot.lane.b32.xlu0 %v4313, 120
  %v4361 = vpop.permute.xlu0 %4360
  %4362 = vrot.lane.b32.xlu0 %v4315, 120
  %v4363 = vpop.permute.xlu0 %4362
  %4364 = vrot.lane.b32.xlu0 %v4317, 120
  %v4365 = vpop.permute.xlu0 %4364
  %4366 = vrot.lane.b32.xlu0 %v4319, 120
  %v4367 = vpop.permute.xlu0 %4366
  %4368 = vrot.lane.b32.xlu0 %v4321, 120
  %v4369 = vpop.permute.xlu0 %4368
  %v4386 = vmul.f32 %v89, %v4339
  %v4387 = vmul.f32 %v90, %v4341
  %v4388 = vmul.f32 %v91, %v4343
  %v4389 = vmul.f32 %v92, %v4345
  %v4390 = vmul.f32 %v93, %v4347
  %v4391 = vmul.f32 %v94, %v4349
  %v4392 = vmul.f32 %v95, %v4351
  %v4393 = vmul.f32 %v96, %v4353
  %v4394 = vmul.f32 %v97, %v4355
  %v4395 = vmul.f32 %v98, %v4357
  %v4396 = vmul.f32 %v99, %v4359
  %v4397 = vmul.f32 %v100, %v4361
  %v4398 = vmul.f32 %v101, %v4363
  %v4399 = vmul.f32 %v102, %v4365
  %v4400 = vmul.f32 %v103, %v4367
  %v4401 = vmul.f32 %v104, %v4369
  %v4402 = vadd.f32 %v4181, %v4386
  %v4403 = vadd.f32 %v4187, %v4387
  %v4404 = vadd.f32 %v4193, %v4388
  %v4405 = vadd.f32 %v4199, %v4389
  %v4406 = vadd.f32 %v4205, %v4390
  %v4407 = vadd.f32 %v4211, %v4391
  %v4408 = vadd.f32 %v4217, %v4392
  %v4409 = vadd.f32 %v4223, %v4393
  %v4410 = vadd.f32 %v4229, %v4394
  %v4411 = vadd.f32 %v4235, %v4395
  %v4412 = vadd.f32 %v4241, %v4396
  %v4413 = vadd.f32 %v4247, %v4397
  %v4414 = vadd.f32 %v4253, %v4398
  %v4415 = vadd.f32 %v4259, %v4399
  %v4416 = vadd.f32 %v4265, %v4400
  %v4417 = vadd.f32 %v4271, %v4401
  %v4418 = vld [vmem:[%s12] sm:$0xff]
  %v4419 = vld [vmem:[%s13] sm:$0x1]
  %v4420 = vld [vmem:[%s14] sm:$0x1]
  %v4421 = vld [vmem:[%s15] sm:$0x1]
  %vm4422 = vcmask 64512
  %v4424 = vsel %vm4422, %v4402, 0
  %v4427 = vsel %vm4422, %v4403, 0
  %v4430 = vsel %vm4422, %v4404, 0
  %v4433 = vsel %vm4422, %v4405, 0
  %v4436 = vsel %vm4422, %v4406, 0
  %v4439 = vsel %vm4422, %v4407, 0
  %v4442 = vsel %vm4422, %v4408, 0
  %v4445 = vsel %vm4422, %v4409, 0
  %v4448 = vsel %vm4422, %v4410, 0
  %v4451 = vsel %vm4422, %v4411, 0
  %v4454 = vsel %vm4422, %v4412, 0
  %v4457 = vsel %vm4422, %v4413, 0
  %v4460 = vsel %vm4422, %v4414, 0
  %v4463 = vsel %vm4422, %v4415, 0
  %v4466 = vsel %vm4422, %v4416, 0
  %v4469 = vsel %vm4422, %v4417, 0
  %4471 = vmatprep.subr.mxu0 0.0
  %4472 = vmatpush1.msra.mxu0 0.0
  %4473 = vmatprep.subr.mxu0 0.0
  %4474 = vmatpush1.msra.mxu0 0.0
  %4475 = vmatprep.subr.mxu0 0.0
  %4476 = vmatpush1.msra.mxu0 0.0
  %4477 = vmatprep.subr.mxu0 0.0
  %4478 = vmatpush1.msra.mxu0 0.0
  %4479 = vmatprep.subr.mxu0 0.0
  %4480 = vmatpush1.msra.mxu0 0.0
  %4481 = vmatprep.subr.mxu0 0.0
  %4482 = vmatpush1.msra.mxu0 0.0
  %4483 = vmatprep.subr.mxu0 0.0
  %4484 = vmatpush1.msra.mxu0 0.0
  %4485 = vmatprep.subr.mxu0 0.0
  %4486 = vmatpush1.msra.mxu0 0.0
  %4487 = vmatprep.subr.mxu0 0.0
  %4488 = vmatpush1.msra.mxu0 0.0
  %4489 = vmatprep.subr.mxu0 0.0
  %4490 = vmatpush1.msra.mxu0 0.0
  %4491 = vmatprep.subr.mxu0 0.0
  %4492 = vmatpush1.msra.mxu0 0.0
  %4493 = vmatprep.subr.mxu0 0.0
  %4494 = vmatpush1.msra.mxu0 0.0
  %4495 = vmatprep.subr.mxu0 0.0
  %4496 = vmatpush1.msra.mxu0 0.0
  %4497 = vmatprep.subr.mxu0 0.0
  %4498 = vmatpush1.msra.mxu0 0.0
  %4499 = vmatprep.subr.mxu0 0.0
  %4500 = vmatpush1.msra.mxu0 0.0
  %4501 = vmatprep.subr.mxu0 0.0
  %v4502 = vand.u32 %v4418, 4294901760
  %4503 = vmatpush1.msra.mxu0 %v4502
  %4504 = vmatprep.subr.mxu0 0.0
  %4505 = vmatpush2.msra.mxu0 0.0
  %4506 = vmatprep.subr.mxu0 0.0
  %4507 = vmatpush2.msra.mxu0 0.0
  %4508 = vmatprep.subr.mxu0 0.0
  %4509 = vmatpush2.msra.mxu0 0.0
  %4510 = vmatprep.subr.mxu0 0.0
  %4511 = vmatpush2.msra.mxu0 0.0
  %4512 = vmatprep.subr.mxu0 0.0
  %4513 = vmatpush2.msra.mxu0 0.0
  %4514 = vmatprep.subr.mxu0 0.0
  %4515 = vmatpush2.msra.mxu0 0.0
  %4516 = vmatprep.subr.mxu0 0.0
  %4517 = vmatpush2.msra.mxu0 0.0
  %4518 = vmatprep.subr.mxu0 0.0
  %4519 = vmatpush2.msra.mxu0 0.0
  %4520 = vmatprep.subr.mxu0 0.0
  %4521 = vmatpush2.msra.mxu0 0.0
  %4522 = vmatprep.subr.mxu0 0.0
  %4523 = vmatpush2.msra.mxu0 0.0
  %4524 = vmatprep.subr.mxu0 0.0
  %4525 = vmatpush2.msra.mxu0 0.0
  %4526 = vmatprep.subr.mxu0 0.0
  %4527 = vmatpush2.msra.mxu0 0.0
  %4528 = vmatprep.subr.mxu0 0.0
  %4529 = vmatpush2.msra.mxu0 0.0
  %4530 = vmatprep.subr.mxu0 0.0
  %4531 = vmatpush2.msra.mxu0 0.0
  %4532 = vmatprep.subr.mxu0 0.0
  %4533 = vmatpush2.msra.mxu0 0.0
  %4534 = vmatprep.subr.mxu0 0.0
  %4535 = vmatpush2.msra.mxu0 0.0
  %4536 = vmatprep.mubr.f32.mxu0 0.0
  %v4537 = vand.u32 %v4424, 4294901760
  %v4538 = vsub.f32 %v4424, %v4537
  %v4539 = vand.u32 %v4538, 4294901760
  %v4540 = vsub.f32 %v4538, %v4539
  %v4541 = vand.u32 %v4540, 4294901760
  %4542 = vmatmul.mubr.f32.gmra.mxu0 %v4541
  %v4543 = vpop.f32.mrf.mxu0
  %v4544 = vadd.f32 0.0, %v4543
  %v4545 = vpop.f32.mrf.mxu0
  %4546 = vmatprep.mubr.f32.mxu0 0.0
  %v4547 = vand.u32 %v4427, 4294901760
  %v4548 = vsub.f32 %v4427, %v4547
  %v4549 = vand.u32 %v4548, 4294901760
  %v4550 = vsub.f32 %v4548, %v4549
  %v4551 = vand.u32 %v4550, 4294901760
  %4552 = vmatmul.mubr.f32.gmra.mxu0 %v4551
  %v4553 = vpop.f32.mrf.mxu0
  %v4554 = vadd.f32 0.0, %v4553
  %v4555 = vpop.f32.mrf.mxu0
  %4556 = vmatprep.mubr.f32.mxu0 0.0
  %v4557 = vand.u32 %v4430, 4294901760
  %v4558 = vsub.f32 %v4430, %v4557
  %v4559 = vand.u32 %v4558, 4294901760
  %v4560 = vsub.f32 %v4558, %v4559
  %v4561 = vand.u32 %v4560, 4294901760
  %4562 = vmatmul.mubr.f32.gmra.mxu0 %v4561
  %v4563 = vpop.f32.mrf.mxu0
  %v4564 = vadd.f32 0.0, %v4563
  %v4565 = vpop.f32.mrf.mxu0
  %4566 = vmatprep.mubr.f32.mxu0 0.0
  %v4567 = vand.u32 %v4433, 4294901760
  %v4568 = vsub.f32 %v4433, %v4567
  %v4569 = vand.u32 %v4568, 4294901760
  %v4570 = vsub.f32 %v4568, %v4569
  %v4571 = vand.u32 %v4570, 4294901760
  %4572 = vmatmul.mubr.f32.gmra.mxu0 %v4571
  %v4573 = vpop.f32.mrf.mxu0
  %v4574 = vadd.f32 0.0, %v4573
  %v4575 = vpop.f32.mrf.mxu0
  %4576 = vmatprep.mubr.f32.mxu0 0.0
  %v4577 = vand.u32 %v4436, 4294901760
  %v4578 = vsub.f32 %v4436, %v4577
  %v4579 = vand.u32 %v4578, 4294901760
  %v4580 = vsub.f32 %v4578, %v4579
  %v4581 = vand.u32 %v4580, 4294901760
  %4582 = vmatmul.mubr.f32.gmra.mxu0 %v4581
  %v4583 = vpop.f32.mrf.mxu0
  %v4584 = vadd.f32 0.0, %v4583
  %v4585 = vpop.f32.mrf.mxu0
  %4586 = vmatprep.mubr.f32.mxu0 0.0
  %v4587 = vand.u32 %v4439, 4294901760
  %v4588 = vsub.f32 %v4439, %v4587
  %v4589 = vand.u32 %v4588, 4294901760
  %v4590 = vsub.f32 %v4588, %v4589
  %v4591 = vand.u32 %v4590, 4294901760
  %4592 = vmatmul.mubr.f32.gmra.mxu0 %v4591
  %v4593 = vpop.f32.mrf.mxu0
  %v4594 = vadd.f32 0.0, %v4593
  %v4595 = vpop.f32.mrf.mxu0
  %4596 = vmatprep.mubr.f32.mxu0 0.0
  %v4597 = vand.u32 %v4442, 4294901760
  %v4598 = vsub.f32 %v4442, %v4597
  %v4599 = vand.u32 %v4598, 4294901760
  %v4600 = vsub.f32 %v4598, %v4599
  %v4601 = vand.u32 %v4600, 4294901760
  %4602 = vmatmul.mubr.f32.gmra.mxu0 %v4601
  %v4603 = vpop.f32.mrf.mxu0
  %v4604 = vadd.f32 0.0, %v4603
  %v4605 = vpop.f32.mrf.mxu0
  %4606 = vmatprep.mubr.f32.mxu0 0.0
  %v4607 = vand.u32 %v4445, 4294901760
  %v4608 = vsub.f32 %v4445, %v4607
  %v4609 = vand.u32 %v4608, 4294901760
  %v4610 = vsub.f32 %v4608, %v4609
  %v4611 = vand.u32 %v4610, 4294901760
  %4612 = vmatmul.mubr.f32.gmra.mxu0 %v4611
  %v4613 = vpop.f32.mrf.mxu0
  %v4614 = vadd.f32 0.0, %v4613
  %v4615 = vpop.f32.mrf.mxu0
  %4616 = vmatprep.mubr.f32.mxu0 0.0
  %v4617 = vand.u32 %v4448, 4294901760
  %v4618 = vsub.f32 %v4448, %v4617
  %v4619 = vand.u32 %v4618, 4294901760
  %v4620 = vsub.f32 %v4618, %v4619
  %v4621 = vand.u32 %v4620, 4294901760
  %4622 = vmatmul.mubr.f32.gmra.mxu0 %v4621
  %v4623 = vpop.f32.mrf.mxu0
  %v4624 = vadd.f32 0.0, %v4623
  %v4625 = vpop.f32.mrf.mxu0
  %4626 = vmatprep.mubr.f32.mxu0 0.0
  %v4627 = vand.u32 %v4451, 4294901760
  %v4628 = vsub.f32 %v4451, %v4627
  %v4629 = vand.u32 %v4628, 4294901760
  %v4630 = vsub.f32 %v4628, %v4629
  %v4631 = vand.u32 %v4630, 4294901760
  %4632 = vmatmul.mubr.f32.gmra.mxu0 %v4631
  %v4633 = vpop.f32.mrf.mxu0
  %v4634 = vadd.f32 0.0, %v4633
  %v4635 = vpop.f32.mrf.mxu0
  %4636 = vmatprep.mubr.f32.mxu0 0.0
  %v4637 = vand.u32 %v4454, 4294901760
  %v4638 = vsub.f32 %v4454, %v4637
  %v4639 = vand.u32 %v4638, 4294901760
  %v4640 = vsub.f32 %v4638, %v4639
  %v4641 = vand.u32 %v4640, 4294901760
  %4642 = vmatmul.mubr.f32.gmra.mxu0 %v4641
  %v4643 = vpop.f32.mrf.mxu0
  %v4644 = vadd.f32 0.0, %v4643
  %v4645 = vpop.f32.mrf.mxu0
  %4646 = vmatprep.mubr.f32.mxu0 0.0
  %v4647 = vand.u32 %v4457, 4294901760
  %v4648 = vsub.f32 %v4457, %v4647
  %v4649 = vand.u32 %v4648, 4294901760
  %v4650 = vsub.f32 %v4648, %v4649
  %v4651 = vand.u32 %v4650, 4294901760
  %4652 = vmatmul.mubr.f32.gmra.mxu0 %v4651
  %v4653 = vpop.f32.mrf.mxu0
  %v4654 = vadd.f32 0.0, %v4653
  %v4655 = vpop.f32.mrf.mxu0
  %4656 = vmatprep.mubr.f32.mxu0 0.0
  %v4657 = vand.u32 %v4460, 4294901760
  %v4658 = vsub.f32 %v4460, %v4657
  %v4659 = vand.u32 %v4658, 4294901760
  %v4660 = vsub.f32 %v4658, %v4659
  %v4661 = vand.u32 %v4660, 4294901760
  %4662 = vmatmul.mubr.f32.gmra.mxu0 %v4661
  %v4663 = vpop.f32.mrf.mxu0
  %v4664 = vadd.f32 0.0, %v4663
  %v4665 = vpop.f32.mrf.mxu0
  %4666 = vmatprep.mubr.f32.mxu0 0.0
  %v4667 = vand.u32 %v4463, 4294901760
  %v4668 = vsub.f32 %v4463, %v4667
  %v4669 = vand.u32 %v4668, 4294901760
  %v4670 = vsub.f32 %v4668, %v4669
  %v4671 = vand.u32 %v4670, 4294901760
  %4672 = vmatmul.mubr.f32.gmra.mxu0 %v4671
  %v4673 = vpop.f32.mrf.mxu0
  %v4674 = vadd.f32 0.0, %v4673
  %v4675 = vpop.f32.mrf.mxu0
  %4676 = vmatprep.mubr.f32.mxu0 0.0
  %v4677 = vand.u32 %v4466, 4294901760
  %v4678 = vsub.f32 %v4466, %v4677
  %v4679 = vand.u32 %v4678, 4294901760
  %v4680 = vsub.f32 %v4678, %v4679
  %v4681 = vand.u32 %v4680, 4294901760
  %4682 = vmatmul.mubr.f32.gmra.mxu0 %v4681
  %v4683 = vpop.f32.mrf.mxu0
  %v4684 = vadd.f32 0.0, %v4683
  %v4685 = vpop.f32.mrf.mxu0
  %4686 = vmatprep.mubr.f32.mxu0 0.0
  %v4687 = vand.u32 %v4469, 4294901760
  %v4688 = vsub.f32 %v4469, %v4687
  %v4689 = vand.u32 %v4688, 4294901760
  %v4690 = vsub.f32 %v4688, %v4689
  %v4691 = vand.u32 %v4690, 4294901760
  %4692 = vmatmul.mubr.f32.gmra.mxu0 %v4691
  %v4693 = vpop.f32.mrf.mxu0
  %v4694 = vadd.f32 0.0, %v4693
  %v4695 = vpop.f32.mrf.mxu0
  %4696 = vdwg.mxu0
  %4697 = vmatprep.subr.mxu0 0.0
  %4698 = vmatpush1.msra.mxu0 0.0
  %4699 = vmatprep.subr.mxu0 0.0
  %4700 = vmatpush1.msra.mxu0 0.0
  %4701 = vmatprep.subr.mxu0 0.0
  %4702 = vmatpush1.msra.mxu0 0.0
  %4703 = vmatprep.subr.mxu0 0.0
  %4704 = vmatpush1.msra.mxu0 0.0
  %4705 = vmatprep.subr.mxu0 0.0
  %4706 = vmatpush1.msra.mxu0 0.0
  %4707 = vmatprep.subr.mxu0 0.0
  %4708 = vmatpush1.msra.mxu0 0.0
  %4709 = vmatprep.subr.mxu0 0.0
  %4710 = vmatpush1.msra.mxu0 0.0
  %4711 = vmatprep.subr.mxu0 0.0
  %4712 = vmatpush1.msra.mxu0 0.0
  %4713 = vmatprep.subr.mxu0 0.0
  %4714 = vmatpush1.msra.mxu0 0.0
  %4715 = vmatprep.subr.mxu0 0.0
  %4716 = vmatpush1.msra.mxu0 0.0
  %4717 = vmatprep.subr.mxu0 0.0
  %4718 = vmatpush1.msra.mxu0 0.0
  %4719 = vmatprep.subr.mxu0 0.0
  %4720 = vmatpush1.msra.mxu0 0.0
  %4721 = vmatprep.subr.mxu0 0.0
  %4722 = vmatpush1.msra.mxu0 0.0
  %4723 = vmatprep.subr.mxu0 0.0
  %4724 = vmatpush1.msra.mxu0 0.0
  %4725 = vmatprep.subr.mxu0 0.0
  %4726 = vmatpush1.msra.mxu0 0.0
  %4727 = vmatprep.subr.mxu0 0.0
  %v4728 = vand.u32 %v4418, 4294901760
  %v4729 = vsub.f32 %v4418, %v4728
  %v4730 = vand.u32 %v4729, 4294901760
  %v4731 = vsub.f32 %v4729, %v4730
  %v4732 = vand.u32 %v4731, 4294901760
  %4733 = vmatpush1.msra.mxu0 %v4732
  %4734 = vmatprep.subr.mxu0 0.0
  %4735 = vmatpush2.msra.mxu0 0.0
  %4736 = vmatprep.subr.mxu0 0.0
  %4737 = vmatpush2.msra.mxu0 0.0
  %4738 = vmatprep.subr.mxu0 0.0
  %4739 = vmatpush2.msra.mxu0 0.0
  %4740 = vmatprep.subr.mxu0 0.0
  %4741 = vmatpush2.msra.mxu0 0.0
  %4742 = vmatprep.subr.mxu0 0.0
  %4743 = vmatpush2.msra.mxu0 0.0
  %4744 = vmatprep.subr.mxu0 0.0
  %4745 = vmatpush2.msra.mxu0 0.0
  %4746 = vmatprep.subr.mxu0 0.0
  %4747 = vmatpush2.msra.mxu0 0.0
  %4748 = vmatprep.subr.mxu0 0.0
  %4749 = vmatpush2.msra.mxu0 0.0
  %4750 = vmatprep.subr.mxu0 0.0
  %4751 = vmatpush2.msra.mxu0 0.0
  %4752 = vmatprep.subr.mxu0 0.0
  %4753 = vmatpush2.msra.mxu0 0.0
  %4754 = vmatprep.subr.mxu0 0.0
  %4755 = vmatpush2.msra.mxu0 0.0
  %4756 = vmatprep.subr.mxu0 0.0
  %4757 = vmatpush2.msra.mxu0 0.0
  %4758 = vmatprep.subr.mxu0 0.0
  %4759 = vmatpush2.msra.mxu0 0.0
  %4760 = vmatprep.subr.mxu0 0.0
  %4761 = vmatpush2.msra.mxu0 0.0
  %4762 = vmatprep.subr.mxu0 0.0
  %4763 = vmatpush2.msra.mxu0 0.0
  %4764 = vmatprep.subr.mxu0 0.0
  %4765 = vmatpush2.msra.mxu0 0.0
  %4766 = vmatprep.mubr.f32.mxu0 0.0
  %v4767 = vand.u32 %v4424, 4294901760
  %4768 = vmatmul.mubr.f32.gmra.mxu0 %v4767
  %v4769 = vpop.f32.mrf.mxu0
  %v4770 = vadd.f32 %v4544, %v4769
  %v4771 = vpop.f32.mrf.mxu0
  %4772 = vmatprep.mubr.f32.mxu0 0.0
  %v4773 = vand.u32 %v4427, 4294901760
  %4774 = vmatmul.mubr.f32.gmra.mxu0 %v4773
  %v4775 = vpop.f32.mrf.mxu0
  %v4776 = vadd.f32 %v4554, %v4775
  %v4777 = vpop.f32.mrf.mxu0
  %4778 = vmatprep.mubr.f32.mxu0 0.0
  %v4779 = vand.u32 %v4430, 4294901760
  %4780 = vmatmul.mubr.f32.gmra.mxu0 %v4779
  %v4781 = vpop.f32.mrf.mxu0
  %v4782 = vadd.f32 %v4564, %v4781
  %v4783 = vpop.f32.mrf.mxu0
  %4784 = vmatprep.mubr.f32.mxu0 0.0
  %v4785 = vand.u32 %v4433, 4294901760
  %4786 = vmatmul.mubr.f32.gmra.mxu0 %v4785
  %v4787 = vpop.f32.mrf.mxu0
  %v4788 = vadd.f32 %v4574, %v4787
  %v4789 = vpop.f32.mrf.mxu0
  %4790 = vmatprep.mubr.f32.mxu0 0.0
  %v4791 = vand.u32 %v4436, 4294901760
  %4792 = vmatmul.mubr.f32.gmra.mxu0 %v4791
  %v4793 = vpop.f32.mrf.mxu0
  %v4794 = vadd.f32 %v4584, %v4793
  %v4795 = vpop.f32.mrf.mxu0
  %4796 = vmatprep.mubr.f32.mxu0 0.0
  %v4797 = vand.u32 %v4439, 4294901760
  %4798 = vmatmul.mubr.f32.gmra.mxu0 %v4797
  %v4799 = vpop.f32.mrf.mxu0
  %v4800 = vadd.f32 %v4594, %v4799
  %v4801 = vpop.f32.mrf.mxu0
  %4802 = vmatprep.mubr.f32.mxu0 0.0
  %v4803 = vand.u32 %v4442, 4294901760
  %4804 = vmatmul.mubr.f32.gmra.mxu0 %v4803
  %v4805 = vpop.f32.mrf.mxu0
  %v4806 = vadd.f32 %v4604, %v4805
  %v4807 = vpop.f32.mrf.mxu0
  %4808 = vmatprep.mubr.f32.mxu0 0.0
  %v4809 = vand.u32 %v4445, 4294901760
  %4810 = vmatmul.mubr.f32.gmra.mxu0 %v4809
  %v4811 = vpop.f32.mrf.mxu0
  %v4812 = vadd.f32 %v4614, %v4811
  %v4813 = vpop.f32.mrf.mxu0
  %4814 = vmatprep.mubr.f32.mxu0 0.0
  %v4815 = vand.u32 %v4448, 4294901760
  %4816 = vmatmul.mubr.f32.gmra.mxu0 %v4815
  %v4817 = vpop.f32.mrf.mxu0
  %v4818 = vadd.f32 %v4624, %v4817
  %v4819 = vpop.f32.mrf.mxu0
  %4820 = vmatprep.mubr.f32.mxu0 0.0
  %v4821 = vand.u32 %v4451, 4294901760
  %4822 = vmatmul.mubr.f32.gmra.mxu0 %v4821
  %v4823 = vpop.f32.mrf.mxu0
  %v4824 = vadd.f32 %v4634, %v4823
  %v4825 = vpop.f32.mrf.mxu0
  %4826 = vmatprep.mubr.f32.mxu0 0.0
  %v4827 = vand.u32 %v4454, 4294901760
  %4828 = vmatmul.mubr.f32.gmra.mxu0 %v4827
  %v4829 = vpop.f32.mrf.mxu0
  %v4830 = vadd.f32 %v4644, %v4829
  %v4831 = vpop.f32.mrf.mxu0
  %4832 = vmatprep.mubr.f32.mxu0 0.0
  %v4833 = vand.u32 %v4457, 4294901760
  %4834 = vmatmul.mubr.f32.gmra.mxu0 %v4833
  %v4835 = vpop.f32.mrf.mxu0
  %v4836 = vadd.f32 %v4654, %v4835
  %v4837 = vpop.f32.mrf.mxu0
  %4838 = vmatprep.mubr.f32.mxu0 0.0
  %v4839 = vand.u32 %v4460, 4294901760
  %4840 = vmatmul.mubr.f32.gmra.mxu0 %v4839
  %v4841 = vpop.f32.mrf.mxu0
  %v4842 = vadd.f32 %v4664, %v4841
  %v4843 = vpop.f32.mrf.mxu0
  %4844 = vmatprep.mubr.f32.mxu0 0.0
  %v4845 = vand.u32 %v4463, 4294901760
  %4846 = vmatmul.mubr.f32.gmra.mxu0 %v4845
  %v4847 = vpop.f32.mrf.mxu0
  %v4848 = vadd.f32 %v4674, %v4847
  %v4849 = vpop.f32.mrf.mxu0
  %4850 = vmatprep.mubr.f32.mxu0 0.0
  %v4851 = vand.u32 %v4466, 4294901760
  %4852 = vmatmul.mubr.f32.gmra.mxu0 %v4851
  %v4853 = vpop.f32.mrf.mxu0
  %v4854 = vadd.f32 %v4684, %v4853
  %v4855 = vpop.f32.mrf.mxu0
  %4856 = vmatprep.mubr.f32.mxu0 0.0
  %v4857 = vand.u32 %v4469, 4294901760
  %4858 = vmatmul.mubr.f32.gmra.mxu0 %v4857
  %v4859 = vpop.f32.mrf.mxu0
  %v4860 = vadd.f32 %v4694, %v4859
  %v4861 = vpop.f32.mrf.mxu0
  %4862 = vdwg.mxu0
  %4863 = vmatprep.subr.mxu0 0.0
  %4864 = vmatpush1.msra.mxu0 0.0
  %4865 = vmatprep.subr.mxu0 0.0
  %4866 = vmatpush1.msra.mxu0 0.0
  %4867 = vmatprep.subr.mxu0 0.0
  %4868 = vmatpush1.msra.mxu0 0.0
  %4869 = vmatprep.subr.mxu0 0.0
  %4870 = vmatpush1.msra.mxu0 0.0
  %4871 = vmatprep.subr.mxu0 0.0
  %4872 = vmatpush1.msra.mxu0 0.0
  %4873 = vmatprep.subr.mxu0 0.0
  %4874 = vmatpush1.msra.mxu0 0.0
  %4875 = vmatprep.subr.mxu0 0.0
  %4876 = vmatpush1.msra.mxu0 0.0
  %4877 = vmatprep.subr.mxu0 0.0
  %4878 = vmatpush1.msra.mxu0 0.0
  %4879 = vmatprep.subr.mxu0 0.0
  %4880 = vmatpush1.msra.mxu0 0.0
  %4881 = vmatprep.subr.mxu0 0.0
  %4882 = vmatpush1.msra.mxu0 0.0
  %4883 = vmatprep.subr.mxu0 0.0
  %4884 = vmatpush1.msra.mxu0 0.0
  %4885 = vmatprep.subr.mxu0 0.0
  %4886 = vmatpush1.msra.mxu0 0.0
  %4887 = vmatprep.subr.mxu0 0.0
  %4888 = vmatpush1.msra.mxu0 0.0
  %4889 = vmatprep.subr.mxu0 0.0
  %4890 = vmatpush1.msra.mxu0 0.0
  %4891 = vmatprep.subr.mxu0 0.0
  %4892 = vmatpush1.msra.mxu0 0.0
  %4893 = vmatprep.subr.mxu0 0.0
  %v4894 = vand.u32 %v4418, 4294901760
  %v4895 = vsub.f32 %v4418, %v4894
  %4896 = vmatpush1.msra.mxu0 %v4895
  %4897 = vmatprep.subr.mxu0 0.0
  %4898 = vmatpush2.msra.mxu0 0.0
  %4899 = vmatprep.subr.mxu0 0.0
  %4900 = vmatpush2.msra.mxu0 0.0
  %4901 = vmatprep.subr.mxu0 0.0
  %4902 = vmatpush2.msra.mxu0 0.0
  %4903 = vmatprep.subr.mxu0 0.0
  %4904 = vmatpush2.msra.mxu0 0.0
  %4905 = vmatprep.subr.mxu0 0.0
  %4906 = vmatpush2.msra.mxu0 0.0
  %4907 = vmatprep.subr.mxu0 0.0
  %4908 = vmatpush2.msra.mxu0 0.0
  %4909 = vmatprep.subr.mxu0 0.0
  %4910 = vmatpush2.msra.mxu0 0.0
  %4911 = vmatprep.subr.mxu0 0.0
  %4912 = vmatpush2.msra.mxu0 0.0
  %4913 = vmatprep.subr.mxu0 0.0
  %4914 = vmatpush2.msra.mxu0 0.0
  %4915 = vmatprep.subr.mxu0 0.0
  %4916 = vmatpush2.msra.mxu0 0.0
  %4917 = vmatprep.subr.mxu0 0.0
  %4918 = vmatpush2.msra.mxu0 0.0
  %4919 = vmatprep.subr.mxu0 0.0
  %4920 = vmatpush2.msra.mxu0 0.0
  %4921 = vmatprep.subr.mxu0 0.0
  %4922 = vmatpush2.msra.mxu0 0.0
  %4923 = vmatprep.subr.mxu0 0.0
  %4924 = vmatpush2.msra.mxu0 0.0
  %4925 = vmatprep.subr.mxu0 0.0
  %4926 = vmatpush2.msra.mxu0 0.0
  %4927 = vmatprep.subr.mxu0 0.0
  %4928 = vmatpush2.msra.mxu0 0.0
  %4929 = vmatprep.mubr.f32.mxu0 0.0
  %v4930 = vand.u32 %v4424, 4294901760
  %v4931 = vsub.f32 %v4424, %v4930
  %4932 = vmatmul.mubr.f32.gmra.mxu0 %v4931
  %v4933 = vpop.f32.mrf.mxu0
  %v4934 = vadd.f32 %v4770, %v4933
  %v4935 = vpop.f32.mrf.mxu0
  %4936 = vmatprep.mubr.f32.mxu0 0.0
  %v4937 = vand.u32 %v4427, 4294901760
  %v4938 = vsub.f32 %v4427, %v4937
  %4939 = vmatmul.mubr.f32.gmra.mxu0 %v4938
  %v4940 = vpop.f32.mrf.mxu0
  %v4941 = vadd.f32 %v4776, %v4940
  %v4942 = vpop.f32.mrf.mxu0
  %4943 = vmatprep.mubr.f32.mxu0 0.0
  %v4944 = vand.u32 %v4430, 4294901760
  %v4945 = vsub.f32 %v4430, %v4944
  %4946 = vmatmul.mubr.f32.gmra.mxu0 %v4945
  %v4947 = vpop.f32.mrf.mxu0
  %v4948 = vadd.f32 %v4782, %v4947
  %v4949 = vpop.f32.mrf.mxu0
  %4950 = vmatprep.mubr.f32.mxu0 0.0
  %v4951 = vand.u32 %v4433, 4294901760
  %v4952 = vsub.f32 %v4433, %v4951
  %4953 = vmatmul.mubr.f32.gmra.mxu0 %v4952
  %v4954 = vpop.f32.mrf.mxu0
  %v4955 = vadd.f32 %v4788, %v4954
  %v4956 = vpop.f32.mrf.mxu0
  %4957 = vmatprep.mubr.f32.mxu0 0.0
  %v4958 = vand.u32 %v4436, 4294901760
  %v4959 = vsub.f32 %v4436, %v4958
  %4960 = vmatmul.mubr.f32.gmra.mxu0 %v4959
  %v4961 = vpop.f32.mrf.mxu0
  %v4962 = vadd.f32 %v4794, %v4961
  %v4963 = vpop.f32.mrf.mxu0
  %4964 = vmatprep.mubr.f32.mxu0 0.0
  %v4965 = vand.u32 %v4439, 4294901760
  %v4966 = vsub.f32 %v4439, %v4965
  %4967 = vmatmul.mubr.f32.gmra.mxu0 %v4966
  %v4968 = vpop.f32.mrf.mxu0
  %v4969 = vadd.f32 %v4800, %v4968
  %v4970 = vpop.f32.mrf.mxu0
  %4971 = vmatprep.mubr.f32.mxu0 0.0
  %v4972 = vand.u32 %v4442, 4294901760
  %v4973 = vsub.f32 %v4442, %v4972
  %4974 = vmatmul.mubr.f32.gmra.mxu0 %v4973
  %v4975 = vpop.f32.mrf.mxu0
  %v4976 = vadd.f32 %v4806, %v4975
  %v4977 = vpop.f32.mrf.mxu0
  %4978 = vmatprep.mubr.f32.mxu0 0.0
  %v4979 = vand.u32 %v4445, 4294901760
  %v4980 = vsub.f32 %v4445, %v4979
  %4981 = vmatmul.mubr.f32.gmra.mxu0 %v4980
  %v4982 = vpop.f32.mrf.mxu0
  %v4983 = vadd.f32 %v4812, %v4982
  %v4984 = vpop.f32.mrf.mxu0
  %4985 = vmatprep.mubr.f32.mxu0 0.0
  %v4986 = vand.u32 %v4448, 4294901760
  %v4987 = vsub.f32 %v4448, %v4986
  %4988 = vmatmul.mubr.f32.gmra.mxu0 %v4987
  %v4989 = vpop.f32.mrf.mxu0
  %v4990 = vadd.f32 %v4818, %v4989
  %v4991 = vpop.f32.mrf.mxu0
  %4992 = vmatprep.mubr.f32.mxu0 0.0
  %v4993 = vand.u32 %v4451, 4294901760
  %v4994 = vsub.f32 %v4451, %v4993
  %4995 = vmatmul.mubr.f32.gmra.mxu0 %v4994
  %v4996 = vpop.f32.mrf.mxu0
  %v4997 = vadd.f32 %v4824, %v4996
  %v4998 = vpop.f32.mrf.mxu0
  %4999 = vmatprep.mubr.f32.mxu0 0.0
  %v5000 = vand.u32 %v4454, 4294901760
  %v5001 = vsub.f32 %v4454, %v5000
  %5002 = vmatmul.mubr.f32.gmra.mxu0 %v5001
  %v5003 = vpop.f32.mrf.mxu0
  %v5004 = vadd.f32 %v4830, %v5003
  %v5005 = vpop.f32.mrf.mxu0
  %5006 = vmatprep.mubr.f32.mxu0 0.0
  %v5007 = vand.u32 %v4457, 4294901760
  %v5008 = vsub.f32 %v4457, %v5007
  %5009 = vmatmul.mubr.f32.gmra.mxu0 %v5008
  %v5010 = vpop.f32.mrf.mxu0
  %v5011 = vadd.f32 %v4836, %v5010
  %v5012 = vpop.f32.mrf.mxu0
  %5013 = vmatprep.mubr.f32.mxu0 0.0
  %v5014 = vand.u32 %v4460, 4294901760
  %v5015 = vsub.f32 %v4460, %v5014
  %5016 = vmatmul.mubr.f32.gmra.mxu0 %v5015
  %v5017 = vpop.f32.mrf.mxu0
  %v5018 = vadd.f32 %v4842, %v5017
  %v5019 = vpop.f32.mrf.mxu0
  %5020 = vmatprep.mubr.f32.mxu0 0.0
  %v5021 = vand.u32 %v4463, 4294901760
  %v5022 = vsub.f32 %v4463, %v5021
  %5023 = vmatmul.mubr.f32.gmra.mxu0 %v5022
  %v5024 = vpop.f32.mrf.mxu0
  %v5025 = vadd.f32 %v4848, %v5024
  %v5026 = vpop.f32.mrf.mxu0
  %5027 = vmatprep.mubr.f32.mxu0 0.0
  %v5028 = vand.u32 %v4466, 4294901760
  %v5029 = vsub.f32 %v4466, %v5028
  %5030 = vmatmul.mubr.f32.gmra.mxu0 %v5029
  %v5031 = vpop.f32.mrf.mxu0
  %v5032 = vadd.f32 %v4854, %v5031
  %v5033 = vpop.f32.mrf.mxu0
  %5034 = vmatprep.mubr.f32.mxu0 0.0
  %v5035 = vand.u32 %v4469, 4294901760
  %v5036 = vsub.f32 %v4469, %v5035
  %5037 = vmatmul.mubr.f32.gmra.mxu0 %v5036
  %v5038 = vpop.f32.mrf.mxu0
  %v5039 = vadd.f32 %v4860, %v5038
  %v5040 = vpop.f32.mrf.mxu0
  %5041 = vdwg.mxu0
  %5042 = vmatprep.subr.mxu0 0.0
  %5043 = vmatpush1.msra.mxu0 0.0
  %5044 = vmatprep.subr.mxu0 0.0
  %5045 = vmatpush1.msra.mxu0 0.0
  %5046 = vmatprep.subr.mxu0 0.0
  %5047 = vmatpush1.msra.mxu0 0.0
  %5048 = vmatprep.subr.mxu0 0.0
  %5049 = vmatpush1.msra.mxu0 0.0
  %5050 = vmatprep.subr.mxu0 0.0
  %5051 = vmatpush1.msra.mxu0 0.0
  %5052 = vmatprep.subr.mxu0 0.0
  %5053 = vmatpush1.msra.mxu0 0.0
  %5054 = vmatprep.subr.mxu0 0.0
  %5055 = vmatpush1.msra.mxu0 0.0
  %5056 = vmatprep.subr.mxu0 0.0
  %5057 = vmatpush1.msra.mxu0 0.0
  %5058 = vmatprep.subr.mxu0 0.0
  %5059 = vmatpush1.msra.mxu0 0.0
  %5060 = vmatprep.subr.mxu0 0.0
  %5061 = vmatpush1.msra.mxu0 0.0
  %5062 = vmatprep.subr.mxu0 0.0
  %5063 = vmatpush1.msra.mxu0 0.0
  %5064 = vmatprep.subr.mxu0 0.0
  %5065 = vmatpush1.msra.mxu0 0.0
  %5066 = vmatprep.subr.mxu0 0.0
  %5067 = vmatpush1.msra.mxu0 0.0
  %5068 = vmatprep.subr.mxu0 0.0
  %5069 = vmatpush1.msra.mxu0 0.0
  %5070 = vmatprep.subr.mxu0 0.0
  %5071 = vmatpush1.msra.mxu0 0.0
  %5072 = vmatprep.subr.mxu0 0.0
  %v5073 = vand.u32 %v4418, 4294901760
  %5074 = vmatpush1.msra.mxu0 %v5073
  %5075 = vmatprep.subr.mxu0 0.0
  %5076 = vmatpush2.msra.mxu0 0.0
  %5077 = vmatprep.subr.mxu0 0.0
  %5078 = vmatpush2.msra.mxu0 0.0
  %5079 = vmatprep.subr.mxu0 0.0
  %5080 = vmatpush2.msra.mxu0 0.0
  %5081 = vmatprep.subr.mxu0 0.0
  %5082 = vmatpush2.msra.mxu0 0.0
  %5083 = vmatprep.subr.mxu0 0.0
  %5084 = vmatpush2.msra.mxu0 0.0
  %5085 = vmatprep.subr.mxu0 0.0
  %5086 = vmatpush2.msra.mxu0 0.0
  %5087 = vmatprep.subr.mxu0 0.0
  %5088 = vmatpush2.msra.mxu0 0.0
  %5089 = vmatprep.subr.mxu0 0.0
  %5090 = vmatpush2.msra.mxu0 0.0
  %5091 = vmatprep.subr.mxu0 0.0
  %5092 = vmatpush2.msra.mxu0 0.0
  %5093 = vmatprep.subr.mxu0 0.0
  %5094 = vmatpush2.msra.mxu0 0.0
  %5095 = vmatprep.subr.mxu0 0.0
  %5096 = vmatpush2.msra.mxu0 0.0
  %5097 = vmatprep.subr.mxu0 0.0
  %5098 = vmatpush2.msra.mxu0 0.0
  %5099 = vmatprep.subr.mxu0 0.0
  %5100 = vmatpush2.msra.mxu0 0.0
  %5101 = vmatprep.subr.mxu0 0.0
  %5102 = vmatpush2.msra.mxu0 0.0
  %5103 = vmatprep.subr.mxu0 0.0
  %5104 = vmatpush2.msra.mxu0 0.0
  %5105 = vmatprep.subr.mxu0 0.0
  %5106 = vmatpush2.msra.mxu0 0.0
  %5107 = vmatprep.mubr.f32.mxu0 0.0
  %v5108 = vand.u32 %v4424, 4294901760
  %v5109 = vsub.f32 %v4424, %v5108
  %v5110 = vand.u32 %v5109, 4294901760
  %5111 = vmatmul.mubr.f32.gmra.mxu0 %v5110
  %v5112 = vpop.f32.mrf.mxu0
  %v5113 = vadd.f32 %v4934, %v5112
  %v5114 = vpop.f32.mrf.mxu0
  %5115 = vmatprep.mubr.f32.mxu0 0.0
  %v5116 = vand.u32 %v4427, 4294901760
  %v5117 = vsub.f32 %v4427, %v5116
  %v5118 = vand.u32 %v5117, 4294901760
  %5119 = vmatmul.mubr.f32.gmra.mxu0 %v5118
  %v5120 = vpop.f32.mrf.mxu0
  %v5121 = vadd.f32 %v4941, %v5120
  %v5122 = vpop.f32.mrf.mxu0
  %5123 = vmatprep.mubr.f32.mxu0 0.0
  %v5124 = vand.u32 %v4430, 4294901760
  %v5125 = vsub.f32 %v4430, %v5124
  %v5126 = vand.u32 %v5125, 4294901760
  %5127 = vmatmul.mubr.f32.gmra.mxu0 %v5126
  %v5128 = vpop.f32.mrf.mxu0
  %v5129 = vadd.f32 %v4948, %v5128
  %v5130 = vpop.f32.mrf.mxu0
  %5131 = vmatprep.mubr.f32.mxu0 0.0
  %v5132 = vand.u32 %v4433, 4294901760
  %v5133 = vsub.f32 %v4433, %v5132
  %v5134 = vand.u32 %v5133, 4294901760
  %5135 = vmatmul.mubr.f32.gmra.mxu0 %v5134
  %v5136 = vpop.f32.mrf.mxu0
  %v5137 = vadd.f32 %v4955, %v5136
  %v5138 = vpop.f32.mrf.mxu0
  %5139 = vmatprep.mubr.f32.mxu0 0.0
  %v5140 = vand.u32 %v4436, 4294901760
  %v5141 = vsub.f32 %v4436, %v5140
  %v5142 = vand.u32 %v5141, 4294901760
  %5143 = vmatmul.mubr.f32.gmra.mxu0 %v5142
  %v5144 = vpop.f32.mrf.mxu0
  %v5145 = vadd.f32 %v4962, %v5144
  %v5146 = vpop.f32.mrf.mxu0
  %5147 = vmatprep.mubr.f32.mxu0 0.0
  %v5148 = vand.u32 %v4439, 4294901760
  %v5149 = vsub.f32 %v4439, %v5148
  %v5150 = vand.u32 %v5149, 4294901760
  %5151 = vmatmul.mubr.f32.gmra.mxu0 %v5150
  %v5152 = vpop.f32.mrf.mxu0
  %v5153 = vadd.f32 %v4969, %v5152
  %v5154 = vpop.f32.mrf.mxu0
  %5155 = vmatprep.mubr.f32.mxu0 0.0
  %v5156 = vand.u32 %v4442, 4294901760
  %v5157 = vsub.f32 %v4442, %v5156
  %v5158 = vand.u32 %v5157, 4294901760
  %5159 = vmatmul.mubr.f32.gmra.mxu0 %v5158
  %v5160 = vpop.f32.mrf.mxu0
  %v5161 = vadd.f32 %v4976, %v5160
  %v5162 = vpop.f32.mrf.mxu0
  %5163 = vmatprep.mubr.f32.mxu0 0.0
  %v5164 = vand.u32 %v4445, 4294901760
  %v5165 = vsub.f32 %v4445, %v5164
  %v5166 = vand.u32 %v5165, 4294901760
  %5167 = vmatmul.mubr.f32.gmra.mxu0 %v5166
  %v5168 = vpop.f32.mrf.mxu0
  %v5169 = vadd.f32 %v4983, %v5168
  %v5170 = vpop.f32.mrf.mxu0
  %5171 = vmatprep.mubr.f32.mxu0 0.0
  %v5172 = vand.u32 %v4448, 4294901760
  %v5173 = vsub.f32 %v4448, %v5172
  %v5174 = vand.u32 %v5173, 4294901760
  %5175 = vmatmul.mubr.f32.gmra.mxu0 %v5174
  %v5176 = vpop.f32.mrf.mxu0
  %v5177 = vadd.f32 %v4990, %v5176
  %v5178 = vpop.f32.mrf.mxu0
  %5179 = vmatprep.mubr.f32.mxu0 0.0
  %v5180 = vand.u32 %v4451, 4294901760
  %v5181 = vsub.f32 %v4451, %v5180
  %v5182 = vand.u32 %v5181, 4294901760
  %5183 = vmatmul.mubr.f32.gmra.mxu0 %v5182
  %v5184 = vpop.f32.mrf.mxu0
  %v5185 = vadd.f32 %v4997, %v5184
  %v5186 = vpop.f32.mrf.mxu0
  %5187 = vmatprep.mubr.f32.mxu0 0.0
  %v5188 = vand.u32 %v4454, 4294901760
  %v5189 = vsub.f32 %v4454, %v5188
  %v5190 = vand.u32 %v5189, 4294901760
  %5191 = vmatmul.mubr.f32.gmra.mxu0 %v5190
  %v5192 = vpop.f32.mrf.mxu0
  %v5193 = vadd.f32 %v5004, %v5192
  %v5194 = vpop.f32.mrf.mxu0
  %5195 = vmatprep.mubr.f32.mxu0 0.0
  %v5196 = vand.u32 %v4457, 4294901760
  %v5197 = vsub.f32 %v4457, %v5196
  %v5198 = vand.u32 %v5197, 4294901760
  %5199 = vmatmul.mubr.f32.gmra.mxu0 %v5198
  %v5200 = vpop.f32.mrf.mxu0
  %v5201 = vadd.f32 %v5011, %v5200
  %v5202 = vpop.f32.mrf.mxu0
  %5203 = vmatprep.mubr.f32.mxu0 0.0
  %v5204 = vand.u32 %v4460, 4294901760
  %v5205 = vsub.f32 %v4460, %v5204
  %v5206 = vand.u32 %v5205, 4294901760
  %5207 = vmatmul.mubr.f32.gmra.mxu0 %v5206
  %v5208 = vpop.f32.mrf.mxu0
  %v5209 = vadd.f32 %v5018, %v5208
  %v5210 = vpop.f32.mrf.mxu0
  %5211 = vmatprep.mubr.f32.mxu0 0.0
  %v5212 = vand.u32 %v4463, 4294901760
  %v5213 = vsub.f32 %v4463, %v5212
  %v5214 = vand.u32 %v5213, 4294901760
  %5215 = vmatmul.mubr.f32.gmra.mxu0 %v5214
  %v5216 = vpop.f32.mrf.mxu0
  %v5217 = vadd.f32 %v5025, %v5216
  %v5218 = vpop.f32.mrf.mxu0
  %5219 = vmatprep.mubr.f32.mxu0 0.0
  %v5220 = vand.u32 %v4466, 4294901760
  %v5221 = vsub.f32 %v4466, %v5220
  %v5222 = vand.u32 %v5221, 4294901760
  %5223 = vmatmul.mubr.f32.gmra.mxu0 %v5222
  %v5224 = vpop.f32.mrf.mxu0
  %v5225 = vadd.f32 %v5032, %v5224
  %v5226 = vpop.f32.mrf.mxu0
  %5227 = vmatprep.mubr.f32.mxu0 0.0
  %v5228 = vand.u32 %v4469, 4294901760
  %v5229 = vsub.f32 %v4469, %v5228
  %v5230 = vand.u32 %v5229, 4294901760
  %5231 = vmatmul.mubr.f32.gmra.mxu0 %v5230
  %v5232 = vpop.f32.mrf.mxu0
  %v5233 = vadd.f32 %v5039, %v5232
  %v5234 = vpop.f32.mrf.mxu0
  %5235 = vdwg.mxu0
  %5236 = vmatprep.subr.mxu0 0.0
  %5237 = vmatpush1.msra.mxu0 0.0
  %5238 = vmatprep.subr.mxu0 0.0
  %5239 = vmatpush1.msra.mxu0 0.0
  %5240 = vmatprep.subr.mxu0 0.0
  %5241 = vmatpush1.msra.mxu0 0.0
  %5242 = vmatprep.subr.mxu0 0.0
  %5243 = vmatpush1.msra.mxu0 0.0
  %5244 = vmatprep.subr.mxu0 0.0
  %5245 = vmatpush1.msra.mxu0 0.0
  %5246 = vmatprep.subr.mxu0 0.0
  %5247 = vmatpush1.msra.mxu0 0.0
  %5248 = vmatprep.subr.mxu0 0.0
  %5249 = vmatpush1.msra.mxu0 0.0
  %5250 = vmatprep.subr.mxu0 0.0
  %5251 = vmatpush1.msra.mxu0 0.0
  %5252 = vmatprep.subr.mxu0 0.0
  %5253 = vmatpush1.msra.mxu0 0.0
  %5254 = vmatprep.subr.mxu0 0.0
  %5255 = vmatpush1.msra.mxu0 0.0
  %5256 = vmatprep.subr.mxu0 0.0
  %5257 = vmatpush1.msra.mxu0 0.0
  %5258 = vmatprep.subr.mxu0 0.0
  %5259 = vmatpush1.msra.mxu0 0.0
  %5260 = vmatprep.subr.mxu0 0.0
  %5261 = vmatpush1.msra.mxu0 0.0
  %5262 = vmatprep.subr.mxu0 0.0
  %5263 = vmatpush1.msra.mxu0 0.0
  %5264 = vmatprep.subr.mxu0 0.0
  %5265 = vmatpush1.msra.mxu0 0.0
  %5266 = vmatprep.subr.mxu0 0.0
  %v5267 = vand.u32 %v4418, 4294901760
  %v5268 = vsub.f32 %v4418, %v5267
  %v5269 = vand.u32 %v5268, 4294901760
  %5270 = vmatpush1.msra.mxu0 %v5269
  %5271 = vmatprep.subr.mxu0 0.0
  %5272 = vmatpush2.msra.mxu0 0.0
  %5273 = vmatprep.subr.mxu0 0.0
  %5274 = vmatpush2.msra.mxu0 0.0
  %5275 = vmatprep.subr.mxu0 0.0
  %5276 = vmatpush2.msra.mxu0 0.0
  %5277 = vmatprep.subr.mxu0 0.0
  %5278 = vmatpush2.msra.mxu0 0.0
  %5279 = vmatprep.subr.mxu0 0.0
  %5280 = vmatpush2.msra.mxu0 0.0
  %5281 = vmatprep.subr.mxu0 0.0
  %5282 = vmatpush2.msra.mxu0 0.0
  %5283 = vmatprep.subr.mxu0 0.0
  %5284 = vmatpush2.msra.mxu0 0.0
  %5285 = vmatprep.subr.mxu0 0.0
  %5286 = vmatpush2.msra.mxu0 0.0
  %5287 = vmatprep.subr.mxu0 0.0
  %5288 = vmatpush2.msra.mxu0 0.0
  %5289 = vmatprep.subr.mxu0 0.0
  %5290 = vmatpush2.msra.mxu0 0.0
  %5291 = vmatprep.subr.mxu0 0.0
  %5292 = vmatpush2.msra.mxu0 0.0
  %5293 = vmatprep.subr.mxu0 0.0
  %5294 = vmatpush2.msra.mxu0 0.0
  %5295 = vmatprep.subr.mxu0 0.0
  %5296 = vmatpush2.msra.mxu0 0.0
  %5297 = vmatprep.subr.mxu0 0.0
  %5298 = vmatpush2.msra.mxu0 0.0
  %5299 = vmatprep.subr.mxu0 0.0
  %5300 = vmatpush2.msra.mxu0 0.0
  %5301 = vmatprep.subr.mxu0 0.0
  %5302 = vmatpush2.msra.mxu0 0.0
  %5303 = vmatprep.mubr.f32.mxu0 0.0
  %v5304 = vand.u32 %v4424, 4294901760
  %5305 = vmatmul.mubr.f32.gmra.mxu0 %v5304
  %v5306 = vpop.f32.mrf.mxu0
  %v5307 = vadd.f32 %v5113, %v5306
  %v5308 = vpop.f32.mrf.mxu0
  %5309 = vmatprep.mubr.f32.mxu0 0.0
  %v5310 = vand.u32 %v4427, 4294901760
  %5311 = vmatmul.mubr.f32.gmra.mxu0 %v5310
  %v5312 = vpop.f32.mrf.mxu0
  %v5313 = vadd.f32 %v5121, %v5312
  %v5314 = vpop.f32.mrf.mxu0
  %5315 = vmatprep.mubr.f32.mxu0 0.0
  %v5316 = vand.u32 %v4430, 4294901760
  %5317 = vmatmul.mubr.f32.gmra.mxu0 %v5316
  %v5318 = vpop.f32.mrf.mxu0
  %v5319 = vadd.f32 %v5129, %v5318
  %v5320 = vpop.f32.mrf.mxu0
  %5321 = vmatprep.mubr.f32.mxu0 0.0
  %v5322 = vand.u32 %v4433, 4294901760
  %5323 = vmatmul.mubr.f32.gmra.mxu0 %v5322
  %v5324 = vpop.f32.mrf.mxu0
  %v5325 = vadd.f32 %v5137, %v5324
  %v5326 = vpop.f32.mrf.mxu0
  %5327 = vmatprep.mubr.f32.mxu0 0.0
  %v5328 = vand.u32 %v4436, 4294901760
  %5329 = vmatmul.mubr.f32.gmra.mxu0 %v5328
  %v5330 = vpop.f32.mrf.mxu0
  %v5331 = vadd.f32 %v5145, %v5330
  %v5332 = vpop.f32.mrf.mxu0
  %5333 = vmatprep.mubr.f32.mxu0 0.0
  %v5334 = vand.u32 %v4439, 4294901760
  %5335 = vmatmul.mubr.f32.gmra.mxu0 %v5334
  %v5336 = vpop.f32.mrf.mxu0
  %v5337 = vadd.f32 %v5153, %v5336
  %v5338 = vpop.f32.mrf.mxu0
  %5339 = vmatprep.mubr.f32.mxu0 0.0
  %v5340 = vand.u32 %v4442, 4294901760
  %5341 = vmatmul.mubr.f32.gmra.mxu0 %v5340
  %v5342 = vpop.f32.mrf.mxu0
  %v5343 = vadd.f32 %v5161, %v5342
  %v5344 = vpop.f32.mrf.mxu0
  %5345 = vmatprep.mubr.f32.mxu0 0.0
  %v5346 = vand.u32 %v4445, 4294901760
  %5347 = vmatmul.mubr.f32.gmra.mxu0 %v5346
  %v5348 = vpop.f32.mrf.mxu0
  %v5349 = vadd.f32 %v5169, %v5348
  %v5350 = vpop.f32.mrf.mxu0
  %5351 = vmatprep.mubr.f32.mxu0 0.0
  %v5352 = vand.u32 %v4448, 4294901760
  %5353 = vmatmul.mubr.f32.gmra.mxu0 %v5352
  %v5354 = vpop.f32.mrf.mxu0
  %v5355 = vadd.f32 %v5177, %v5354
  %v5356 = vpop.f32.mrf.mxu0
  %5357 = vmatprep.mubr.f32.mxu0 0.0
  %v5358 = vand.u32 %v4451, 4294901760
  %5359 = vmatmul.mubr.f32.gmra.mxu0 %v5358
  %v5360 = vpop.f32.mrf.mxu0
  %v5361 = vadd.f32 %v5185, %v5360
  %v5362 = vpop.f32.mrf.mxu0
  %5363 = vmatprep.mubr.f32.mxu0 0.0
  %v5364 = vand.u32 %v4454, 4294901760
  %5365 = vmatmul.mubr.f32.gmra.mxu0 %v5364
  %v5366 = vpop.f32.mrf.mxu0
  %v5367 = vadd.f32 %v5193, %v5366
  %v5368 = vpop.f32.mrf.mxu0
  %5369 = vmatprep.mubr.f32.mxu0 0.0
  %v5370 = vand.u32 %v4457, 4294901760
  %5371 = vmatmul.mubr.f32.gmra.mxu0 %v5370
  %v5372 = vpop.f32.mrf.mxu0
  %v5373 = vadd.f32 %v5201, %v5372
  %v5374 = vpop.f32.mrf.mxu0
  %5375 = vmatprep.mubr.f32.mxu0 0.0
  %v5376 = vand.u32 %v4460, 4294901760
  %5377 = vmatmul.mubr.f32.gmra.mxu0 %v5376
  %v5378 = vpop.f32.mrf.mxu0
  %v5379 = vadd.f32 %v5209, %v5378
  %v5380 = vpop.f32.mrf.mxu0
  %5381 = vmatprep.mubr.f32.mxu0 0.0
  %v5382 = vand.u32 %v4463, 4294901760
  %5383 = vmatmul.mubr.f32.gmra.mxu0 %v5382
  %v5384 = vpop.f32.mrf.mxu0
  %v5385 = vadd.f32 %v5217, %v5384
  %v5386 = vpop.f32.mrf.mxu0
  %5387 = vmatprep.mubr.f32.mxu0 0.0
  %v5388 = vand.u32 %v4466, 4294901760
  %5389 = vmatmul.mubr.f32.gmra.mxu0 %v5388
  %v5390 = vpop.f32.mrf.mxu0
  %v5391 = vadd.f32 %v5225, %v5390
  %v5392 = vpop.f32.mrf.mxu0
  %5393 = vmatprep.mubr.f32.mxu0 0.0
  %v5394 = vand.u32 %v4469, 4294901760
  %5395 = vmatmul.mubr.f32.gmra.mxu0 %v5394
  %v5396 = vpop.f32.mrf.mxu0
  %v5397 = vadd.f32 %v5233, %v5396
  %v5398 = vpop.f32.mrf.mxu0
  %5399 = vdwg.mxu0
  %5400 = vmatprep.subr.mxu0 0.0
  %5401 = vmatpush1.msra.mxu0 0.0
  %5402 = vmatprep.subr.mxu0 0.0
  %5403 = vmatpush1.msra.mxu0 0.0
  %5404 = vmatprep.subr.mxu0 0.0
  %5405 = vmatpush1.msra.mxu0 0.0
  %5406 = vmatprep.subr.mxu0 0.0
  %5407 = vmatpush1.msra.mxu0 0.0
  %5408 = vmatprep.subr.mxu0 0.0
  %5409 = vmatpush1.msra.mxu0 0.0
  %5410 = vmatprep.subr.mxu0 0.0
  %5411 = vmatpush1.msra.mxu0 0.0
  %5412 = vmatprep.subr.mxu0 0.0
  %5413 = vmatpush1.msra.mxu0 0.0
  %5414 = vmatprep.subr.mxu0 0.0
  %5415 = vmatpush1.msra.mxu0 0.0
  %5416 = vmatprep.subr.mxu0 0.0
  %5417 = vmatpush1.msra.mxu0 0.0
  %5418 = vmatprep.subr.mxu0 0.0
  %5419 = vmatpush1.msra.mxu0 0.0
  %5420 = vmatprep.subr.mxu0 0.0
  %5421 = vmatpush1.msra.mxu0 0.0
  %5422 = vmatprep.subr.mxu0 0.0
  %5423 = vmatpush1.msra.mxu0 0.0
  %5424 = vmatprep.subr.mxu0 0.0
  %5425 = vmatpush1.msra.mxu0 0.0
  %5426 = vmatprep.subr.mxu0 0.0
  %5427 = vmatpush1.msra.mxu0 0.0
  %5428 = vmatprep.subr.mxu0 0.0
  %5429 = vmatpush1.msra.mxu0 0.0
  %5430 = vmatprep.subr.mxu0 0.0
  %v5431 = vand.u32 %v4418, 4294901760
  %5432 = vmatpush1.msra.mxu0 %v5431
  %5433 = vmatprep.subr.mxu0 0.0
  %5434 = vmatpush2.msra.mxu0 0.0
  %5435 = vmatprep.subr.mxu0 0.0
  %5436 = vmatpush2.msra.mxu0 0.0
  %5437 = vmatprep.subr.mxu0 0.0
  %5438 = vmatpush2.msra.mxu0 0.0
  %5439 = vmatprep.subr.mxu0 0.0
  %5440 = vmatpush2.msra.mxu0 0.0
  %5441 = vmatprep.subr.mxu0 0.0
  %5442 = vmatpush2.msra.mxu0 0.0
  %5443 = vmatprep.subr.mxu0 0.0
  %5444 = vmatpush2.msra.mxu0 0.0
  %5445 = vmatprep.subr.mxu0 0.0
  %5446 = vmatpush2.msra.mxu0 0.0
  %5447 = vmatprep.subr.mxu0 0.0
  %5448 = vmatpush2.msra.mxu0 0.0
  %5449 = vmatprep.subr.mxu0 0.0
  %5450 = vmatpush2.msra.mxu0 0.0
  %5451 = vmatprep.subr.mxu0 0.0
  %5452 = vmatpush2.msra.mxu0 0.0
  %5453 = vmatprep.subr.mxu0 0.0
  %5454 = vmatpush2.msra.mxu0 0.0
  %5455 = vmatprep.subr.mxu0 0.0
  %5456 = vmatpush2.msra.mxu0 0.0
  %5457 = vmatprep.subr.mxu0 0.0
  %5458 = vmatpush2.msra.mxu0 0.0
  %5459 = vmatprep.subr.mxu0 0.0
  %5460 = vmatpush2.msra.mxu0 0.0
  %5461 = vmatprep.subr.mxu0 0.0
  %5462 = vmatpush2.msra.mxu0 0.0
  %5463 = vmatprep.subr.mxu0 0.0
  %5464 = vmatpush2.msra.mxu0 0.0
  %5465 = vmatprep.mubr.f32.mxu0 0.0
  %v5466 = vand.u32 %v4424, 4294901760
  %5467 = vmatmul.mubr.f32.gmra.mxu0 %v5466
  %v5468 = vpop.f32.mrf.mxu0
  %v5469 = vadd.f32 %v5307, %v5468
  %v5470 = vpop.f32.mrf.mxu0
  %5471 = vmatprep.mubr.f32.mxu0 0.0
  %v5472 = vand.u32 %v4427, 4294901760
  %5473 = vmatmul.mubr.f32.gmra.mxu0 %v5472
  %v5474 = vpop.f32.mrf.mxu0
  %v5475 = vadd.f32 %v5313, %v5474
  %v5476 = vpop.f32.mrf.mxu0
  %5477 = vmatprep.mubr.f32.mxu0 0.0
  %v5478 = vand.u32 %v4430, 4294901760
  %5479 = vmatmul.mubr.f32.gmra.mxu0 %v5478
  %v5480 = vpop.f32.mrf.mxu0
  %v5481 = vadd.f32 %v5319, %v5480
  %v5482 = vpop.f32.mrf.mxu0
  %5483 = vmatprep.mubr.f32.mxu0 0.0
  %v5484 = vand.u32 %v4433, 4294901760
  %5485 = vmatmul.mubr.f32.gmra.mxu0 %v5484
  %v5486 = vpop.f32.mrf.mxu0
  %v5487 = vadd.f32 %v5325, %v5486
  %v5488 = vpop.f32.mrf.mxu0
  %5489 = vmatprep.mubr.f32.mxu0 0.0
  %v5490 = vand.u32 %v4436, 4294901760
  %5491 = vmatmul.mubr.f32.gmra.mxu0 %v5490
  %v5492 = vpop.f32.mrf.mxu0
  %v5493 = vadd.f32 %v5331, %v5492
  %v5494 = vpop.f32.mrf.mxu0
  %5495 = vmatprep.mubr.f32.mxu0 0.0
  %v5496 = vand.u32 %v4439, 4294901760
  %5497 = vmatmul.mubr.f32.gmra.mxu0 %v5496
  %v5498 = vpop.f32.mrf.mxu0
  %v5499 = vadd.f32 %v5337, %v5498
  %v5500 = vpop.f32.mrf.mxu0
  %5501 = vmatprep.mubr.f32.mxu0 0.0
  %v5502 = vand.u32 %v4442, 4294901760
  %5503 = vmatmul.mubr.f32.gmra.mxu0 %v5502
  %v5504 = vpop.f32.mrf.mxu0
  %v5505 = vadd.f32 %v5343, %v5504
  %v5506 = vpop.f32.mrf.mxu0
  %5507 = vmatprep.mubr.f32.mxu0 0.0
  %v5508 = vand.u32 %v4445, 4294901760
  %5509 = vmatmul.mubr.f32.gmra.mxu0 %v5508
  %v5510 = vpop.f32.mrf.mxu0
  %v5511 = vadd.f32 %v5349, %v5510
  %v5512 = vpop.f32.mrf.mxu0
  %5513 = vmatprep.mubr.f32.mxu0 0.0
  %v5514 = vand.u32 %v4448, 4294901760
  %5515 = vmatmul.mubr.f32.gmra.mxu0 %v5514
  %v5516 = vpop.f32.mrf.mxu0
  %v5517 = vadd.f32 %v5355, %v5516
  %v5518 = vpop.f32.mrf.mxu0
  %5519 = vmatprep.mubr.f32.mxu0 0.0
  %v5520 = vand.u32 %v4451, 4294901760
  %5521 = vmatmul.mubr.f32.gmra.mxu0 %v5520
  %v5522 = vpop.f32.mrf.mxu0
  %v5523 = vadd.f32 %v5361, %v5522
  %v5524 = vpop.f32.mrf.mxu0
  %5525 = vmatprep.mubr.f32.mxu0 0.0
  %v5526 = vand.u32 %v4454, 4294901760
  %5527 = vmatmul.mubr.f32.gmra.mxu0 %v5526
  %v5528 = vpop.f32.mrf.mxu0
  %v5529 = vadd.f32 %v5367, %v5528
  %v5530 = vpop.f32.mrf.mxu0
  %5531 = vmatprep.mubr.f32.mxu0 0.0
  %v5532 = vand.u32 %v4457, 4294901760
  %5533 = vmatmul.mubr.f32.gmra.mxu0 %v5532
  %v5534 = vpop.f32.mrf.mxu0
  %v5535 = vadd.f32 %v5373, %v5534
  %v5536 = vpop.f32.mrf.mxu0
  %5537 = vmatprep.mubr.f32.mxu0 0.0
  %v5538 = vand.u32 %v4460, 4294901760
  %5539 = vmatmul.mubr.f32.gmra.mxu0 %v5538
  %v5540 = vpop.f32.mrf.mxu0
  %v5541 = vadd.f32 %v5379, %v5540
  %v5542 = vpop.f32.mrf.mxu0
  %5543 = vmatprep.mubr.f32.mxu0 0.0
  %v5544 = vand.u32 %v4463, 4294901760
  %5545 = vmatmul.mubr.f32.gmra.mxu0 %v5544
  %v5546 = vpop.f32.mrf.mxu0
  %v5547 = vadd.f32 %v5385, %v5546
  %v5548 = vpop.f32.mrf.mxu0
  %5549 = vmatprep.mubr.f32.mxu0 0.0
  %v5550 = vand.u32 %v4466, 4294901760
  %5551 = vmatmul.mubr.f32.gmra.mxu0 %v5550
  %v5552 = vpop.f32.mrf.mxu0
  %v5553 = vadd.f32 %v5391, %v5552
  %v5554 = vpop.f32.mrf.mxu0
  %5555 = vmatprep.mubr.f32.mxu0 0.0
  %v5556 = vand.u32 %v4469, 4294901760
  %5557 = vmatmul.mubr.f32.gmra.mxu0 %v5556
  %v5558 = vpop.f32.mrf.mxu0
  %v5559 = vadd.f32 %v5397, %v5558
  %v5560 = vpop.f32.mrf.mxu0
  %5561 = vdwg.mxu0
  %v5563 = vlaneseq
  %v5564 = vshrl.u32 %v5563, 7
  %v5565 = vsub.s32 0, %v5564
  %v5566 = vrot.slane %v4419, %v5565
  %5567 = vrot.lane.b32.xlu0 %v5566, 16
  %v5568 = vpop.permute.xlu0 %5567
  %v5570 = vadd.f32 %v5469, %v5568
  %v5571 = vadd.f32 %v5475, %v5568
  %v5572 = vadd.f32 %v5481, %v5568
  %v5573 = vadd.f32 %v5487, %v5568
  %v5574 = vadd.f32 %v5493, %v5568
  %v5575 = vadd.f32 %v5499, %v5568
  %v5576 = vadd.f32 %v5505, %v5568
  %v5577 = vadd.f32 %v5511, %v5568
  %v5578 = vadd.f32 %v5517, %v5568
  %v5579 = vadd.f32 %v5523, %v5568
  %v5580 = vadd.f32 %v5529, %v5568
  %v5581 = vadd.f32 %v5535, %v5568
  %v5582 = vadd.f32 %v5541, %v5568
  %v5583 = vadd.f32 %v5547, %v5568
  %v5584 = vadd.f32 %v5553, %v5568
  %v5585 = vadd.f32 %v5559, %v5568
  %v5586 = vsel %vm110, %v5469, 0.0
  %v5587 = vsel %vm110, %v5475, 0.0
  %v5588 = vadd.f32 %v5586, %v5587
  %v5589 = vsel %vm110, %v5481, 0.0
  %v5590 = vadd.f32 %v5588, %v5589
  %v5591 = vsel %vm110, %v5487, 0.0
  %v5592 = vadd.f32 %v5590, %v5591
  %v5593 = vsel %vm110, %v5493, 0.0
  %v5594 = vadd.f32 %v5592, %v5593
  %v5595 = vsel %vm110, %v5499, 0.0
  %v5596 = vadd.f32 %v5594, %v5595
  %v5597 = vsel %vm110, %v5505, 0.0
  %v5598 = vadd.f32 %v5596, %v5597
  %v5599 = vsel %vm110, %v5511, 0.0
  %v5600 = vadd.f32 %v5598, %v5599
  %v5601 = vsel %vm110, %v5517, 0.0
  %v5602 = vadd.f32 %v5600, %v5601
  %v5603 = vsel %vm110, %v5523, 0.0
  %v5604 = vadd.f32 %v5602, %v5603
  %v5605 = vsel %vm110, %v5529, 0.0
  %v5606 = vadd.f32 %v5604, %v5605
  %v5607 = vsel %vm110, %v5535, 0.0
  %v5608 = vadd.f32 %v5606, %v5607
  %v5609 = vsel %vm110, %v5541, 0.0
  %v5610 = vadd.f32 %v5608, %v5609
  %v5611 = vsel %vm110, %v5547, 0.0
  %v5612 = vadd.f32 %v5610, %v5611
  %v5613 = vsel %vm110, %v5553, 0.0
  %v5614 = vadd.f32 %v5612, %v5613
  %v5615 = vsel %vm110, %v5559, 0.0
  %v5616 = vadd.f32 %v5614, %v5615
  %v5617 = vrot.slane %v5616, 4
  %v5618 = vadd.f32 %v5616, %v5617
  %v5619 = vrot.slane %v5618, 2
  %v5620 = vadd.f32 %v5618, %v5619
  %v5621 = vrot.slane %v5620, 1
  %v5622 = vadd.f32 %v5620, %v5621
  %v5623 = vmul.f32 %v5622, %v1325
  %v5624 = vmul.f32 %v5469, %v5469
  %v5625 = vmul.f32 %v5475, %v5475
  %v5626 = vmul.f32 %v5481, %v5481
  %v5627 = vmul.f32 %v5487, %v5487
  %v5628 = vmul.f32 %v5493, %v5493
  %v5629 = vmul.f32 %v5499, %v5499
  %v5630 = vmul.f32 %v5505, %v5505
  %v5631 = vmul.f32 %v5511, %v5511
  %v5632 = vmul.f32 %v5517, %v5517
  %v5633 = vmul.f32 %v5523, %v5523
  %v5634 = vmul.f32 %v5529, %v5529
  %v5635 = vmul.f32 %v5535, %v5535
  %v5636 = vmul.f32 %v5541, %v5541
  %v5637 = vmul.f32 %v5547, %v5547
  %v5638 = vmul.f32 %v5553, %v5553
  %v5639 = vmul.f32 %v5559, %v5559
  %v5640 = vsel %vm110, %v5624, 0.0
  %v5641 = vsel %vm110, %v5625, 0.0
  %v5642 = vadd.f32 %v5640, %v5641
  %v5643 = vsel %vm110, %v5626, 0.0
  %v5644 = vadd.f32 %v5642, %v5643
  %v5645 = vsel %vm110, %v5627, 0.0
  %v5646 = vadd.f32 %v5644, %v5645
  %v5647 = vsel %vm110, %v5628, 0.0
  %v5648 = vadd.f32 %v5646, %v5647
  %v5649 = vsel %vm110, %v5629, 0.0
  %v5650 = vadd.f32 %v5648, %v5649
  %v5651 = vsel %vm110, %v5630, 0.0
  %v5652 = vadd.f32 %v5650, %v5651
  %v5653 = vsel %vm110, %v5631, 0.0
  %v5654 = vadd.f32 %v5652, %v5653
  %v5655 = vsel %vm110, %v5632, 0.0
  %v5656 = vadd.f32 %v5654, %v5655
  %v5657 = vsel %vm110, %v5633, 0.0
  %v5658 = vadd.f32 %v5656, %v5657
  %v5659 = vsel %vm110, %v5634, 0.0
  %v5660 = vadd.f32 %v5658, %v5659
  %v5661 = vsel %vm110, %v5635, 0.0
  %v5662 = vadd.f32 %v5660, %v5661
  %v5663 = vsel %vm110, %v5636, 0.0
  %v5664 = vadd.f32 %v5662, %v5663
  %v5665 = vsel %vm110, %v5637, 0.0
  %v5666 = vadd.f32 %v5664, %v5665
  %v5667 = vsel %vm110, %v5638, 0.0
  %v5668 = vadd.f32 %v5666, %v5667
  %v5669 = vsel %vm110, %v5639, 0.0
  %v5670 = vadd.f32 %v5668, %v5669
  %v5671 = vrot.slane %v5670, 4
  %v5672 = vadd.f32 %v5670, %v5671
  %v5673 = vrot.slane %v5672, 2
  %v5674 = vadd.f32 %v5672, %v5673
  %v5675 = vrot.slane %v5674, 1
  %v5676 = vadd.f32 %v5674, %v5675
  %v5677 = vmul.f32 %v5676, %v1325
  %v5678 = vmul.f32 %v5623, %v5623
  %v5679 = vsub.f32 %v5677, %v5678
  %v5680 = vsub.f32 %v5469, %v5623
  %v5681 = vsub.f32 %v5475, %v5623
  %v5682 = vsub.f32 %v5481, %v5623
  %v5683 = vsub.f32 %v5487, %v5623
  %v5684 = vsub.f32 %v5493, %v5623
  %v5685 = vsub.f32 %v5499, %v5623
  %v5686 = vsub.f32 %v5505, %v5623
  %v5687 = vsub.f32 %v5511, %v5623
  %v5688 = vsub.f32 %v5517, %v5623
  %v5689 = vsub.f32 %v5523, %v5623
  %v5690 = vsub.f32 %v5529, %v5623
  %v5691 = vsub.f32 %v5535, %v5623
  %v5692 = vsub.f32 %v5541, %v5623
  %v5693 = vsub.f32 %v5547, %v5623
  %v5694 = vsub.f32 %v5553, %v5623
  %v5695 = vsub.f32 %v5559, %v5623
  %v5696 = vadd.f32 %v5679, 1e-05
  %v5697 = vrsqrt.pop %v5696
  %v5698 = vmul.f32 %v5680, %v5697
  %v5699 = vmul.f32 %v5681, %v5697
  %v5700 = vmul.f32 %v5682, %v5697
  %v5701 = vmul.f32 %v5683, %v5697
  %v5702 = vmul.f32 %v5684, %v5697
  %v5703 = vmul.f32 %v5685, %v5697
  %v5704 = vmul.f32 %v5686, %v5697
  %v5705 = vmul.f32 %v5687, %v5697
  %v5706 = vmul.f32 %v5688, %v5697
  %v5707 = vmul.f32 %v5689, %v5697
  %v5708 = vmul.f32 %v5690, %v5697
  %v5709 = vmul.f32 %v5691, %v5697
  %v5710 = vmul.f32 %v5692, %v5697
  %v5711 = vmul.f32 %v5693, %v5697
  %v5712 = vmul.f32 %v5694, %v5697
  %v5713 = vmul.f32 %v5695, %v5697
  %v5715 = vlaneseq
  %v5716 = vshrl.u32 %v5715, 7
  %v5717 = vsub.s32 0, %v5716
  %v5718 = vrot.slane %v4420, %v5717
  %v5720 = vmul.f32 %v5698, %v5718
  %v5721 = vmul.f32 %v5699, %v5718
  %v5722 = vmul.f32 %v5700, %v5718
  %v5723 = vmul.f32 %v5701, %v5718
  %v5724 = vmul.f32 %v5702, %v5718
  %v5725 = vmul.f32 %v5703, %v5718
  %v5726 = vmul.f32 %v5704, %v5718
  %v5727 = vmul.f32 %v5705, %v5718
  %v5728 = vmul.f32 %v5706, %v5718
  %v5729 = vmul.f32 %v5707, %v5718
  %v5730 = vmul.f32 %v5708, %v5718
  %v5731 = vmul.f32 %v5709, %v5718
  %v5732 = vmul.f32 %v5710, %v5718
  %v5733 = vmul.f32 %v5711, %v5718
  %v5734 = vmul.f32 %v5712, %v5718
  %v5735 = vmul.f32 %v5713, %v5718
  %v5737 = vlaneseq
  %v5738 = vshrl.u32 %v5737, 7
  %v5739 = vsub.s32 0, %v5738
  %v5740 = vrot.slane %v4421, %v5739
  %v5742 = vadd.f32 %v5720, %v5740
  %v5743 = vadd.f32 %v5721, %v5740
  %v5744 = vadd.f32 %v5722, %v5740
  %v5745 = vadd.f32 %v5723, %v5740
  %v5746 = vadd.f32 %v5724, %v5740
  %v5747 = vadd.f32 %v5725, %v5740
  %v5748 = vadd.f32 %v5726, %v5740
  %v5749 = vadd.f32 %v5727, %v5740
  %v5750 = vadd.f32 %v5728, %v5740
  %v5751 = vadd.f32 %v5729, %v5740
  %v5752 = vadd.f32 %v5730, %v5740
  %v5753 = vadd.f32 %v5731, %v5740
  %v5754 = vadd.f32 %v5732, %v5740
  %v5755 = vadd.f32 %v5733, %v5740
  %v5756 = vadd.f32 %v5734, %v5740
  %v5757 = vadd.f32 %v5735, %v5740
  %vm5758 = vcmp.gt.f32.partialorder %v5742, 0.0
  %vm5759 = vcmp.gt.f32.partialorder %v5743, 0.0
  %vm5760 = vcmp.gt.f32.partialorder %v5744, 0.0
  %vm5761 = vcmp.gt.f32.partialorder %v5745, 0.0
  %vm5762 = vcmp.gt.f32.partialorder %v5746, 0.0
  %vm5763 = vcmp.gt.f32.partialorder %v5747, 0.0
  %vm5764 = vcmp.gt.f32.partialorder %v5748, 0.0
  %vm5765 = vcmp.gt.f32.partialorder %v5749, 0.0
  %vm5766 = vcmp.gt.f32.partialorder %v5750, 0.0
  %vm5767 = vcmp.gt.f32.partialorder %v5751, 0.0
  %vm5768 = vcmp.gt.f32.partialorder %v5752, 0.0
  %vm5769 = vcmp.gt.f32.partialorder %v5753, 0.0
  %vm5770 = vcmp.gt.f32.partialorder %v5754, 0.0
  %vm5771 = vcmp.gt.f32.partialorder %v5755, 0.0
  %vm5772 = vcmp.gt.f32.partialorder %v5756, 0.0
  %vm5773 = vcmp.gt.f32.partialorder %v5757, 0.0
  %v5774 = vmul.f32 %v5742, 0.01
  %v5775 = vmul.f32 %v5743, 0.01
  %v5776 = vmul.f32 %v5744, 0.01
  %v5777 = vmul.f32 %v5745, 0.01
  %v5778 = vmul.f32 %v5746, 0.01
  %v5779 = vmul.f32 %v5747, 0.01
  %v5780 = vmul.f32 %v5748, 0.01
  %v5781 = vmul.f32 %v5749, 0.01
  %v5782 = vmul.f32 %v5750, 0.01
  %v5783 = vmul.f32 %v5751, 0.01
  %v5784 = vmul.f32 %v5752, 0.01
  %v5785 = vmul.f32 %v5753, 0.01
  %v5786 = vmul.f32 %v5754, 0.01
  %v5787 = vmul.f32 %v5755, 0.01
  %v5788 = vmul.f32 %v5756, 0.01
  %v5789 = vmul.f32 %v5757, 0.01
  %v5790 = vsel %vm5758, %v5742, %v5774
  %v5791 = vsel %vm5759, %v5743, %v5775
  %v5792 = vsel %vm5760, %v5744, %v5776
  %v5793 = vsel %vm5761, %v5745, %v5777
  %v5794 = vsel %vm5762, %v5746, %v5778
  %v5795 = vsel %vm5763, %v5747, %v5779
  %v5796 = vsel %vm5764, %v5748, %v5780
  %v5797 = vsel %vm5765, %v5749, %v5781
  %v5798 = vsel %vm5766, %v5750, %v5782
  %v5799 = vsel %vm5767, %v5751, %v5783
  %v5800 = vsel %vm5768, %v5752, %v5784
  %v5801 = vsel %vm5769, %v5753, %v5785
  %v5802 = vsel %vm5770, %v5754, %v5786
  %v5803 = vsel %vm5771, %v5755, %v5787
  %v5804 = vsel %vm5772, %v5756, %v5788
  %v5805 = vsel %vm5773, %v5757, %v5789
  %5822 = vrot.lane.b32.xlu0 %v5570, 112
  %v5823 = vpop.permute.xlu0 %5822
  %5824 = vrot.lane.b32.xlu0 %v5571, 112
  %v5825 = vpop.permute.xlu0 %5824
  %5826 = vrot.lane.b32.xlu0 %v5572, 112
  %v5827 = vpop.permute.xlu0 %5826
  %5828 = vrot.lane.b32.xlu0 %v5573, 112
  %v5829 = vpop.permute.xlu0 %5828
  %5830 = vrot.lane.b32.xlu0 %v5574, 112
  %v5831 = vpop.permute.xlu0 %5830
  %5832 = vrot.lane.b32.xlu0 %v5575, 112
  %v5833 = vpop.permute.xlu0 %5832
  %5834 = vrot.lane.b32.xlu0 %v5576, 112
  %v5835 = vpop.permute.xlu0 %5834
  %5836 = vrot.lane.b32.xlu0 %v5577, 112
  %v5837 = vpop.permute.xlu0 %5836
  %5838 = vrot.lane.b32.xlu0 %v5578, 112
  %v5839 = vpop.permute.xlu0 %5838
  %5840 = vrot.lane.b32.xlu0 %v5579, 112
  %v5841 = vpop.permute.xlu0 %5840
  %5842 = vrot.lane.b32.xlu0 %v5580, 112
  %v5843 = vpop.permute.xlu0 %5842
  %5844 = vrot.lane.b32.xlu0 %v5581, 112
  %v5845 = vpop.permute.xlu0 %5844
  %5846 = vrot.lane.b32.xlu0 %v5582, 112
  %v5847 = vpop.permute.xlu0 %5846
  %5848 = vrot.lane.b32.xlu0 %v5583, 112
  %v5849 = vpop.permute.xlu0 %5848
  %5850 = vrot.lane.b32.xlu0 %v5584, 112
  %v5851 = vpop.permute.xlu0 %5850
  %5852 = vrot.lane.b32.xlu0 %v5585, 112
  %v5853 = vpop.permute.xlu0 %5852
  %v5870 = vadd.f32 %v5790, %v5823
  %v5871 = vadd.f32 %v5791, %v5825
  %v5872 = vadd.f32 %v5792, %v5827
  %v5873 = vadd.f32 %v5793, %v5829
  %v5874 = vadd.f32 %v5794, %v5831
  %v5875 = vadd.f32 %v5795, %v5833
  %v5876 = vadd.f32 %v5796, %v5835
  %v5877 = vadd.f32 %v5797, %v5837
  %v5878 = vadd.f32 %v5798, %v5839
  %v5879 = vadd.f32 %v5799, %v5841
  %v5880 = vadd.f32 %v5800, %v5843
  %v5881 = vadd.f32 %v5801, %v5845
  %v5882 = vadd.f32 %v5802, %v5847
  %v5883 = vadd.f32 %v5803, %v5849
  %v5884 = vadd.f32 %v5804, %v5851
  %v5885 = vadd.f32 %v5805, %v5853
  %v5886 = vld [vmem:[%s16] sm:$0xff]
  %v5887 = vld [vmem:[%s16 + $0x8] sm:$0xff]
  %v5888 = vld [vmem:[%s17] sm:$0x1]
  %v5889 = vld [vmem:[%s18] sm:$0x1]
  %v5890 = vld [vmem:[%s19] sm:$0x1]
  %v5892 = vsel %vm110, %v5870, 0
  %v5895 = vsel %vm110, %v5871, 0
  %v5898 = vsel %vm110, %v5872, 0
  %v5901 = vsel %vm110, %v5873, 0
  %v5904 = vsel %vm110, %v5874, 0
  %v5907 = vsel %vm110, %v5875, 0
  %v5910 = vsel %vm110, %v5876, 0
  %v5913 = vsel %vm110, %v5877, 0
  %v5916 = vsel %vm110, %v5878, 0
  %v5919 = vsel %vm110, %v5879, 0
  %v5922 = vsel %vm110, %v5880, 0
  %v5925 = vsel %vm110, %v5881, 0
  %v5928 = vsel %vm110, %v5882, 0
  %v5931 = vsel %vm110, %v5883, 0
  %v5934 = vsel %vm110, %v5884, 0
  %v5937 = vsel %vm110, %v5885, 0
  %5939 = vmatprep.subr.mxu0 0.0
  %5940 = vmatpush1.msra.mxu0 0.0
  %5941 = vmatprep.subr.mxu0 0.0
  %5942 = vmatpush1.msra.mxu0 0.0
  %5943 = vmatprep.subr.mxu0 0.0
  %5944 = vmatpush1.msra.mxu0 0.0
  %5945 = vmatprep.subr.mxu0 0.0
  %5946 = vmatpush1.msra.mxu0 0.0
  %5947 = vmatprep.subr.mxu0 0.0
  %5948 = vmatpush1.msra.mxu0 0.0
  %5949 = vmatprep.subr.mxu0 0.0
  %5950 = vmatpush1.msra.mxu0 0.0
  %5951 = vmatprep.subr.mxu0 0.0
  %5952 = vmatpush1.msra.mxu0 0.0
  %5953 = vmatprep.subr.mxu0 0.0
  %5954 = vmatpush1.msra.mxu0 0.0
  %5955 = vmatprep.subr.mxu0 0.0
  %5956 = vmatpush1.msra.mxu0 0.0
  %5957 = vmatprep.subr.mxu0 0.0
  %5958 = vmatpush1.msra.mxu0 0.0
  %5959 = vmatprep.subr.mxu0 0.0
  %5960 = vmatpush1.msra.mxu0 0.0
  %5961 = vmatprep.subr.mxu0 0.0
  %5962 = vmatpush1.msra.mxu0 0.0
  %5963 = vmatprep.subr.mxu0 0.0
  %5964 = vmatpush1.msra.mxu0 0.0
  %5965 = vmatprep.subr.mxu0 0.0
  %5966 = vmatpush1.msra.mxu0 0.0
  %5967 = vmatprep.subr.mxu0 0.0
  %v5968 = vand.u32 %v5887, 4294901760
  %5969 = vmatpush1.msra.mxu0 %v5968
  %5970 = vmatprep.subr.mxu0 0.0
  %v5971 = vand.u32 %v5886, 4294901760
  %5972 = vmatpush1.msra.mxu0 %v5971
  %5973 = vmatprep.subr.mxu0 0.0
  %5974 = vmatpush2.msra.mxu0 0.0
  %5975 = vmatprep.subr.mxu0 0.0
  %5976 = vmatpush2.msra.mxu0 0.0
  %5977 = vmatprep.subr.mxu0 0.0
  %5978 = vmatpush2.msra.mxu0 0.0
  %5979 = vmatprep.subr.mxu0 0.0
  %5980 = vmatpush2.msra.mxu0 0.0
  %5981 = vmatprep.subr.mxu0 0.0
  %5982 = vmatpush2.msra.mxu0 0.0
  %5983 = vmatprep.subr.mxu0 0.0
  %5984 = vmatpush2.msra.mxu0 0.0
  %5985 = vmatprep.subr.mxu0 0.0
  %5986 = vmatpush2.msra.mxu0 0.0
  %5987 = vmatprep.subr.mxu0 0.0
  %5988 = vmatpush2.msra.mxu0 0.0
  %5989 = vmatprep.subr.mxu0 0.0
  %5990 = vmatpush2.msra.mxu0 0.0
  %5991 = vmatprep.subr.mxu0 0.0
  %5992 = vmatpush2.msra.mxu0 0.0
  %5993 = vmatprep.subr.mxu0 0.0
  %5994 = vmatpush2.msra.mxu0 0.0
  %5995 = vmatprep.subr.mxu0 0.0
  %5996 = vmatpush2.msra.mxu0 0.0
  %5997 = vmatprep.subr.mxu0 0.0
  %5998 = vmatpush2.msra.mxu0 0.0
  %5999 = vmatprep.subr.mxu0 0.0
  %6000 = vmatpush2.msra.mxu0 0.0
  %6001 = vmatprep.subr.mxu0 0.0
  %6002 = vmatpush2.msra.mxu0 0.0
  %6003 = vmatprep.subr.mxu0 0.0
  %6004 = vmatpush2.msra.mxu0 0.0
  %6005 = vmatprep.mubr.f32.mxu0 0.0
  %v6006 = vand.u32 %v5892, 4294901760
  %v6007 = vsub.f32 %v5892, %v6006
  %v6008 = vand.u32 %v6007, 4294901760
  %v6009 = vsub.f32 %v6007, %v6008
  %v6010 = vand.u32 %v6009, 4294901760
  %6011 = vmatmul.mubr.f32.gmra.mxu0 %v6010
  %v6012 = vpop.f32.mrf.mxu0
  %v6013 = vadd.f32 0.0, %v6012
  %v6014 = vpop.f32.mrf.mxu0
  %6015 = vmatprep.mubr.f32.mxu0 0.0
  %v6016 = vand.u32 %v5895, 4294901760
  %v6017 = vsub.f32 %v5895, %v6016
  %v6018 = vand.u32 %v6017, 4294901760
  %v6019 = vsub.f32 %v6017, %v6018
  %v6020 = vand.u32 %v6019, 4294901760
  %6021 = vmatmul.mubr.f32.gmra.mxu0 %v6020
  %v6022 = vpop.f32.mrf.mxu0
  %v6023 = vadd.f32 0.0, %v6022
  %v6024 = vpop.f32.mrf.mxu0
  %6025 = vmatprep.mubr.f32.mxu0 0.0
  %v6026 = vand.u32 %v5898, 4294901760
  %v6027 = vsub.f32 %v5898, %v6026
  %v6028 = vand.u32 %v6027, 4294901760
  %v6029 = vsub.f32 %v6027, %v6028
  %v6030 = vand.u32 %v6029, 4294901760
  %6031 = vmatmul.mubr.f32.gmra.mxu0 %v6030
  %v6032 = vpop.f32.mrf.mxu0
  %v6033 = vadd.f32 0.0, %v6032
  %v6034 = vpop.f32.mrf.mxu0
  %6035 = vmatprep.mubr.f32.mxu0 0.0
  %v6036 = vand.u32 %v5901, 4294901760
  %v6037 = vsub.f32 %v5901, %v6036
  %v6038 = vand.u32 %v6037, 4294901760
  %v6039 = vsub.f32 %v6037, %v6038
  %v6040 = vand.u32 %v6039, 4294901760
  %6041 = vmatmul.mubr.f32.gmra.mxu0 %v6040
  %v6042 = vpop.f32.mrf.mxu0
  %v6043 = vadd.f32 0.0, %v6042
  %v6044 = vpop.f32.mrf.mxu0
  %6045 = vmatprep.mubr.f32.mxu0 0.0
  %v6046 = vand.u32 %v5904, 4294901760
  %v6047 = vsub.f32 %v5904, %v6046
  %v6048 = vand.u32 %v6047, 4294901760
  %v6049 = vsub.f32 %v6047, %v6048
  %v6050 = vand.u32 %v6049, 4294901760
  %6051 = vmatmul.mubr.f32.gmra.mxu0 %v6050
  %v6052 = vpop.f32.mrf.mxu0
  %v6053 = vadd.f32 0.0, %v6052
  %v6054 = vpop.f32.mrf.mxu0
  %6055 = vmatprep.mubr.f32.mxu0 0.0
  %v6056 = vand.u32 %v5907, 4294901760
  %v6057 = vsub.f32 %v5907, %v6056
  %v6058 = vand.u32 %v6057, 4294901760
  %v6059 = vsub.f32 %v6057, %v6058
  %v6060 = vand.u32 %v6059, 4294901760
  %6061 = vmatmul.mubr.f32.gmra.mxu0 %v6060
  %v6062 = vpop.f32.mrf.mxu0
  %v6063 = vadd.f32 0.0, %v6062
  %v6064 = vpop.f32.mrf.mxu0
  %6065 = vmatprep.mubr.f32.mxu0 0.0
  %v6066 = vand.u32 %v5910, 4294901760
  %v6067 = vsub.f32 %v5910, %v6066
  %v6068 = vand.u32 %v6067, 4294901760
  %v6069 = vsub.f32 %v6067, %v6068
  %v6070 = vand.u32 %v6069, 4294901760
  %6071 = vmatmul.mubr.f32.gmra.mxu0 %v6070
  %v6072 = vpop.f32.mrf.mxu0
  %v6073 = vadd.f32 0.0, %v6072
  %v6074 = vpop.f32.mrf.mxu0
  %6075 = vmatprep.mubr.f32.mxu0 0.0
  %v6076 = vand.u32 %v5913, 4294901760
  %v6077 = vsub.f32 %v5913, %v6076
  %v6078 = vand.u32 %v6077, 4294901760
  %v6079 = vsub.f32 %v6077, %v6078
  %v6080 = vand.u32 %v6079, 4294901760
  %6081 = vmatmul.mubr.f32.gmra.mxu0 %v6080
  %v6082 = vpop.f32.mrf.mxu0
  %v6083 = vadd.f32 0.0, %v6082
  %v6084 = vpop.f32.mrf.mxu0
  %6085 = vmatprep.mubr.f32.mxu0 0.0
  %v6086 = vand.u32 %v5916, 4294901760
  %v6087 = vsub.f32 %v5916, %v6086
  %v6088 = vand.u32 %v6087, 4294901760
  %v6089 = vsub.f32 %v6087, %v6088
  %v6090 = vand.u32 %v6089, 4294901760
  %6091 = vmatmul.mubr.f32.gmra.mxu0 %v6090
  %v6092 = vpop.f32.mrf.mxu0
  %v6093 = vadd.f32 0.0, %v6092
  %v6094 = vpop.f32.mrf.mxu0
  %6095 = vmatprep.mubr.f32.mxu0 0.0
  %v6096 = vand.u32 %v5919, 4294901760
  %v6097 = vsub.f32 %v5919, %v6096
  %v6098 = vand.u32 %v6097, 4294901760
  %v6099 = vsub.f32 %v6097, %v6098
  %v6100 = vand.u32 %v6099, 4294901760
  %6101 = vmatmul.mubr.f32.gmra.mxu0 %v6100
  %v6102 = vpop.f32.mrf.mxu0
  %v6103 = vadd.f32 0.0, %v6102
  %v6104 = vpop.f32.mrf.mxu0
  %6105 = vmatprep.mubr.f32.mxu0 0.0
  %v6106 = vand.u32 %v5922, 4294901760
  %v6107 = vsub.f32 %v5922, %v6106
  %v6108 = vand.u32 %v6107, 4294901760
  %v6109 = vsub.f32 %v6107, %v6108
  %v6110 = vand.u32 %v6109, 4294901760
  %6111 = vmatmul.mubr.f32.gmra.mxu0 %v6110
  %v6112 = vpop.f32.mrf.mxu0
  %v6113 = vadd.f32 0.0, %v6112
  %v6114 = vpop.f32.mrf.mxu0
  %6115 = vmatprep.mubr.f32.mxu0 0.0
  %v6116 = vand.u32 %v5925, 4294901760
  %v6117 = vsub.f32 %v5925, %v6116
  %v6118 = vand.u32 %v6117, 4294901760
  %v6119 = vsub.f32 %v6117, %v6118
  %v6120 = vand.u32 %v6119, 4294901760
  %6121 = vmatmul.mubr.f32.gmra.mxu0 %v6120
  %v6122 = vpop.f32.mrf.mxu0
  %v6123 = vadd.f32 0.0, %v6122
  %v6124 = vpop.f32.mrf.mxu0
  %6125 = vmatprep.mubr.f32.mxu0 0.0
  %v6126 = vand.u32 %v5928, 4294901760
  %v6127 = vsub.f32 %v5928, %v6126
  %v6128 = vand.u32 %v6127, 4294901760
  %v6129 = vsub.f32 %v6127, %v6128
  %v6130 = vand.u32 %v6129, 4294901760
  %6131 = vmatmul.mubr.f32.gmra.mxu0 %v6130
  %v6132 = vpop.f32.mrf.mxu0
  %v6133 = vadd.f32 0.0, %v6132
  %v6134 = vpop.f32.mrf.mxu0
  %6135 = vmatprep.mubr.f32.mxu0 0.0
  %v6136 = vand.u32 %v5931, 4294901760
  %v6137 = vsub.f32 %v5931, %v6136
  %v6138 = vand.u32 %v6137, 4294901760
  %v6139 = vsub.f32 %v6137, %v6138
  %v6140 = vand.u32 %v6139, 4294901760
  %6141 = vmatmul.mubr.f32.gmra.mxu0 %v6140
  %v6142 = vpop.f32.mrf.mxu0
  %v6143 = vadd.f32 0.0, %v6142
  %v6144 = vpop.f32.mrf.mxu0
  %6145 = vmatprep.mubr.f32.mxu0 0.0
  %v6146 = vand.u32 %v5934, 4294901760
  %v6147 = vsub.f32 %v5934, %v6146
  %v6148 = vand.u32 %v6147, 4294901760
  %v6149 = vsub.f32 %v6147, %v6148
  %v6150 = vand.u32 %v6149, 4294901760
  %6151 = vmatmul.mubr.f32.gmra.mxu0 %v6150
  %v6152 = vpop.f32.mrf.mxu0
  %v6153 = vadd.f32 0.0, %v6152
  %v6154 = vpop.f32.mrf.mxu0
  %6155 = vmatprep.mubr.f32.mxu0 0.0
  %v6156 = vand.u32 %v5937, 4294901760
  %v6157 = vsub.f32 %v5937, %v6156
  %v6158 = vand.u32 %v6157, 4294901760
  %v6159 = vsub.f32 %v6157, %v6158
  %v6160 = vand.u32 %v6159, 4294901760
  %6161 = vmatmul.mubr.f32.gmra.mxu0 %v6160
  %v6162 = vpop.f32.mrf.mxu0
  %v6163 = vadd.f32 0.0, %v6162
  %v6164 = vpop.f32.mrf.mxu0
  %6165 = vdwg.mxu0
  %6166 = vmatprep.subr.mxu0 0.0
  %6167 = vmatpush1.msra.mxu0 0.0
  %6168 = vmatprep.subr.mxu0 0.0
  %6169 = vmatpush1.msra.mxu0 0.0
  %6170 = vmatprep.subr.mxu0 0.0
  %6171 = vmatpush1.msra.mxu0 0.0
  %6172 = vmatprep.subr.mxu0 0.0
  %6173 = vmatpush1.msra.mxu0 0.0
  %6174 = vmatprep.subr.mxu0 0.0
  %6175 = vmatpush1.msra.mxu0 0.0
  %6176 = vmatprep.subr.mxu0 0.0
  %6177 = vmatpush1.msra.mxu0 0.0
  %6178 = vmatprep.subr.mxu0 0.0
  %6179 = vmatpush1.msra.mxu0 0.0
  %6180 = vmatprep.subr.mxu0 0.0
  %6181 = vmatpush1.msra.mxu0 0.0
  %6182 = vmatprep.subr.mxu0 0.0
  %6183 = vmatpush1.msra.mxu0 0.0
  %6184 = vmatprep.subr.mxu0 0.0
  %6185 = vmatpush1.msra.mxu0 0.0
  %6186 = vmatprep.subr.mxu0 0.0
  %6187 = vmatpush1.msra.mxu0 0.0
  %6188 = vmatprep.subr.mxu0 0.0
  %6189 = vmatpush1.msra.mxu0 0.0
  %6190 = vmatprep.subr.mxu0 0.0
  %6191 = vmatpush1.msra.mxu0 0.0
  %6192 = vmatprep.subr.mxu0 0.0
  %6193 = vmatpush1.msra.mxu0 0.0
  %6194 = vmatprep.subr.mxu0 0.0
  %v6195 = vand.u32 %v5887, 4294901760
  %v6196 = vsub.f32 %v5887, %v6195
  %v6197 = vand.u32 %v6196, 4294901760
  %v6198 = vsub.f32 %v6196, %v6197
  %v6199 = vand.u32 %v6198, 4294901760
  %6200 = vmatpush1.msra.mxu0 %v6199
  %6201 = vmatprep.subr.mxu0 0.0
  %v6202 = vand.u32 %v5886, 4294901760
  %v6203 = vsub.f32 %v5886, %v6202
  %v6204 = vand.u32 %v6203, 4294901760
  %v6205 = vsub.f32 %v6203, %v6204
  %v6206 = vand.u32 %v6205, 4294901760
  %6207 = vmatpush1.msra.mxu0 %v6206
  %6208 = vmatprep.subr.mxu0 0.0
  %6209 = vmatpush2.msra.mxu0 0.0
  %6210 = vmatprep.subr.mxu0 0.0
  %6211 = vmatpush2.msra.mxu0 0.0
  %6212 = vmatprep.subr.mxu0 0.0
  %6213 = vmatpush2.msra.mxu0 0.0
  %6214 = vmatprep.subr.mxu0 0.0
  %6215 = vmatpush2.msra.mxu0 0.0
  %6216 = vmatprep.subr.mxu0 0.0
  %6217 = vmatpush2.msra.mxu0 0.0
  %6218 = vmatprep.subr.mxu0 0.0
  %6219 = vmatpush2.msra.mxu0 0.0
  %6220 = vmatprep.subr.mxu0 0.0
  %6221 = vmatpush2.msra.mxu0 0.0
  %6222 = vmatprep.subr.mxu0 0.0
  %6223 = vmatpush2.msra.mxu0 0.0
  %6224 = vmatprep.subr.mxu0 0.0
  %6225 = vmatpush2.msra.mxu0 0.0
  %6226 = vmatprep.subr.mxu0 0.0
  %6227 = vmatpush2.msra.mxu0 0.0
  %6228 = vmatprep.subr.mxu0 0.0
  %6229 = vmatpush2.msra.mxu0 0.0
  %6230 = vmatprep.subr.mxu0 0.0
  %6231 = vmatpush2.msra.mxu0 0.0
  %6232 = vmatprep.subr.mxu0 0.0
  %6233 = vmatpush2.msra.mxu0 0.0
  %6234 = vmatprep.subr.mxu0 0.0
  %6235 = vmatpush2.msra.mxu0 0.0
  %6236 = vmatprep.subr.mxu0 0.0
  %6237 = vmatpush2.msra.mxu0 0.0
  %6238 = vmatprep.subr.mxu0 0.0
  %6239 = vmatpush2.msra.mxu0 0.0
  %6240 = vmatprep.mubr.f32.mxu0 0.0
  %v6241 = vand.u32 %v5892, 4294901760
  %6242 = vmatmul.mubr.f32.gmra.mxu0 %v6241
  %v6243 = vpop.f32.mrf.mxu0
  %v6244 = vadd.f32 %v6013, %v6243
  %v6245 = vpop.f32.mrf.mxu0
  %6246 = vmatprep.mubr.f32.mxu0 0.0
  %v6247 = vand.u32 %v5895, 4294901760
  %6248 = vmatmul.mubr.f32.gmra.mxu0 %v6247
  %v6249 = vpop.f32.mrf.mxu0
  %v6250 = vadd.f32 %v6023, %v6249
  %v6251 = vpop.f32.mrf.mxu0
  %6252 = vmatprep.mubr.f32.mxu0 0.0
  %v6253 = vand.u32 %v5898, 4294901760
  %6254 = vmatmul.mubr.f32.gmra.mxu0 %v6253
  %v6255 = vpop.f32.mrf.mxu0
  %v6256 = vadd.f32 %v6033, %v6255
  %v6257 = vpop.f32.mrf.mxu0
  %6258 = vmatprep.mubr.f32.mxu0 0.0
  %v6259 = vand.u32 %v5901, 4294901760
  %6260 = vmatmul.mubr.f32.gmra.mxu0 %v6259
  %v6261 = vpop.f32.mrf.mxu0
  %v6262 = vadd.f32 %v6043, %v6261
  %v6263 = vpop.f32.mrf.mxu0
  %6264 = vmatprep.mubr.f32.mxu0 0.0
  %v6265 = vand.u32 %v5904, 4294901760
  %6266 = vmatmul.mubr.f32.gmra.mxu0 %v6265
  %v6267 = vpop.f32.mrf.mxu0
  %v6268 = vadd.f32 %v6053, %v6267
  %v6269 = vpop.f32.mrf.mxu0
  %6270 = vmatprep.mubr.f32.mxu0 0.0
  %v6271 = vand.u32 %v5907, 4294901760
  %6272 = vmatmul.mubr.f32.gmra.mxu0 %v6271
  %v6273 = vpop.f32.mrf.mxu0
  %v6274 = vadd.f32 %v6063, %v6273
  %v6275 = vpop.f32.mrf.mxu0
  %6276 = vmatprep.mubr.f32.mxu0 0.0
  %v6277 = vand.u32 %v5910, 4294901760
  %6278 = vmatmul.mubr.f32.gmra.mxu0 %v6277
  %v6279 = vpop.f32.mrf.mxu0
  %v6280 = vadd.f32 %v6073, %v6279
  %v6281 = vpop.f32.mrf.mxu0
  %6282 = vmatprep.mubr.f32.mxu0 0.0
  %v6283 = vand.u32 %v5913, 4294901760
  %6284 = vmatmul.mubr.f32.gmra.mxu0 %v6283
  %v6285 = vpop.f32.mrf.mxu0
  %v6286 = vadd.f32 %v6083, %v6285
  %v6287 = vpop.f32.mrf.mxu0
  %6288 = vmatprep.mubr.f32.mxu0 0.0
  %v6289 = vand.u32 %v5916, 4294901760
  %6290 = vmatmul.mubr.f32.gmra.mxu0 %v6289
  %v6291 = vpop.f32.mrf.mxu0
  %v6292 = vadd.f32 %v6093, %v6291
  %v6293 = vpop.f32.mrf.mxu0
  %6294 = vmatprep.mubr.f32.mxu0 0.0
  %v6295 = vand.u32 %v5919, 4294901760
  %6296 = vmatmul.mubr.f32.gmra.mxu0 %v6295
  %v6297 = vpop.f32.mrf.mxu0
  %v6298 = vadd.f32 %v6103, %v6297
  %v6299 = vpop.f32.mrf.mxu0
  %6300 = vmatprep.mubr.f32.mxu0 0.0
  %v6301 = vand.u32 %v5922, 4294901760
  %6302 = vmatmul.mubr.f32.gmra.mxu0 %v6301
  %v6303 = vpop.f32.mrf.mxu0
  %v6304 = vadd.f32 %v6113, %v6303
  %v6305 = vpop.f32.mrf.mxu0
  %6306 = vmatprep.mubr.f32.mxu0 0.0
  %v6307 = vand.u32 %v5925, 4294901760
  %6308 = vmatmul.mubr.f32.gmra.mxu0 %v6307
  %v6309 = vpop.f32.mrf.mxu0
  %v6310 = vadd.f32 %v6123, %v6309
  %v6311 = vpop.f32.mrf.mxu0
  %6312 = vmatprep.mubr.f32.mxu0 0.0
  %v6313 = vand.u32 %v5928, 4294901760
  %6314 = vmatmul.mubr.f32.gmra.mxu0 %v6313
  %v6315 = vpop.f32.mrf.mxu0
  %v6316 = vadd.f32 %v6133, %v6315
  %v6317 = vpop.f32.mrf.mxu0
  %6318 = vmatprep.mubr.f32.mxu0 0.0
  %v6319 = vand.u32 %v5931, 4294901760
  %6320 = vmatmul.mubr.f32.gmra.mxu0 %v6319
  %v6321 = vpop.f32.mrf.mxu0
  %v6322 = vadd.f32 %v6143, %v6321
  %v6323 = vpop.f32.mrf.mxu0
  %6324 = vmatprep.mubr.f32.mxu0 0.0
  %v6325 = vand.u32 %v5934, 4294901760
  %6326 = vmatmul.mubr.f32.gmra.mxu0 %v6325
  %v6327 = vpop.f32.mrf.mxu0
  %v6328 = vadd.f32 %v6153, %v6327
  %v6329 = vpop.f32.mrf.mxu0
  %6330 = vmatprep.mubr.f32.mxu0 0.0
  %v6331 = vand.u32 %v5937, 4294901760
  %6332 = vmatmul.mubr.f32.gmra.mxu0 %v6331
  %v6333 = vpop.f32.mrf.mxu0
  %v6334 = vadd.f32 %v6163, %v6333
  %v6335 = vpop.f32.mrf.mxu0
  %6336 = vdwg.mxu0
  %6337 = vmatprep.subr.mxu0 0.0
  %6338 = vmatpush1.msra.mxu0 0.0
  %6339 = vmatprep.subr.mxu0 0.0
  %6340 = vmatpush1.msra.mxu0 0.0
  %6341 = vmatprep.subr.mxu0 0.0
  %6342 = vmatpush1.msra.mxu0 0.0
  %6343 = vmatprep.subr.mxu0 0.0
  %6344 = vmatpush1.msra.mxu0 0.0
  %6345 = vmatprep.subr.mxu0 0.0
  %6346 = vmatpush1.msra.mxu0 0.0
  %6347 = vmatprep.subr.mxu0 0.0
  %6348 = vmatpush1.msra.mxu0 0.0
  %6349 = vmatprep.subr.mxu0 0.0
  %6350 = vmatpush1.msra.mxu0 0.0
  %6351 = vmatprep.subr.mxu0 0.0
  %6352 = vmatpush1.msra.mxu0 0.0
  %6353 = vmatprep.subr.mxu0 0.0
  %6354 = vmatpush1.msra.mxu0 0.0
  %6355 = vmatprep.subr.mxu0 0.0
  %6356 = vmatpush1.msra.mxu0 0.0
  %6357 = vmatprep.subr.mxu0 0.0
  %6358 = vmatpush1.msra.mxu0 0.0
  %6359 = vmatprep.subr.mxu0 0.0
  %6360 = vmatpush1.msra.mxu0 0.0
  %6361 = vmatprep.subr.mxu0 0.0
  %6362 = vmatpush1.msra.mxu0 0.0
  %6363 = vmatprep.subr.mxu0 0.0
  %6364 = vmatpush1.msra.mxu0 0.0
  %6365 = vmatprep.subr.mxu0 0.0
  %v6366 = vand.u32 %v5887, 4294901760
  %v6367 = vsub.f32 %v5887, %v6366
  %6368 = vmatpush1.msra.mxu0 %v6367
  %6369 = vmatprep.subr.mxu0 0.0
  %v6370 = vand.u32 %v5886, 4294901760
  %v6371 = vsub.f32 %v5886, %v6370
  %6372 = vmatpush1.msra.mxu0 %v6371
  %6373 = vmatprep.subr.mxu0 0.0
  %6374 = vmatpush2.msra.mxu0 0.0
  %6375 = vmatprep.subr.mxu0 0.0
  %6376 = vmatpush2.msra.mxu0 0.0
  %6377 = vmatprep.subr.mxu0 0.0
  %6378 = vmatpush2.msra.mxu0 0.0
  %6379 = vmatprep.subr.mxu0 0.0
  %6380 = vmatpush2.msra.mxu0 0.0
  %6381 = vmatprep.subr.mxu0 0.0
  %6382 = vmatpush2.msra.mxu0 0.0
  %6383 = vmatprep.subr.mxu0 0.0
  %6384 = vmatpush2.msra.mxu0 0.0
  %6385 = vmatprep.subr.mxu0 0.0
  %6386 = vmatpush2.msra.mxu0 0.0
  %6387 = vmatprep.subr.mxu0 0.0
  %6388 = vmatpush2.msra.mxu0 0.0
  %6389 = vmatprep.subr.mxu0 0.0
  %6390 = vmatpush2.msra.mxu0 0.0
  %6391 = vmatprep.subr.mxu0 0.0
  %6392 = vmatpush2.msra.mxu0 0.0
  %6393 = vmatprep.subr.mxu0 0.0
  %6394 = vmatpush2.msra.mxu0 0.0
  %6395 = vmatprep.subr.mxu0 0.0
  %6396 = vmatpush2.msra.mxu0 0.0
  %6397 = vmatprep.subr.mxu0 0.0
  %6398 = vmatpush2.msra.mxu0 0.0
  %6399 = vmatprep.subr.mxu0 0.0
  %6400 = vmatpush2.msra.mxu0 0.0
  %6401 = vmatprep.subr.mxu0 0.0
  %6402 = vmatpush2.msra.mxu0 0.0
  %6403 = vmatprep.subr.mxu0 0.0
  %6404 = vmatpush2.msra.mxu0 0.0
  %6405 = vmatprep.mubr.f32.mxu0 0.0
  %v6406 = vand.u32 %v5892, 4294901760
  %v6407 = vsub.f32 %v5892, %v6406
  %6408 = vmatmul.mubr.f32.gmra.mxu0 %v6407
  %v6409 = vpop.f32.mrf.mxu0
  %v6410 = vadd.f32 %v6244, %v6409
  %v6411 = vpop.f32.mrf.mxu0
  %6412 = vmatprep.mubr.f32.mxu0 0.0
  %v6413 = vand.u32 %v5895, 4294901760
  %v6414 = vsub.f32 %v5895, %v6413
  %6415 = vmatmul.mubr.f32.gmra.mxu0 %v6414
  %v6416 = vpop.f32.mrf.mxu0
  %v6417 = vadd.f32 %v6250, %v6416
  %v6418 = vpop.f32.mrf.mxu0
  %6419 = vmatprep.mubr.f32.mxu0 0.0
  %v6420 = vand.u32 %v5898, 4294901760
  %v6421 = vsub.f32 %v5898, %v6420
  %6422 = vmatmul.mubr.f32.gmra.mxu0 %v6421
  %v6423 = vpop.f32.mrf.mxu0
  %v6424 = vadd.f32 %v6256, %v6423
  %v6425 = vpop.f32.mrf.mxu0
  %6426 = vmatprep.mubr.f32.mxu0 0.0
  %v6427 = vand.u32 %v5901, 4294901760
  %v6428 = vsub.f32 %v5901, %v6427
  %6429 = vmatmul.mubr.f32.gmra.mxu0 %v6428
  %v6430 = vpop.f32.mrf.mxu0
  %v6431 = vadd.f32 %v6262, %v6430
  %v6432 = vpop.f32.mrf.mxu0
  %6433 = vmatprep.mubr.f32.mxu0 0.0
  %v6434 = vand.u32 %v5904, 4294901760
  %v6435 = vsub.f32 %v5904, %v6434
  %6436 = vmatmul.mubr.f32.gmra.mxu0 %v6435
  %v6437 = vpop.f32.mrf.mxu0
  %v6438 = vadd.f32 %v6268, %v6437
  %v6439 = vpop.f32.mrf.mxu0
  %6440 = vmatprep.mubr.f32.mxu0 0.0
  %v6441 = vand.u32 %v5907, 4294901760
  %v6442 = vsub.f32 %v5907, %v6441
  %6443 = vmatmul.mubr.f32.gmra.mxu0 %v6442
  %v6444 = vpop.f32.mrf.mxu0
  %v6445 = vadd.f32 %v6274, %v6444
  %v6446 = vpop.f32.mrf.mxu0
  %6447 = vmatprep.mubr.f32.mxu0 0.0
  %v6448 = vand.u32 %v5910, 4294901760
  %v6449 = vsub.f32 %v5910, %v6448
  %6450 = vmatmul.mubr.f32.gmra.mxu0 %v6449
  %v6451 = vpop.f32.mrf.mxu0
  %v6452 = vadd.f32 %v6280, %v6451
  %v6453 = vpop.f32.mrf.mxu0
  %6454 = vmatprep.mubr.f32.mxu0 0.0
  %v6455 = vand.u32 %v5913, 4294901760
  %v6456 = vsub.f32 %v5913, %v6455
  %6457 = vmatmul.mubr.f32.gmra.mxu0 %v6456
  %v6458 = vpop.f32.mrf.mxu0
  %v6459 = vadd.f32 %v6286, %v6458
  %v6460 = vpop.f32.mrf.mxu0
  %6461 = vmatprep.mubr.f32.mxu0 0.0
  %v6462 = vand.u32 %v5916, 4294901760
  %v6463 = vsub.f32 %v5916, %v6462
  %6464 = vmatmul.mubr.f32.gmra.mxu0 %v6463
  %v6465 = vpop.f32.mrf.mxu0
  %v6466 = vadd.f32 %v6292, %v6465
  %v6467 = vpop.f32.mrf.mxu0
  %6468 = vmatprep.mubr.f32.mxu0 0.0
  %v6469 = vand.u32 %v5919, 4294901760
  %v6470 = vsub.f32 %v5919, %v6469
  %6471 = vmatmul.mubr.f32.gmra.mxu0 %v6470
  %v6472 = vpop.f32.mrf.mxu0
  %v6473 = vadd.f32 %v6298, %v6472
  %v6474 = vpop.f32.mrf.mxu0
  %6475 = vmatprep.mubr.f32.mxu0 0.0
  %v6476 = vand.u32 %v5922, 4294901760
  %v6477 = vsub.f32 %v5922, %v6476
  %6478 = vmatmul.mubr.f32.gmra.mxu0 %v6477
  %v6479 = vpop.f32.mrf.mxu0
  %v6480 = vadd.f32 %v6304, %v6479
  %v6481 = vpop.f32.mrf.mxu0
  %6482 = vmatprep.mubr.f32.mxu0 0.0
  %v6483 = vand.u32 %v5925, 4294901760
  %v6484 = vsub.f32 %v5925, %v6483
  %6485 = vmatmul.mubr.f32.gmra.mxu0 %v6484
  %v6486 = vpop.f32.mrf.mxu0
  %v6487 = vadd.f32 %v6310, %v6486
  %v6488 = vpop.f32.mrf.mxu0
  %6489 = vmatprep.mubr.f32.mxu0 0.0
  %v6490 = vand.u32 %v5928, 4294901760
  %v6491 = vsub.f32 %v5928, %v6490
  %6492 = vmatmul.mubr.f32.gmra.mxu0 %v6491
  %v6493 = vpop.f32.mrf.mxu0
  %v6494 = vadd.f32 %v6316, %v6493
  %v6495 = vpop.f32.mrf.mxu0
  %6496 = vmatprep.mubr.f32.mxu0 0.0
  %v6497 = vand.u32 %v5931, 4294901760
  %v6498 = vsub.f32 %v5931, %v6497
  %6499 = vmatmul.mubr.f32.gmra.mxu0 %v6498
  %v6500 = vpop.f32.mrf.mxu0
  %v6501 = vadd.f32 %v6322, %v6500
  %v6502 = vpop.f32.mrf.mxu0
  %6503 = vmatprep.mubr.f32.mxu0 0.0
  %v6504 = vand.u32 %v5934, 4294901760
  %v6505 = vsub.f32 %v5934, %v6504
  %6506 = vmatmul.mubr.f32.gmra.mxu0 %v6505
  %v6507 = vpop.f32.mrf.mxu0
  %v6508 = vadd.f32 %v6328, %v6507
  %v6509 = vpop.f32.mrf.mxu0
  %6510 = vmatprep.mubr.f32.mxu0 0.0
  %v6511 = vand.u32 %v5937, 4294901760
  %v6512 = vsub.f32 %v5937, %v6511
  %6513 = vmatmul.mubr.f32.gmra.mxu0 %v6512
  %v6514 = vpop.f32.mrf.mxu0
  %v6515 = vadd.f32 %v6334, %v6514
  %v6516 = vpop.f32.mrf.mxu0
  %6517 = vdwg.mxu0
  %6518 = vmatprep.subr.mxu0 0.0
  %6519 = vmatpush1.msra.mxu0 0.0
  %6520 = vmatprep.subr.mxu0 0.0
  %6521 = vmatpush1.msra.mxu0 0.0
  %6522 = vmatprep.subr.mxu0 0.0
  %6523 = vmatpush1.msra.mxu0 0.0
  %6524 = vmatprep.subr.mxu0 0.0
  %6525 = vmatpush1.msra.mxu0 0.0
  %6526 = vmatprep.subr.mxu0 0.0
  %6527 = vmatpush1.msra.mxu0 0.0
  %6528 = vmatprep.subr.mxu0 0.0
  %6529 = vmatpush1.msra.mxu0 0.0
  %6530 = vmatprep.subr.mxu0 0.0
  %6531 = vmatpush1.msra.mxu0 0.0
  %6532 = vmatprep.subr.mxu0 0.0
  %6533 = vmatpush1.msra.mxu0 0.0
  %6534 = vmatprep.subr.mxu0 0.0
  %6535 = vmatpush1.msra.mxu0 0.0
  %6536 = vmatprep.subr.mxu0 0.0
  %6537 = vmatpush1.msra.mxu0 0.0
  %6538 = vmatprep.subr.mxu0 0.0
  %6539 = vmatpush1.msra.mxu0 0.0
  %6540 = vmatprep.subr.mxu0 0.0
  %6541 = vmatpush1.msra.mxu0 0.0
  %6542 = vmatprep.subr.mxu0 0.0
  %6543 = vmatpush1.msra.mxu0 0.0
  %6544 = vmatprep.subr.mxu0 0.0
  %6545 = vmatpush1.msra.mxu0 0.0
  %6546 = vmatprep.subr.mxu0 0.0
  %v6547 = vand.u32 %v5887, 4294901760
  %6548 = vmatpush1.msra.mxu0 %v6547
  %6549 = vmatprep.subr.mxu0 0.0
  %v6550 = vand.u32 %v5886, 4294901760
  %6551 = vmatpush1.msra.mxu0 %v6550
  %6552 = vmatprep.subr.mxu0 0.0
  %6553 = vmatpush2.msra.mxu0 0.0
  %6554 = vmatprep.subr.mxu0 0.0
  %6555 = vmatpush2.msra.mxu0 0.0
  %6556 = vmatprep.subr.mxu0 0.0
  %6557 = vmatpush2.msra.mxu0 0.0
  %6558 = vmatprep.subr.mxu0 0.0
  %6559 = vmatpush2.msra.mxu0 0.0
  %6560 = vmatprep.subr.mxu0 0.0
  %6561 = vmatpush2.msra.mxu0 0.0
  %6562 = vmatprep.subr.mxu0 0.0
  %6563 = vmatpush2.msra.mxu0 0.0
  %6564 = vmatprep.subr.mxu0 0.0
  %6565 = vmatpush2.msra.mxu0 0.0
  %6566 = vmatprep.subr.mxu0 0.0
  %6567 = vmatpush2.msra.mxu0 0.0
  %6568 = vmatprep.subr.mxu0 0.0
  %6569 = vmatpush2.msra.mxu0 0.0
  %6570 = vmatprep.subr.mxu0 0.0
  %6571 = vmatpush2.msra.mxu0 0.0
  %6572 = vmatprep.subr.mxu0 0.0
  %6573 = vmatpush2.msra.mxu0 0.0
  %6574 = vmatprep.subr.mxu0 0.0
  %6575 = vmatpush2.msra.mxu0 0.0
  %6576 = vmatprep.subr.mxu0 0.0
  %6577 = vmatpush2.msra.mxu0 0.0
  %6578 = vmatprep.subr.mxu0 0.0
  %6579 = vmatpush2.msra.mxu0 0.0
  %6580 = vmatprep.subr.mxu0 0.0
  %6581 = vmatpush2.msra.mxu0 0.0
  %6582 = vmatprep.subr.mxu0 0.0
  %6583 = vmatpush2.msra.mxu0 0.0
  %6584 = vmatprep.mubr.f32.mxu0 0.0
  %v6585 = vand.u32 %v5892, 4294901760
  %v6586 = vsub.f32 %v5892, %v6585
  %v6587 = vand.u32 %v6586, 4294901760
  %6588 = vmatmul.mubr.f32.gmra.mxu0 %v6587
  %v6589 = vpop.f32.mrf.mxu0
  %v6590 = vadd.f32 %v6410, %v6589
  %v6591 = vpop.f32.mrf.mxu0
  %6592 = vmatprep.mubr.f32.mxu0 0.0
  %v6593 = vand.u32 %v5895, 4294901760
  %v6594 = vsub.f32 %v5895, %v6593
  %v6595 = vand.u32 %v6594, 4294901760
  %6596 = vmatmul.mubr.f32.gmra.mxu0 %v6595
  %v6597 = vpop.f32.mrf.mxu0
  %v6598 = vadd.f32 %v6417, %v6597
  %v6599 = vpop.f32.mrf.mxu0
  %6600 = vmatprep.mubr.f32.mxu0 0.0
  %v6601 = vand.u32 %v5898, 4294901760
  %v6602 = vsub.f32 %v5898, %v6601
  %v6603 = vand.u32 %v6602, 4294901760
  %6604 = vmatmul.mubr.f32.gmra.mxu0 %v6603
  %v6605 = vpop.f32.mrf.mxu0
  %v6606 = vadd.f32 %v6424, %v6605
  %v6607 = vpop.f32.mrf.mxu0
  %6608 = vmatprep.mubr.f32.mxu0 0.0
  %v6609 = vand.u32 %v5901, 4294901760
  %v6610 = vsub.f32 %v5901, %v6609
  %v6611 = vand.u32 %v6610, 4294901760
  %6612 = vmatmul.mubr.f32.gmra.mxu0 %v6611
  %v6613 = vpop.f32.mrf.mxu0
  %v6614 = vadd.f32 %v6431, %v6613
  %v6615 = vpop.f32.mrf.mxu0
  %6616 = vmatprep.mubr.f32.mxu0 0.0
  %v6617 = vand.u32 %v5904, 4294901760
  %v6618 = vsub.f32 %v5904, %v6617
  %v6619 = vand.u32 %v6618, 4294901760
  %6620 = vmatmul.mubr.f32.gmra.mxu0 %v6619
  %v6621 = vpop.f32.mrf.mxu0
  %v6622 = vadd.f32 %v6438, %v6621
  %v6623 = vpop.f32.mrf.mxu0
  %6624 = vmatprep.mubr.f32.mxu0 0.0
  %v6625 = vand.u32 %v5907, 4294901760
  %v6626 = vsub.f32 %v5907, %v6625
  %v6627 = vand.u32 %v6626, 4294901760
  %6628 = vmatmul.mubr.f32.gmra.mxu0 %v6627
  %v6629 = vpop.f32.mrf.mxu0
  %v6630 = vadd.f32 %v6445, %v6629
  %v6631 = vpop.f32.mrf.mxu0
  %6632 = vmatprep.mubr.f32.mxu0 0.0
  %v6633 = vand.u32 %v5910, 4294901760
  %v6634 = vsub.f32 %v5910, %v6633
  %v6635 = vand.u32 %v6634, 4294901760
  %6636 = vmatmul.mubr.f32.gmra.mxu0 %v6635
  %v6637 = vpop.f32.mrf.mxu0
  %v6638 = vadd.f32 %v6452, %v6637
  %v6639 = vpop.f32.mrf.mxu0
  %6640 = vmatprep.mubr.f32.mxu0 0.0
  %v6641 = vand.u32 %v5913, 4294901760
  %v6642 = vsub.f32 %v5913, %v6641
  %v6643 = vand.u32 %v6642, 4294901760
  %6644 = vmatmul.mubr.f32.gmra.mxu0 %v6643
  %v6645 = vpop.f32.mrf.mxu0
  %v6646 = vadd.f32 %v6459, %v6645
  %v6647 = vpop.f32.mrf.mxu0
  %6648 = vmatprep.mubr.f32.mxu0 0.0
  %v6649 = vand.u32 %v5916, 4294901760
  %v6650 = vsub.f32 %v5916, %v6649
  %v6651 = vand.u32 %v6650, 4294901760
  %6652 = vmatmul.mubr.f32.gmra.mxu0 %v6651
  %v6653 = vpop.f32.mrf.mxu0
  %v6654 = vadd.f32 %v6466, %v6653
  %v6655 = vpop.f32.mrf.mxu0
  %6656 = vmatprep.mubr.f32.mxu0 0.0
  %v6657 = vand.u32 %v5919, 4294901760
  %v6658 = vsub.f32 %v5919, %v6657
  %v6659 = vand.u32 %v6658, 4294901760
  %6660 = vmatmul.mubr.f32.gmra.mxu0 %v6659
  %v6661 = vpop.f32.mrf.mxu0
  %v6662 = vadd.f32 %v6473, %v6661
  %v6663 = vpop.f32.mrf.mxu0
  %6664 = vmatprep.mubr.f32.mxu0 0.0
  %v6665 = vand.u32 %v5922, 4294901760
  %v6666 = vsub.f32 %v5922, %v6665
  %v6667 = vand.u32 %v6666, 4294901760
  %6668 = vmatmul.mubr.f32.gmra.mxu0 %v6667
  %v6669 = vpop.f32.mrf.mxu0
  %v6670 = vadd.f32 %v6480, %v6669
  %v6671 = vpop.f32.mrf.mxu0
  %6672 = vmatprep.mubr.f32.mxu0 0.0
  %v6673 = vand.u32 %v5925, 4294901760
  %v6674 = vsub.f32 %v5925, %v6673
  %v6675 = vand.u32 %v6674, 4294901760
  %6676 = vmatmul.mubr.f32.gmra.mxu0 %v6675
  %v6677 = vpop.f32.mrf.mxu0
  %v6678 = vadd.f32 %v6487, %v6677
  %v6679 = vpop.f32.mrf.mxu0
  %6680 = vmatprep.mubr.f32.mxu0 0.0
  %v6681 = vand.u32 %v5928, 4294901760
  %v6682 = vsub.f32 %v5928, %v6681
  %v6683 = vand.u32 %v6682, 4294901760
  %6684 = vmatmul.mubr.f32.gmra.mxu0 %v6683
  %v6685 = vpop.f32.mrf.mxu0
  %v6686 = vadd.f32 %v6494, %v6685
  %v6687 = vpop.f32.mrf.mxu0
  %6688 = vmatprep.mubr.f32.mxu0 0.0
  %v6689 = vand.u32 %v5931, 4294901760
  %v6690 = vsub.f32 %v5931, %v6689
  %v6691 = vand.u32 %v6690, 4294901760
  %6692 = vmatmul.mubr.f32.gmra.mxu0 %v6691
  %v6693 = vpop.f32.mrf.mxu0
  %v6694 = vadd.f32 %v6501, %v6693
  %v6695 = vpop.f32.mrf.mxu0
  %6696 = vmatprep.mubr.f32.mxu0 0.0
  %v6697 = vand.u32 %v5934, 4294901760
  %v6698 = vsub.f32 %v5934, %v6697
  %v6699 = vand.u32 %v6698, 4294901760
  %6700 = vmatmul.mubr.f32.gmra.mxu0 %v6699
  %v6701 = vpop.f32.mrf.mxu0
  %v6702 = vadd.f32 %v6508, %v6701
  %v6703 = vpop.f32.mrf.mxu0
  %6704 = vmatprep.mubr.f32.mxu0 0.0
  %v6705 = vand.u32 %v5937, 4294901760
  %v6706 = vsub.f32 %v5937, %v6705
  %v6707 = vand.u32 %v6706, 4294901760
  %6708 = vmatmul.mubr.f32.gmra.mxu0 %v6707
  %v6709 = vpop.f32.mrf.mxu0
  %v6710 = vadd.f32 %v6515, %v6709
  %v6711 = vpop.f32.mrf.mxu0
  %6712 = vdwg.mxu0
  %6713 = vmatprep.subr.mxu0 0.0
  %6714 = vmatpush1.msra.mxu0 0.0
  %6715 = vmatprep.subr.mxu0 0.0
  %6716 = vmatpush1.msra.mxu0 0.0
  %6717 = vmatprep.subr.mxu0 0.0
  %6718 = vmatpush1.msra.mxu0 0.0
  %6719 = vmatprep.subr.mxu0 0.0
  %6720 = vmatpush1.msra.mxu0 0.0
  %6721 = vmatprep.subr.mxu0 0.0
  %6722 = vmatpush1.msra.mxu0 0.0
  %6723 = vmatprep.subr.mxu0 0.0
  %6724 = vmatpush1.msra.mxu0 0.0
  %6725 = vmatprep.subr.mxu0 0.0
  %6726 = vmatpush1.msra.mxu0 0.0
  %6727 = vmatprep.subr.mxu0 0.0
  %6728 = vmatpush1.msra.mxu0 0.0
  %6729 = vmatprep.subr.mxu0 0.0
  %6730 = vmatpush1.msra.mxu0 0.0
  %6731 = vmatprep.subr.mxu0 0.0
  %6732 = vmatpush1.msra.mxu0 0.0
  %6733 = vmatprep.subr.mxu0 0.0
  %6734 = vmatpush1.msra.mxu0 0.0
  %6735 = vmatprep.subr.mxu0 0.0
  %6736 = vmatpush1.msra.mxu0 0.0
  %6737 = vmatprep.subr.mxu0 0.0
  %6738 = vmatpush1.msra.mxu0 0.0
  %6739 = vmatprep.subr.mxu0 0.0
  %6740 = vmatpush1.msra.mxu0 0.0
  %6741 = vmatprep.subr.mxu0 0.0
  %v6742 = vand.u32 %v5887, 4294901760
  %v6743 = vsub.f32 %v5887, %v6742
  %v6744 = vand.u32 %v6743, 4294901760
  %6745 = vmatpush1.msra.mxu0 %v6744
  %6746 = vmatprep.subr.mxu0 0.0
  %v6747 = vand.u32 %v5886, 4294901760
  %v6748 = vsub.f32 %v5886, %v6747
  %v6749 = vand.u32 %v6748, 4294901760
  %6750 = vmatpush1.msra.mxu0 %v6749
  %6751 = vmatprep.subr.mxu0 0.0
  %6752 = vmatpush2.msra.mxu0 0.0
  %6753 = vmatprep.subr.mxu0 0.0
  %6754 = vmatpush2.msra.mxu0 0.0
  %6755 = vmatprep.subr.mxu0 0.0
  %6756 = vmatpush2.msra.mxu0 0.0
  %6757 = vmatprep.subr.mxu0 0.0
  %6758 = vmatpush2.msra.mxu0 0.0
  %6759 = vmatprep.subr.mxu0 0.0
  %6760 = vmatpush2.msra.mxu0 0.0
  %6761 = vmatprep.subr.mxu0 0.0
  %6762 = vmatpush2.msra.mxu0 0.0
  %6763 = vmatprep.subr.mxu0 0.0
  %6764 = vmatpush2.msra.mxu0 0.0
  %6765 = vmatprep.subr.mxu0 0.0
  %6766 = vmatpush2.msra.mxu0 0.0
  %6767 = vmatprep.subr.mxu0 0.0
  %6768 = vmatpush2.msra.mxu0 0.0
  %6769 = vmatprep.subr.mxu0 0.0
  %6770 = vmatpush2.msra.mxu0 0.0
  %6771 = vmatprep.subr.mxu0 0.0
  %6772 = vmatpush2.msra.mxu0 0.0
  %6773 = vmatprep.subr.mxu0 0.0
  %6774 = vmatpush2.msra.mxu0 0.0
  %6775 = vmatprep.subr.mxu0 0.0
  %6776 = vmatpush2.msra.mxu0 0.0
  %6777 = vmatprep.subr.mxu0 0.0
  %6778 = vmatpush2.msra.mxu0 0.0
  %6779 = vmatprep.subr.mxu0 0.0
  %6780 = vmatpush2.msra.mxu0 0.0
  %6781 = vmatprep.subr.mxu0 0.0
  %6782 = vmatpush2.msra.mxu0 0.0
  %6783 = vmatprep.mubr.f32.mxu0 0.0
  %v6784 = vand.u32 %v5892, 4294901760
  %6785 = vmatmul.mubr.f32.gmra.mxu0 %v6784
  %v6786 = vpop.f32.mrf.mxu0
  %v6787 = vadd.f32 %v6590, %v6786
  %v6788 = vpop.f32.mrf.mxu0
  %6789 = vmatprep.mubr.f32.mxu0 0.0
  %v6790 = vand.u32 %v5895, 4294901760
  %6791 = vmatmul.mubr.f32.gmra.mxu0 %v6790
  %v6792 = vpop.f32.mrf.mxu0
  %v6793 = vadd.f32 %v6598, %v6792
  %v6794 = vpop.f32.mrf.mxu0
  %6795 = vmatprep.mubr.f32.mxu0 0.0
  %v6796 = vand.u32 %v5898, 4294901760
  %6797 = vmatmul.mubr.f32.gmra.mxu0 %v6796
  %v6798 = vpop.f32.mrf.mxu0
  %v6799 = vadd.f32 %v6606, %v6798
  %v6800 = vpop.f32.mrf.mxu0
  %6801 = vmatprep.mubr.f32.mxu0 0.0
  %v6802 = vand.u32 %v5901, 4294901760
  %6803 = vmatmul.mubr.f32.gmra.mxu0 %v6802
  %v6804 = vpop.f32.mrf.mxu0
  %v6805 = vadd.f32 %v6614, %v6804
  %v6806 = vpop.f32.mrf.mxu0
  %6807 = vmatprep.mubr.f32.mxu0 0.0
  %v6808 = vand.u32 %v5904, 4294901760
  %6809 = vmatmul.mubr.f32.gmra.mxu0 %v6808
  %v6810 = vpop.f32.mrf.mxu0
  %v6811 = vadd.f32 %v6622, %v6810
  %v6812 = vpop.f32.mrf.mxu0
  %6813 = vmatprep.mubr.f32.mxu0 0.0
  %v6814 = vand.u32 %v5907, 4294901760
  %6815 = vmatmul.mubr.f32.gmra.mxu0 %v6814
  %v6816 = vpop.f32.mrf.mxu0
  %v6817 = vadd.f32 %v6630, %v6816
  %v6818 = vpop.f32.mrf.mxu0
  %6819 = vmatprep.mubr.f32.mxu0 0.0
  %v6820 = vand.u32 %v5910, 4294901760
  %6821 = vmatmul.mubr.f32.gmra.mxu0 %v6820
  %v6822 = vpop.f32.mrf.mxu0
  %v6823 = vadd.f32 %v6638, %v6822
  %v6824 = vpop.f32.mrf.mxu0
  %6825 = vmatprep.mubr.f32.mxu0 0.0
  %v6826 = vand.u32 %v5913, 4294901760
  %6827 = vmatmul.mubr.f32.gmra.mxu0 %v6826
  %v6828 = vpop.f32.mrf.mxu0
  %v6829 = vadd.f32 %v6646, %v6828
  %v6830 = vpop.f32.mrf.mxu0
  %6831 = vmatprep.mubr.f32.mxu0 0.0
  %v6832 = vand.u32 %v5916, 4294901760
  %6833 = vmatmul.mubr.f32.gmra.mxu0 %v6832
  %v6834 = vpop.f32.mrf.mxu0
  %v6835 = vadd.f32 %v6654, %v6834
  %v6836 = vpop.f32.mrf.mxu0
  %6837 = vmatprep.mubr.f32.mxu0 0.0
  %v6838 = vand.u32 %v5919, 4294901760
  %6839 = vmatmul.mubr.f32.gmra.mxu0 %v6838
  %v6840 = vpop.f32.mrf.mxu0
  %v6841 = vadd.f32 %v6662, %v6840
  %v6842 = vpop.f32.mrf.mxu0
  %6843 = vmatprep.mubr.f32.mxu0 0.0
  %v6844 = vand.u32 %v5922, 4294901760
  %6845 = vmatmul.mubr.f32.gmra.mxu0 %v6844
  %v6846 = vpop.f32.mrf.mxu0
  %v6847 = vadd.f32 %v6670, %v6846
  %v6848 = vpop.f32.mrf.mxu0
  %6849 = vmatprep.mubr.f32.mxu0 0.0
  %v6850 = vand.u32 %v5925, 4294901760
  %6851 = vmatmul.mubr.f32.gmra.mxu0 %v6850
  %v6852 = vpop.f32.mrf.mxu0
  %v6853 = vadd.f32 %v6678, %v6852
  %v6854 = vpop.f32.mrf.mxu0
  %6855 = vmatprep.mubr.f32.mxu0 0.0
  %v6856 = vand.u32 %v5928, 4294901760
  %6857 = vmatmul.mubr.f32.gmra.mxu0 %v6856
  %v6858 = vpop.f32.mrf.mxu0
  %v6859 = vadd.f32 %v6686, %v6858
  %v6860 = vpop.f32.mrf.mxu0
  %6861 = vmatprep.mubr.f32.mxu0 0.0
  %v6862 = vand.u32 %v5931, 4294901760
  %6863 = vmatmul.mubr.f32.gmra.mxu0 %v6862
  %v6864 = vpop.f32.mrf.mxu0
  %v6865 = vadd.f32 %v6694, %v6864
  %v6866 = vpop.f32.mrf.mxu0
  %6867 = vmatprep.mubr.f32.mxu0 0.0
  %v6868 = vand.u32 %v5934, 4294901760
  %6869 = vmatmul.mubr.f32.gmra.mxu0 %v6868
  %v6870 = vpop.f32.mrf.mxu0
  %v6871 = vadd.f32 %v6702, %v6870
  %v6872 = vpop.f32.mrf.mxu0
  %6873 = vmatprep.mubr.f32.mxu0 0.0
  %v6874 = vand.u32 %v5937, 4294901760
  %6875 = vmatmul.mubr.f32.gmra.mxu0 %v6874
  %v6876 = vpop.f32.mrf.mxu0
  %v6877 = vadd.f32 %v6710, %v6876
  %v6878 = vpop.f32.mrf.mxu0
  %6879 = vdwg.mxu0
  %6880 = vmatprep.subr.mxu0 0.0
  %6881 = vmatpush1.msra.mxu0 0.0
  %6882 = vmatprep.subr.mxu0 0.0
  %6883 = vmatpush1.msra.mxu0 0.0
  %6884 = vmatprep.subr.mxu0 0.0
  %6885 = vmatpush1.msra.mxu0 0.0
  %6886 = vmatprep.subr.mxu0 0.0
  %6887 = vmatpush1.msra.mxu0 0.0
  %6888 = vmatprep.subr.mxu0 0.0
  %6889 = vmatpush1.msra.mxu0 0.0
  %6890 = vmatprep.subr.mxu0 0.0
  %6891 = vmatpush1.msra.mxu0 0.0
  %6892 = vmatprep.subr.mxu0 0.0
  %6893 = vmatpush1.msra.mxu0 0.0
  %6894 = vmatprep.subr.mxu0 0.0
  %6895 = vmatpush1.msra.mxu0 0.0
  %6896 = vmatprep.subr.mxu0 0.0
  %6897 = vmatpush1.msra.mxu0 0.0
  %6898 = vmatprep.subr.mxu0 0.0
  %6899 = vmatpush1.msra.mxu0 0.0
  %6900 = vmatprep.subr.mxu0 0.0
  %6901 = vmatpush1.msra.mxu0 0.0
  %6902 = vmatprep.subr.mxu0 0.0
  %6903 = vmatpush1.msra.mxu0 0.0
  %6904 = vmatprep.subr.mxu0 0.0
  %6905 = vmatpush1.msra.mxu0 0.0
  %6906 = vmatprep.subr.mxu0 0.0
  %6907 = vmatpush1.msra.mxu0 0.0
  %6908 = vmatprep.subr.mxu0 0.0
  %v6909 = vand.u32 %v5887, 4294901760
  %6910 = vmatpush1.msra.mxu0 %v6909
  %6911 = vmatprep.subr.mxu0 0.0
  %v6912 = vand.u32 %v5886, 4294901760
  %6913 = vmatpush1.msra.mxu0 %v6912
  %6914 = vmatprep.subr.mxu0 0.0
  %6915 = vmatpush2.msra.mxu0 0.0
  %6916 = vmatprep.subr.mxu0 0.0
  %6917 = vmatpush2.msra.mxu0 0.0
  %6918 = vmatprep.subr.mxu0 0.0
  %6919 = vmatpush2.msra.mxu0 0.0
  %6920 = vmatprep.subr.mxu0 0.0
  %6921 = vmatpush2.msra.mxu0 0.0
  %6922 = vmatprep.subr.mxu0 0.0
  %6923 = vmatpush2.msra.mxu0 0.0
  %6924 = vmatprep.subr.mxu0 0.0
  %6925 = vmatpush2.msra.mxu0 0.0
  %6926 = vmatprep.subr.mxu0 0.0
  %6927 = vmatpush2.msra.mxu0 0.0
  %6928 = vmatprep.subr.mxu0 0.0
  %6929 = vmatpush2.msra.mxu0 0.0
  %6930 = vmatprep.subr.mxu0 0.0
  %6931 = vmatpush2.msra.mxu0 0.0
  %6932 = vmatprep.subr.mxu0 0.0
  %6933 = vmatpush2.msra.mxu0 0.0
  %6934 = vmatprep.subr.mxu0 0.0
  %6935 = vmatpush2.msra.mxu0 0.0
  %6936 = vmatprep.subr.mxu0 0.0
  %6937 = vmatpush2.msra.mxu0 0.0
  %6938 = vmatprep.subr.mxu0 0.0
  %6939 = vmatpush2.msra.mxu0 0.0
  %6940 = vmatprep.subr.mxu0 0.0
  %6941 = vmatpush2.msra.mxu0 0.0
  %6942 = vmatprep.subr.mxu0 0.0
  %6943 = vmatpush2.msra.mxu0 0.0
  %6944 = vmatprep.subr.mxu0 0.0
  %6945 = vmatpush2.msra.mxu0 0.0
  %6946 = vmatprep.mubr.f32.mxu0 0.0
  %v6947 = vand.u32 %v5892, 4294901760
  %6948 = vmatmul.mubr.f32.gmra.mxu0 %v6947
  %v6949 = vpop.f32.mrf.mxu0
  %v6950 = vadd.f32 %v6787, %v6949
  %v6951 = vpop.f32.mrf.mxu0
  %6952 = vmatprep.mubr.f32.mxu0 0.0
  %v6953 = vand.u32 %v5895, 4294901760
  %6954 = vmatmul.mubr.f32.gmra.mxu0 %v6953
  %v6955 = vpop.f32.mrf.mxu0
  %v6956 = vadd.f32 %v6793, %v6955
  %v6957 = vpop.f32.mrf.mxu0
  %6958 = vmatprep.mubr.f32.mxu0 0.0
  %v6959 = vand.u32 %v5898, 4294901760
  %6960 = vmatmul.mubr.f32.gmra.mxu0 %v6959
  %v6961 = vpop.f32.mrf.mxu0
  %v6962 = vadd.f32 %v6799, %v6961
  %v6963 = vpop.f32.mrf.mxu0
  %6964 = vmatprep.mubr.f32.mxu0 0.0
  %v6965 = vand.u32 %v5901, 4294901760
  %6966 = vmatmul.mubr.f32.gmra.mxu0 %v6965
  %v6967 = vpop.f32.mrf.mxu0
  %v6968 = vadd.f32 %v6805, %v6967
  %v6969 = vpop.f32.mrf.mxu0
  %6970 = vmatprep.mubr.f32.mxu0 0.0
  %v6971 = vand.u32 %v5904, 4294901760
  %6972 = vmatmul.mubr.f32.gmra.mxu0 %v6971
  %v6973 = vpop.f32.mrf.mxu0
  %v6974 = vadd.f32 %v6811, %v6973
  %v6975 = vpop.f32.mrf.mxu0
  %6976 = vmatprep.mubr.f32.mxu0 0.0
  %v6977 = vand.u32 %v5907, 4294901760
  %6978 = vmatmul.mubr.f32.gmra.mxu0 %v6977
  %v6979 = vpop.f32.mrf.mxu0
  %v6980 = vadd.f32 %v6817, %v6979
  %v6981 = vpop.f32.mrf.mxu0
  %6982 = vmatprep.mubr.f32.mxu0 0.0
  %v6983 = vand.u32 %v5910, 4294901760
  %6984 = vmatmul.mubr.f32.gmra.mxu0 %v6983
  %v6985 = vpop.f32.mrf.mxu0
  %v6986 = vadd.f32 %v6823, %v6985
  %v6987 = vpop.f32.mrf.mxu0
  %6988 = vmatprep.mubr.f32.mxu0 0.0
  %v6989 = vand.u32 %v5913, 4294901760
  %6990 = vmatmul.mubr.f32.gmra.mxu0 %v6989
  %v6991 = vpop.f32.mrf.mxu0
  %v6992 = vadd.f32 %v6829, %v6991
  %v6993 = vpop.f32.mrf.mxu0
  %6994 = vmatprep.mubr.f32.mxu0 0.0
  %v6995 = vand.u32 %v5916, 4294901760
  %6996 = vmatmul.mubr.f32.gmra.mxu0 %v6995
  %v6997 = vpop.f32.mrf.mxu0
  %v6998 = vadd.f32 %v6835, %v6997
  %v6999 = vpop.f32.mrf.mxu0
  %7000 = vmatprep.mubr.f32.mxu0 0.0
  %v7001 = vand.u32 %v5919, 4294901760
  %7002 = vmatmul.mubr.f32.gmra.mxu0 %v7001
  %v7003 = vpop.f32.mrf.mxu0
  %v7004 = vadd.f32 %v6841, %v7003
  %v7005 = vpop.f32.mrf.mxu0
  %7006 = vmatprep.mubr.f32.mxu0 0.0
  %v7007 = vand.u32 %v5922, 4294901760
  %7008 = vmatmul.mubr.f32.gmra.mxu0 %v7007
  %v7009 = vpop.f32.mrf.mxu0
  %v7010 = vadd.f32 %v6847, %v7009
  %v7011 = vpop.f32.mrf.mxu0
  %7012 = vmatprep.mubr.f32.mxu0 0.0
  %v7013 = vand.u32 %v5925, 4294901760
  %7014 = vmatmul.mubr.f32.gmra.mxu0 %v7013
  %v7015 = vpop.f32.mrf.mxu0
  %v7016 = vadd.f32 %v6853, %v7015
  %v7017 = vpop.f32.mrf.mxu0
  %7018 = vmatprep.mubr.f32.mxu0 0.0
  %v7019 = vand.u32 %v5928, 4294901760
  %7020 = vmatmul.mubr.f32.gmra.mxu0 %v7019
  %v7021 = vpop.f32.mrf.mxu0
  %v7022 = vadd.f32 %v6859, %v7021
  %v7023 = vpop.f32.mrf.mxu0
  %7024 = vmatprep.mubr.f32.mxu0 0.0
  %v7025 = vand.u32 %v5931, 4294901760
  %7026 = vmatmul.mubr.f32.gmra.mxu0 %v7025
  %v7027 = vpop.f32.mrf.mxu0
  %v7028 = vadd.f32 %v6865, %v7027
  %v7029 = vpop.f32.mrf.mxu0
  %7030 = vmatprep.mubr.f32.mxu0 0.0
  %v7031 = vand.u32 %v5934, 4294901760
  %7032 = vmatmul.mubr.f32.gmra.mxu0 %v7031
  %v7033 = vpop.f32.mrf.mxu0
  %v7034 = vadd.f32 %v6871, %v7033
  %v7035 = vpop.f32.mrf.mxu0
  %7036 = vmatprep.mubr.f32.mxu0 0.0
  %v7037 = vand.u32 %v5937, 4294901760
  %7038 = vmatmul.mubr.f32.gmra.mxu0 %v7037
  %v7039 = vpop.f32.mrf.mxu0
  %v7040 = vadd.f32 %v6877, %v7039
  %v7041 = vpop.f32.mrf.mxu0
  %7042 = vdwg.mxu0
  %v7044 = vlaneseq
  %v7045 = vshrl.u32 %v7044, 7
  %v7046 = vsub.s32 0, %v7045
  %v7047 = vrot.slane %v5888, %v7046
  %7048 = vrot.lane.b32.xlu0 %v7047, 32
  %v7049 = vpop.permute.xlu0 %7048
  %v7051 = vadd.f32 %v6950, %v7049
  %v7052 = vadd.f32 %v6956, %v7049
  %v7053 = vadd.f32 %v6962, %v7049
  %v7054 = vadd.f32 %v6968, %v7049
  %v7055 = vadd.f32 %v6974, %v7049
  %v7056 = vadd.f32 %v6980, %v7049
  %v7057 = vadd.f32 %v6986, %v7049
  %v7058 = vadd.f32 %v6992, %v7049
  %v7059 = vadd.f32 %v6998, %v7049
  %v7060 = vadd.f32 %v7004, %v7049
  %v7061 = vadd.f32 %v7010, %v7049
  %v7062 = vadd.f32 %v7016, %v7049
  %v7063 = vadd.f32 %v7022, %v7049
  %v7064 = vadd.f32 %v7028, %v7049
  %v7065 = vadd.f32 %v7034, %v7049
  %v7066 = vadd.f32 %v7040, %v7049
  %v7067 = vsel %vm1287, %v6950, 0.0
  %v7068 = vsel %vm1287, %v6956, 0.0
  %v7069 = vadd.f32 %v7067, %v7068
  %v7070 = vsel %vm1287, %v6962, 0.0
  %v7071 = vadd.f32 %v7069, %v7070
  %v7072 = vsel %vm1287, %v6968, 0.0
  %v7073 = vadd.f32 %v7071, %v7072
  %v7074 = vsel %vm1287, %v6974, 0.0
  %v7075 = vadd.f32 %v7073, %v7074
  %v7076 = vsel %vm1287, %v6980, 0.0
  %v7077 = vadd.f32 %v7075, %v7076
  %v7078 = vsel %vm1287, %v6986, 0.0
  %v7079 = vadd.f32 %v7077, %v7078
  %v7080 = vsel %vm1287, %v6992, 0.0
  %v7081 = vadd.f32 %v7079, %v7080
  %v7082 = vsel %vm1287, %v6998, 0.0
  %v7083 = vadd.f32 %v7081, %v7082
  %v7084 = vsel %vm1287, %v7004, 0.0
  %v7085 = vadd.f32 %v7083, %v7084
  %v7086 = vsel %vm1287, %v7010, 0.0
  %v7087 = vadd.f32 %v7085, %v7086
  %v7088 = vsel %vm1287, %v7016, 0.0
  %v7089 = vadd.f32 %v7087, %v7088
  %v7090 = vsel %vm1287, %v7022, 0.0
  %v7091 = vadd.f32 %v7089, %v7090
  %v7092 = vsel %vm1287, %v7028, 0.0
  %v7093 = vadd.f32 %v7091, %v7092
  %v7094 = vsel %vm1287, %v7034, 0.0
  %v7095 = vadd.f32 %v7093, %v7094
  %v7096 = vsel %vm1287, %v7040, 0.0
  %v7097 = vadd.f32 %v7095, %v7096
  %v7098 = vrot.slane %v7097, 4
  %v7099 = vadd.f32 %v7097, %v7098
  %v7100 = vrot.slane %v7099, 2
  %v7101 = vadd.f32 %v7099, %v7100
  %v7102 = vrot.slane %v7101, 1
  %v7103 = vadd.f32 %v7101, %v7102
  %v7104 = vmul.f32 %v7103, %v1325
  %v7105 = vmul.f32 %v6950, %v6950
  %v7106 = vmul.f32 %v6956, %v6956
  %v7107 = vmul.f32 %v6962, %v6962
  %v7108 = vmul.f32 %v6968, %v6968
  %v7109 = vmul.f32 %v6974, %v6974
  %v7110 = vmul.f32 %v6980, %v6980
  %v7111 = vmul.f32 %v6986, %v6986
  %v7112 = vmul.f32 %v6992, %v6992
  %v7113 = vmul.f32 %v6998, %v6998
  %v7114 = vmul.f32 %v7004, %v7004
  %v7115 = vmul.f32 %v7010, %v7010
  %v7116 = vmul.f32 %v7016, %v7016
  %v7117 = vmul.f32 %v7022, %v7022
  %v7118 = vmul.f32 %v7028, %v7028
  %v7119 = vmul.f32 %v7034, %v7034
  %v7120 = vmul.f32 %v7040, %v7040
  %v7121 = vsel %vm1287, %v7105, 0.0
  %v7122 = vsel %vm1287, %v7106, 0.0
  %v7123 = vadd.f32 %v7121, %v7122
  %v7124 = vsel %vm1287, %v7107, 0.0
  %v7125 = vadd.f32 %v7123, %v7124
  %v7126 = vsel %vm1287, %v7108, 0.0
  %v7127 = vadd.f32 %v7125, %v7126
  %v7128 = vsel %vm1287, %v7109, 0.0
  %v7129 = vadd.f32 %v7127, %v7128
  %v7130 = vsel %vm1287, %v7110, 0.0
  %v7131 = vadd.f32 %v7129, %v7130
  %v7132 = vsel %vm1287, %v7111, 0.0
  %v7133 = vadd.f32 %v7131, %v7132
  %v7134 = vsel %vm1287, %v7112, 0.0
  %v7135 = vadd.f32 %v7133, %v7134
  %v7136 = vsel %vm1287, %v7113, 0.0
  %v7137 = vadd.f32 %v7135, %v7136
  %v7138 = vsel %vm1287, %v7114, 0.0
  %v7139 = vadd.f32 %v7137, %v7138
  %v7140 = vsel %vm1287, %v7115, 0.0
  %v7141 = vadd.f32 %v7139, %v7140
  %v7142 = vsel %vm1287, %v7116, 0.0
  %v7143 = vadd.f32 %v7141, %v7142
  %v7144 = vsel %vm1287, %v7117, 0.0
  %v7145 = vadd.f32 %v7143, %v7144
  %v7146 = vsel %vm1287, %v7118, 0.0
  %v7147 = vadd.f32 %v7145, %v7146
  %v7148 = vsel %vm1287, %v7119, 0.0
  %v7149 = vadd.f32 %v7147, %v7148
  %v7150 = vsel %vm1287, %v7120, 0.0
  %v7151 = vadd.f32 %v7149, %v7150
  %v7152 = vrot.slane %v7151, 4
  %v7153 = vadd.f32 %v7151, %v7152
  %v7154 = vrot.slane %v7153, 2
  %v7155 = vadd.f32 %v7153, %v7154
  %v7156 = vrot.slane %v7155, 1
  %v7157 = vadd.f32 %v7155, %v7156
  %v7158 = vmul.f32 %v7157, %v1325
  %v7159 = vmul.f32 %v7104, %v7104
  %v7160 = vsub.f32 %v7158, %v7159
  %v7161 = vsub.f32 %v6950, %v7104
  %v7162 = vsub.f32 %v6956, %v7104
  %v7163 = vsub.f32 %v6962, %v7104
  %v7164 = vsub.f32 %v6968, %v7104
  %v7165 = vsub.f32 %v6974, %v7104
  %v7166 = vsub.f32 %v6980, %v7104
  %v7167 = vsub.f32 %v6986, %v7104
  %v7168 = vsub.f32 %v6992, %v7104
  %v7169 = vsub.f32 %v6998, %v7104
  %v7170 = vsub.f32 %v7004, %v7104
  %v7171 = vsub.f32 %v7010, %v7104
  %v7172 = vsub.f32 %v7016, %v7104
  %v7173 = vsub.f32 %v7022, %v7104
  %v7174 = vsub.f32 %v7028, %v7104
  %v7175 = vsub.f32 %v7034, %v7104
  %v7176 = vsub.f32 %v7040, %v7104
  %v7177 = vadd.f32 %v7160, 1e-05
  %v7178 = vrsqrt.pop %v7177
  %v7179 = vmul.f32 %v7161, %v7178
  %v7180 = vmul.f32 %v7162, %v7178
  %v7181 = vmul.f32 %v7163, %v7178
  %v7182 = vmul.f32 %v7164, %v7178
  %v7183 = vmul.f32 %v7165, %v7178
  %v7184 = vmul.f32 %v7166, %v7178
  %v7185 = vmul.f32 %v7167, %v7178
  %v7186 = vmul.f32 %v7168, %v7178
  %v7187 = vmul.f32 %v7169, %v7178
  %v7188 = vmul.f32 %v7170, %v7178
  %v7189 = vmul.f32 %v7171, %v7178
  %v7190 = vmul.f32 %v7172, %v7178
  %v7191 = vmul.f32 %v7173, %v7178
  %v7192 = vmul.f32 %v7174, %v7178
  %v7193 = vmul.f32 %v7175, %v7178
  %v7194 = vmul.f32 %v7176, %v7178
  %v7196 = vlaneseq
  %v7197 = vshrl.u32 %v7196, 7
  %v7198 = vsub.s32 0, %v7197
  %v7199 = vrot.slane %v5889, %v7198
  %v7201 = vmul.f32 %v7179, %v7199
  %v7202 = vmul.f32 %v7180, %v7199
  %v7203 = vmul.f32 %v7181, %v7199
  %v7204 = vmul.f32 %v7182, %v7199
  %v7205 = vmul.f32 %v7183, %v7199
  %v7206 = vmul.f32 %v7184, %v7199
  %v7207 = vmul.f32 %v7185, %v7199
  %v7208 = vmul.f32 %v7186, %v7199
  %v7209 = vmul.f32 %v7187, %v7199
  %v7210 = vmul.f32 %v7188, %v7199
  %v7211 = vmul.f32 %v7189, %v7199
  %v7212 = vmul.f32 %v7190, %v7199
  %v7213 = vmul.f32 %v7191, %v7199
  %v7214 = vmul.f32 %v7192, %v7199
  %v7215 = vmul.f32 %v7193, %v7199
  %v7216 = vmul.f32 %v7194, %v7199
  %v7218 = vlaneseq
  %v7219 = vshrl.u32 %v7218, 7
  %v7220 = vsub.s32 0, %v7219
  %v7221 = vrot.slane %v5890, %v7220
  %v7223 = vadd.f32 %v7201, %v7221
  %v7224 = vadd.f32 %v7202, %v7221
  %v7225 = vadd.f32 %v7203, %v7221
  %v7226 = vadd.f32 %v7204, %v7221
  %v7227 = vadd.f32 %v7205, %v7221
  %v7228 = vadd.f32 %v7206, %v7221
  %v7229 = vadd.f32 %v7207, %v7221
  %v7230 = vadd.f32 %v7208, %v7221
  %v7231 = vadd.f32 %v7209, %v7221
  %v7232 = vadd.f32 %v7210, %v7221
  %v7233 = vadd.f32 %v7211, %v7221
  %v7234 = vadd.f32 %v7212, %v7221
  %v7235 = vadd.f32 %v7213, %v7221
  %v7236 = vadd.f32 %v7214, %v7221
  %v7237 = vadd.f32 %v7215, %v7221
  %v7238 = vadd.f32 %v7216, %v7221
  %vm7239 = vcmp.gt.f32.partialorder %v7223, 0.0
  %vm7240 = vcmp.gt.f32.partialorder %v7224, 0.0
  %vm7241 = vcmp.gt.f32.partialorder %v7225, 0.0
  %vm7242 = vcmp.gt.f32.partialorder %v7226, 0.0
  %vm7243 = vcmp.gt.f32.partialorder %v7227, 0.0
  %vm7244 = vcmp.gt.f32.partialorder %v7228, 0.0
  %vm7245 = vcmp.gt.f32.partialorder %v7229, 0.0
  %vm7246 = vcmp.gt.f32.partialorder %v7230, 0.0
  %vm7247 = vcmp.gt.f32.partialorder %v7231, 0.0
  %vm7248 = vcmp.gt.f32.partialorder %v7232, 0.0
  %vm7249 = vcmp.gt.f32.partialorder %v7233, 0.0
  %vm7250 = vcmp.gt.f32.partialorder %v7234, 0.0
  %vm7251 = vcmp.gt.f32.partialorder %v7235, 0.0
  %vm7252 = vcmp.gt.f32.partialorder %v7236, 0.0
  %vm7253 = vcmp.gt.f32.partialorder %v7237, 0.0
  %vm7254 = vcmp.gt.f32.partialorder %v7238, 0.0
  %v7255 = vmul.f32 %v7223, 0.01
  %v7256 = vmul.f32 %v7224, 0.01
  %v7257 = vmul.f32 %v7225, 0.01
  %v7258 = vmul.f32 %v7226, 0.01
  %v7259 = vmul.f32 %v7227, 0.01
  %v7260 = vmul.f32 %v7228, 0.01
  %v7261 = vmul.f32 %v7229, 0.01
  %v7262 = vmul.f32 %v7230, 0.01
  %v7263 = vmul.f32 %v7231, 0.01
  %v7264 = vmul.f32 %v7232, 0.01
  %v7265 = vmul.f32 %v7233, 0.01
  %v7266 = vmul.f32 %v7234, 0.01
  %v7267 = vmul.f32 %v7235, 0.01
  %v7268 = vmul.f32 %v7236, 0.01
  %v7269 = vmul.f32 %v7237, 0.01
  %v7270 = vmul.f32 %v7238, 0.01
  %v7271 = vsel %vm7239, %v7223, %v7255
  %v7272 = vsel %vm7240, %v7224, %v7256
  %v7273 = vsel %vm7241, %v7225, %v7257
  %v7274 = vsel %vm7242, %v7226, %v7258
  %v7275 = vsel %vm7243, %v7227, %v7259
  %v7276 = vsel %vm7244, %v7228, %v7260
  %v7277 = vsel %vm7245, %v7229, %v7261
  %v7278 = vsel %vm7246, %v7230, %v7262
  %v7279 = vsel %vm7247, %v7231, %v7263
  %v7280 = vsel %vm7248, %v7232, %v7264
  %v7281 = vsel %vm7249, %v7233, %v7265
  %v7282 = vsel %vm7250, %v7234, %v7266
  %v7283 = vsel %vm7251, %v7235, %v7267
  %v7284 = vsel %vm7252, %v7236, %v7268
  %v7285 = vsel %vm7253, %v7237, %v7269
  %v7286 = vsel %vm7254, %v7238, %v7270
  %7303 = vrot.lane.b32.xlu0 %v7051, 96
  %v7304 = vpop.permute.xlu0 %7303
  %7305 = vrot.lane.b32.xlu0 %v7052, 96
  %v7306 = vpop.permute.xlu0 %7305
  %7307 = vrot.lane.b32.xlu0 %v7053, 96
  %v7308 = vpop.permute.xlu0 %7307
  %7309 = vrot.lane.b32.xlu0 %v7054, 96
  %v7310 = vpop.permute.xlu0 %7309
  %7311 = vrot.lane.b32.xlu0 %v7055, 96
  %v7312 = vpop.permute.xlu0 %7311
  %7313 = vrot.lane.b32.xlu0 %v7056, 96
  %v7314 = vpop.permute.xlu0 %7313
  %7315 = vrot.lane.b32.xlu0 %v7057, 96
  %v7316 = vpop.permute.xlu0 %7315
  %7317 = vrot.lane.b32.xlu0 %v7058, 96
  %v7318 = vpop.permute.xlu0 %7317
  %7319 = vrot.lane.b32.xlu0 %v7059, 96
  %v7320 = vpop.permute.xlu0 %7319
  %7321 = vrot.lane.b32.xlu0 %v7060, 96
  %v7322 = vpop.permute.xlu0 %7321
  %7323 = vrot.lane.b32.xlu0 %v7061, 96
  %v7324 = vpop.permute.xlu0 %7323
  %7325 = vrot.lane.b32.xlu0 %v7062, 96
  %v7326 = vpop.permute.xlu0 %7325
  %7327 = vrot.lane.b32.xlu0 %v7063, 96
  %v7328 = vpop.permute.xlu0 %7327
  %7329 = vrot.lane.b32.xlu0 %v7064, 96
  %v7330 = vpop.permute.xlu0 %7329
  %7331 = vrot.lane.b32.xlu0 %v7065, 96
  %v7332 = vpop.permute.xlu0 %7331
  %7333 = vrot.lane.b32.xlu0 %v7066, 96
  %v7334 = vpop.permute.xlu0 %7333
  %v7351 = vadd.f32 %v7271, %v7304
  %v7352 = vadd.f32 %v7272, %v7306
  %v7353 = vadd.f32 %v7273, %v7308
  %v7354 = vadd.f32 %v7274, %v7310
  %v7355 = vadd.f32 %v7275, %v7312
  %v7356 = vadd.f32 %v7276, %v7314
  %v7357 = vadd.f32 %v7277, %v7316
  %v7358 = vadd.f32 %v7278, %v7318
  %v7359 = vadd.f32 %v7279, %v7320
  %v7360 = vadd.f32 %v7280, %v7322
  %v7361 = vadd.f32 %v7281, %v7324
  %v7362 = vadd.f32 %v7282, %v7326
  %v7363 = vadd.f32 %v7283, %v7328
  %v7364 = vadd.f32 %v7284, %v7330
  %v7365 = vadd.f32 %v7285, %v7332
  %v7366 = vadd.f32 %v7286, %v7334
  %v7367 = vld [vmem:[%s20] sm:$0xff]
  %v7368 = vld [vmem:[%s20 + $0x8] sm:$0xff]
  %v7369 = vld [vmem:[%s20 + $0x10] sm:$0xff]
  %v7370 = vld [vmem:[%s20 + $0x18] sm:$0xff]
  %v7371 = vld [vmem:[%s21] sm:$0x1]
  %v7373 = vlaneseq
  %v7374 = vshrl.u32 %v7373, 7
  %v7375 = vsub.s32 0, %v7374
  %v7376 = vrot.slane %v7371, %v7375
  %v7379 = vsel %vm1287, %v7351, 0
  %v7382 = vsel %vm1287, %v7352, 0
  %v7385 = vsel %vm1287, %v7353, 0
  %v7388 = vsel %vm1287, %v7354, 0
  %v7391 = vsel %vm1287, %v7355, 0
  %v7394 = vsel %vm1287, %v7356, 0
  %v7397 = vsel %vm1287, %v7357, 0
  %v7400 = vsel %vm1287, %v7358, 0
  %v7403 = vsel %vm1287, %v7359, 0
  %v7406 = vsel %vm1287, %v7360, 0
  %v7409 = vsel %vm1287, %v7361, 0
  %v7412 = vsel %vm1287, %v7362, 0
  %v7415 = vsel %vm1287, %v7363, 0
  %v7418 = vsel %vm1287, %v7364, 0
  %v7421 = vsel %vm1287, %v7365, 0
  %v7424 = vsel %vm1287, %v7366, 0
  %7426 = vmatprep.subr.mxu0 0.0
  %7427 = vmatpush1.msra.mxu0 0.0
  %7428 = vmatprep.subr.mxu0 0.0
  %7429 = vmatpush1.msra.mxu0 0.0
  %7430 = vmatprep.subr.mxu0 0.0
  %7431 = vmatpush1.msra.mxu0 0.0
  %7432 = vmatprep.subr.mxu0 0.0
  %7433 = vmatpush1.msra.mxu0 0.0
  %7434 = vmatprep.subr.mxu0 0.0
  %7435 = vmatpush1.msra.mxu0 0.0
  %7436 = vmatprep.subr.mxu0 0.0
  %7437 = vmatpush1.msra.mxu0 0.0
  %7438 = vmatprep.subr.mxu0 0.0
  %7439 = vmatpush1.msra.mxu0 0.0
  %7440 = vmatprep.subr.mxu0 0.0
  %7441 = vmatpush1.msra.mxu0 0.0
  %7442 = vmatprep.subr.mxu0 0.0
  %7443 = vmatpush1.msra.mxu0 0.0
  %7444 = vmatprep.subr.mxu0 0.0
  %7445 = vmatpush1.msra.mxu0 0.0
  %7446 = vmatprep.subr.mxu0 0.0
  %7447 = vmatpush1.msra.mxu0 0.0
  %7448 = vmatprep.subr.mxu0 0.0
  %7449 = vmatpush1.msra.mxu0 0.0
  %7450 = vmatprep.subr.mxu0 0.0
  %v7451 = vand.u32 %v7370, 4294901760
  %7452 = vmatpush1.msra.mxu0 %v7451
  %7453 = vmatprep.subr.mxu0 0.0
  %v7454 = vand.u32 %v7369, 4294901760
  %7455 = vmatpush1.msra.mxu0 %v7454
  %7456 = vmatprep.subr.mxu0 0.0
  %v7457 = vand.u32 %v7368, 4294901760
  %7458 = vmatpush1.msra.mxu0 %v7457
  %7459 = vmatprep.subr.mxu0 0.0
  %v7460 = vand.u32 %v7367, 4294901760
  %7461 = vmatpush1.msra.mxu0 %v7460
  %7462 = vmatprep.subr.mxu0 0.0
  %7463 = vmatpush2.msra.mxu0 0.0
  %7464 = vmatprep.subr.mxu0 0.0
  %7465 = vmatpush2.msra.mxu0 0.0
  %7466 = vmatprep.subr.mxu0 0.0
  %7467 = vmatpush2.msra.mxu0 0.0
  %7468 = vmatprep.subr.mxu0 0.0
  %7469 = vmatpush2.msra.mxu0 0.0
  %7470 = vmatprep.subr.mxu0 0.0
  %7471 = vmatpush2.msra.mxu0 0.0
  %7472 = vmatprep.subr.mxu0 0.0
  %7473 = vmatpush2.msra.mxu0 0.0
  %7474 = vmatprep.subr.mxu0 0.0
  %7475 = vmatpush2.msra.mxu0 0.0
  %7476 = vmatprep.subr.mxu0 0.0
  %7477 = vmatpush2.msra.mxu0 0.0
  %7478 = vmatprep.subr.mxu0 0.0
  %7479 = vmatpush2.msra.mxu0 0.0
  %7480 = vmatprep.subr.mxu0 0.0
  %7481 = vmatpush2.msra.mxu0 0.0
  %7482 = vmatprep.subr.mxu0 0.0
  %7483 = vmatpush2.msra.mxu0 0.0
  %7484 = vmatprep.subr.mxu0 0.0
  %7485 = vmatpush2.msra.mxu0 0.0
  %7486 = vmatprep.subr.mxu0 0.0
  %7487 = vmatpush2.msra.mxu0 0.0
  %7488 = vmatprep.subr.mxu0 0.0
  %7489 = vmatpush2.msra.mxu0 0.0
  %7490 = vmatprep.subr.mxu0 0.0
  %7491 = vmatpush2.msra.mxu0 0.0
  %7492 = vmatprep.subr.mxu0 0.0
  %7493 = vmatpush2.msra.mxu0 0.0
  %7494 = vmatprep.mubr.f32.mxu0 0.0
  %v7495 = vand.u32 %v7379, 4294901760
  %v7496 = vsub.f32 %v7379, %v7495
  %v7497 = vand.u32 %v7496, 4294901760
  %v7498 = vsub.f32 %v7496, %v7497
  %v7499 = vand.u32 %v7498, 4294901760
  %7500 = vmatmul.mubr.f32.gmra.mxu0 %v7499
  %v7501 = vpop.f32.mrf.mxu0
  %v7502 = vadd.f32 %v7376, %v7501
  %v7503 = vpop.f32.mrf.mxu0
  %7504 = vmatprep.mubr.f32.mxu0 0.0
  %v7505 = vand.u32 %v7382, 4294901760
  %v7506 = vsub.f32 %v7382, %v7505
  %v7507 = vand.u32 %v7506, 4294901760
  %v7508 = vsub.f32 %v7506, %v7507
  %v7509 = vand.u32 %v7508, 4294901760
  %7510 = vmatmul.mubr.f32.gmra.mxu0 %v7509
  %v7511 = vpop.f32.mrf.mxu0
  %v7512 = vadd.f32 %v7376, %v7511
  %v7513 = vpop.f32.mrf.mxu0
  %7514 = vmatprep.mubr.f32.mxu0 0.0
  %v7515 = vand.u32 %v7385, 4294901760
  %v7516 = vsub.f32 %v7385, %v7515
  %v7517 = vand.u32 %v7516, 4294901760
  %v7518 = vsub.f32 %v7516, %v7517
  %v7519 = vand.u32 %v7518, 4294901760
  %7520 = vmatmul.mubr.f32.gmra.mxu0 %v7519
  %v7521 = vpop.f32.mrf.mxu0
  %v7522 = vadd.f32 %v7376, %v7521
  %v7523 = vpop.f32.mrf.mxu0
  %7524 = vmatprep.mubr.f32.mxu0 0.0
  %v7525 = vand.u32 %v7388, 4294901760
  %v7526 = vsub.f32 %v7388, %v7525
  %v7527 = vand.u32 %v7526, 4294901760
  %v7528 = vsub.f32 %v7526, %v7527
  %v7529 = vand.u32 %v7528, 4294901760
  %7530 = vmatmul.mubr.f32.gmra.mxu0 %v7529
  %v7531 = vpop.f32.mrf.mxu0
  %v7532 = vadd.f32 %v7376, %v7531
  %v7533 = vpop.f32.mrf.mxu0
  %7534 = vmatprep.mubr.f32.mxu0 0.0
  %v7535 = vand.u32 %v7391, 4294901760
  %v7536 = vsub.f32 %v7391, %v7535
  %v7537 = vand.u32 %v7536, 4294901760
  %v7538 = vsub.f32 %v7536, %v7537
  %v7539 = vand.u32 %v7538, 4294901760
  %7540 = vmatmul.mubr.f32.gmra.mxu0 %v7539
  %v7541 = vpop.f32.mrf.mxu0
  %v7542 = vadd.f32 %v7376, %v7541
  %v7543 = vpop.f32.mrf.mxu0
  %7544 = vmatprep.mubr.f32.mxu0 0.0
  %v7545 = vand.u32 %v7394, 4294901760
  %v7546 = vsub.f32 %v7394, %v7545
  %v7547 = vand.u32 %v7546, 4294901760
  %v7548 = vsub.f32 %v7546, %v7547
  %v7549 = vand.u32 %v7548, 4294901760
  %7550 = vmatmul.mubr.f32.gmra.mxu0 %v7549
  %v7551 = vpop.f32.mrf.mxu0
  %v7552 = vadd.f32 %v7376, %v7551
  %v7553 = vpop.f32.mrf.mxu0
  %7554 = vmatprep.mubr.f32.mxu0 0.0
  %v7555 = vand.u32 %v7397, 4294901760
  %v7556 = vsub.f32 %v7397, %v7555
  %v7557 = vand.u32 %v7556, 4294901760
  %v7558 = vsub.f32 %v7556, %v7557
  %v7559 = vand.u32 %v7558, 4294901760
  %7560 = vmatmul.mubr.f32.gmra.mxu0 %v7559
  %v7561 = vpop.f32.mrf.mxu0
  %v7562 = vadd.f32 %v7376, %v7561
  %v7563 = vpop.f32.mrf.mxu0
  %7564 = vmatprep.mubr.f32.mxu0 0.0
  %v7565 = vand.u32 %v7400, 4294901760
  %v7566 = vsub.f32 %v7400, %v7565
  %v7567 = vand.u32 %v7566, 4294901760
  %v7568 = vsub.f32 %v7566, %v7567
  %v7569 = vand.u32 %v7568, 4294901760
  %7570 = vmatmul.mubr.f32.gmra.mxu0 %v7569
  %v7571 = vpop.f32.mrf.mxu0
  %v7572 = vadd.f32 %v7376, %v7571
  %v7573 = vpop.f32.mrf.mxu0
  %7574 = vmatprep.mubr.f32.mxu0 0.0
  %v7575 = vand.u32 %v7403, 4294901760
  %v7576 = vsub.f32 %v7403, %v7575
  %v7577 = vand.u32 %v7576, 4294901760
  %v7578 = vsub.f32 %v7576, %v7577
  %v7579 = vand.u32 %v7578, 4294901760
  %7580 = vmatmul.mubr.f32.gmra.mxu0 %v7579
  %v7581 = vpop.f32.mrf.mxu0
  %v7582 = vadd.f32 %v7376, %v7581
  %v7583 = vpop.f32.mrf.mxu0
  %7584 = vmatprep.mubr.f32.mxu0 0.0
  %v7585 = vand.u32 %v7406, 4294901760
  %v7586 = vsub.f32 %v7406, %v7585
  %v7587 = vand.u32 %v7586, 4294901760
  %v7588 = vsub.f32 %v7586, %v7587
  %v7589 = vand.u32 %v7588, 4294901760
  %7590 = vmatmul.mubr.f32.gmra.mxu0 %v7589
  %v7591 = vpop.f32.mrf.mxu0
  %v7592 = vadd.f32 %v7376, %v7591
  %v7593 = vpop.f32.mrf.mxu0
  %7594 = vmatprep.mubr.f32.mxu0 0.0
  %v7595 = vand.u32 %v7409, 4294901760
  %v7596 = vsub.f32 %v7409, %v7595
  %v7597 = vand.u32 %v7596, 4294901760
  %v7598 = vsub.f32 %v7596, %v7597
  %v7599 = vand.u32 %v7598, 4294901760
  %7600 = vmatmul.mubr.f32.gmra.mxu0 %v7599
  %v7601 = vpop.f32.mrf.mxu0
  %v7602 = vadd.f32 %v7376, %v7601
  %v7603 = vpop.f32.mrf.mxu0
  %7604 = vmatprep.mubr.f32.mxu0 0.0
  %v7605 = vand.u32 %v7412, 4294901760
  %v7606 = vsub.f32 %v7412, %v7605
  %v7607 = vand.u32 %v7606, 4294901760
  %v7608 = vsub.f32 %v7606, %v7607
  %v7609 = vand.u32 %v7608, 4294901760
  %7610 = vmatmul.mubr.f32.gmra.mxu0 %v7609
  %v7611 = vpop.f32.mrf.mxu0
  %v7612 = vadd.f32 %v7376, %v7611
  %v7613 = vpop.f32.mrf.mxu0
  %7614 = vmatprep.mubr.f32.mxu0 0.0
  %v7615 = vand.u32 %v7415, 4294901760
  %v7616 = vsub.f32 %v7415, %v7615
  %v7617 = vand.u32 %v7616, 4294901760
  %v7618 = vsub.f32 %v7616, %v7617
  %v7619 = vand.u32 %v7618, 4294901760
  %7620 = vmatmul.mubr.f32.gmra.mxu0 %v7619
  %v7621 = vpop.f32.mrf.mxu0
  %v7622 = vadd.f32 %v7376, %v7621
  %v7623 = vpop.f32.mrf.mxu0
  %7624 = vmatprep.mubr.f32.mxu0 0.0
  %v7625 = vand.u32 %v7418, 4294901760
  %v7626 = vsub.f32 %v7418, %v7625
  %v7627 = vand.u32 %v7626, 4294901760
  %v7628 = vsub.f32 %v7626, %v7627
  %v7629 = vand.u32 %v7628, 4294901760
  %7630 = vmatmul.mubr.f32.gmra.mxu0 %v7629
  %v7631 = vpop.f32.mrf.mxu0
  %v7632 = vadd.f32 %v7376, %v7631
  %v7633 = vpop.f32.mrf.mxu0
  %7634 = vmatprep.mubr.f32.mxu0 0.0
  %v7635 = vand.u32 %v7421, 4294901760
  %v7636 = vsub.f32 %v7421, %v7635
  %v7637 = vand.u32 %v7636, 4294901760
  %v7638 = vsub.f32 %v7636, %v7637
  %v7639 = vand.u32 %v7638, 4294901760
  %7640 = vmatmul.mubr.f32.gmra.mxu0 %v7639
  %v7641 = vpop.f32.mrf.mxu0
  %v7642 = vadd.f32 %v7376, %v7641
  %v7643 = vpop.f32.mrf.mxu0
  %7644 = vmatprep.mubr.f32.mxu0 0.0
  %v7645 = vand.u32 %v7424, 4294901760
  %v7646 = vsub.f32 %v7424, %v7645
  %v7647 = vand.u32 %v7646, 4294901760
  %v7648 = vsub.f32 %v7646, %v7647
  %v7649 = vand.u32 %v7648, 4294901760
  %7650 = vmatmul.mubr.f32.gmra.mxu0 %v7649
  %v7651 = vpop.f32.mrf.mxu0
  %v7652 = vadd.f32 %v7376, %v7651
  %v7653 = vpop.f32.mrf.mxu0
  %7654 = vdwg.mxu0
  %7655 = vmatprep.subr.mxu0 0.0
  %7656 = vmatpush1.msra.mxu0 0.0
  %7657 = vmatprep.subr.mxu0 0.0
  %7658 = vmatpush1.msra.mxu0 0.0
  %7659 = vmatprep.subr.mxu0 0.0
  %7660 = vmatpush1.msra.mxu0 0.0
  %7661 = vmatprep.subr.mxu0 0.0
  %7662 = vmatpush1.msra.mxu0 0.0
  %7663 = vmatprep.subr.mxu0 0.0
  %7664 = vmatpush1.msra.mxu0 0.0
  %7665 = vmatprep.subr.mxu0 0.0
  %7666 = vmatpush1.msra.mxu0 0.0
  %7667 = vmatprep.subr.mxu0 0.0
  %7668 = vmatpush1.msra.mxu0 0.0
  %7669 = vmatprep.subr.mxu0 0.0
  %7670 = vmatpush1.msra.mxu0 0.0
  %7671 = vmatprep.subr.mxu0 0.0
  %7672 = vmatpush1.msra.mxu0 0.0
  %7673 = vmatprep.subr.mxu0 0.0
  %7674 = vmatpush1.msra.mxu0 0.0
  %7675 = vmatprep.subr.mxu0 0.0
  %7676 = vmatpush1.msra.mxu0 0.0
  %7677 = vmatprep.subr.mxu0 0.0
  %7678 = vmatpush1.msra.mxu0 0.0
  %7679 = vmatprep.subr.mxu0 0.0
  %v7680 = vand.u32 %v7370, 4294901760
  %v7681 = vsub.f32 %v7370, %v7680
  %v7682 = vand.u32 %v7681, 4294901760
  %v7683 = vsub.f32 %v7681, %v7682
  %v7684 = vand.u32 %v7683, 4294901760
  %7685 = vmatpush1.msra.mxu0 %v7684
  %7686 = vmatprep.subr.mxu0 0.0
  %v7687 = vand.u32 %v7369, 4294901760
  %v7688 = vsub.f32 %v7369, %v7687
  %v7689 = vand.u32 %v7688, 4294901760
  %v7690 = vsub.f32 %v7688, %v7689
  %v7691 = vand.u32 %v7690, 4294901760
  %7692 = vmatpush1.msra.mxu0 %v7691
  %7693 = vmatprep.subr.mxu0 0.0
  %v7694 = vand.u32 %v7368, 4294901760
  %v7695 = vsub.f32 %v7368, %v7694
  %v7696 = vand.u32 %v7695, 4294901760
  %v7697 = vsub.f32 %v7695, %v7696
  %v7698 = vand.u32 %v7697, 4294901760
  %7699 = vmatpush1.msra.mxu0 %v7698
  %7700 = vmatprep.subr.mxu0 0.0
  %v7701 = vand.u32 %v7367, 4294901760
  %v7702 = vsub.f32 %v7367, %v7701
  %v7703 = vand.u32 %v7702, 4294901760
  %v7704 = vsub.f32 %v7702, %v7703
  %v7705 = vand.u32 %v7704, 4294901760
  %7706 = vmatpush1.msra.mxu0 %v7705
  %7707 = vmatprep.subr.mxu0 0.0
  %7708 = vmatpush2.msra.mxu0 0.0
  %7709 = vmatprep.subr.mxu0 0.0
  %7710 = vmatpush2.msra.mxu0 0.0
  %7711 = vmatprep.subr.mxu0 0.0
  %7712 = vmatpush2.msra.mxu0 0.0
  %7713 = vmatprep.subr.mxu0 0.0
  %7714 = vmatpush2.msra.mxu0 0.0
  %7715 = vmatprep.subr.mxu0 0.0
  %7716 = vmatpush2.msra.mxu0 0.0
  %7717 = vmatprep.subr.mxu0 0.0
  %7718 = vmatpush2.msra.mxu0 0.0
  %7719 = vmatprep.subr.mxu0 0.0
  %7720 = vmatpush2.msra.mxu0 0.0
  %7721 = vmatprep.subr.mxu0 0.0
  %7722 = vmatpush2.msra.mxu0 0.0
  %7723 = vmatprep.subr.mxu0 0.0
  %7724 = vmatpush2.msra.mxu0 0.0
  %7725 = vmatprep.subr.mxu0 0.0
  %7726 = vmatpush2.msra.mxu0 0.0
  %7727 = vmatprep.subr.mxu0 0.0
  %7728 = vmatpush2.msra.mxu0 0.0
  %7729 = vmatprep.subr.mxu0 0.0
  %7730 = vmatpush2.msra.mxu0 0.0
  %7731 = vmatprep.subr.mxu0 0.0
  %7732 = vmatpush2.msra.mxu0 0.0
  %7733 = vmatprep.subr.mxu0 0.0
  %7734 = vmatpush2.msra.mxu0 0.0
  %7735 = vmatprep.subr.mxu0 0.0
  %7736 = vmatpush2.msra.mxu0 0.0
  %7737 = vmatprep.subr.mxu0 0.0
  %7738 = vmatpush2.msra.mxu0 0.0
  %7739 = vmatprep.mubr.f32.mxu0 0.0
  %v7740 = vand.u32 %v7379, 4294901760
  %7741 = vmatmul.mubr.f32.gmra.mxu0 %v7740
  %v7742 = vpop.f32.mrf.mxu0
  %v7743 = vadd.f32 %v7502, %v7742
  %v7744 = vpop.f32.mrf.mxu0
  %7745 = vmatprep.mubr.f32.mxu0 0.0
  %v7746 = vand.u32 %v7382, 4294901760
  %7747 = vmatmul.mubr.f32.gmra.mxu0 %v7746
  %v7748 = vpop.f32.mrf.mxu0
  %v7749 = vadd.f32 %v7512, %v7748
  %v7750 = vpop.f32.mrf.mxu0
  %7751 = vmatprep.mubr.f32.mxu0 0.0
  %v7752 = vand.u32 %v7385, 4294901760
  %7753 = vmatmul.mubr.f32.gmra.mxu0 %v7752
  %v7754 = vpop.f32.mrf.mxu0
  %v7755 = vadd.f32 %v7522, %v7754
  %v7756 = vpop.f32.mrf.mxu0
  %7757 = vmatprep.mubr.f32.mxu0 0.0
  %v7758 = vand.u32 %v7388, 4294901760
  %7759 = vmatmul.mubr.f32.gmra.mxu0 %v7758
  %v7760 = vpop.f32.mrf.mxu0
  %v7761 = vadd.f32 %v7532, %v7760
  %v7762 = vpop.f32.mrf.mxu0
  %7763 = vmatprep.mubr.f32.mxu0 0.0
  %v7764 = vand.u32 %v7391, 4294901760
  %7765 = vmatmul.mubr.f32.gmra.mxu0 %v7764
  %v7766 = vpop.f32.mrf.mxu0
  %v7767 = vadd.f32 %v7542, %v7766
  %v7768 = vpop.f32.mrf.mxu0
  %7769 = vmatprep.mubr.f32.mxu0 0.0
  %v7770 = vand.u32 %v7394, 4294901760
  %7771 = vmatmul.mubr.f32.gmra.mxu0 %v7770
  %v7772 = vpop.f32.mrf.mxu0
  %v7773 = vadd.f32 %v7552, %v7772
  %v7774 = vpop.f32.mrf.mxu0
  %7775 = vmatprep.mubr.f32.mxu0 0.0
  %v7776 = vand.u32 %v7397, 4294901760
  %7777 = vmatmul.mubr.f32.gmra.mxu0 %v7776
  %v7778 = vpop.f32.mrf.mxu0
  %v7779 = vadd.f32 %v7562, %v7778
  %v7780 = vpop.f32.mrf.mxu0
  %7781 = vmatprep.mubr.f32.mxu0 0.0
  %v7782 = vand.u32 %v7400, 4294901760
  %7783 = vmatmul.mubr.f32.gmra.mxu0 %v7782
  %v7784 = vpop.f32.mrf.mxu0
  %v7785 = vadd.f32 %v7572, %v7784
  %v7786 = vpop.f32.mrf.mxu0
  %7787 = vmatprep.mubr.f32.mxu0 0.0
  %v7788 = vand.u32 %v7403, 4294901760
  %7789 = vmatmul.mubr.f32.gmra.mxu0 %v7788
  %v7790 = vpop.f32.mrf.mxu0
  %v7791 = vadd.f32 %v7582, %v7790
  %v7792 = vpop.f32.mrf.mxu0
  %7793 = vmatprep.mubr.f32.mxu0 0.0
  %v7794 = vand.u32 %v7406, 4294901760
  %7795 = vmatmul.mubr.f32.gmra.mxu0 %v7794
  %v7796 = vpop.f32.mrf.mxu0
  %v7797 = vadd.f32 %v7592, %v7796
  %v7798 = vpop.f32.mrf.mxu0
  %7799 = vmatprep.mubr.f32.mxu0 0.0
  %v7800 = vand.u32 %v7409, 4294901760
  %7801 = vmatmul.mubr.f32.gmra.mxu0 %v7800
  %v7802 = vpop.f32.mrf.mxu0
  %v7803 = vadd.f32 %v7602, %v7802
  %v7804 = vpop.f32.mrf.mxu0
  %7805 = vmatprep.mubr.f32.mxu0 0.0
  %v7806 = vand.u32 %v7412, 4294901760
  %7807 = vmatmul.mubr.f32.gmra.mxu0 %v7806
  %v7808 = vpop.f32.mrf.mxu0
  %v7809 = vadd.f32 %v7612, %v7808
  %v7810 = vpop.f32.mrf.mxu0
  %7811 = vmatprep.mubr.f32.mxu0 0.0
  %v7812 = vand.u32 %v7415, 4294901760
  %7813 = vmatmul.mubr.f32.gmra.mxu0 %v7812
  %v7814 = vpop.f32.mrf.mxu0
  %v7815 = vadd.f32 %v7622, %v7814
  %v7816 = vpop.f32.mrf.mxu0
  %7817 = vmatprep.mubr.f32.mxu0 0.0
  %v7818 = vand.u32 %v7418, 4294901760
  %7819 = vmatmul.mubr.f32.gmra.mxu0 %v7818
  %v7820 = vpop.f32.mrf.mxu0
  %v7821 = vadd.f32 %v7632, %v7820
  %v7822 = vpop.f32.mrf.mxu0
  %7823 = vmatprep.mubr.f32.mxu0 0.0
  %v7824 = vand.u32 %v7421, 4294901760
  %7825 = vmatmul.mubr.f32.gmra.mxu0 %v7824
  %v7826 = vpop.f32.mrf.mxu0
  %v7827 = vadd.f32 %v7642, %v7826
  %v7828 = vpop.f32.mrf.mxu0
  %7829 = vmatprep.mubr.f32.mxu0 0.0
  %v7830 = vand.u32 %v7424, 4294901760
  %7831 = vmatmul.mubr.f32.gmra.mxu0 %v7830
  %v7832 = vpop.f32.mrf.mxu0
  %v7833 = vadd.f32 %v7652, %v7832
  %v7834 = vpop.f32.mrf.mxu0
  %7835 = vdwg.mxu0
  %7836 = vmatprep.subr.mxu0 0.0
  %7837 = vmatpush1.msra.mxu0 0.0
  %7838 = vmatprep.subr.mxu0 0.0
  %7839 = vmatpush1.msra.mxu0 0.0
  %7840 = vmatprep.subr.mxu0 0.0
  %7841 = vmatpush1.msra.mxu0 0.0
  %7842 = vmatprep.subr.mxu0 0.0
  %7843 = vmatpush1.msra.mxu0 0.0
  %7844 = vmatprep.subr.mxu0 0.0
  %7845 = vmatpush1.msra.mxu0 0.0
  %7846 = vmatprep.subr.mxu0 0.0
  %7847 = vmatpush1.msra.mxu0 0.0
  %7848 = vmatprep.subr.mxu0 0.0
  %7849 = vmatpush1.msra.mxu0 0.0
  %7850 = vmatprep.subr.mxu0 0.0
  %7851 = vmatpush1.msra.mxu0 0.0
  %7852 = vmatprep.subr.mxu0 0.0
  %7853 = vmatpush1.msra.mxu0 0.0
  %7854 = vmatprep.subr.mxu0 0.0
  %7855 = vmatpush1.msra.mxu0 0.0
  %7856 = vmatprep.subr.mxu0 0.0
  %7857 = vmatpush1.msra.mxu0 0.0
  %7858 = vmatprep.subr.mxu0 0.0
  %7859 = vmatpush1.msra.mxu0 0.0
  %7860 = vmatprep.subr.mxu0 0.0
  %v7861 = vand.u32 %v7370, 4294901760
  %v7862 = vsub.f32 %v7370, %v7861
  %7863 = vmatpush1.msra.mxu0 %v7862
  %7864 = vmatprep.subr.mxu0 0.0
  %v7865 = vand.u32 %v7369, 4294901760
  %v7866 = vsub.f32 %v7369, %v7865
  %7867 = vmatpush1.msra.mxu0 %v7866
  %7868 = vmatprep.subr.mxu0 0.0
  %v7869 = vand.u32 %v7368, 4294901760
  %v7870 = vsub.f32 %v7368, %v7869
  %7871 = vmatpush1.msra.mxu0 %v7870
  %7872 = vmatprep.subr.mxu0 0.0
  %v7873 = vand.u32 %v7367, 4294901760
  %v7874 = vsub.f32 %v7367, %v7873
  %7875 = vmatpush1.msra.mxu0 %v7874
  %7876 = vmatprep.subr.mxu0 0.0
  %7877 = vmatpush2.msra.mxu0 0.0
  %7878 = vmatprep.subr.mxu0 0.0
  %7879 = vmatpush2.msra.mxu0 0.0
  %7880 = vmatprep.subr.mxu0 0.0
  %7881 = vmatpush2.msra.mxu0 0.0
  %7882 = vmatprep.subr.mxu0 0.0
  %7883 = vmatpush2.msra.mxu0 0.0
  %7884 = vmatprep.subr.mxu0 0.0
  %7885 = vmatpush2.msra.mxu0 0.0
  %7886 = vmatprep.subr.mxu0 0.0
  %7887 = vmatpush2.msra.mxu0 0.0
  %7888 = vmatprep.subr.mxu0 0.0
  %7889 = vmatpush2.msra.mxu0 0.0
  %7890 = vmatprep.subr.mxu0 0.0
  %7891 = vmatpush2.msra.mxu0 0.0
  %7892 = vmatprep.subr.mxu0 0.0
  %7893 = vmatpush2.msra.mxu0 0.0
  %7894 = vmatprep.subr.mxu0 0.0
  %7895 = vmatpush2.msra.mxu0 0.0
  %7896 = vmatprep.subr.mxu0 0.0
  %7897 = vmatpush2.msra.mxu0 0.0
  %7898 = vmatprep.subr.mxu0 0.0
  %7899 = vmatpush2.msra.mxu0 0.0
  %7900 = vmatprep.subr.mxu0 0.0
  %7901 = vmatpush2.msra.mxu0 0.0
  %7902 = vmatprep.subr.mxu0 0.0
  %7903 = vmatpush2.msra.mxu0 0.0
  %7904 = vmatprep.subr.mxu0 0.0
  %7905 = vmatpush2.msra.mxu0 0.0
  %7906 = vmatprep.subr.mxu0 0.0
  %7907 = vmatpush2.msra.mxu0 0.0
  %7908 = vmatprep.mubr.f32.mxu0 0.0
  %v7909 = vand.u32 %v7379, 4294901760
  %v7910 = vsub.f32 %v7379, %v7909
  %7911 = vmatmul.mubr.f32.gmra.mxu0 %v7910
  %v7912 = vpop.f32.mrf.mxu0
  %v7913 = vadd.f32 %v7743, %v7912
  %v7914 = vpop.f32.mrf.mxu0
  %7915 = vmatprep.mubr.f32.mxu0 0.0
  %v7916 = vand.u32 %v7382, 4294901760
  %v7917 = vsub.f32 %v7382, %v7916
  %7918 = vmatmul.mubr.f32.gmra.mxu0 %v7917
  %v7919 = vpop.f32.mrf.mxu0
  %v7920 = vadd.f32 %v7749, %v7919
  %v7921 = vpop.f32.mrf.mxu0
  %7922 = vmatprep.mubr.f32.mxu0 0.0
  %v7923 = vand.u32 %v7385, 4294901760
  %v7924 = vsub.f32 %v7385, %v7923
  %7925 = vmatmul.mubr.f32.gmra.mxu0 %v7924
  %v7926 = vpop.f32.mrf.mxu0
  %v7927 = vadd.f32 %v7755, %v7926
  %v7928 = vpop.f32.mrf.mxu0
  %7929 = vmatprep.mubr.f32.mxu0 0.0
  %v7930 = vand.u32 %v7388, 4294901760
  %v7931 = vsub.f32 %v7388, %v7930
  %7932 = vmatmul.mubr.f32.gmra.mxu0 %v7931
  %v7933 = vpop.f32.mrf.mxu0
  %v7934 = vadd.f32 %v7761, %v7933
  %v7935 = vpop.f32.mrf.mxu0
  %7936 = vmatprep.mubr.f32.mxu0 0.0
  %v7937 = vand.u32 %v7391, 4294901760
  %v7938 = vsub.f32 %v7391, %v7937
  %7939 = vmatmul.mubr.f32.gmra.mxu0 %v7938
  %v7940 = vpop.f32.mrf.mxu0
  %v7941 = vadd.f32 %v7767, %v7940
  %v7942 = vpop.f32.mrf.mxu0
  %7943 = vmatprep.mubr.f32.mxu0 0.0
  %v7944 = vand.u32 %v7394, 4294901760
  %v7945 = vsub.f32 %v7394, %v7944
  %7946 = vmatmul.mubr.f32.gmra.mxu0 %v7945
  %v7947 = vpop.f32.mrf.mxu0
  %v7948 = vadd.f32 %v7773, %v7947
  %v7949 = vpop.f32.mrf.mxu0
  %7950 = vmatprep.mubr.f32.mxu0 0.0
  %v7951 = vand.u32 %v7397, 4294901760
  %v7952 = vsub.f32 %v7397, %v7951
  %7953 = vmatmul.mubr.f32.gmra.mxu0 %v7952
  %v7954 = vpop.f32.mrf.mxu0
  %v7955 = vadd.f32 %v7779, %v7954
  %v7956 = vpop.f32.mrf.mxu0
  %7957 = vmatprep.mubr.f32.mxu0 0.0
  %v7958 = vand.u32 %v7400, 4294901760
  %v7959 = vsub.f32 %v7400, %v7958
  %7960 = vmatmul.mubr.f32.gmra.mxu0 %v7959
  %v7961 = vpop.f32.mrf.mxu0
  %v7962 = vadd.f32 %v7785, %v7961
  %v7963 = vpop.f32.mrf.mxu0
  %7964 = vmatprep.mubr.f32.mxu0 0.0
  %v7965 = vand.u32 %v7403, 4294901760
  %v7966 = vsub.f32 %v7403, %v7965
  %7967 = vmatmul.mubr.f32.gmra.mxu0 %v7966
  %v7968 = vpop.f32.mrf.mxu0
  %v7969 = vadd.f32 %v7791, %v7968
  %v7970 = vpop.f32.mrf.mxu0
  %7971 = vmatprep.mubr.f32.mxu0 0.0
  %v7972 = vand.u32 %v7406, 4294901760
  %v7973 = vsub.f32 %v7406, %v7972
  %7974 = vmatmul.mubr.f32.gmra.mxu0 %v7973
  %v7975 = vpop.f32.mrf.mxu0
  %v7976 = vadd.f32 %v7797, %v7975
  %v7977 = vpop.f32.mrf.mxu0
  %7978 = vmatprep.mubr.f32.mxu0 0.0
  %v7979 = vand.u32 %v7409, 4294901760
  %v7980 = vsub.f32 %v7409, %v7979
  %7981 = vmatmul.mubr.f32.gmra.mxu0 %v7980
  %v7982 = vpop.f32.mrf.mxu0
  %v7983 = vadd.f32 %v7803, %v7982
  %v7984 = vpop.f32.mrf.mxu0
  %7985 = vmatprep.mubr.f32.mxu0 0.0
  %v7986 = vand.u32 %v7412, 4294901760
  %v7987 = vsub.f32 %v7412, %v7986
  %7988 = vmatmul.mubr.f32.gmra.mxu0 %v7987
  %v7989 = vpop.f32.mrf.mxu0
  %v7990 = vadd.f32 %v7809, %v7989
  %v7991 = vpop.f32.mrf.mxu0
  %7992 = vmatprep.mubr.f32.mxu0 0.0
  %v7993 = vand.u32 %v7415, 4294901760
  %v7994 = vsub.f32 %v7415, %v7993
  %7995 = vmatmul.mubr.f32.gmra.mxu0 %v7994
  %v7996 = vpop.f32.mrf.mxu0
  %v7997 = vadd.f32 %v7815, %v7996
  %v7998 = vpop.f32.mrf.mxu0
  %7999 = vmatprep.mubr.f32.mxu0 0.0
  %v8000 = vand.u32 %v7418, 4294901760
  %v8001 = vsub.f32 %v7418, %v8000
  %8002 = vmatmul.mubr.f32.gmra.mxu0 %v8001
  %v8003 = vpop.f32.mrf.mxu0
  %v8004 = vadd.f32 %v7821, %v8003
  %v8005 = vpop.f32.mrf.mxu0
  %8006 = vmatprep.mubr.f32.mxu0 0.0
  %v8007 = vand.u32 %v7421, 4294901760
  %v8008 = vsub.f32 %v7421, %v8007
  %8009 = vmatmul.mubr.f32.gmra.mxu0 %v8008
  %v8010 = vpop.f32.mrf.mxu0
  %v8011 = vadd.f32 %v7827, %v8010
  %v8012 = vpop.f32.mrf.mxu0
  %8013 = vmatprep.mubr.f32.mxu0 0.0
  %v8014 = vand.u32 %v7424, 4294901760
  %v8015 = vsub.f32 %v7424, %v8014
  %8016 = vmatmul.mubr.f32.gmra.mxu0 %v8015
  %v8017 = vpop.f32.mrf.mxu0
  %v8018 = vadd.f32 %v7833, %v8017
  %v8019 = vpop.f32.mrf.mxu0
  %8020 = vdwg.mxu0
  %8021 = vmatprep.subr.mxu0 0.0
  %8022 = vmatpush1.msra.mxu0 0.0
  %8023 = vmatprep.subr.mxu0 0.0
  %8024 = vmatpush1.msra.mxu0 0.0
  %8025 = vmatprep.subr.mxu0 0.0
  %8026 = vmatpush1.msra.mxu0 0.0
  %8027 = vmatprep.subr.mxu0 0.0
  %8028 = vmatpush1.msra.mxu0 0.0
  %8029 = vmatprep.subr.mxu0 0.0
  %8030 = vmatpush1.msra.mxu0 0.0
  %8031 = vmatprep.subr.mxu0 0.0
  %8032 = vmatpush1.msra.mxu0 0.0
  %8033 = vmatprep.subr.mxu0 0.0
  %8034 = vmatpush1.msra.mxu0 0.0
  %8035 = vmatprep.subr.mxu0 0.0
  %8036 = vmatpush1.msra.mxu0 0.0
  %8037 = vmatprep.subr.mxu0 0.0
  %8038 = vmatpush1.msra.mxu0 0.0
  %8039 = vmatprep.subr.mxu0 0.0
  %8040 = vmatpush1.msra.mxu0 0.0
  %8041 = vmatprep.subr.mxu0 0.0
  %8042 = vmatpush1.msra.mxu0 0.0
  %8043 = vmatprep.subr.mxu0 0.0
  %8044 = vmatpush1.msra.mxu0 0.0
  %8045 = vmatprep.subr.mxu0 0.0
  %v8046 = vand.u32 %v7370, 4294901760
  %8047 = vmatpush1.msra.mxu0 %v8046
  %8048 = vmatprep.subr.mxu0 0.0
  %v8049 = vand.u32 %v7369, 4294901760
  %8050 = vmatpush1.msra.mxu0 %v8049
  %8051 = vmatprep.subr.mxu0 0.0
  %v8052 = vand.u32 %v7368, 4294901760
  %8053 = vmatpush1.msra.mxu0 %v8052
  %8054 = vmatprep.subr.mxu0 0.0
  %v8055 = vand.u32 %v7367, 4294901760
  %8056 = vmatpush1.msra.mxu0 %v8055
  %8057 = vmatprep.subr.mxu0 0.0
  %8058 = vmatpush2.msra.mxu0 0.0
  %8059 = vmatprep.subr.mxu0 0.0
  %8060 = vmatpush2.msra.mxu0 0.0
  %8061 = vmatprep.subr.mxu0 0.0
  %8062 = vmatpush2.msra.mxu0 0.0
  %8063 = vmatprep.subr.mxu0 0.0
  %8064 = vmatpush2.msra.mxu0 0.0
  %8065 = vmatprep.subr.mxu0 0.0
  %8066 = vmatpush2.msra.mxu0 0.0
  %8067 = vmatprep.subr.mxu0 0.0
  %8068 = vmatpush2.msra.mxu0 0.0
  %8069 = vmatprep.subr.mxu0 0.0
  %8070 = vmatpush2.msra.mxu0 0.0
  %8071 = vmatprep.subr.mxu0 0.0
  %8072 = vmatpush2.msra.mxu0 0.0
  %8073 = vmatprep.subr.mxu0 0.0
  %8074 = vmatpush2.msra.mxu0 0.0
  %8075 = vmatprep.subr.mxu0 0.0
  %8076 = vmatpush2.msra.mxu0 0.0
  %8077 = vmatprep.subr.mxu0 0.0
  %8078 = vmatpush2.msra.mxu0 0.0
  %8079 = vmatprep.subr.mxu0 0.0
  %8080 = vmatpush2.msra.mxu0 0.0
  %8081 = vmatprep.subr.mxu0 0.0
  %8082 = vmatpush2.msra.mxu0 0.0
  %8083 = vmatprep.subr.mxu0 0.0
  %8084 = vmatpush2.msra.mxu0 0.0
  %8085 = vmatprep.subr.mxu0 0.0
  %8086 = vmatpush2.msra.mxu0 0.0
  %8087 = vmatprep.subr.mxu0 0.0
  %8088 = vmatpush2.msra.mxu0 0.0
  %8089 = vmatprep.mubr.f32.mxu0 0.0
  %v8090 = vand.u32 %v7379, 4294901760
  %v8091 = vsub.f32 %v7379, %v8090
  %v8092 = vand.u32 %v8091, 4294901760
  %8093 = vmatmul.mubr.f32.gmra.mxu0 %v8092
  %v8094 = vpop.f32.mrf.mxu0
  %v8095 = vadd.f32 %v7913, %v8094
  %v8096 = vpop.f32.mrf.mxu0
  %8097 = vmatprep.mubr.f32.mxu0 0.0
  %v8098 = vand.u32 %v7382, 4294901760
  %v8099 = vsub.f32 %v7382, %v8098
  %v8100 = vand.u32 %v8099, 4294901760
  %8101 = vmatmul.mubr.f32.gmra.mxu0 %v8100
  %v8102 = vpop.f32.mrf.mxu0
  %v8103 = vadd.f32 %v7920, %v8102
  %v8104 = vpop.f32.mrf.mxu0
  %8105 = vmatprep.mubr.f32.mxu0 0.0
  %v8106 = vand.u32 %v7385, 4294901760
  %v8107 = vsub.f32 %v7385, %v8106
  %v8108 = vand.u32 %v8107, 4294901760
  %8109 = vmatmul.mubr.f32.gmra.mxu0 %v8108
  %v8110 = vpop.f32.mrf.mxu0
  %v8111 = vadd.f32 %v7927, %v8110
  %v8112 = vpop.f32.mrf.mxu0
  %8113 = vmatprep.mubr.f32.mxu0 0.0
  %v8114 = vand.u32 %v7388, 4294901760
  %v8115 = vsub.f32 %v7388, %v8114
  %v8116 = vand.u32 %v8115, 4294901760
  %8117 = vmatmul.mubr.f32.gmra.mxu0 %v8116
  %v8118 = vpop.f32.mrf.mxu0
  %v8119 = vadd.f32 %v7934, %v8118
  %v8120 = vpop.f32.mrf.mxu0
  %8121 = vmatprep.mubr.f32.mxu0 0.0
  %v8122 = vand.u32 %v7391, 4294901760
  %v8123 = vsub.f32 %v7391, %v8122
  %v8124 = vand.u32 %v8123, 4294901760
  %8125 = vmatmul.mubr.f32.gmra.mxu0 %v8124
  %v8126 = vpop.f32.mrf.mxu0
  %v8127 = vadd.f32 %v7941, %v8126
  %v8128 = vpop.f32.mrf.mxu0
  %8129 = vmatprep.mubr.f32.mxu0 0.0
  %v8130 = vand.u32 %v7394, 4294901760
  %v8131 = vsub.f32 %v7394, %v8130
  %v8132 = vand.u32 %v8131, 4294901760
  %8133 = vmatmul.mubr.f32.gmra.mxu0 %v8132
  %v8134 = vpop.f32.mrf.mxu0
  %v8135 = vadd.f32 %v7948, %v8134
  %v8136 = vpop.f32.mrf.mxu0
  %8137 = vmatprep.mubr.f32.mxu0 0.0
  %v8138 = vand.u32 %v7397, 4294901760
  %v8139 = vsub.f32 %v7397, %v8138
  %v8140 = vand.u32 %v8139, 4294901760
  %8141 = vmatmul.mubr.f32.gmra.mxu0 %v8140
  %v8142 = vpop.f32.mrf.mxu0
  %v8143 = vadd.f32 %v7955, %v8142
  %v8144 = vpop.f32.mrf.mxu0
  %8145 = vmatprep.mubr.f32.mxu0 0.0
  %v8146 = vand.u32 %v7400, 4294901760
  %v8147 = vsub.f32 %v7400, %v8146
  %v8148 = vand.u32 %v8147, 4294901760
  %8149 = vmatmul.mubr.f32.gmra.mxu0 %v8148
  %v8150 = vpop.f32.mrf.mxu0
  %v8151 = vadd.f32 %v7962, %v8150
  %v8152 = vpop.f32.mrf.mxu0
  %8153 = vmatprep.mubr.f32.mxu0 0.0
  %v8154 = vand.u32 %v7403, 4294901760
  %v8155 = vsub.f32 %v7403, %v8154
  %v8156 = vand.u32 %v8155, 4294901760
  %8157 = vmatmul.mubr.f32.gmra.mxu0 %v8156
  %v8158 = vpop.f32.mrf.mxu0
  %v8159 = vadd.f32 %v7969, %v8158
  %v8160 = vpop.f32.mrf.mxu0
  %8161 = vmatprep.mubr.f32.mxu0 0.0
  %v8162 = vand.u32 %v7406, 4294901760
  %v8163 = vsub.f32 %v7406, %v8162
  %v8164 = vand.u32 %v8163, 4294901760
  %8165 = vmatmul.mubr.f32.gmra.mxu0 %v8164
  %v8166 = vpop.f32.mrf.mxu0
  %v8167 = vadd.f32 %v7976, %v8166
  %v8168 = vpop.f32.mrf.mxu0
  %8169 = vmatprep.mubr.f32.mxu0 0.0
  %v8170 = vand.u32 %v7409, 4294901760
  %v8171 = vsub.f32 %v7409, %v8170
  %v8172 = vand.u32 %v8171, 4294901760
  %8173 = vmatmul.mubr.f32.gmra.mxu0 %v8172
  %v8174 = vpop.f32.mrf.mxu0
  %v8175 = vadd.f32 %v7983, %v8174
  %v8176 = vpop.f32.mrf.mxu0
  %8177 = vmatprep.mubr.f32.mxu0 0.0
  %v8178 = vand.u32 %v7412, 4294901760
  %v8179 = vsub.f32 %v7412, %v8178
  %v8180 = vand.u32 %v8179, 4294901760
  %8181 = vmatmul.mubr.f32.gmra.mxu0 %v8180
  %v8182 = vpop.f32.mrf.mxu0
  %v8183 = vadd.f32 %v7990, %v8182
  %v8184 = vpop.f32.mrf.mxu0
  %8185 = vmatprep.mubr.f32.mxu0 0.0
  %v8186 = vand.u32 %v7415, 4294901760
  %v8187 = vsub.f32 %v7415, %v8186
  %v8188 = vand.u32 %v8187, 4294901760
  %8189 = vmatmul.mubr.f32.gmra.mxu0 %v8188
  %v8190 = vpop.f32.mrf.mxu0
  %v8191 = vadd.f32 %v7997, %v8190
  %v8192 = vpop.f32.mrf.mxu0
  %8193 = vmatprep.mubr.f32.mxu0 0.0
  %v8194 = vand.u32 %v7418, 4294901760
  %v8195 = vsub.f32 %v7418, %v8194
  %v8196 = vand.u32 %v8195, 4294901760
  %8197 = vmatmul.mubr.f32.gmra.mxu0 %v8196
  %v8198 = vpop.f32.mrf.mxu0
  %v8199 = vadd.f32 %v8004, %v8198
  %v8200 = vpop.f32.mrf.mxu0
  %8201 = vmatprep.mubr.f32.mxu0 0.0
  %v8202 = vand.u32 %v7421, 4294901760
  %v8203 = vsub.f32 %v7421, %v8202
  %v8204 = vand.u32 %v8203, 4294901760
  %8205 = vmatmul.mubr.f32.gmra.mxu0 %v8204
  %v8206 = vpop.f32.mrf.mxu0
  %v8207 = vadd.f32 %v8011, %v8206
  %v8208 = vpop.f32.mrf.mxu0
  %8209 = vmatprep.mubr.f32.mxu0 0.0
  %v8210 = vand.u32 %v7424, 4294901760
  %v8211 = vsub.f32 %v7424, %v8210
  %v8212 = vand.u32 %v8211, 4294901760
  %8213 = vmatmul.mubr.f32.gmra.mxu0 %v8212
  %v8214 = vpop.f32.mrf.mxu0
  %v8215 = vadd.f32 %v8018, %v8214
  %v8216 = vpop.f32.mrf.mxu0
  %8217 = vdwg.mxu0
  %8218 = vmatprep.subr.mxu0 0.0
  %8219 = vmatpush1.msra.mxu0 0.0
  %8220 = vmatprep.subr.mxu0 0.0
  %8221 = vmatpush1.msra.mxu0 0.0
  %8222 = vmatprep.subr.mxu0 0.0
  %8223 = vmatpush1.msra.mxu0 0.0
  %8224 = vmatprep.subr.mxu0 0.0
  %8225 = vmatpush1.msra.mxu0 0.0
  %8226 = vmatprep.subr.mxu0 0.0
  %8227 = vmatpush1.msra.mxu0 0.0
  %8228 = vmatprep.subr.mxu0 0.0
  %8229 = vmatpush1.msra.mxu0 0.0
  %8230 = vmatprep.subr.mxu0 0.0
  %8231 = vmatpush1.msra.mxu0 0.0
  %8232 = vmatprep.subr.mxu0 0.0
  %8233 = vmatpush1.msra.mxu0 0.0
  %8234 = vmatprep.subr.mxu0 0.0
  %8235 = vmatpush1.msra.mxu0 0.0
  %8236 = vmatprep.subr.mxu0 0.0
  %8237 = vmatpush1.msra.mxu0 0.0
  %8238 = vmatprep.subr.mxu0 0.0
  %8239 = vmatpush1.msra.mxu0 0.0
  %8240 = vmatprep.subr.mxu0 0.0
  %8241 = vmatpush1.msra.mxu0 0.0
  %8242 = vmatprep.subr.mxu0 0.0
  %v8243 = vand.u32 %v7370, 4294901760
  %v8244 = vsub.f32 %v7370, %v8243
  %v8245 = vand.u32 %v8244, 4294901760
  %8246 = vmatpush1.msra.mxu0 %v8245
  %8247 = vmatprep.subr.mxu0 0.0
  %v8248 = vand.u32 %v7369, 4294901760
  %v8249 = vsub.f32 %v7369, %v8248
  %v8250 = vand.u32 %v8249, 4294901760
  %8251 = vmatpush1.msra.mxu0 %v8250
  %8252 = vmatprep.subr.mxu0 0.0
  %v8253 = vand.u32 %v7368, 4294901760
  %v8254 = vsub.f32 %v7368, %v8253
  %v8255 = vand.u32 %v8254, 4294901760
  %8256 = vmatpush1.msra.mxu0 %v8255
  %8257 = vmatprep.subr.mxu0 0.0
  %v8258 = vand.u32 %v7367, 4294901760
  %v8259 = vsub.f32 %v7367, %v8258
  %v8260 = vand.u32 %v8259, 4294901760
  %8261 = vmatpush1.msra.mxu0 %v8260
  %8262 = vmatprep.subr.mxu0 0.0
  %8263 = vmatpush2.msra.mxu0 0.0
  %8264 = vmatprep.subr.mxu0 0.0
  %8265 = vmatpush2.msra.mxu0 0.0
  %8266 = vmatprep.subr.mxu0 0.0
  %8267 = vmatpush2.msra.mxu0 0.0
  %8268 = vmatprep.subr.mxu0 0.0
  %8269 = vmatpush2.msra.mxu0 0.0
  %8270 = vmatprep.subr.mxu0 0.0
  %8271 = vmatpush2.msra.mxu0 0.0
  %8272 = vmatprep.subr.mxu0 0.0
  %8273 = vmatpush2.msra.mxu0 0.0
  %8274 = vmatprep.subr.mxu0 0.0
  %8275 = vmatpush2.msra.mxu0 0.0
  %8276 = vmatprep.subr.mxu0 0.0
  %8277 = vmatpush2.msra.mxu0 0.0
  %8278 = vmatprep.subr.mxu0 0.0
  %8279 = vmatpush2.msra.mxu0 0.0
  %8280 = vmatprep.subr.mxu0 0.0
  %8281 = vmatpush2.msra.mxu0 0.0
  %8282 = vmatprep.subr.mxu0 0.0
  %8283 = vmatpush2.msra.mxu0 0.0
  %8284 = vmatprep.subr.mxu0 0.0
  %8285 = vmatpush2.msra.mxu0 0.0
  %8286 = vmatprep.subr.mxu0 0.0
  %8287 = vmatpush2.msra.mxu0 0.0
  %8288 = vmatprep.subr.mxu0 0.0
  %8289 = vmatpush2.msra.mxu0 0.0
  %8290 = vmatprep.subr.mxu0 0.0
  %8291 = vmatpush2.msra.mxu0 0.0
  %8292 = vmatprep.subr.mxu0 0.0
  %8293 = vmatpush2.msra.mxu0 0.0
  %8294 = vmatprep.mubr.f32.mxu0 0.0
  %v8295 = vand.u32 %v7379, 4294901760
  %8296 = vmatmul.mubr.f32.gmra.mxu0 %v8295
  %v8297 = vpop.f32.mrf.mxu0
  %v8298 = vadd.f32 %v8095, %v8297
  %v8299 = vpop.f32.mrf.mxu0
  %8300 = vmatprep.mubr.f32.mxu0 0.0
  %v8301 = vand.u32 %v7382, 4294901760
  %8302 = vmatmul.mubr.f32.gmra.mxu0 %v8301
  %v8303 = vpop.f32.mrf.mxu0
  %v8304 = vadd.f32 %v8103, %v8303
  %v8305 = vpop.f32.mrf.mxu0
  %8306 = vmatprep.mubr.f32.mxu0 0.0
  %v8307 = vand.u32 %v7385, 4294901760
  %8308 = vmatmul.mubr.f32.gmra.mxu0 %v8307
  %v8309 = vpop.f32.mrf.mxu0
  %v8310 = vadd.f32 %v8111, %v8309
  %v8311 = vpop.f32.mrf.mxu0
  %8312 = vmatprep.mubr.f32.mxu0 0.0
  %v8313 = vand.u32 %v7388, 4294901760
  %8314 = vmatmul.mubr.f32.gmra.mxu0 %v8313
  %v8315 = vpop.f32.mrf.mxu0
  %v8316 = vadd.f32 %v8119, %v8315
  %v8317 = vpop.f32.mrf.mxu0
  %8318 = vmatprep.mubr.f32.mxu0 0.0
  %v8319 = vand.u32 %v7391, 4294901760
  %8320 = vmatmul.mubr.f32.gmra.mxu0 %v8319
  %v8321 = vpop.f32.mrf.mxu0
  %v8322 = vadd.f32 %v8127, %v8321
  %v8323 = vpop.f32.mrf.mxu0
  %8324 = vmatprep.mubr.f32.mxu0 0.0
  %v8325 = vand.u32 %v7394, 4294901760
  %8326 = vmatmul.mubr.f32.gmra.mxu0 %v8325
  %v8327 = vpop.f32.mrf.mxu0
  %v8328 = vadd.f32 %v8135, %v8327
  %v8329 = vpop.f32.mrf.mxu0
  %8330 = vmatprep.mubr.f32.mxu0 0.0
  %v8331 = vand.u32 %v7397, 4294901760
  %8332 = vmatmul.mubr.f32.gmra.mxu0 %v8331
  %v8333 = vpop.f32.mrf.mxu0
  %v8334 = vadd.f32 %v8143, %v8333
  %v8335 = vpop.f32.mrf.mxu0
  %8336 = vmatprep.mubr.f32.mxu0 0.0
  %v8337 = vand.u32 %v7400, 4294901760
  %8338 = vmatmul.mubr.f32.gmra.mxu0 %v8337
  %v8339 = vpop.f32.mrf.mxu0
  %v8340 = vadd.f32 %v8151, %v8339
  %v8341 = vpop.f32.mrf.mxu0
  %8342 = vmatprep.mubr.f32.mxu0 0.0
  %v8343 = vand.u32 %v7403, 4294901760
  %8344 = vmatmul.mubr.f32.gmra.mxu0 %v8343
  %v8345 = vpop.f32.mrf.mxu0
  %v8346 = vadd.f32 %v8159, %v8345
  %v8347 = vpop.f32.mrf.mxu0
  %8348 = vmatprep.mubr.f32.mxu0 0.0
  %v8349 = vand.u32 %v7406, 4294901760
  %8350 = vmatmul.mubr.f32.gmra.mxu0 %v8349
  %v8351 = vpop.f32.mrf.mxu0
  %v8352 = vadd.f32 %v8167, %v8351
  %v8353 = vpop.f32.mrf.mxu0
  %8354 = vmatprep.mubr.f32.mxu0 0.0
  %v8355 = vand.u32 %v7409, 4294901760
  %8356 = vmatmul.mubr.f32.gmra.mxu0 %v8355
  %v8357 = vpop.f32.mrf.mxu0
  %v8358 = vadd.f32 %v8175, %v8357
  %v8359 = vpop.f32.mrf.mxu0
  %8360 = vmatprep.mubr.f32.mxu0 0.0
  %v8361 = vand.u32 %v7412, 4294901760
  %8362 = vmatmul.mubr.f32.gmra.mxu0 %v8361
  %v8363 = vpop.f32.mrf.mxu0
  %v8364 = vadd.f32 %v8183, %v8363
  %v8365 = vpop.f32.mrf.mxu0
  %8366 = vmatprep.mubr.f32.mxu0 0.0
  %v8367 = vand.u32 %v7415, 4294901760
  %8368 = vmatmul.mubr.f32.gmra.mxu0 %v8367
  %v8369 = vpop.f32.mrf.mxu0
  %v8370 = vadd.f32 %v8191, %v8369
  %v8371 = vpop.f32.mrf.mxu0
  %8372 = vmatprep.mubr.f32.mxu0 0.0
  %v8373 = vand.u32 %v7418, 4294901760
  %8374 = vmatmul.mubr.f32.gmra.mxu0 %v8373
  %v8375 = vpop.f32.mrf.mxu0
  %v8376 = vadd.f32 %v8199, %v8375
  %v8377 = vpop.f32.mrf.mxu0
  %8378 = vmatprep.mubr.f32.mxu0 0.0
  %v8379 = vand.u32 %v7421, 4294901760
  %8380 = vmatmul.mubr.f32.gmra.mxu0 %v8379
  %v8381 = vpop.f32.mrf.mxu0
  %v8382 = vadd.f32 %v8207, %v8381
  %v8383 = vpop.f32.mrf.mxu0
  %8384 = vmatprep.mubr.f32.mxu0 0.0
  %v8385 = vand.u32 %v7424, 4294901760
  %8386 = vmatmul.mubr.f32.gmra.mxu0 %v8385
  %v8387 = vpop.f32.mrf.mxu0
  %v8388 = vadd.f32 %v8215, %v8387
  %v8389 = vpop.f32.mrf.mxu0
  %8390 = vdwg.mxu0
  %8391 = vmatprep.subr.mxu0 0.0
  %8392 = vmatpush1.msra.mxu0 0.0
  %8393 = vmatprep.subr.mxu0 0.0
  %8394 = vmatpush1.msra.mxu0 0.0
  %8395 = vmatprep.subr.mxu0 0.0
  %8396 = vmatpush1.msra.mxu0 0.0
  %8397 = vmatprep.subr.mxu0 0.0
  %8398 = vmatpush1.msra.mxu0 0.0
  %8399 = vmatprep.subr.mxu0 0.0
  %8400 = vmatpush1.msra.mxu0 0.0
  %8401 = vmatprep.subr.mxu0 0.0
  %8402 = vmatpush1.msra.mxu0 0.0
  %8403 = vmatprep.subr.mxu0 0.0
  %8404 = vmatpush1.msra.mxu0 0.0
  %8405 = vmatprep.subr.mxu0 0.0
  %8406 = vmatpush1.msra.mxu0 0.0
  %8407 = vmatprep.subr.mxu0 0.0
  %8408 = vmatpush1.msra.mxu0 0.0
  %8409 = vmatprep.subr.mxu0 0.0
  %8410 = vmatpush1.msra.mxu0 0.0
  %8411 = vmatprep.subr.mxu0 0.0
  %8412 = vmatpush1.msra.mxu0 0.0
  %8413 = vmatprep.subr.mxu0 0.0
  %8414 = vmatpush1.msra.mxu0 0.0
  %8415 = vmatprep.subr.mxu0 0.0
  %v8416 = vand.u32 %v7370, 4294901760
  %8417 = vmatpush1.msra.mxu0 %v8416
  %8418 = vmatprep.subr.mxu0 0.0
  %v8419 = vand.u32 %v7369, 4294901760
  %8420 = vmatpush1.msra.mxu0 %v8419
  %8421 = vmatprep.subr.mxu0 0.0
  %v8422 = vand.u32 %v7368, 4294901760
  %8423 = vmatpush1.msra.mxu0 %v8422
  %8424 = vmatprep.subr.mxu0 0.0
  %v8425 = vand.u32 %v7367, 4294901760
  %8426 = vmatpush1.msra.mxu0 %v8425
  %8427 = vmatprep.subr.mxu0 0.0
  %8428 = vmatpush2.msra.mxu0 0.0
  %8429 = vmatprep.subr.mxu0 0.0
  %8430 = vmatpush2.msra.mxu0 0.0
  %8431 = vmatprep.subr.mxu0 0.0
  %8432 = vmatpush2.msra.mxu0 0.0
  %8433 = vmatprep.subr.mxu0 0.0
  %8434 = vmatpush2.msra.mxu0 0.0
  %8435 = vmatprep.subr.mxu0 0.0
  %8436 = vmatpush2.msra.mxu0 0.0
  %8437 = vmatprep.subr.mxu0 0.0
  %8438 = vmatpush2.msra.mxu0 0.0
  %8439 = vmatprep.subr.mxu0 0.0
  %8440 = vmatpush2.msra.mxu0 0.0
  %8441 = vmatprep.subr.mxu0 0.0
  %8442 = vmatpush2.msra.mxu0 0.0
  %8443 = vmatprep.subr.mxu0 0.0
  %8444 = vmatpush2.msra.mxu0 0.0
  %8445 = vmatprep.subr.mxu0 0.0
  %8446 = vmatpush2.msra.mxu0 0.0
  %8447 = vmatprep.subr.mxu0 0.0
  %8448 = vmatpush2.msra.mxu0 0.0
  %8449 = vmatprep.subr.mxu0 0.0
  %8450 = vmatpush2.msra.mxu0 0.0
  %8451 = vmatprep.subr.mxu0 0.0
  %8452 = vmatpush2.msra.mxu0 0.0
  %8453 = vmatprep.subr.mxu0 0.0
  %8454 = vmatpush2.msra.mxu0 0.0
  %8455 = vmatprep.subr.mxu0 0.0
  %8456 = vmatpush2.msra.mxu0 0.0
  %8457 = vmatprep.subr.mxu0 0.0
  %8458 = vmatpush2.msra.mxu0 0.0
  %8459 = vmatprep.mubr.f32.mxu0 0.0
  %v8460 = vand.u32 %v7379, 4294901760
  %8461 = vmatmul.mubr.f32.gmra.mxu0 %v8460
  %v8462 = vpop.f32.mrf.mxu0
  %v8463 = vadd.f32 %v8298, %v8462
  %v8464 = vpop.f32.mrf.mxu0
  %8465 = vmatprep.mubr.f32.mxu0 0.0
  %v8466 = vand.u32 %v7382, 4294901760
  %8467 = vmatmul.mubr.f32.gmra.mxu0 %v8466
  %v8468 = vpop.f32.mrf.mxu0
  %v8469 = vadd.f32 %v8304, %v8468
  %v8470 = vpop.f32.mrf.mxu0
  %8471 = vmatprep.mubr.f32.mxu0 0.0
  %v8472 = vand.u32 %v7385, 4294901760
  %8473 = vmatmul.mubr.f32.gmra.mxu0 %v8472
  %v8474 = vpop.f32.mrf.mxu0
  %v8475 = vadd.f32 %v8310, %v8474
  %v8476 = vpop.f32.mrf.mxu0
  %8477 = vmatprep.mubr.f32.mxu0 0.0
  %v8478 = vand.u32 %v7388, 4294901760
  %8479 = vmatmul.mubr.f32.gmra.mxu0 %v8478
  %v8480 = vpop.f32.mrf.mxu0
  %v8481 = vadd.f32 %v8316, %v8480
  %v8482 = vpop.f32.mrf.mxu0
  %8483 = vmatprep.mubr.f32.mxu0 0.0
  %v8484 = vand.u32 %v7391, 4294901760
  %8485 = vmatmul.mubr.f32.gmra.mxu0 %v8484
  %v8486 = vpop.f32.mrf.mxu0
  %v8487 = vadd.f32 %v8322, %v8486
  %v8488 = vpop.f32.mrf.mxu0
  %8489 = vmatprep.mubr.f32.mxu0 0.0
  %v8490 = vand.u32 %v7394, 4294901760
  %8491 = vmatmul.mubr.f32.gmra.mxu0 %v8490
  %v8492 = vpop.f32.mrf.mxu0
  %v8493 = vadd.f32 %v8328, %v8492
  %v8494 = vpop.f32.mrf.mxu0
  %8495 = vmatprep.mubr.f32.mxu0 0.0
  %v8496 = vand.u32 %v7397, 4294901760
  %8497 = vmatmul.mubr.f32.gmra.mxu0 %v8496
  %v8498 = vpop.f32.mrf.mxu0
  %v8499 = vadd.f32 %v8334, %v8498
  %v8500 = vpop.f32.mrf.mxu0
  %8501 = vmatprep.mubr.f32.mxu0 0.0
  %v8502 = vand.u32 %v7400, 4294901760
  %8503 = vmatmul.mubr.f32.gmra.mxu0 %v8502
  %v8504 = vpop.f32.mrf.mxu0
  %v8505 = vadd.f32 %v8340, %v8504
  %v8506 = vpop.f32.mrf.mxu0
  %8507 = vmatprep.mubr.f32.mxu0 0.0
  %v8508 = vand.u32 %v7403, 4294901760
  %8509 = vmatmul.mubr.f32.gmra.mxu0 %v8508
  %v8510 = vpop.f32.mrf.mxu0
  %v8511 = vadd.f32 %v8346, %v8510
  %v8512 = vpop.f32.mrf.mxu0
  %8513 = vmatprep.mubr.f32.mxu0 0.0
  %v8514 = vand.u32 %v7406, 4294901760
  %8515 = vmatmul.mubr.f32.gmra.mxu0 %v8514
  %v8516 = vpop.f32.mrf.mxu0
  %v8517 = vadd.f32 %v8352, %v8516
  %v8518 = vpop.f32.mrf.mxu0
  %8519 = vmatprep.mubr.f32.mxu0 0.0
  %v8520 = vand.u32 %v7409, 4294901760
  %8521 = vmatmul.mubr.f32.gmra.mxu0 %v8520
  %v8522 = vpop.f32.mrf.mxu0
  %v8523 = vadd.f32 %v8358, %v8522
  %v8524 = vpop.f32.mrf.mxu0
  %8525 = vmatprep.mubr.f32.mxu0 0.0
  %v8526 = vand.u32 %v7412, 4294901760
  %8527 = vmatmul.mubr.f32.gmra.mxu0 %v8526
  %v8528 = vpop.f32.mrf.mxu0
  %v8529 = vadd.f32 %v8364, %v8528
  %v8530 = vpop.f32.mrf.mxu0
  %8531 = vmatprep.mubr.f32.mxu0 0.0
  %v8532 = vand.u32 %v7415, 4294901760
  %8533 = vmatmul.mubr.f32.gmra.mxu0 %v8532
  %v8534 = vpop.f32.mrf.mxu0
  %v8535 = vadd.f32 %v8370, %v8534
  %v8536 = vpop.f32.mrf.mxu0
  %8537 = vmatprep.mubr.f32.mxu0 0.0
  %v8538 = vand.u32 %v7418, 4294901760
  %8539 = vmatmul.mubr.f32.gmra.mxu0 %v8538
  %v8540 = vpop.f32.mrf.mxu0
  %v8541 = vadd.f32 %v8376, %v8540
  %v8542 = vpop.f32.mrf.mxu0
  %8543 = vmatprep.mubr.f32.mxu0 0.0
  %v8544 = vand.u32 %v7421, 4294901760
  %8545 = vmatmul.mubr.f32.gmra.mxu0 %v8544
  %v8546 = vpop.f32.mrf.mxu0
  %v8547 = vadd.f32 %v8382, %v8546
  %v8548 = vpop.f32.mrf.mxu0
  %8549 = vmatprep.mubr.f32.mxu0 0.0
  %v8550 = vand.u32 %v7424, 4294901760
  %8551 = vmatmul.mubr.f32.gmra.mxu0 %v8550
  %v8552 = vpop.f32.mrf.mxu0
  %v8553 = vadd.f32 %v8388, %v8552
  %v8554 = vpop.f32.mrf.mxu0
  %8555 = vdwg.mxu0
  %8556 = vst.msk [vmem:[%s22] sm:$0xff] %vm110, %v8463
  %8557 = vst.msk [vmem:[%s22 + $0x8] sm:$0xff] %vm110, %v8469
  %8558 = vst.msk [vmem:[%s22 + $0x10] sm:$0xff] %vm110, %v8475
  %8559 = vst.msk [vmem:[%s22 + $0x18] sm:$0xff] %vm110, %v8481
  %8560 = vst.msk [vmem:[%s22 + $0x20] sm:$0xff] %vm110, %v8487
  %8561 = vst.msk [vmem:[%s22 + $0x28] sm:$0xff] %vm110, %v8493
  %8562 = vst.msk [vmem:[%s22 + $0x30] sm:$0xff] %vm110, %v8499
  %8563 = vst.msk [vmem:[%s22 + $0x38] sm:$0xff] %vm110, %v8505
  %8564 = vst.msk [vmem:[%s22 + $0x40] sm:$0xff] %vm110, %v8511
  %8565 = vst.msk [vmem:[%s22 + $0x48] sm:$0xff] %vm110, %v8517
  %8566 = vst.msk [vmem:[%s22 + $0x50] sm:$0xff] %vm110, %v8523
  %8567 = vst.msk [vmem:[%s22 + $0x58] sm:$0xff] %vm110, %v8529
  %8568 = vst.msk [vmem:[%s22 + $0x60] sm:$0xff] %vm110, %v8535
  %8569 = vst.msk [vmem:[%s22 + $0x68] sm:$0xff] %vm110, %v8541
  %8570 = vst.msk [vmem:[%s22 + $0x70] sm:$0xff] %vm110, %v8547
  %8571 = vst.msk [vmem:[%s22 + $0x78] sm:$0xff] %vm110, %v8553
  %8572 = vst.msk [vmem:[%s23] sm:$0xff] %vm110, %v4181
  %8573 = vst.msk [vmem:[%s23 + $0x8] sm:$0xff] %vm110, %v4187
  %8574 = vst.msk [vmem:[%s23 + $0x10] sm:$0xff] %vm110, %v4193
  %8575 = vst.msk [vmem:[%s23 + $0x18] sm:$0xff] %vm110, %v4199
  %8576 = vst.msk [vmem:[%s23 + $0x20] sm:$0xff] %vm110, %v4205
  %8577 = vst.msk [vmem:[%s23 + $0x28] sm:$0xff] %vm110, %v4211
  %8578 = vst.msk [vmem:[%s23 + $0x30] sm:$0xff] %vm110, %v4217
  %8579 = vst.msk [vmem:[%s23 + $0x38] sm:$0xff] %vm110, %v4223
  %8580 = vst.msk [vmem:[%s23 + $0x40] sm:$0xff] %vm110, %v4229
  %8581 = vst.msk [vmem:[%s23 + $0x48] sm:$0xff] %vm110, %v4235
  %8582 = vst.msk [vmem:[%s23 + $0x50] sm:$0xff] %vm110, %v4241
  %8583 = vst.msk [vmem:[%s23 + $0x58] sm:$0xff] %vm110, %v4247
  %8584 = vst.msk [vmem:[%s23 + $0x60] sm:$0xff] %vm110, %v4253
  %8585 = vst.msk [vmem:[%s23 + $0x68] sm:$0xff] %vm110, %v4259
  %8586 = vst.msk [vmem:[%s23 + $0x70] sm:$0xff] %vm110, %v4265
  %8587 = vst.msk [vmem:[%s23 + $0x78] sm:$0xff] %vm110, %v4271
  // Predicated region
  $region90: #{_fused_forward.1} parent=0 // pred_check
    _
  $region91: #{_fused_forward.1} parent=0 // pred_check_branch
    %8589 = sbr.rel (0) target = $region93
  $region92: #{_fused_forward.1} parent=0 // pred_region
    _
  $region93: #{_fused_forward.1} parent=0 // pred_fallthru
    _
  // Predicated region
  $region94: #{_fused_forward.1} parent=0 // pred_check
    _
  $region95: #{_fused_forward.1} parent=0 // pred_check_branch
    %8591 = sbr.rel (0) target = $region97
  $region96: #{_fused_forward.1} parent=0 // pred_region
    _
  $region97: #{_fused_forward.1} parent=0 // pred_fallthru
    _
  // Predicated region
  $region98: #{_fused_forward.1} parent=0 // pred_check
    _
  $region99: #{_fused_forward.1} parent=0 // pred_check_branch
    %8593 = sbr.rel (0) target = $region101
  $region100: #{_fused_forward.1} parent=0 // pred_region
    _
  $region101: #{_fused_forward.1} parent=0 // pred_fallthru
    _
  // Predicated region
  $region102: #{_fused_forward.1} parent=0 // pred_check
    _
  $region103: #{_fused_forward.1} parent=0 // pred_check_branch
    %8595 = sbr.rel (0) target = $region105
  $region104: #{_fused_forward.1} parent=0 // pred_region
    _
  $region105: #{_fused_forward.1} parent=0 // pred_fallthru
    _

</llo_original>
